<compile_context>
chip_gen: v6e
topology: v6e:2x2x1
jax: 0.10.0
libtpu: 0.0.40
codegen_flags: <defaults>
</compile_context>

<pallas_src>
import functools

import jax
import jax.numpy as jnp
from jax.experimental import pallas as pl
from jax.experimental.pallas import tpu as pltpu


# ----------------------------------------------------------------------------
# Fused forward kernel
# ----------------------------------------------------------------------------
def encdec_kernel(enc_x_ref, dec_x_ref,
                  enc_w_ih_ref, enc_w_hh_ref, enc_b_ref,
                  dec_w_ih_ref, dec_w_hh_ref, dec_b_ref,
                  fc_w_ref, fc_b_ref,
                  out_ref,
                  *, T_enc, T_dec, B, H, L, F):
    """Whole EncoderDecoderModel forward on VMEM-resident data.

    enc_x_ref/dec_x_ref : (T*B, F)     time-major flattened embedded features
    *_w_ih_ref          : (L, Imax, 8H)  [W_ih_fwd^T | W_ih_bwd^T], zero-padded rows
    *_w_hh_ref          : (L, 2H, 8H)    block-diag([W_hh_fwd^T, W_hh_bwd^T])
    *_b_ref             : (L, 1, 8H)     [b_fwd | b_bwd]  (b_ih + b_hh, ifgo order)
    fc_w_ref            : (1, 2H)        fused decoder.fc o model.fc weight
    fc_b_ref            : (1, 1)         fused bias
    out_ref             : (T_dec*B, 1)
    """

    def cell_update(gates, c):
        # Full-tile activations (spare EUP slots), slice afterwards.
        sig = jax.nn.sigmoid(gates)
        th = jnp.tanh(gates)
        i_g = sig[:, 0 * H:1 * H]
        f_g = sig[:, 1 * H:2 * H]
        g_g = th[:, 2 * H:3 * H]
        o_g = sig[:, 3 * H:4 * H]
        c_new = f_g * c + i_g * g_g
        h_new = o_g * jnp.tanh(c_new)
        return h_new, c_new

    def bidir_stack(x0, T, w_ih_ref, w_hh_ref, b_ref, init_states):
        """Bidirectional L-layer LSTM stack with fwd/bwd fused per step.

        x0: (T*B, F_in) value.  Returns (seq_out (T*B, 2H),
        [(hT, cT)] * 2L in torch order: l0-fwd, l0-bwd, l1-fwd, l1-bwd, ...).
        """
        finals = []
        layer_in = x0
        for layer in range(L):
            in_sz = F if layer == 0 else 2 * H
            w_ih = w_ih_ref[layer, :in_sz, :]    # (in_sz, 8H)  static slice
            w_hh = w_hh_ref[layer]               # (2H, 8H)     block-diagonal
            bias = b_ref[layer]                  # (1, 8H)

            # Hoisted input projection: one MXU matmul for all T steps & dirs.
            proj = jnp.dot(layer_in, w_ih,
                           preferred_element_type=jnp.float32) + bias

            h_f, c_f = init_states[2 * layer]        # (B, H) each
            h_b, c_b = init_states[2 * layer + 1]
            hs_f = [None] * T
            hs_b = [None] * T
            for s in range(T):                   # static unroll over time
                tf = s                           # forward reads time tf
                tb = T - 1 - s                   # backward reads time tb
                h_cat = jnp.concatenate([h_f, h_b], axis=-1)        # (B, 2H)
                rec = jnp.dot(h_cat, w_hh,
                              preferred_element_type=jnp.float32)   # (B, 8H)
                g_f = proj[tf * B:(tf + 1) * B, :4 * H] + rec[:, :4 * H]
                g_b = proj[tb * B:(tb + 1) * B, 4 * H:] + rec[:, 4 * H:]
                h_f, c_f = cell_update(g_f, c_f)
                h_b, c_b = cell_update(g_b, c_b)
                hs_f[tf] = h_f
                hs_b[tb] = h_b
            finals.append((h_f, c_f))
            finals.append((h_b, c_b))
            layer_in = jnp.concatenate(
                [jnp.concatenate(hs_f, axis=0),
                 jnp.concatenate(hs_b, axis=0)], axis=-1)            # (T*B, 2H)
        return layer_in, finals

    zeros = jnp.zeros((B, H), jnp.float32)
    zero_states = [(zeros, zeros)] * (2 * L)

    # ---- Encoder: only the final (hidden, cell) states are consumed. ----
    _, enc_states = bidir_stack(enc_x_ref[...], T_enc,
                                enc_w_ih_ref, enc_w_hh_ref, enc_b_ref,
                                zero_states)

    # ---- Decoder, seeded with the encoder state. ----
    dec_seq, _ = bidir_stack(dec_x_ref[...], T_dec,
                             dec_w_ih_ref, dec_w_hh_ref, dec_b_ref,
                             enc_states)                              # (T_dec*B, 2H)

    # ---- Fused decoder.fc o model.fc (no nonlinearity in between). ----
    # output_size == 1 -> lane reduction instead of an N=1 matmul.
    out_ref[...] = (jnp.sum(dec_seq * fc_w_ref[...], axis=-1, keepdims=True)
                    + fc_b_ref[...])


# ----------------------------------------------------------------------------
# Parameter construction (deterministic, mirrors nn.Module shapes)
# ----------------------------------------------------------------------------
def pack_lstm_params(layer_params, feat, H):
    """Pack raw per-layer/dir params into direction-fused arrays.

    Returns w_ih (L, Imax, 8H), w_hh (L, 2H, 8H) block-diag, bias (L, 1, 8H).
    """
    L = len(layer_params)
    i_max = max(feat, 2 * H)
    w_ih_s, w_hh_s, b_s = [], [], []
    for layer in range(L):
        in_sz = feat if layer == 0 else 2 * H
        wf_ih, wf_hh, bf_ih, bf_hh = layer_params[layer][0]
        wb_ih, wb_hh, bb_ih, bb_hh = layer_params[layer][1]
        w_ih = jnp.concatenate([wf_ih.T, wb_ih.T], axis=1)        # (in_sz, 8H)
        w_ih = jnp.pad(w_ih, ((0, i_max - in_sz), (0, 0)))
        w_hh = jnp.zeros((2 * H, 8 * H), jnp.float32)
        w_hh = w_hh.at[:H, :4 * H].set(wf_hh.T)
        w_hh = w_hh.at[H:, 4 * H:].set(wb_hh.T)
        bias = jnp.concatenate([bf_ih + bf_hh, bb_ih + bb_hh]).reshape(1, -1)
        w_ih_s.append(w_ih)
        w_hh_s.append(w_hh)
        b_s.append(bias)
    return jnp.stack(w_ih_s), jnp.stack(w_hh_s), jnp.stack(b_s)


def build_model(key, cfg):
    H, L = cfg["hidden_size"], cfg["num_layers"]
    F = cfg["input_size"] + cfg["loc_dim"] + cfg["time_dim"]

    key, k1, k2, k3, k4 = jax.random.split(key, 5)
    rparams = {
        "enc_loc_emb": jax.random.normal(k1, (cfg["loc_vocab"], cfg["loc_dim"]),
                                         jnp.float32),
        "enc_time_emb": jax.random.normal(k2, (cfg["time_vocab"], cfg["time_dim"]),
                                          jnp.float32),
        "dec_loc_emb": jax.random.normal(k3, (cfg["loc_vocab"], cfg["loc_dim"]),
                                         jnp.float32),
        "dec_time_emb": jax.random.normal(k4, (cfg["time_vocab"], cfg["time_dim"]),
                                          jnp.float32),
    }

    def init_lstm(key):
        scale = 1.0 / jnp.sqrt(H)
        layers = []
        for layer in range(L):
            in_sz = F if layer == 0 else 2 * H
            dirs = []
            for _ in range(2):
                key, a, b, c, d = jax.random.split(key, 5)
                w_ih = jax.random.uniform(a, (4 * H, in_sz), minval=-scale,
                                          maxval=scale).astype(jnp.float32)
                w_hh = jax.random.uniform(b, (4 * H, H), minval=-scale,
                                          maxval=scale).astype(jnp.float32)
                b_ih = jax.random.uniform(c, (4 * H,), minval=-scale,
                                          maxval=scale).astype(jnp.float32)
                b_hh = jax.random.uniform(d, (4 * H,), minval=-scale,
                                          maxval=scale).astype(jnp.float32)
                dirs.append((w_ih, w_hh, b_ih, b_hh))
            layers.append(dirs)
        return layers, key

    rparams["enc_lstm"], key = init_lstm(key)
    rparams["dec_lstm"], key = init_lstm(key)

    def init_linear(key, in_f, out_f):
        key, a, b = jax.random.split(key, 3)
        s = 1.0 / jnp.sqrt(in_f)
        w = jax.random.uniform(a, (out_f, in_f), minval=-s, maxval=s).astype(jnp.float32)
        bb = jax.random.uniform(b, (out_f,), minval=-s, maxval=s).astype(jnp.float32)
        return (w, bb), key

    rparams["dec_fc"], key = init_linear(key, 2 * H, F)                 # decoder.fc
    rparams["out_fc"], key = init_linear(key, F, cfg["output_size"])    # model.fc

    # ---- packed / fused params consumed by the kernel ----
    kparams = {k: rparams[k] for k in
               ("enc_loc_emb", "enc_time_emb", "dec_loc_emb", "dec_time_emb")}
    kparams["enc_w_ih"], kparams["enc_w_hh"], kparams["enc_b"] = \
        pack_lstm_params(rparams["enc_lstm"], F, H)
    kparams["dec_w_ih"], kparams["dec_w_hh"], kparams["dec_b"] = \
        pack_lstm_params(rparams["dec_lstm"], F, H)

    w1, b1 = rparams["dec_fc"]    # (F, 2H), (F,)
    w2, b2 = rparams["out_fc"]    # (1, F), (1,)
    # Algebraic fusion (no nonlinearity between the two linears):
    #   out = (x @ W1^T + b1) @ W2^T + b2 = x @ (W2 W1)^T + (W2 b1 + b2)
    kparams["fc_w"] = w2 @ w1                      # (1, 2H)
    kparams["fc_b"] = (w2 @ b1 + b2).reshape(1, 1)  # (1, 1)
    return kparams, rparams


# ----------------------------------------------------------------------------
# Forward pass (matches EncoderDecoderModel.forward)
# ----------------------------------------------------------------------------
def embed_and_concat(x, loc_emb, time_emb):
    loc_ids = x[:, :, 0].astype(jnp.int32)
    time_ids = x[:, :, 1].astype(jnp.int32)
    # torch.squeeze on the embeddings is a no-op for these (non-degenerate) shapes.
    # TODO(synk): nn.Embedding gather stays in the JAX wrapper (no efficient
    # Pallas equivalent at these tiny sizes).
    return jnp.concatenate([loc_emb[loc_ids], time_emb[time_ids], x[:, :, 2:]],
                           axis=2)


def forward(kparams, cfg, encoder_input, decoder_input):
    B, T_enc, _ = encoder_input.shape
    _, T_dec, _ = decoder_input.shape
    H, L = cfg["hidden_size"], cfg["num_layers"]
    F = cfg["input_size"] + cfg["loc_dim"] + cfg["time_dim"]
    assert cfg["output_size"] == 1  # model.fc(...).squeeze(2) assumes this

    enc_feat = embed_and_concat(encoder_input,
                                kparams["enc_loc_emb"], kparams["enc_time_emb"])
    dec_feat = embed_and_concat(decoder_input,
                                kparams["dec_loc_emb"], kparams["dec_time_emb"])

    # batch-first -> time-major, flattened to (T*B, F): row = t*B + b.
    enc_x = jnp.transpose(enc_feat, (1, 0, 2)).reshape(T_enc * B, F).astype(jnp.float32)
    dec_x = jnp.transpose(dec_feat, (1, 0, 2)).reshape(T_dec * B, F).astype(jnp.float32)

    vmem = pl.BlockSpec(memory_space=pltpu.MemorySpace.VMEM)
    out = pl.pallas_call(
        functools.partial(encdec_kernel, T_enc=T_enc, T_dec=T_dec,
                          B=B, H=H, L=L, F=F),
        out_shape=jax.ShapeDtypeStruct((T_dec * B, 1), jnp.float32),
        in_specs=[vmem] * 10,
        out_specs=vmem,
    )(enc_x, dec_x,
      kparams["enc_w_ih"], kparams["enc_w_hh"], kparams["enc_b"],
      kparams["dec_w_ih"], kparams["dec_w_hh"], kparams["dec_b"],
      kparams["fc_w"], kparams["fc_b"])

    # (T*B, 1) -> (T, B) -> (B, T); matches fc(...).squeeze(2) with output_size=1.
    return jnp.transpose(out.reshape(T_dec, B))


# ----------------------------------------------------------------------------
# Pure-JAX reference (same math, un-fused weights) for a correctness check
# ----------------------------------------------------------------------------
def _lstm_stack_ref(x, layers, h0, c0, H):
    hi = jax.lax.Precision.HIGHEST
    B, T, _ = x.shape
    hs, cs = [], []
    layer_in = x
    for layer in range(len(layers)):
        dir_outs = []
        for d in range(2):
            w_ih, w_hh, b_ih, b_hh = layers[layer][d]
            h = h0[2 * layer + d]
            c = c0[2 * layer + d]
            seq = [None] * T
            order = range(T) if d == 0 else range(T - 1, -1, -1)
            for t in order:
                gates = (jnp.dot(layer_in[:, t, :], w_ih.T, precision=hi) + b_ih
                         + jnp.dot(h, w_hh.T, precision=hi) + b_hh)
                i_g = jax.nn.sigmoid(gates[:, 0 * H:1 * H])
                f_g = jax.nn.sigmoid(gates[:, 1 * H:2 * H])
                g_g = jnp.tanh(gates[:, 2 * H:3 * H])
                o_g = jax.nn.sigmoid(gates[:, 3 * H:4 * H])
                c = f_g * c + i_g * g_g
                h = o_g * jnp.tanh(c)
                seq[t] = h
            dir_outs.append(jnp.stack(seq, axis=1))
            hs.append(h)
            cs.append(c)
        layer_in = jnp.concatenate(dir_outs, axis=-1)
    return layer_in, jnp.stack(hs), jnp.stack(cs)


def forward_ref(rparams, cfg, encoder_input, decoder_input):
    hi = jax.lax.Precision.HIGHEST
    H, L = cfg["hidden_size"], cfg["num_layers"]
    B = encoder_input.shape[0]
    enc_feat = embed_and_concat(encoder_input,
                                rparams["enc_loc_emb"], rparams["enc_time_emb"])
    dec_feat = embed_and_concat(decoder_input,
                                rparams["dec_loc_emb"], rparams["dec_time_emb"])
    z = jnp.zeros((2 * L, B, H), jnp.float32)
    _, hT, cT = _lstm_stack_ref(enc_feat, rparams["enc_lstm"], z, z, H)
    dec_seq, _, _ = _lstm_stack_ref(dec_feat, rparams["dec_lstm"], hT, cT, H)
    w1, b1 = rparams["dec_fc"]
    w2, b2 = rparams["out_fc"]
    x = jnp.dot(dec_seq, w1.T, precision=hi) + b1
    out = jnp.dot(x, w2.T, precision=hi) + b2
    return out[..., 0]


# ----------------------------------------------------------------------------
if __name__ == "__main__":
    cfg = dict(input_size=4, hidden_size=32, num_layers=2,
               loc_dim=8, loc_vocab=16, time_dim=8, time_vocab=24,
               output_size=1)

    key = jax.random.PRNGKey(0)
    kparams, rparams = build_model(key, cfg)

    B, T_enc, T_dec = 2, 8, 8
    key, k1, k2, k3, k4, k5, k6 = jax.random.split(jax.random.PRNGKey(0), 7)
    enc_loc = jax.random.randint(k1, (B, T_enc, 1), 0, cfg["loc_vocab"])
    enc_time = jax.random.randint(k2, (B, T_enc, 1), 0, cfg["time_vocab"])
    enc_cont = jax.random.normal(k3, (B, T_enc, cfg["input_size"]))
    encoder_input = jnp.concatenate(
        [enc_loc.astype(jnp.float32), enc_time.astype(jnp.float32), enc_cont],
        axis=2)

    dec_loc = jax.random.randint(k4, (B, T_dec, 1), 0, cfg["loc_vocab"])
    dec_time = jax.random.randint(k5, (B, T_dec, 1), 0, cfg["time_vocab"])
    dec_cont = jax.random.normal(k6, (B, T_dec, cfg["input_size"]))
    decoder_input = jnp.concatenate(
        [dec_loc.astype(jnp.float32), dec_time.astype(jnp.float32), dec_cont],
        axis=2)

    fwd = jax.jit(functools.partial(forward, kparams, cfg))
    out = fwd(encoder_input, decoder_input)
    jax.block_until_ready(out)
    assert out.shape == (B, T_dec), out.shape

    ref = jax.jit(functools.partial(forward_ref, rparams, cfg))(
        encoder_input, decoder_input)
    err = float(jnp.max(jnp.abs(out - ref)))
    assert err < 2e-3, f"kernel/reference mismatch: max abs err = {err}"
    print("KERNEL_OK")
</pallas_src>

<mosaic_0001>
module attributes {stable_mosaic.version = 11 : i64} {
  func.func @encdec_kernel(%arg0: memref<16x20xf32, #tpu.memory_space<vmem>>, %arg1: memref<16x20xf32, #tpu.memory_space<vmem>>, %arg2: memref<2x64x256xf32, #tpu.memory_space<vmem>>, %arg3: memref<2x64x256xf32, #tpu.memory_space<vmem>>, %arg4: memref<2x1x256xf32, #tpu.memory_space<vmem>>, %arg5: memref<2x64x256xf32, #tpu.memory_space<vmem>>, %arg6: memref<2x64x256xf32, #tpu.memory_space<vmem>>, %arg7: memref<2x1x256xf32, #tpu.memory_space<vmem>>, %arg8: memref<1x64xf32, #tpu.memory_space<vmem>>, %arg9: memref<1x1xf32, #tpu.memory_space<vmem>>, %arg10: memref<16x1xf32, #tpu.memory_space<vmem>>) attributes {dimension_semantics = [], scalar_prefetch = 0 : i64, scratch_operands = 0 : i64, tpu.core_type = #tpu.core_type<tc>} {
    %cst = arith.constant 0.000000e+00 : f32
    %0 = vector.broadcast %cst : f32 to vector<2x32xf32>
    %c0 = arith.constant 0 : index
    %c0_0 = arith.constant 0 : index
    %1 = vector.load %arg0[%c0, %c0_0] : memref<16x20xf32, #tpu.memory_space<vmem>>, vector<16x20xf32>
    %c0_1 = arith.constant 0 : index
    %c0_2 = arith.constant 0 : index
    %c0_3 = arith.constant 0 : index
    %2 = vector.load %arg2[%c0_1, %c0_2, %c0_3] : memref<2x64x256xf32, #tpu.memory_space<vmem>>, vector<1x20x256xf32>
    %3 = vector.shape_cast %2 : vector<1x20x256xf32> to vector<20x256xf32>
    %c0_4 = arith.constant 0 : index
    %c0_5 = arith.constant 0 : index
    %c0_6 = arith.constant 0 : index
    %4 = vector.load %arg3[%c0_4, %c0_5, %c0_6] : memref<2x64x256xf32, #tpu.memory_space<vmem>>, vector<1x64x256xf32>
    %5 = vector.shape_cast %4 : vector<1x64x256xf32> to vector<64x256xf32>
    %c0_7 = arith.constant 0 : index
    %c0_8 = arith.constant 0 : index
    %c0_9 = arith.constant 0 : index
    %6 = vector.load %arg4[%c0_7, %c0_8, %c0_9] : memref<2x1x256xf32, #tpu.memory_space<vmem>>, vector<1x1x256xf32>
    %7 = vector.shape_cast %6 : vector<1x1x256xf32> to vector<1x256xf32>
    %cst_10 = arith.constant dense<0.000000e+00> : vector<16x256xf32>
    %8 = tpu.matmul %1, %3, %cst_10 {dimension_numbers = #tpu.dot_dimension_numbers<[1], [0], [0], [1], [0, 0, 1, 1], [], []>} : vector<16x20xf32>, vector<20x256xf32>, vector<16x256xf32> -> vector<16x256xf32>
    %9 = vector.broadcast %7 : vector<1x256xf32> to vector<16x256xf32>
    %10 = arith.addf %8, %9 : vector<16x256xf32>
    %11 = tpu.concatenate %0, %0 in 1 : vector<2x32xf32>, vector<2x32xf32> -> vector<2x64xf32>
    %cst_11 = arith.constant dense<0.000000e+00> : vector<2x256xf32>
    %12 = tpu.matmul %11, %5, %cst_11 {dimension_numbers = #tpu.dot_dimension_numbers<[1], [0], [0], [1], [0, 0, 1, 1], [], []>} : vector<2x64xf32>, vector<64x256xf32>, vector<2x256xf32> -> vector<2x256xf32>
    %13 = vector.extract_strided_slice %10 {offsets = [0, 0], sizes = [2, 128], strides = [1, 1]} : vector<16x256xf32> to vector<2x128xf32>
    %14 = vector.extract_strided_slice %12 {offsets = [0, 0], sizes = [2, 128], strides = [1, 1]} : vector<2x256xf32> to vector<2x128xf32>
    %15 = arith.addf %13, %14 : vector<2x128xf32>
    %16 = vector.extract_strided_slice %10 {offsets = [14, 128], sizes = [2, 128], strides = [1, 1]} : vector<16x256xf32> to vector<2x128xf32>
    %17 = vector.extract_strided_slice %12 {offsets = [0, 128], sizes = [2, 128], strides = [1, 1]} : vector<2x256xf32> to vector<2x128xf32>
    %18 = arith.addf %16, %17 : vector<2x128xf32>
    %19 = arith.negf %15 : vector<2x128xf32>
    %20 = math.exp %19 : vector<2x128xf32>
    %cst_12 = arith.constant 1.000000e+00 : f32
    %21 = vector.broadcast %cst_12 : f32 to vector<2x128xf32>
    %22 = arith.addf %21, %20 : vector<2x128xf32>
    %23 = arith.divf %21, %22 : vector<2x128xf32>
    %24 = math.tanh %15 : vector<2x128xf32>
    %25 = vector.extract_strided_slice %23 {offsets = [0, 0], sizes = [2, 32], strides = [1, 1]} : vector<2x128xf32> to vector<2x32xf32>
    %26 = vector.extract_strided_slice %23 {offsets = [0, 32], sizes = [2, 32], strides = [1, 1]} : vector<2x128xf32> to vector<2x32xf32>
    %27 = vector.extract_strided_slice %24 {offsets = [0, 64], sizes = [2, 32], strides = [1, 1]} : vector<2x128xf32> to vector<2x32xf32>
    %28 = vector.extract_strided_slice %23 {offsets = [0, 96], sizes = [2, 32], strides = [1, 1]} : vector<2x128xf32> to vector<2x32xf32>
    %29 = arith.mulf %26, %0 : vector<2x32xf32>
    %30 = arith.mulf %25, %27 : vector<2x32xf32>
    %31 = arith.addf %29, %30 : vector<2x32xf32>
    %32 = math.tanh %31 : vector<2x32xf32>
    %33 = arith.mulf %28, %32 : vector<2x32xf32>
    %34 = arith.negf %18 : vector<2x128xf32>
    %35 = math.exp %34 : vector<2x128xf32>
    %cst_13 = arith.constant 1.000000e+00 : f32
    %36 = vector.broadcast %cst_13 : f32 to vector<2x128xf32>
    %37 = arith.addf %36, %35 : vector<2x128xf32>
    %38 = arith.divf %36, %37 : vector<2x128xf32>
    %39 = math.tanh %18 : vector<2x128xf32>
    %40 = vector.extract_strided_slice %38 {offsets = [0, 0], sizes = [2, 32], strides = [1, 1]} : vector<2x128xf32> to vector<2x32xf32>
    %41 = vector.extract_strided_slice %38 {offsets = [0, 32], sizes = [2, 32], strides = [1, 1]} : vector<2x128xf32> to vector<2x32xf32>
    %42 = vector.extract_strided_slice %39 {offsets = [0, 64], sizes = [2, 32], strides = [1, 1]} : vector<2x128xf32> to vector<2x32xf32>
    %43 = vector.extract_strided_slice %38 {offsets = [0, 96], sizes = [2, 32], strides = [1, 1]} : vector<2x128xf32> to vector<2x32xf32>
    %44 = arith.mulf %41, %0 : vector<2x32xf32>
    %45 = arith.mulf %40, %42 : vector<2x32xf32>
    %46 = arith.addf %44, %45 : vector<2x32xf32>
    %47 = math.tanh %46 : vector<2x32xf32>
    %48 = arith.mulf %43, %47 : vector<2x32xf32>
    %49 = tpu.concatenate %33, %48 in 1 : vector<2x32xf32>, vector<2x32xf32> -> vector<2x64xf32>
    %cst_14 = arith.constant dense<0.000000e+00> : vector<2x256xf32>
    %50 = tpu.matmul %49, %5, %cst_14 {dimension_numbers = #tpu.dot_dimension_numbers<[1], [0], [0], [1], [0, 0, 1, 1], [], []>} : vector<2x64xf32>, vector<64x256xf32>, vector<2x256xf32> -> vector<2x256xf32>
    %51 = vector.extract_strided_slice %10 {offsets = [2, 0], sizes = [2, 128], strides = [1, 1]} : vector<16x256xf32> to vector<2x128xf32>
    %52 = vector.extract_strided_slice %50 {offsets = [0, 0], sizes = [2, 128], strides = [1, 1]} : vector<2x256xf32> to vector<2x128xf32>
    %53 = arith.addf %51, %52 : vector<2x128xf32>
    %54 = vector.extract_strided_slice %10 {offsets = [12, 128], sizes = [2, 128], strides = [1, 1]} : vector<16x256xf32> to vector<2x128xf32>
    %55 = vector.extract_strided_slice %50 {offsets = [0, 128], sizes = [2, 128], strides = [1, 1]} : vector<2x256xf32> to vector<2x128xf32>
    %56 = arith.addf %54, %55 : vector<2x128xf32>
    %57 = arith.negf %53 : vector<2x128xf32>
    %58 = math.exp %57 : vector<2x128xf32>
    %cst_15 = arith.constant 1.000000e+00 : f32
    %59 = vector.broadcast %cst_15 : f32 to vector<2x128xf32>
    %60 = arith.addf %59, %58 : vector<2x128xf32>
    %61 = arith.divf %59, %60 : vector<2x128xf32>
    %62 = math.tanh %53 : vector<2x128xf32>
    %63 = vector.extract_strided_slice %61 {offsets = [0, 0], sizes = [2, 32], strides = [1, 1]} : vector<2x128xf32> to vector<2x32xf32>
    %64 = vector.extract_strided_slice %61 {offsets = [0, 32], sizes = [2, 32], strides = [1, 1]} : vector<2x128xf32> to vector<2x32xf32>
    %65 = vector.extract_strided_slice %62 {offsets = [0, 64], sizes = [2, 32], strides = [1, 1]} : vector<2x128xf32> to vector<2x32xf32>
    %66 = vector.extract_strided_slice %61 {offsets = [0, 96], sizes = [2, 32], strides = [1, 1]} : vector<2x128xf32> to vector<2x32xf32>
    %67 = arith.mulf %64, %31 : vector<2x32xf32>
    %68 = arith.mulf %63, %65 : vector<2x32xf32>
    %69 = arith.addf %67, %68 : vector<2x32xf32>
    %70 = math.tanh %69 : vector<2x32xf32>
    %71 = arith.mulf %66, %70 : vector<2x32xf32>
    %72 = arith.negf %56 : vector<2x128xf32>
    %73 = math.exp %72 : vector<2x128xf32>
    %cst_16 = arith.constant 1.000000e+00 : f32
    %74 = vector.broadcast %cst_16 : f32 to vector<2x128xf32>
    %75 = arith.addf %74, %73 : vector<2x128xf32>
    %76 = arith.divf %74, %75 : vector<2x128xf32>
    %77 = math.tanh %56 : vector<2x128xf32>
    %78 = vector.extract_strided_slice %76 {offsets = [0, 0], sizes = [2, 32], strides = [1, 1]} : vector<2x128xf32> to vector<2x32xf32>
    %79 = vector.extract_strided_slice %76 {offsets = [0, 32], sizes = [2, 32], strides = [1, 1]} : vector<2x128xf32> to vector<2x32xf32>
    %80 = vector.extract_strided_slice %77 {offsets = [0, 64], sizes = [2, 32], strides = [1, 1]} : vector<2x128xf32> to vector<2x32xf32>
    %81 = vector.extract_strided_slice %76 {offsets = [0, 96], sizes = [2, 32], strides = [1, 1]} : vector<2x128xf32> to vector<2x32xf32>
    %82 = arith.mulf %79, %46 : vector<2x32xf32>
    %83 = arith.mulf %78, %80 : vector<2x32xf32>
    %84 = arith.addf %82, %83 : vector<2x32xf32>
    %85 = math.tanh %84 : vector<2x32xf32>
    %86 = arith.mulf %81, %85 : vector<2x32xf32>
    %87 = tpu.concatenate %71, %86 in 1 : vector<2x32xf32>, vector<2x32xf32> -> vector<2x64xf32>
    %cst_17 = arith.constant dense<0.000000e+00> : vector<2x256xf32>
    %88 = tpu.matmul %87, %5, %cst_17 {dimension_numbers = #tpu.dot_dimension_numbers<[1], [0], [0], [1], [0, 0, 1, 1], [], []>} : vector<2x64xf32>, vector<64x256xf32>, vector<2x256xf32> -> vector<2x256xf32>
    %89 = vector.extract_strided_slice %10 {offsets = [4, 0], sizes = [2, 128], strides = [1, 1]} : vector<16x256xf32> to vector<2x128xf32>
    %90 = vector.extract_strided_slice %88 {offsets = [0, 0], sizes = [2, 128], strides = [1, 1]} : vector<2x256xf32> to vector<2x128xf32>
    %91 = arith.addf %89, %90 : vector<2x128xf32>
    %92 = vector.extract_strided_slice %10 {offsets = [10, 128], sizes = [2, 128], strides = [1, 1]} : vector<16x256xf32> to vector<2x128xf32>
    %93 = vector.extract_strided_slice %88 {offsets = [0, 128], sizes = [2, 128], strides = [1, 1]} : vector<2x256xf32> to vector<2x128xf32>
    %94 = arith.addf %92, %93 : vector<2x128xf32>
    %95 = arith.negf %91 : vector<2x128xf32>
    %96 = math.exp %95 : vector<2x128xf32>
    %cst_18 = arith.constant 1.000000e+00 : f32
    %97 = vector.broadcast %cst_18 : f32 to vector<2x128xf32>
    %98 = arith.addf %97, %96 : vector<2x128xf32>
    %99 = arith.divf %97, %98 : vector<2x128xf32>
    %100 = math.tanh %91 : vector<2x128xf32>
    %101 = vector.extract_strided_slice %99 {offsets = [0, 0], sizes = [2, 32], strides = [1, 1]} : vector<2x128xf32> to vector<2x32xf32>
    %102 = vector.extract_strided_slice %99 {offsets = [0, 32], sizes = [2, 32], strides = [1, 1]} : vector<2x128xf32> to vector<2x32xf32>
    %103 = vector.extract_strided_slice %100 {offsets = [0, 64], sizes = [2, 32], strides = [1, 1]} : vector<2x128xf32> to vector<2x32xf32>
    %104 = vector.extract_strided_slice %99 {offsets = [0, 96], sizes = [2, 32], strides = [1, 1]} : vector<2x128xf32> to vector<2x32xf32>
    %105 = arith.mulf %102, %69 : vector<2x32xf32>
    %106 = arith.mulf %101, %103 : vector<2x32xf32>
    %107 = arith.addf %105, %106 : vector<2x32xf32>
    %108 = math.tanh %107 : vector<2x32xf32>
    %109 = arith.mulf %104, %108 : vector<2x32xf32>
    %110 = arith.negf %94 : vector<2x128xf32>
    %111 = math.exp %110 : vector<2x128xf32>
    %cst_19 = arith.constant 1.000000e+00 : f32
    %112 = vector.broadcast %cst_19 : f32 to vector<2x128xf32>
    %113 = arith.addf %112, %111 : vector<2x128xf32>
    %114 = arith.divf %112, %113 : vector<2x128xf32>
    %115 = math.tanh %94 : vector<2x128xf32>
    %116 = vector.extract_strided_slice %114 {offsets = [0, 0], sizes = [2, 32], strides = [1, 1]} : vector<2x128xf32> to vector<2x32xf32>
    %117 = vector.extract_strided_slice %114 {offsets = [0, 32], sizes = [2, 32], strides = [1, 1]} : vector<2x128xf32> to vector<2x32xf32>
    %118 = vector.extract_strided_slice %115 {offsets = [0, 64], sizes = [2, 32], strides = [1, 1]} : vector<2x128xf32> to vector<2x32xf32>
    %119 = vector.extract_strided_slice %114 {offsets = [0, 96], sizes = [2, 32], strides = [1, 1]} : vector<2x128xf32> to vector<2x32xf32>
    %120 = arith.mulf %117, %84 : vector<2x32xf32>
    %121 = arith.mulf %116, %118 : vector<2x32xf32>
    %122 = arith.addf %120, %121 : vector<2x32xf32>
    %123 = math.tanh %122 : vector<2x32xf32>
    %124 = arith.mulf %119, %123 : vector<2x32xf32>
    %125 = tpu.concatenate %109, %124 in 1 : vector<2x32xf32>, vector<2x32xf32> -> vector<2x64xf32>
    %cst_20 = arith.constant dense<0.000000e+00> : vector<2x256xf32>
    %126 = tpu.matmul %125, %5, %cst_20 {dimension_numbers = #tpu.dot_dimension_numbers<[1], [0], [0], [1], [0, 0, 1, 1], [], []>} : vector<2x64xf32>, vector<64x256xf32>, vector<2x256xf32> -> vector<2x256xf32>
    %127 = vector.extract_strided_slice %10 {offsets = [6, 0], sizes = [2, 128], strides = [1, 1]} : vector<16x256xf32> to vector<2x128xf32>
    %128 = vector.extract_strided_slice %126 {offsets = [0, 0], sizes = [2, 128], strides = [1, 1]} : vector<2x256xf32> to vector<2x128xf32>
    %129 = arith.addf %127, %128 : vector<2x128xf32>
    %130 = vector.extract_strided_slice %10 {offsets = [8, 128], sizes = [2, 128], strides = [1, 1]} : vector<16x256xf32> to vector<2x128xf32>
    %131 = vector.extract_strided_slice %126 {offsets = [0, 128], sizes = [2, 128], strides = [1, 1]} : vector<2x256xf32> to vector<2x128xf32>
    %132 = arith.addf %130, %131 : vector<2x128xf32>
    %133 = arith.negf %129 : vector<2x128xf32>
    %134 = math.exp %133 : vector<2x128xf32>
    %cst_21 = arith.constant 1.000000e+00 : f32
    %135 = vector.broadcast %cst_21 : f32 to vector<2x128xf32>
    %136 = arith.addf %135, %134 : vector<2x128xf32>
    %137 = arith.divf %135, %136 : vector<2x128xf32>
    %138 = math.tanh %129 : vector<2x128xf32>
    %139 = vector.extract_strided_slice %137 {offsets = [0, 0], sizes = [2, 32], strides = [1, 1]} : vector<2x128xf32> to vector<2x32xf32>
    %140 = vector.extract_strided_slice %137 {offsets = [0, 32], sizes = [2, 32], strides = [1, 1]} : vector<2x128xf32> to vector<2x32xf32>
    %141 = vector.extract_strided_slice %138 {offsets = [0, 64], sizes = [2, 32], strides = [1, 1]} : vector<2x128xf32> to vector<2x32xf32>
    %142 = vector.extract_strided_slice %137 {offsets = [0, 96], sizes = [2, 32], strides = [1, 1]} : vector<2x128xf32> to vector<2x32xf32>
    %143 = arith.mulf %140, %107 : vector<2x32xf32>
    %144 = arith.mulf %139, %141 : vector<2x32xf32>
    %145 = arith.addf %143, %144 : vector<2x32xf32>
    %146 = math.tanh %145 : vector<2x32xf32>
    %147 = arith.mulf %142, %146 : vector<2x32xf32>
    %148 = arith.negf %132 : vector<2x128xf32>
    %149 = math.exp %148 : vector<2x128xf32>
    %cst_22 = arith.constant 1.000000e+00 : f32
    %150 = vector.broadcast %cst_22 : f32 to vector<2x128xf32>
    %151 = arith.addf %150, %149 : vector<2x128xf32>
    %152 = arith.divf %150, %151 : vector<2x128xf32>
    %153 = math.tanh %132 : vector<2x128xf32>
    %154 = vector.extract_strided_slice %152 {offsets = [0, 0], sizes = [2, 32], strides = [1, 1]} : vector<2x128xf32> to vector<2x32xf32>
    %155 = vector.extract_strided_slice %152 {offsets = [0, 32], sizes = [2, 32], strides = [1, 1]} : vector<2x128xf32> to vector<2x32xf32>
    %156 = vector.extract_strided_slice %153 {offsets = [0, 64], sizes = [2, 32], strides = [1, 1]} : vector<2x128xf32> to vector<2x32xf32>
    %157 = vector.extract_strided_slice %152 {offsets = [0, 96], sizes = [2, 32], strides = [1, 1]} : vector<2x128xf32> to vector<2x32xf32>
    %158 = arith.mulf %155, %122 : vector<2x32xf32>
    %159 = arith.mulf %154, %156 : vector<2x32xf32>
    %160 = arith.addf %158, %159 : vector<2x32xf32>
    %161 = math.tanh %160 : vector<2x32xf32>
    %162 = arith.mulf %157, %161 : vector<2x32xf32>
    %163 = tpu.concatenate %147, %162 in 1 : vector<2x32xf32>, vector<2x32xf32> -> vector<2x64xf32>
    %cst_23 = arith.constant dense<0.000000e+00> : vector<2x256xf32>
    %164 = tpu.matmul %163, %5, %cst_23 {dimension_numbers = #tpu.dot_dimension_numbers<[1], [0], [0], [1], [0, 0, 1, 1], [], []>} : vector<2x64xf32>, vector<64x256xf32>, vector<2x256xf32> -> vector<2x256xf32>
    %165 = vector.extract_strided_slice %10 {offsets = [8, 0], sizes = [2, 128], strides = [1, 1]} : vector<16x256xf32> to vector<2x128xf32>
    %166 = vector.extract_strided_slice %164 {offsets = [0, 0], sizes = [2, 128], strides = [1, 1]} : vector<2x256xf32> to vector<2x128xf32>
    %167 = arith.addf %165, %166 : vector<2x128xf32>
    %168 = vector.extract_strided_slice %10 {offsets = [6, 128], sizes = [2, 128], strides = [1, 1]} : vector<16x256xf32> to vector<2x128xf32>
    %169 = vector.extract_strided_slice %164 {offsets = [0, 128], sizes = [2, 128], strides = [1, 1]} : vector<2x256xf32> to vector<2x128xf32>
    %170 = arith.addf %168, %169 : vector<2x128xf32>
    %171 = arith.negf %167 : vector<2x128xf32>
    %172 = math.exp %171 : vector<2x128xf32>
    %cst_24 = arith.constant 1.000000e+00 : f32
    %173 = vector.broadcast %cst_24 : f32 to vector<2x128xf32>
    %174 = arith.addf %173, %172 : vector<2x128xf32>
    %175 = arith.divf %173, %174 : vector<2x128xf32>
    %176 = math.tanh %167 : vector<2x128xf32>
    %177 = vector.extract_strided_slice %175 {offsets = [0, 0], sizes = [2, 32], strides = [1, 1]} : vector<2x128xf32> to vector<2x32xf32>
    %178 = vector.extract_strided_slice %175 {offsets = [0, 32], sizes = [2, 32], strides = [1, 1]} : vector<2x128xf32> to vector<2x32xf32>
    %179 = vector.extract_strided_slice %176 {offsets = [0, 64], sizes = [2, 32], strides = [1, 1]} : vector<2x128xf32> to vector<2x32xf32>
    %180 = vector.extract_strided_slice %175 {offsets = [0, 96], sizes = [2, 32], strides = [1, 1]} : vector<2x128xf32> to vector<2x32xf32>
    %181 = arith.mulf %178, %145 : vector<2x32xf32>
    %182 = arith.mulf %177, %179 : vector<2x32xf32>
    %183 = arith.addf %181, %182 : vector<2x32xf32>
    %184 = math.tanh %183 : vector<2x32xf32>
    %185 = arith.mulf %180, %184 : vector<2x32xf32>
    %186 = arith.negf %170 : vector<2x128xf32>
    %187 = math.exp %186 : vector<2x128xf32>
    %cst_25 = arith.constant 1.000000e+00 : f32
    %188 = vector.broadcast %cst_25 : f32 to vector<2x128xf32>
    %189 = arith.addf %188, %187 : vector<2x128xf32>
    %190 = arith.divf %188, %189 : vector<2x128xf32>
    %191 = math.tanh %170 : vector<2x128xf32>
    %192 = vector.extract_strided_slice %190 {offsets = [0, 0], sizes = [2, 32], strides = [1, 1]} : vector<2x128xf32> to vector<2x32xf32>
    %193 = vector.extract_strided_slice %190 {offsets = [0, 32], sizes = [2, 32], strides = [1, 1]} : vector<2x128xf32> to vector<2x32xf32>
    %194 = vector.extract_strided_slice %191 {offsets = [0, 64], sizes = [2, 32], strides = [1, 1]} : vector<2x128xf32> to vector<2x32xf32>
    %195 = vector.extract_strided_slice %190 {offsets = [0, 96], sizes = [2, 32], strides = [1, 1]} : vector<2x128xf32> to vector<2x32xf32>
    %196 = arith.mulf %193, %160 : vector<2x32xf32>
    %197 = arith.mulf %192, %194 : vector<2x32xf32>
    %198 = arith.addf %196, %197 : vector<2x32xf32>
    %199 = math.tanh %198 : vector<2x32xf32>
    %200 = arith.mulf %195, %199 : vector<2x32xf32>
    %201 = tpu.concatenate %185, %200 in 1 : vector<2x32xf32>, vector<2x32xf32> -> vector<2x64xf32>
    %cst_26 = arith.constant dense<0.000000e+00> : vector<2x256xf32>
    %202 = tpu.matmul %201, %5, %cst_26 {dimension_numbers = #tpu.dot_dimension_numbers<[1], [0], [0], [1], [0, 0, 1, 1], [], []>} : vector<2x64xf32>, vector<64x256xf32>, vector<2x256xf32> -> vector<2x256xf32>
    %203 = vector.extract_strided_slice %10 {offsets = [10, 0], sizes = [2, 128], strides = [1, 1]} : vector<16x256xf32> to vector<2x128xf32>
    %204 = vector.extract_strided_slice %202 {offsets = [0, 0], sizes = [2, 128], strides = [1, 1]} : vector<2x256xf32> to vector<2x128xf32>
    %205 = arith.addf %203, %204 : vector<2x128xf32>
    %206 = vector.extract_strided_slice %10 {offsets = [4, 128], sizes = [2, 128], strides = [1, 1]} : vector<16x256xf32> to vector<2x128xf32>
    %207 = vector.extract_strided_slice %202 {offsets = [0, 128], sizes = [2, 128], strides = [1, 1]} : vector<2x256xf32> to vector<2x128xf32>
    %208 = arith.addf %206, %207 : vector<2x128xf32>
    %209 = arith.negf %205 : vector<2x128xf32>
    %210 = math.exp %209 : vector<2x128xf32>
    %cst_27 = arith.constant 1.000000e+00 : f32
    %211 = vector.broadcast %cst_27 : f32 to vector<2x128xf32>
    %212 = arith.addf %211, %210 : vector<2x128xf32>
    %213 = arith.divf %211, %212 : vector<2x128xf32>
    %214 = math.tanh %205 : vector<2x128xf32>
    %215 = vector.extract_strided_slice %213 {offsets = [0, 0], sizes = [2, 32], strides = [1, 1]} : vector<2x128xf32> to vector<2x32xf32>
    %216 = vector.extract_strided_slice %213 {offsets = [0, 32], sizes = [2, 32], strides = [1, 1]} : vector<2x128xf32> to vector<2x32xf32>
    %217 = vector.extract_strided_slice %214 {offsets = [0, 64], sizes = [2, 32], strides = [1, 1]} : vector<2x128xf32> to vector<2x32xf32>
    %218 = vector.extract_strided_slice %213 {offsets = [0, 96], sizes = [2, 32], strides = [1, 1]} : vector<2x128xf32> to vector<2x32xf32>
    %219 = arith.mulf %216, %183 : vector<2x32xf32>
    %220 = arith.mulf %215, %217 : vector<2x32xf32>
    %221 = arith.addf %219, %220 : vector<2x32xf32>
    %222 = math.tanh %221 : vector<2x32xf32>
    %223 = arith.mulf %218, %222 : vector<2x32xf32>
    %224 = arith.negf %208 : vector<2x128xf32>
    %225 = math.exp %224 : vector<2x128xf32>
    %cst_28 = arith.constant 1.000000e+00 : f32
    %226 = vector.broadcast %cst_28 : f32 to vector<2x128xf32>
    %227 = arith.addf %226, %225 : vector<2x128xf32>
    %228 = arith.divf %226, %227 : vector<2x128xf32>
    %229 = math.tanh %208 : vector<2x128xf32>
    %230 = vector.extract_strided_slice %228 {offsets = [0, 0], sizes = [2, 32], strides = [1, 1]} : vector<2x128xf32> to vector<2x32xf32>
    %231 = vector.extract_strided_slice %228 {offsets = [0, 32], sizes = [2, 32], strides = [1, 1]} : vector<2x128xf32> to vector<2x32xf32>
    %232 = vector.extract_strided_slice %229 {offsets = [0, 64], sizes = [2, 32], strides = [1, 1]} : vector<2x128xf32> to vector<2x32xf32>
    %233 = vector.extract_strided_slice %228 {offsets = [0, 96], sizes = [2, 32], strides = [1, 1]} : vector<2x128xf32> to vector<2x32xf32>
    %234 = arith.mulf %231, %198 : vector<2x32xf32>
    %235 = arith.mulf %230, %232 : vector<2x32xf32>
    %236 = arith.addf %234, %235 : vector<2x32xf32>
    %237 = math.tanh %236 : vector<2x32xf32>
    %238 = arith.mulf %233, %237 : vector<2x32xf32>
    %239 = tpu.concatenate %223, %238 in 1 : vector<2x32xf32>, vector<2x32xf32> -> vector<2x64xf32>
    %cst_29 = arith.constant dense<0.000000e+00> : vector<2x256xf32>
    %240 = tpu.matmul %239, %5, %cst_29 {dimension_numbers = #tpu.dot_dimension_numbers<[1], [0], [0], [1], [0, 0, 1, 1], [], []>} : vector<2x64xf32>, vector<64x256xf32>, vector<2x256xf32> -> vector<2x256xf32>
    %241 = vector.extract_strided_slice %10 {offsets = [12, 0], sizes = [2, 128], strides = [1, 1]} : vector<16x256xf32> to vector<2x128xf32>
    %242 = vector.extract_strided_slice %240 {offsets = [0, 0], sizes = [2, 128], strides = [1, 1]} : vector<2x256xf32> to vector<2x128xf32>
    %243 = arith.addf %241, %242 : vector<2x128xf32>
    %244 = vector.extract_strided_slice %10 {offsets = [2, 128], sizes = [2, 128], strides = [1, 1]} : vector<16x256xf32> to vector<2x128xf32>
    %245 = vector.extract_strided_slice %240 {offsets = [0, 128], sizes = [2, 128], strides = [1, 1]} : vector<2x256xf32> to vector<2x128xf32>
    %246 = arith.addf %244, %245 : vector<2x128xf32>
    %247 = arith.negf %243 : vector<2x128xf32>
    %248 = math.exp %247 : vector<2x128xf32>
    %cst_30 = arith.constant 1.000000e+00 : f32
    %249 = vector.broadcast %cst_30 : f32 to vector<2x128xf32>
    %250 = arith.addf %249, %248 : vector<2x128xf32>
    %251 = arith.divf %249, %250 : vector<2x128xf32>
    %252 = math.tanh %243 : vector<2x128xf32>
    %253 = vector.extract_strided_slice %251 {offsets = [0, 0], sizes = [2, 32], strides = [1, 1]} : vector<2x128xf32> to vector<2x32xf32>
    %254 = vector.extract_strided_slice %251 {offsets = [0, 32], sizes = [2, 32], strides = [1, 1]} : vector<2x128xf32> to vector<2x32xf32>
    %255 = vector.extract_strided_slice %252 {offsets = [0, 64], sizes = [2, 32], strides = [1, 1]} : vector<2x128xf32> to vector<2x32xf32>
    %256 = vector.extract_strided_slice %251 {offsets = [0, 96], sizes = [2, 32], strides = [1, 1]} : vector<2x128xf32> to vector<2x32xf32>
    %257 = arith.mulf %254, %221 : vector<2x32xf32>
    %258 = arith.mulf %253, %255 : vector<2x32xf32>
    %259 = arith.addf %257, %258 : vector<2x32xf32>
    %260 = math.tanh %259 : vector<2x32xf32>
    %261 = arith.mulf %256, %260 : vector<2x32xf32>
    %262 = arith.negf %246 : vector<2x128xf32>
    %263 = math.exp %262 : vector<2x128xf32>
    %cst_31 = arith.constant 1.000000e+00 : f32
    %264 = vector.broadcast %cst_31 : f32 to vector<2x128xf32>
    %265 = arith.addf %264, %263 : vector<2x128xf32>
    %266 = arith.divf %264, %265 : vector<2x128xf32>
    %267 = math.tanh %246 : vector<2x128xf32>
    %268 = vector.extract_strided_slice %266 {offsets = [0, 0], sizes = [2, 32], strides = [1, 1]} : vector<2x128xf32> to vector<2x32xf32>
    %269 = vector.extract_strided_slice %266 {offsets = [0, 32], sizes = [2, 32], strides = [1, 1]} : vector<2x128xf32> to vector<2x32xf32>
    %270 = vector.extract_strided_slice %267 {offsets = [0, 64], sizes = [2, 32], strides = [1, 1]} : vector<2x128xf32> to vector<2x32xf32>
    %271 = vector.extract_strided_slice %266 {offsets = [0, 96], sizes = [2, 32], strides = [1, 1]} : vector<2x128xf32> to vector<2x32xf32>
    %272 = arith.mulf %269, %236 : vector<2x32xf32>
    %273 = arith.mulf %268, %270 : vector<2x32xf32>
    %274 = arith.addf %272, %273 : vector<2x32xf32>
    %275 = math.tanh %274 : vector<2x32xf32>
    %276 = arith.mulf %271, %275 : vector<2x32xf32>
    %277 = tpu.concatenate %261, %276 in 1 : vector<2x32xf32>, vector<2x32xf32> -> vector<2x64xf32>
    %cst_32 = arith.constant dense<0.000000e+00> : vector<2x256xf32>
    %278 = tpu.matmul %277, %5, %cst_32 {dimension_numbers = #tpu.dot_dimension_numbers<[1], [0], [0], [1], [0, 0, 1, 1], [], []>} : vector<2x64xf32>, vector<64x256xf32>, vector<2x256xf32> -> vector<2x256xf32>
    %279 = vector.extract_strided_slice %10 {offsets = [14, 0], sizes = [2, 128], strides = [1, 1]} : vector<16x256xf32> to vector<2x128xf32>
    %280 = vector.extract_strided_slice %278 {offsets = [0, 0], sizes = [2, 128], strides = [1, 1]} : vector<2x256xf32> to vector<2x128xf32>
    %281 = arith.addf %279, %280 : vector<2x128xf32>
    %282 = vector.extract_strided_slice %10 {offsets = [0, 128], sizes = [2, 128], strides = [1, 1]} : vector<16x256xf32> to vector<2x128xf32>
    %283 = vector.extract_strided_slice %278 {offsets = [0, 128], sizes = [2, 128], strides = [1, 1]} : vector<2x256xf32> to vector<2x128xf32>
    %284 = arith.addf %282, %283 : vector<2x128xf32>
    %285 = arith.negf %281 : vector<2x128xf32>
    %286 = math.exp %285 : vector<2x128xf32>
    %cst_33 = arith.constant 1.000000e+00 : f32
    %287 = vector.broadcast %cst_33 : f32 to vector<2x128xf32>
    %288 = arith.addf %287, %286 : vector<2x128xf32>
    %289 = arith.divf %287, %288 : vector<2x128xf32>
    %290 = math.tanh %281 : vector<2x128xf32>
    %291 = vector.extract_strided_slice %289 {offsets = [0, 0], sizes = [2, 32], strides = [1, 1]} : vector<2x128xf32> to vector<2x32xf32>
    %292 = vector.extract_strided_slice %289 {offsets = [0, 32], sizes = [2, 32], strides = [1, 1]} : vector<2x128xf32> to vector<2x32xf32>
    %293 = vector.extract_strided_slice %290 {offsets = [0, 64], sizes = [2, 32], strides = [1, 1]} : vector<2x128xf32> to vector<2x32xf32>
    %294 = vector.extract_strided_slice %289 {offsets = [0, 96], sizes = [2, 32], strides = [1, 1]} : vector<2x128xf32> to vector<2x32xf32>
    %295 = arith.mulf %292, %259 : vector<2x32xf32>
    %296 = arith.mulf %291, %293 : vector<2x32xf32>
    %297 = arith.addf %295, %296 : vector<2x32xf32>
    %298 = math.tanh %297 : vector<2x32xf32>
    %299 = arith.mulf %294, %298 : vector<2x32xf32>
    %300 = arith.negf %284 : vector<2x128xf32>
    %301 = math.exp %300 : vector<2x128xf32>
    %cst_34 = arith.constant 1.000000e+00 : f32
    %302 = vector.broadcast %cst_34 : f32 to vector<2x128xf32>
    %303 = arith.addf %302, %301 : vector<2x128xf32>
    %304 = arith.divf %302, %303 : vector<2x128xf32>
    %305 = math.tanh %284 : vector<2x128xf32>
    %306 = vector.extract_strided_slice %304 {offsets = [0, 0], sizes = [2, 32], strides = [1, 1]} : vector<2x128xf32> to vector<2x32xf32>
    %307 = vector.extract_strided_slice %304 {offsets = [0, 32], sizes = [2, 32], strides = [1, 1]} : vector<2x128xf32> to vector<2x32xf32>
    %308 = vector.extract_strided_slice %305 {offsets = [0, 64], sizes = [2, 32], strides = [1, 1]} : vector<2x128xf32> to vector<2x32xf32>
    %309 = vector.extract_strided_slice %304 {offsets = [0, 96], sizes = [2, 32], strides = [1, 1]} : vector<2x128xf32> to vector<2x32xf32>
    %310 = arith.mulf %307, %274 : vector<2x32xf32>
    %311 = arith.mulf %306, %308 : vector<2x32xf32>
    %312 = arith.addf %310, %311 : vector<2x32xf32>
    %313 = math.tanh %312 : vector<2x32xf32>
    %314 = arith.mulf %309, %313 : vector<2x32xf32>
    %315 = tpu.concatenate %33, %71, %109, %147, %185, %223, %261, %299 in 0 : vector<2x32xf32>, vector<2x32xf32>, vector<2x32xf32>, vector<2x32xf32>, vector<2x32xf32>, vector<2x32xf32>, vector<2x32xf32>, vector<2x32xf32> -> vector<16x32xf32>
    %316 = tpu.concatenate %314, %276, %238, %200, %162, %124, %86, %48 in 0 : vector<2x32xf32>, vector<2x32xf32>, vector<2x32xf32>, vector<2x32xf32>, vector<2x32xf32>, vector<2x32xf32>, vector<2x32xf32>, vector<2x32xf32> -> vector<16x32xf32>
    %317 = tpu.concatenate %315, %316 in 1 : vector<16x32xf32>, vector<16x32xf32> -> vector<16x64xf32>
    %c1 = arith.constant 1 : index
    %c0_35 = arith.constant 0 : index
    %c0_36 = arith.constant 0 : index
    %318 = vector.load %arg2[%c1, %c0_35, %c0_36] : memref<2x64x256xf32, #tpu.memory_space<vmem>>, vector<1x64x256xf32>
    %319 = vector.shape_cast %318 : vector<1x64x256xf32> to vector<64x256xf32>
    %c1_37 = arith.constant 1 : index
    %c0_38 = arith.constant 0 : index
    %c0_39 = arith.constant 0 : index
    %320 = vector.load %arg3[%c1_37, %c0_38, %c0_39] : memref<2x64x256xf32, #tpu.memory_space<vmem>>, vector<1x64x256xf32>
    %321 = vector.shape_cast %320 : vector<1x64x256xf32> to vector<64x256xf32>
    %c1_40 = arith.constant 1 : index
    %c0_41 = arith.constant 0 : index
    %c0_42 = arith.constant 0 : index
    %322 = vector.load %arg4[%c1_40, %c0_41, %c0_42] : memref<2x1x256xf32, #tpu.memory_space<vmem>>, vector<1x1x256xf32>
    %323 = vector.shape_cast %322 : vector<1x1x256xf32> to vector<1x256xf32>
    %cst_43 = arith.constant dense<0.000000e+00> : vector<16x256xf32>
    %324 = tpu.matmul %317, %319, %cst_43 {dimension_numbers = #tpu.dot_dimension_numbers<[1], [0], [0], [1], [0, 0, 1, 1], [], []>} : vector<16x64xf32>, vector<64x256xf32>, vector<16x256xf32> -> vector<16x256xf32>
    %325 = vector.broadcast %323 : vector<1x256xf32> to vector<16x256xf32>
    %326 = arith.addf %324, %325 : vector<16x256xf32>
    %327 = tpu.concatenate %0, %0 in 1 : vector<2x32xf32>, vector<2x32xf32> -> vector<2x64xf32>
    %cst_44 = arith.constant dense<0.000000e+00> : vector<2x256xf32>
    %328 = tpu.matmul %327, %321, %cst_44 {dimension_numbers = #tpu.dot_dimension_numbers<[1], [0], [0], [1], [0, 0, 1, 1], [], []>} : vector<2x64xf32>, vector<64x256xf32>, vector<2x256xf32> -> vector<2x256xf32>
    %329 = vector.extract_strided_slice %326 {offsets = [0, 0], sizes = [2, 128], strides = [1, 1]} : vector<16x256xf32> to vector<2x128xf32>
    %330 = vector.extract_strided_slice %328 {offsets = [0, 0], sizes = [2, 128], strides = [1, 1]} : vector<2x256xf32> to vector<2x128xf32>
    %331 = arith.addf %329, %330 : vector<2x128xf32>
    %332 = vector.extract_strided_slice %326 {offsets = [14, 128], sizes = [2, 128], strides = [1, 1]} : vector<16x256xf32> to vector<2x128xf32>
    %333 = vector.extract_strided_slice %328 {offsets = [0, 128], sizes = [2, 128], strides = [1, 1]} : vector<2x256xf32> to vector<2x128xf32>
    %334 = arith.addf %332, %333 : vector<2x128xf32>
    %335 = arith.negf %331 : vector<2x128xf32>
    %336 = math.exp %335 : vector<2x128xf32>
    %cst_45 = arith.constant 1.000000e+00 : f32
    %337 = vector.broadcast %cst_45 : f32 to vector<2x128xf32>
    %338 = arith.addf %337, %336 : vector<2x128xf32>
    %339 = arith.divf %337, %338 : vector<2x128xf32>
    %340 = math.tanh %331 : vector<2x128xf32>
    %341 = vector.extract_strided_slice %339 {offsets = [0, 0], sizes = [2, 32], strides = [1, 1]} : vector<2x128xf32> to vector<2x32xf32>
    %342 = vector.extract_strided_slice %339 {offsets = [0, 32], sizes = [2, 32], strides = [1, 1]} : vector<2x128xf32> to vector<2x32xf32>
    %343 = vector.extract_strided_slice %340 {offsets = [0, 64], sizes = [2, 32], strides = [1, 1]} : vector<2x128xf32> to vector<2x32xf32>
    %344 = vector.extract_strided_slice %339 {offsets = [0, 96], sizes = [2, 32], strides = [1, 1]} : vector<2x128xf32> to vector<2x32xf32>
    %345 = arith.mulf %342, %0 : vector<2x32xf32>
    %346 = arith.mulf %341, %343 : vector<2x32xf32>
    %347 = arith.addf %345, %346 : vector<2x32xf32>
    %348 = math.tanh %347 : vector<2x32xf32>
    %349 = arith.mulf %344, %348 : vector<2x32xf32>
    %350 = arith.negf %334 : vector<2x128xf32>
    %351 = math.exp %350 : vector<2x128xf32>
    %cst_46 = arith.constant 1.000000e+00 : f32
    %352 = vector.broadcast %cst_46 : f32 to vector<2x128xf32>
    %353 = arith.addf %352, %351 : vector<2x128xf32>
    %354 = arith.divf %352, %353 : vector<2x128xf32>
    %355 = math.tanh %334 : vector<2x128xf32>
    %356 = vector.extract_strided_slice %354 {offsets = [0, 0], sizes = [2, 32], strides = [1, 1]} : vector<2x128xf32> to vector<2x32xf32>
    %357 = vector.extract_strided_slice %354 {offsets = [0, 32], sizes = [2, 32], strides = [1, 1]} : vector<2x128xf32> to vector<2x32xf32>
    %358 = vector.extract_strided_slice %355 {offsets = [0, 64], sizes = [2, 32], strides = [1, 1]} : vector<2x128xf32> to vector<2x32xf32>
    %359 = vector.extract_strided_slice %354 {offsets = [0, 96], sizes = [2, 32], strides = [1, 1]} : vector<2x128xf32> to vector<2x32xf32>
    %360 = arith.mulf %357, %0 : vector<2x32xf32>
    %361 = arith.mulf %356, %358 : vector<2x32xf32>
    %362 = arith.addf %360, %361 : vector<2x32xf32>
    %363 = math.tanh %362 : vector<2x32xf32>
    %364 = arith.mulf %359, %363 : vector<2x32xf32>
    %365 = tpu.concatenate %349, %364 in 1 : vector<2x32xf32>, vector<2x32xf32> -> vector<2x64xf32>
    %cst_47 = arith.constant dense<0.000000e+00> : vector<2x256xf32>
    %366 = tpu.matmul %365, %321, %cst_47 {dimension_numbers = #tpu.dot_dimension_numbers<[1], [0], [0], [1], [0, 0, 1, 1], [], []>} : vector<2x64xf32>, vector<64x256xf32>, vector<2x256xf32> -> vector<2x256xf32>
    %367 = vector.extract_strided_slice %326 {offsets = [2, 0], sizes = [2, 128], strides = [1, 1]} : vector<16x256xf32> to vector<2x128xf32>
    %368 = vector.extract_strided_slice %366 {offsets = [0, 0], sizes = [2, 128], strides = [1, 1]} : vector<2x256xf32> to vector<2x128xf32>
    %369 = arith.addf %367, %368 : vector<2x128xf32>
    %370 = vector.extract_strided_slice %326 {offsets = [12, 128], sizes = [2, 128], strides = [1, 1]} : vector<16x256xf32> to vector<2x128xf32>
    %371 = vector.extract_strided_slice %366 {offsets = [0, 128], sizes = [2, 128], strides = [1, 1]} : vector<2x256xf32> to vector<2x128xf32>
    %372 = arith.addf %370, %371 : vector<2x128xf32>
    %373 = arith.negf %369 : vector<2x128xf32>
    %374 = math.exp %373 : vector<2x128xf32>
    %cst_48 = arith.constant 1.000000e+00 : f32
    %375 = vector.broadcast %cst_48 : f32 to vector<2x128xf32>
    %376 = arith.addf %375, %374 : vector<2x128xf32>
    %377 = arith.divf %375, %376 : vector<2x128xf32>
    %378 = math.tanh %369 : vector<2x128xf32>
    %379 = vector.extract_strided_slice %377 {offsets = [0, 0], sizes = [2, 32], strides = [1, 1]} : vector<2x128xf32> to vector<2x32xf32>
    %380 = vector.extract_strided_slice %377 {offsets = [0, 32], sizes = [2, 32], strides = [1, 1]} : vector<2x128xf32> to vector<2x32xf32>
    %381 = vector.extract_strided_slice %378 {offsets = [0, 64], sizes = [2, 32], strides = [1, 1]} : vector<2x128xf32> to vector<2x32xf32>
    %382 = vector.extract_strided_slice %377 {offsets = [0, 96], sizes = [2, 32], strides = [1, 1]} : vector<2x128xf32> to vector<2x32xf32>
    %383 = arith.mulf %380, %347 : vector<2x32xf32>
    %384 = arith.mulf %379, %381 : vector<2x32xf32>
    %385 = arith.addf %383, %384 : vector<2x32xf32>
    %386 = math.tanh %385 : vector<2x32xf32>
    %387 = arith.mulf %382, %386 : vector<2x32xf32>
    %388 = arith.negf %372 : vector<2x128xf32>
    %389 = math.exp %388 : vector<2x128xf32>
    %cst_49 = arith.constant 1.000000e+00 : f32
    %390 = vector.broadcast %cst_49 : f32 to vector<2x128xf32>
    %391 = arith.addf %390, %389 : vector<2x128xf32>
    %392 = arith.divf %390, %391 : vector<2x128xf32>
    %393 = math.tanh %372 : vector<2x128xf32>
    %394 = vector.extract_strided_slice %392 {offsets = [0, 0], sizes = [2, 32], strides = [1, 1]} : vector<2x128xf32> to vector<2x32xf32>
    %395 = vector.extract_strided_slice %392 {offsets = [0, 32], sizes = [2, 32], strides = [1, 1]} : vector<2x128xf32> to vector<2x32xf32>
    %396 = vector.extract_strided_slice %393 {offsets = [0, 64], sizes = [2, 32], strides = [1, 1]} : vector<2x128xf32> to vector<2x32xf32>
    %397 = vector.extract_strided_slice %392 {offsets = [0, 96], sizes = [2, 32], strides = [1, 1]} : vector<2x128xf32> to vector<2x32xf32>
    %398 = arith.mulf %395, %362 : vector<2x32xf32>
    %399 = arith.mulf %394, %396 : vector<2x32xf32>
    %400 = arith.addf %398, %399 : vector<2x32xf32>
    %401 = math.tanh %400 : vector<2x32xf32>
    %402 = arith.mulf %397, %401 : vector<2x32xf32>
    %403 = tpu.concatenate %387, %402 in 1 : vector<2x32xf32>, vector<2x32xf32> -> vector<2x64xf32>
    %cst_50 = arith.constant dense<0.000000e+00> : vector<2x256xf32>
    %404 = tpu.matmul %403, %321, %cst_50 {dimension_numbers = #tpu.dot_dimension_numbers<[1], [0], [0], [1], [0, 0, 1, 1], [], []>} : vector<2x64xf32>, vector<64x256xf32>, vector<2x256xf32> -> vector<2x256xf32>
    %405 = vector.extract_strided_slice %326 {offsets = [4, 0], sizes = [2, 128], strides = [1, 1]} : vector<16x256xf32> to vector<2x128xf32>
    %406 = vector.extract_strided_slice %404 {offsets = [0, 0], sizes = [2, 128], strides = [1, 1]} : vector<2x256xf32> to vector<2x128xf32>
    %407 = arith.addf %405, %406 : vector<2x128xf32>
    %408 = vector.extract_strided_slice %326 {offsets = [10, 128], sizes = [2, 128], strides = [1, 1]} : vector<16x256xf32> to vector<2x128xf32>
    %409 = vector.extract_strided_slice %404 {offsets = [0, 128], sizes = [2, 128], strides = [1, 1]} : vector<2x256xf32> to vector<2x128xf32>
    %410 = arith.addf %408, %409 : vector<2x128xf32>
    %411 = arith.negf %407 : vector<2x128xf32>
    %412 = math.exp %411 : vector<2x128xf32>
    %cst_51 = arith.constant 1.000000e+00 : f32
    %413 = vector.broadcast %cst_51 : f32 to vector<2x128xf32>
    %414 = arith.addf %413, %412 : vector<2x128xf32>
    %415 = arith.divf %413, %414 : vector<2x128xf32>
    %416 = math.tanh %407 : vector<2x128xf32>
    %417 = vector.extract_strided_slice %415 {offsets = [0, 0], sizes = [2, 32], strides = [1, 1]} : vector<2x128xf32> to vector<2x32xf32>
    %418 = vector.extract_strided_slice %415 {offsets = [0, 32], sizes = [2, 32], strides = [1, 1]} : vector<2x128xf32> to vector<2x32xf32>
    %419 = vector.extract_strided_slice %416 {offsets = [0, 64], sizes = [2, 32], strides = [1, 1]} : vector<2x128xf32> to vector<2x32xf32>
    %420 = vector.extract_strided_slice %415 {offsets = [0, 96], sizes = [2, 32], strides = [1, 1]} : vector<2x128xf32> to vector<2x32xf32>
    %421 = arith.mulf %418, %385 : vector<2x32xf32>
    %422 = arith.mulf %417, %419 : vector<2x32xf32>
    %423 = arith.addf %421, %422 : vector<2x32xf32>
    %424 = math.tanh %423 : vector<2x32xf32>
    %425 = arith.mulf %420, %424 : vector<2x32xf32>
    %426 = arith.negf %410 : vector<2x128xf32>
    %427 = math.exp %426 : vector<2x128xf32>
    %cst_52 = arith.constant 1.000000e+00 : f32
    %428 = vector.broadcast %cst_52 : f32 to vector<2x128xf32>
    %429 = arith.addf %428, %427 : vector<2x128xf32>
    %430 = arith.divf %428, %429 : vector<2x128xf32>
    %431 = math.tanh %410 : vector<2x128xf32>
    %432 = vector.extract_strided_slice %430 {offsets = [0, 0], sizes = [2, 32], strides = [1, 1]} : vector<2x128xf32> to vector<2x32xf32>
    %433 = vector.extract_strided_slice %430 {offsets = [0, 32], sizes = [2, 32], strides = [1, 1]} : vector<2x128xf32> to vector<2x32xf32>
    %434 = vector.extract_strided_slice %431 {offsets = [0, 64], sizes = [2, 32], strides = [1, 1]} : vector<2x128xf32> to vector<2x32xf32>
    %435 = vector.extract_strided_slice %430 {offsets = [0, 96], sizes = [2, 32], strides = [1, 1]} : vector<2x128xf32> to vector<2x32xf32>
    %436 = arith.mulf %433, %400 : vector<2x32xf32>
    %437 = arith.mulf %432, %434 : vector<2x32xf32>
    %438 = arith.addf %436, %437 : vector<2x32xf32>
    %439 = math.tanh %438 : vector<2x32xf32>
    %440 = arith.mulf %435, %439 : vector<2x32xf32>
    %441 = tpu.concatenate %425, %440 in 1 : vector<2x32xf32>, vector<2x32xf32> -> vector<2x64xf32>
    %cst_53 = arith.constant dense<0.000000e+00> : vector<2x256xf32>
    %442 = tpu.matmul %441, %321, %cst_53 {dimension_numbers = #tpu.dot_dimension_numbers<[1], [0], [0], [1], [0, 0, 1, 1], [], []>} : vector<2x64xf32>, vector<64x256xf32>, vector<2x256xf32> -> vector<2x256xf32>
    %443 = vector.extract_strided_slice %326 {offsets = [6, 0], sizes = [2, 128], strides = [1, 1]} : vector<16x256xf32> to vector<2x128xf32>
    %444 = vector.extract_strided_slice %442 {offsets = [0, 0], sizes = [2, 128], strides = [1, 1]} : vector<2x256xf32> to vector<2x128xf32>
    %445 = arith.addf %443, %444 : vector<2x128xf32>
    %446 = vector.extract_strided_slice %326 {offsets = [8, 128], sizes = [2, 128], strides = [1, 1]} : vector<16x256xf32> to vector<2x128xf32>
    %447 = vector.extract_strided_slice %442 {offsets = [0, 128], sizes = [2, 128], strides = [1, 1]} : vector<2x256xf32> to vector<2x128xf32>
    %448 = arith.addf %446, %447 : vector<2x128xf32>
    %449 = arith.negf %445 : vector<2x128xf32>
    %450 = math.exp %449 : vector<2x128xf32>
    %cst_54 = arith.constant 1.000000e+00 : f32
    %451 = vector.broadcast %cst_54 : f32 to vector<2x128xf32>
    %452 = arith.addf %451, %450 : vector<2x128xf32>
    %453 = arith.divf %451, %452 : vector<2x128xf32>
    %454 = math.tanh %445 : vector<2x128xf32>
    %455 = vector.extract_strided_slice %453 {offsets = [0, 0], sizes = [2, 32], strides = [1, 1]} : vector<2x128xf32> to vector<2x32xf32>
    %456 = vector.extract_strided_slice %453 {offsets = [0, 32], sizes = [2, 32], strides = [1, 1]} : vector<2x128xf32> to vector<2x32xf32>
    %457 = vector.extract_strided_slice %454 {offsets = [0, 64], sizes = [2, 32], strides = [1, 1]} : vector<2x128xf32> to vector<2x32xf32>
    %458 = vector.extract_strided_slice %453 {offsets = [0, 96], sizes = [2, 32], strides = [1, 1]} : vector<2x128xf32> to vector<2x32xf32>
    %459 = arith.mulf %456, %423 : vector<2x32xf32>
    %460 = arith.mulf %455, %457 : vector<2x32xf32>
    %461 = arith.addf %459, %460 : vector<2x32xf32>
    %462 = math.tanh %461 : vector<2x32xf32>
    %463 = arith.mulf %458, %462 : vector<2x32xf32>
    %464 = arith.negf %448 : vector<2x128xf32>
    %465 = math.exp %464 : vector<2x128xf32>
    %cst_55 = arith.constant 1.000000e+00 : f32
    %466 = vector.broadcast %cst_55 : f32 to vector<2x128xf32>
    %467 = arith.addf %466, %465 : vector<2x128xf32>
    %468 = arith.divf %466, %467 : vector<2x128xf32>
    %469 = math.tanh %448 : vector<2x128xf32>
    %470 = vector.extract_strided_slice %468 {offsets = [0, 0], sizes = [2, 32], strides = [1, 1]} : vector<2x128xf32> to vector<2x32xf32>
    %471 = vector.extract_strided_slice %468 {offsets = [0, 32], sizes = [2, 32], strides = [1, 1]} : vector<2x128xf32> to vector<2x32xf32>
    %472 = vector.extract_strided_slice %469 {offsets = [0, 64], sizes = [2, 32], strides = [1, 1]} : vector<2x128xf32> to vector<2x32xf32>
    %473 = vector.extract_strided_slice %468 {offsets = [0, 96], sizes = [2, 32], strides = [1, 1]} : vector<2x128xf32> to vector<2x32xf32>
    %474 = arith.mulf %471, %438 : vector<2x32xf32>
    %475 = arith.mulf %470, %472 : vector<2x32xf32>
    %476 = arith.addf %474, %475 : vector<2x32xf32>
    %477 = math.tanh %476 : vector<2x32xf32>
    %478 = arith.mulf %473, %477 : vector<2x32xf32>
    %479 = tpu.concatenate %463, %478 in 1 : vector<2x32xf32>, vector<2x32xf32> -> vector<2x64xf32>
    %cst_56 = arith.constant dense<0.000000e+00> : vector<2x256xf32>
    %480 = tpu.matmul %479, %321, %cst_56 {dimension_numbers = #tpu.dot_dimension_numbers<[1], [0], [0], [1], [0, 0, 1, 1], [], []>} : vector<2x64xf32>, vector<64x256xf32>, vector<2x256xf32> -> vector<2x256xf32>
    %481 = vector.extract_strided_slice %326 {offsets = [8, 0], sizes = [2, 128], strides = [1, 1]} : vector<16x256xf32> to vector<2x128xf32>
    %482 = vector.extract_strided_slice %480 {offsets = [0, 0], sizes = [2, 128], strides = [1, 1]} : vector<2x256xf32> to vector<2x128xf32>
    %483 = arith.addf %481, %482 : vector<2x128xf32>
    %484 = vector.extract_strided_slice %326 {offsets = [6, 128], sizes = [2, 128], strides = [1, 1]} : vector<16x256xf32> to vector<2x128xf32>
    %485 = vector.extract_strided_slice %480 {offsets = [0, 128], sizes = [2, 128], strides = [1, 1]} : vector<2x256xf32> to vector<2x128xf32>
    %486 = arith.addf %484, %485 : vector<2x128xf32>
    %487 = arith.negf %483 : vector<2x128xf32>
    %488 = math.exp %487 : vector<2x128xf32>
    %cst_57 = arith.constant 1.000000e+00 : f32
    %489 = vector.broadcast %cst_57 : f32 to vector<2x128xf32>
    %490 = arith.addf %489, %488 : vector<2x128xf32>
    %491 = arith.divf %489, %490 : vector<2x128xf32>
    %492 = math.tanh %483 : vector<2x128xf32>
    %493 = vector.extract_strided_slice %491 {offsets = [0, 0], sizes = [2, 32], strides = [1, 1]} : vector<2x128xf32> to vector<2x32xf32>
    %494 = vector.extract_strided_slice %491 {offsets = [0, 32], sizes = [2, 32], strides = [1, 1]} : vector<2x128xf32> to vector<2x32xf32>
    %495 = vector.extract_strided_slice %492 {offsets = [0, 64], sizes = [2, 32], strides = [1, 1]} : vector<2x128xf32> to vector<2x32xf32>
    %496 = vector.extract_strided_slice %491 {offsets = [0, 96], sizes = [2, 32], strides = [1, 1]} : vector<2x128xf32> to vector<2x32xf32>
    %497 = arith.mulf %494, %461 : vector<2x32xf32>
    %498 = arith.mulf %493, %495 : vector<2x32xf32>
    %499 = arith.addf %497, %498 : vector<2x32xf32>
    %500 = math.tanh %499 : vector<2x32xf32>
    %501 = arith.mulf %496, %500 : vector<2x32xf32>
    %502 = arith.negf %486 : vector<2x128xf32>
    %503 = math.exp %502 : vector<2x128xf32>
    %cst_58 = arith.constant 1.000000e+00 : f32
    %504 = vector.broadcast %cst_58 : f32 to vector<2x128xf32>
    %505 = arith.addf %504, %503 : vector<2x128xf32>
    %506 = arith.divf %504, %505 : vector<2x128xf32>
    %507 = math.tanh %486 : vector<2x128xf32>
    %508 = vector.extract_strided_slice %506 {offsets = [0, 0], sizes = [2, 32], strides = [1, 1]} : vector<2x128xf32> to vector<2x32xf32>
    %509 = vector.extract_strided_slice %506 {offsets = [0, 32], sizes = [2, 32], strides = [1, 1]} : vector<2x128xf32> to vector<2x32xf32>
    %510 = vector.extract_strided_slice %507 {offsets = [0, 64], sizes = [2, 32], strides = [1, 1]} : vector<2x128xf32> to vector<2x32xf32>
    %511 = vector.extract_strided_slice %506 {offsets = [0, 96], sizes = [2, 32], strides = [1, 1]} : vector<2x128xf32> to vector<2x32xf32>
    %512 = arith.mulf %509, %476 : vector<2x32xf32>
    %513 = arith.mulf %508, %510 : vector<2x32xf32>
    %514 = arith.addf %512, %513 : vector<2x32xf32>
    %515 = math.tanh %514 : vector<2x32xf32>
    %516 = arith.mulf %511, %515 : vector<2x32xf32>
    %517 = tpu.concatenate %501, %516 in 1 : vector<2x32xf32>, vector<2x32xf32> -> vector<2x64xf32>
    %cst_59 = arith.constant dense<0.000000e+00> : vector<2x256xf32>
    %518 = tpu.matmul %517, %321, %cst_59 {dimension_numbers = #tpu.dot_dimension_numbers<[1], [0], [0], [1], [0, 0, 1, 1], [], []>} : vector<2x64xf32>, vector<64x256xf32>, vector<2x256xf32> -> vector<2x256xf32>
    %519 = vector.extract_strided_slice %326 {offsets = [10, 0], sizes = [2, 128], strides = [1, 1]} : vector<16x256xf32> to vector<2x128xf32>
    %520 = vector.extract_strided_slice %518 {offsets = [0, 0], sizes = [2, 128], strides = [1, 1]} : vector<2x256xf32> to vector<2x128xf32>
    %521 = arith.addf %519, %520 : vector<2x128xf32>
    %522 = vector.extract_strided_slice %326 {offsets = [4, 128], sizes = [2, 128], strides = [1, 1]} : vector<16x256xf32> to vector<2x128xf32>
    %523 = vector.extract_strided_slice %518 {offsets = [0, 128], sizes = [2, 128], strides = [1, 1]} : vector<2x256xf32> to vector<2x128xf32>
    %524 = arith.addf %522, %523 : vector<2x128xf32>
    %525 = arith.negf %521 : vector<2x128xf32>
    %526 = math.exp %525 : vector<2x128xf32>
    %cst_60 = arith.constant 1.000000e+00 : f32
    %527 = vector.broadcast %cst_60 : f32 to vector<2x128xf32>
    %528 = arith.addf %527, %526 : vector<2x128xf32>
    %529 = arith.divf %527, %528 : vector<2x128xf32>
    %530 = math.tanh %521 : vector<2x128xf32>
    %531 = vector.extract_strided_slice %529 {offsets = [0, 0], sizes = [2, 32], strides = [1, 1]} : vector<2x128xf32> to vector<2x32xf32>
    %532 = vector.extract_strided_slice %529 {offsets = [0, 32], sizes = [2, 32], strides = [1, 1]} : vector<2x128xf32> to vector<2x32xf32>
    %533 = vector.extract_strided_slice %530 {offsets = [0, 64], sizes = [2, 32], strides = [1, 1]} : vector<2x128xf32> to vector<2x32xf32>
    %534 = vector.extract_strided_slice %529 {offsets = [0, 96], sizes = [2, 32], strides = [1, 1]} : vector<2x128xf32> to vector<2x32xf32>
    %535 = arith.mulf %532, %499 : vector<2x32xf32>
    %536 = arith.mulf %531, %533 : vector<2x32xf32>
    %537 = arith.addf %535, %536 : vector<2x32xf32>
    %538 = math.tanh %537 : vector<2x32xf32>
    %539 = arith.mulf %534, %538 : vector<2x32xf32>
    %540 = arith.negf %524 : vector<2x128xf32>
    %541 = math.exp %540 : vector<2x128xf32>
    %cst_61 = arith.constant 1.000000e+00 : f32
    %542 = vector.broadcast %cst_61 : f32 to vector<2x128xf32>
    %543 = arith.addf %542, %541 : vector<2x128xf32>
    %544 = arith.divf %542, %543 : vector<2x128xf32>
    %545 = math.tanh %524 : vector<2x128xf32>
    %546 = vector.extract_strided_slice %544 {offsets = [0, 0], sizes = [2, 32], strides = [1, 1]} : vector<2x128xf32> to vector<2x32xf32>
    %547 = vector.extract_strided_slice %544 {offsets = [0, 32], sizes = [2, 32], strides = [1, 1]} : vector<2x128xf32> to vector<2x32xf32>
    %548 = vector.extract_strided_slice %545 {offsets = [0, 64], sizes = [2, 32], strides = [1, 1]} : vector<2x128xf32> to vector<2x32xf32>
    %549 = vector.extract_strided_slice %544 {offsets = [0, 96], sizes = [2, 32], strides = [1, 1]} : vector<2x128xf32> to vector<2x32xf32>
    %550 = arith.mulf %547, %514 : vector<2x32xf32>
    %551 = arith.mulf %546, %548 : vector<2x32xf32>
    %552 = arith.addf %550, %551 : vector<2x32xf32>
    %553 = math.tanh %552 : vector<2x32xf32>
    %554 = arith.mulf %549, %553 : vector<2x32xf32>
    %555 = tpu.concatenate %539, %554 in 1 : vector<2x32xf32>, vector<2x32xf32> -> vector<2x64xf32>
    %cst_62 = arith.constant dense<0.000000e+00> : vector<2x256xf32>
    %556 = tpu.matmul %555, %321, %cst_62 {dimension_numbers = #tpu.dot_dimension_numbers<[1], [0], [0], [1], [0, 0, 1, 1], [], []>} : vector<2x64xf32>, vector<64x256xf32>, vector<2x256xf32> -> vector<2x256xf32>
    %557 = vector.extract_strided_slice %326 {offsets = [12, 0], sizes = [2, 128], strides = [1, 1]} : vector<16x256xf32> to vector<2x128xf32>
    %558 = vector.extract_strided_slice %556 {offsets = [0, 0], sizes = [2, 128], strides = [1, 1]} : vector<2x256xf32> to vector<2x128xf32>
    %559 = arith.addf %557, %558 : vector<2x128xf32>
    %560 = vector.extract_strided_slice %326 {offsets = [2, 128], sizes = [2, 128], strides = [1, 1]} : vector<16x256xf32> to vector<2x128xf32>
    %561 = vector.extract_strided_slice %556 {offsets = [0, 128], sizes = [2, 128], strides = [1, 1]} : vector<2x256xf32> to vector<2x128xf32>
    %562 = arith.addf %560, %561 : vector<2x128xf32>
    %563 = arith.negf %559 : vector<2x128xf32>
    %564 = math.exp %563 : vector<2x128xf32>
    %cst_63 = arith.constant 1.000000e+00 : f32
    %565 = vector.broadcast %cst_63 : f32 to vector<2x128xf32>
    %566 = arith.addf %565, %564 : vector<2x128xf32>
    %567 = arith.divf %565, %566 : vector<2x128xf32>
    %568 = math.tanh %559 : vector<2x128xf32>
    %569 = vector.extract_strided_slice %567 {offsets = [0, 0], sizes = [2, 32], strides = [1, 1]} : vector<2x128xf32> to vector<2x32xf32>
    %570 = vector.extract_strided_slice %567 {offsets = [0, 32], sizes = [2, 32], strides = [1, 1]} : vector<2x128xf32> to vector<2x32xf32>
    %571 = vector.extract_strided_slice %568 {offsets = [0, 64], sizes = [2, 32], strides = [1, 1]} : vector<2x128xf32> to vector<2x32xf32>
    %572 = vector.extract_strided_slice %567 {offsets = [0, 96], sizes = [2, 32], strides = [1, 1]} : vector<2x128xf32> to vector<2x32xf32>
    %573 = arith.mulf %570, %537 : vector<2x32xf32>
    %574 = arith.mulf %569, %571 : vector<2x32xf32>
    %575 = arith.addf %573, %574 : vector<2x32xf32>
    %576 = math.tanh %575 : vector<2x32xf32>
    %577 = arith.mulf %572, %576 : vector<2x32xf32>
    %578 = arith.negf %562 : vector<2x128xf32>
    %579 = math.exp %578 : vector<2x128xf32>
    %cst_64 = arith.constant 1.000000e+00 : f32
    %580 = vector.broadcast %cst_64 : f32 to vector<2x128xf32>
    %581 = arith.addf %580, %579 : vector<2x128xf32>
    %582 = arith.divf %580, %581 : vector<2x128xf32>
    %583 = math.tanh %562 : vector<2x128xf32>
    %584 = vector.extract_strided_slice %582 {offsets = [0, 0], sizes = [2, 32], strides = [1, 1]} : vector<2x128xf32> to vector<2x32xf32>
    %585 = vector.extract_strided_slice %582 {offsets = [0, 32], sizes = [2, 32], strides = [1, 1]} : vector<2x128xf32> to vector<2x32xf32>
    %586 = vector.extract_strided_slice %583 {offsets = [0, 64], sizes = [2, 32], strides = [1, 1]} : vector<2x128xf32> to vector<2x32xf32>
    %587 = vector.extract_strided_slice %582 {offsets = [0, 96], sizes = [2, 32], strides = [1, 1]} : vector<2x128xf32> to vector<2x32xf32>
    %588 = arith.mulf %585, %552 : vector<2x32xf32>
    %589 = arith.mulf %584, %586 : vector<2x32xf32>
    %590 = arith.addf %588, %589 : vector<2x32xf32>
    %591 = math.tanh %590 : vector<2x32xf32>
    %592 = arith.mulf %587, %591 : vector<2x32xf32>
    %593 = tpu.concatenate %577, %592 in 1 : vector<2x32xf32>, vector<2x32xf32> -> vector<2x64xf32>
    %cst_65 = arith.constant dense<0.000000e+00> : vector<2x256xf32>
    %594 = tpu.matmul %593, %321, %cst_65 {dimension_numbers = #tpu.dot_dimension_numbers<[1], [0], [0], [1], [0, 0, 1, 1], [], []>} : vector<2x64xf32>, vector<64x256xf32>, vector<2x256xf32> -> vector<2x256xf32>
    %595 = vector.extract_strided_slice %326 {offsets = [14, 0], sizes = [2, 128], strides = [1, 1]} : vector<16x256xf32> to vector<2x128xf32>
    %596 = vector.extract_strided_slice %594 {offsets = [0, 0], sizes = [2, 128], strides = [1, 1]} : vector<2x256xf32> to vector<2x128xf32>
    %597 = arith.addf %595, %596 : vector<2x128xf32>
    %598 = vector.extract_strided_slice %326 {offsets = [0, 128], sizes = [2, 128], strides = [1, 1]} : vector<16x256xf32> to vector<2x128xf32>
    %599 = vector.extract_strided_slice %594 {offsets = [0, 128], sizes = [2, 128], strides = [1, 1]} : vector<2x256xf32> to vector<2x128xf32>
    %600 = arith.addf %598, %599 : vector<2x128xf32>
    %601 = arith.negf %597 : vector<2x128xf32>
    %602 = math.exp %601 : vector<2x128xf32>
    %cst_66 = arith.constant 1.000000e+00 : f32
    %603 = vector.broadcast %cst_66 : f32 to vector<2x128xf32>
    %604 = arith.addf %603, %602 : vector<2x128xf32>
    %605 = arith.divf %603, %604 : vector<2x128xf32>
    %606 = math.tanh %597 : vector<2x128xf32>
    %607 = vector.extract_strided_slice %605 {offsets = [0, 0], sizes = [2, 32], strides = [1, 1]} : vector<2x128xf32> to vector<2x32xf32>
    %608 = vector.extract_strided_slice %605 {offsets = [0, 32], sizes = [2, 32], strides = [1, 1]} : vector<2x128xf32> to vector<2x32xf32>
    %609 = vector.extract_strided_slice %606 {offsets = [0, 64], sizes = [2, 32], strides = [1, 1]} : vector<2x128xf32> to vector<2x32xf32>
    %610 = vector.extract_strided_slice %605 {offsets = [0, 96], sizes = [2, 32], strides = [1, 1]} : vector<2x128xf32> to vector<2x32xf32>
    %611 = arith.mulf %608, %575 : vector<2x32xf32>
    %612 = arith.mulf %607, %609 : vector<2x32xf32>
    %613 = arith.addf %611, %612 : vector<2x32xf32>
    %614 = math.tanh %613 : vector<2x32xf32>
    %615 = arith.mulf %610, %614 : vector<2x32xf32>
    %616 = arith.negf %600 : vector<2x128xf32>
    %617 = math.exp %616 : vector<2x128xf32>
    %cst_67 = arith.constant 1.000000e+00 : f32
    %618 = vector.broadcast %cst_67 : f32 to vector<2x128xf32>
    %619 = arith.addf %618, %617 : vector<2x128xf32>
    %620 = arith.divf %618, %619 : vector<2x128xf32>
    %621 = math.tanh %600 : vector<2x128xf32>
    %622 = vector.extract_strided_slice %620 {offsets = [0, 0], sizes = [2, 32], strides = [1, 1]} : vector<2x128xf32> to vector<2x32xf32>
    %623 = vector.extract_strided_slice %620 {offsets = [0, 32], sizes = [2, 32], strides = [1, 1]} : vector<2x128xf32> to vector<2x32xf32>
    %624 = vector.extract_strided_slice %621 {offsets = [0, 64], sizes = [2, 32], strides = [1, 1]} : vector<2x128xf32> to vector<2x32xf32>
    %625 = vector.extract_strided_slice %620 {offsets = [0, 96], sizes = [2, 32], strides = [1, 1]} : vector<2x128xf32> to vector<2x32xf32>
    %626 = arith.mulf %623, %590 : vector<2x32xf32>
    %627 = arith.mulf %622, %624 : vector<2x32xf32>
    %628 = arith.addf %626, %627 : vector<2x32xf32>
    %629 = math.tanh %628 : vector<2x32xf32>
    %630 = arith.mulf %625, %629 : vector<2x32xf32>
    %c0_68 = arith.constant 0 : index
    %c0_69 = arith.constant 0 : index
    %631 = vector.load %arg1[%c0_68, %c0_69] : memref<16x20xf32, #tpu.memory_space<vmem>>, vector<16x20xf32>
    %c0_70 = arith.constant 0 : index
    %c0_71 = arith.constant 0 : index
    %c0_72 = arith.constant 0 : index
    %632 = vector.load %arg5[%c0_70, %c0_71, %c0_72] : memref<2x64x256xf32, #tpu.memory_space<vmem>>, vector<1x20x256xf32>
    %633 = vector.shape_cast %632 : vector<1x20x256xf32> to vector<20x256xf32>
    %c0_73 = arith.constant 0 : index
    %c0_74 = arith.constant 0 : index
    %c0_75 = arith.constant 0 : index
    %634 = vector.load %arg6[%c0_73, %c0_74, %c0_75] : memref<2x64x256xf32, #tpu.memory_space<vmem>>, vector<1x64x256xf32>
    %635 = vector.shape_cast %634 : vector<1x64x256xf32> to vector<64x256xf32>
    %c0_76 = arith.constant 0 : index
    %c0_77 = arith.constant 0 : index
    %c0_78 = arith.constant 0 : index
    %636 = vector.load %arg7[%c0_76, %c0_77, %c0_78] : memref<2x1x256xf32, #tpu.memory_space<vmem>>, vector<1x1x256xf32>
    %637 = vector.shape_cast %636 : vector<1x1x256xf32> to vector<1x256xf32>
    %cst_79 = arith.constant dense<0.000000e+00> : vector<16x256xf32>
    %638 = tpu.matmul %631, %633, %cst_79 {dimension_numbers = #tpu.dot_dimension_numbers<[1], [0], [0], [1], [0, 0, 1, 1], [], []>} : vector<16x20xf32>, vector<20x256xf32>, vector<16x256xf32> -> vector<16x256xf32>
    %639 = vector.broadcast %637 : vector<1x256xf32> to vector<16x256xf32>
    %640 = arith.addf %638, %639 : vector<16x256xf32>
    %641 = tpu.concatenate %299, %314 in 1 : vector<2x32xf32>, vector<2x32xf32> -> vector<2x64xf32>
    %cst_80 = arith.constant dense<0.000000e+00> : vector<2x256xf32>
    %642 = tpu.matmul %641, %635, %cst_80 {dimension_numbers = #tpu.dot_dimension_numbers<[1], [0], [0], [1], [0, 0, 1, 1], [], []>} : vector<2x64xf32>, vector<64x256xf32>, vector<2x256xf32> -> vector<2x256xf32>
    %643 = vector.extract_strided_slice %640 {offsets = [0, 0], sizes = [2, 128], strides = [1, 1]} : vector<16x256xf32> to vector<2x128xf32>
    %644 = vector.extract_strided_slice %642 {offsets = [0, 0], sizes = [2, 128], strides = [1, 1]} : vector<2x256xf32> to vector<2x128xf32>
    %645 = arith.addf %643, %644 : vector<2x128xf32>
    %646 = vector.extract_strided_slice %640 {offsets = [14, 128], sizes = [2, 128], strides = [1, 1]} : vector<16x256xf32> to vector<2x128xf32>
    %647 = vector.extract_strided_slice %642 {offsets = [0, 128], sizes = [2, 128], strides = [1, 1]} : vector<2x256xf32> to vector<2x128xf32>
    %648 = arith.addf %646, %647 : vector<2x128xf32>
    %649 = arith.negf %645 : vector<2x128xf32>
    %650 = math.exp %649 : vector<2x128xf32>
    %cst_81 = arith.constant 1.000000e+00 : f32
    %651 = vector.broadcast %cst_81 : f32 to vector<2x128xf32>
    %652 = arith.addf %651, %650 : vector<2x128xf32>
    %653 = arith.divf %651, %652 : vector<2x128xf32>
    %654 = math.tanh %645 : vector<2x128xf32>
    %655 = vector.extract_strided_slice %653 {offsets = [0, 0], sizes = [2, 32], strides = [1, 1]} : vector<2x128xf32> to vector<2x32xf32>
    %656 = vector.extract_strided_slice %653 {offsets = [0, 32], sizes = [2, 32], strides = [1, 1]} : vector<2x128xf32> to vector<2x32xf32>
    %657 = vector.extract_strided_slice %654 {offsets = [0, 64], sizes = [2, 32], strides = [1, 1]} : vector<2x128xf32> to vector<2x32xf32>
    %658 = vector.extract_strided_slice %653 {offsets = [0, 96], sizes = [2, 32], strides = [1, 1]} : vector<2x128xf32> to vector<2x32xf32>
    %659 = arith.mulf %656, %297 : vector<2x32xf32>
    %660 = arith.mulf %655, %657 : vector<2x32xf32>
    %661 = arith.addf %659, %660 : vector<2x32xf32>
    %662 = math.tanh %661 : vector<2x32xf32>
    %663 = arith.mulf %658, %662 : vector<2x32xf32>
    %664 = arith.negf %648 : vector<2x128xf32>
    %665 = math.exp %664 : vector<2x128xf32>
    %cst_82 = arith.constant 1.000000e+00 : f32
    %666 = vector.broadcast %cst_82 : f32 to vector<2x128xf32>
    %667 = arith.addf %666, %665 : vector<2x128xf32>
    %668 = arith.divf %666, %667 : vector<2x128xf32>
    %669 = math.tanh %648 : vector<2x128xf32>
    %670 = vector.extract_strided_slice %668 {offsets = [0, 0], sizes = [2, 32], strides = [1, 1]} : vector<2x128xf32> to vector<2x32xf32>
    %671 = vector.extract_strided_slice %668 {offsets = [0, 32], sizes = [2, 32], strides = [1, 1]} : vector<2x128xf32> to vector<2x32xf32>
    %672 = vector.extract_strided_slice %669 {offsets = [0, 64], sizes = [2, 32], strides = [1, 1]} : vector<2x128xf32> to vector<2x32xf32>
    %673 = vector.extract_strided_slice %668 {offsets = [0, 96], sizes = [2, 32], strides = [1, 1]} : vector<2x128xf32> to vector<2x32xf32>
    %674 = arith.mulf %671, %312 : vector<2x32xf32>
    %675 = arith.mulf %670, %672 : vector<2x32xf32>
    %676 = arith.addf %674, %675 : vector<2x32xf32>
    %677 = math.tanh %676 : vector<2x32xf32>
    %678 = arith.mulf %673, %677 : vector<2x32xf32>
    %679 = tpu.concatenate %663, %678 in 1 : vector<2x32xf32>, vector<2x32xf32> -> vector<2x64xf32>
    %cst_83 = arith.constant dense<0.000000e+00> : vector<2x256xf32>
    %680 = tpu.matmul %679, %635, %cst_83 {dimension_numbers = #tpu.dot_dimension_numbers<[1], [0], [0], [1], [0, 0, 1, 1], [], []>} : vector<2x64xf32>, vector<64x256xf32>, vector<2x256xf32> -> vector<2x256xf32>
    %681 = vector.extract_strided_slice %640 {offsets = [2, 0], sizes = [2, 128], strides = [1, 1]} : vector<16x256xf32> to vector<2x128xf32>
    %682 = vector.extract_strided_slice %680 {offsets = [0, 0], sizes = [2, 128], strides = [1, 1]} : vector<2x256xf32> to vector<2x128xf32>
    %683 = arith.addf %681, %682 : vector<2x128xf32>
    %684 = vector.extract_strided_slice %640 {offsets = [12, 128], sizes = [2, 128], strides = [1, 1]} : vector<16x256xf32> to vector<2x128xf32>
    %685 = vector.extract_strided_slice %680 {offsets = [0, 128], sizes = [2, 128], strides = [1, 1]} : vector<2x256xf32> to vector<2x128xf32>
    %686 = arith.addf %684, %685 : vector<2x128xf32>
    %687 = arith.negf %683 : vector<2x128xf32>
    %688 = math.exp %687 : vector<2x128xf32>
    %cst_84 = arith.constant 1.000000e+00 : f32
    %689 = vector.broadcast %cst_84 : f32 to vector<2x128xf32>
    %690 = arith.addf %689, %688 : vector<2x128xf32>
    %691 = arith.divf %689, %690 : vector<2x128xf32>
    %692 = math.tanh %683 : vector<2x128xf32>
    %693 = vector.extract_strided_slice %691 {offsets = [0, 0], sizes = [2, 32], strides = [1, 1]} : vector<2x128xf32> to vector<2x32xf32>
    %694 = vector.extract_strided_slice %691 {offsets = [0, 32], sizes = [2, 32], strides = [1, 1]} : vector<2x128xf32> to vector<2x32xf32>
    %695 = vector.extract_strided_slice %692 {offsets = [0, 64], sizes = [2, 32], strides = [1, 1]} : vector<2x128xf32> to vector<2x32xf32>
    %696 = vector.extract_strided_slice %691 {offsets = [0, 96], sizes = [2, 32], strides = [1, 1]} : vector<2x128xf32> to vector<2x32xf32>
    %697 = arith.mulf %694, %661 : vector<2x32xf32>
    %698 = arith.mulf %693, %695 : vector<2x32xf32>
    %699 = arith.addf %697, %698 : vector<2x32xf32>
    %700 = math.tanh %699 : vector<2x32xf32>
    %701 = arith.mulf %696, %700 : vector<2x32xf32>
    %702 = arith.negf %686 : vector<2x128xf32>
    %703 = math.exp %702 : vector<2x128xf32>
    %cst_85 = arith.constant 1.000000e+00 : f32
    %704 = vector.broadcast %cst_85 : f32 to vector<2x128xf32>
    %705 = arith.addf %704, %703 : vector<2x128xf32>
    %706 = arith.divf %704, %705 : vector<2x128xf32>
    %707 = math.tanh %686 : vector<2x128xf32>
    %708 = vector.extract_strided_slice %706 {offsets = [0, 0], sizes = [2, 32], strides = [1, 1]} : vector<2x128xf32> to vector<2x32xf32>
    %709 = vector.extract_strided_slice %706 {offsets = [0, 32], sizes = [2, 32], strides = [1, 1]} : vector<2x128xf32> to vector<2x32xf32>
    %710 = vector.extract_strided_slice %707 {offsets = [0, 64], sizes = [2, 32], strides = [1, 1]} : vector<2x128xf32> to vector<2x32xf32>
    %711 = vector.extract_strided_slice %706 {offsets = [0, 96], sizes = [2, 32], strides = [1, 1]} : vector<2x128xf32> to vector<2x32xf32>
    %712 = arith.mulf %709, %676 : vector<2x32xf32>
    %713 = arith.mulf %708, %710 : vector<2x32xf32>
    %714 = arith.addf %712, %713 : vector<2x32xf32>
    %715 = math.tanh %714 : vector<2x32xf32>
    %716 = arith.mulf %711, %715 : vector<2x32xf32>
    %717 = tpu.concatenate %701, %716 in 1 : vector<2x32xf32>, vector<2x32xf32> -> vector<2x64xf32>
    %cst_86 = arith.constant dense<0.000000e+00> : vector<2x256xf32>
    %718 = tpu.matmul %717, %635, %cst_86 {dimension_numbers = #tpu.dot_dimension_numbers<[1], [0], [0], [1], [0, 0, 1, 1], [], []>} : vector<2x64xf32>, vector<64x256xf32>, vector<2x256xf32> -> vector<2x256xf32>
    %719 = vector.extract_strided_slice %640 {offsets = [4, 0], sizes = [2, 128], strides = [1, 1]} : vector<16x256xf32> to vector<2x128xf32>
    %720 = vector.extract_strided_slice %718 {offsets = [0, 0], sizes = [2, 128], strides = [1, 1]} : vector<2x256xf32> to vector<2x128xf32>
    %721 = arith.addf %719, %720 : vector<2x128xf32>
    %722 = vector.extract_strided_slice %640 {offsets = [10, 128], sizes = [2, 128], strides = [1, 1]} : vector<16x256xf32> to vector<2x128xf32>
    %723 = vector.extract_strided_slice %718 {offsets = [0, 128], sizes = [2, 128], strides = [1, 1]} : vector<2x256xf32> to vector<2x128xf32>
    %724 = arith.addf %722, %723 : vector<2x128xf32>
    %725 = arith.negf %721 : vector<2x128xf32>
    %726 = math.exp %725 : vector<2x128xf32>
    %cst_87 = arith.constant 1.000000e+00 : f32
    %727 = vector.broadcast %cst_87 : f32 to vector<2x128xf32>
    %728 = arith.addf %727, %726 : vector<2x128xf32>
    %729 = arith.divf %727, %728 : vector<2x128xf32>
    %730 = math.tanh %721 : vector<2x128xf32>
    %731 = vector.extract_strided_slice %729 {offsets = [0, 0], sizes = [2, 32], strides = [1, 1]} : vector<2x128xf32> to vector<2x32xf32>
    %732 = vector.extract_strided_slice %729 {offsets = [0, 32], sizes = [2, 32], strides = [1, 1]} : vector<2x128xf32> to vector<2x32xf32>
    %733 = vector.extract_strided_slice %730 {offsets = [0, 64], sizes = [2, 32], strides = [1, 1]} : vector<2x128xf32> to vector<2x32xf32>
    %734 = vector.extract_strided_slice %729 {offsets = [0, 96], sizes = [2, 32], strides = [1, 1]} : vector<2x128xf32> to vector<2x32xf32>
    %735 = arith.mulf %732, %699 : vector<2x32xf32>
    %736 = arith.mulf %731, %733 : vector<2x32xf32>
    %737 = arith.addf %735, %736 : vector<2x32xf32>
    %738 = math.tanh %737 : vector<2x32xf32>
    %739 = arith.mulf %734, %738 : vector<2x32xf32>
    %740 = arith.negf %724 : vector<2x128xf32>
    %741 = math.exp %740 : vector<2x128xf32>
    %cst_88 = arith.constant 1.000000e+00 : f32
    %742 = vector.broadcast %cst_88 : f32 to vector<2x128xf32>
    %743 = arith.addf %742, %741 : vector<2x128xf32>
    %744 = arith.divf %742, %743 : vector<2x128xf32>
    %745 = math.tanh %724 : vector<2x128xf32>
    %746 = vector.extract_strided_slice %744 {offsets = [0, 0], sizes = [2, 32], strides = [1, 1]} : vector<2x128xf32> to vector<2x32xf32>
    %747 = vector.extract_strided_slice %744 {offsets = [0, 32], sizes = [2, 32], strides = [1, 1]} : vector<2x128xf32> to vector<2x32xf32>
    %748 = vector.extract_strided_slice %745 {offsets = [0, 64], sizes = [2, 32], strides = [1, 1]} : vector<2x128xf32> to vector<2x32xf32>
    %749 = vector.extract_strided_slice %744 {offsets = [0, 96], sizes = [2, 32], strides = [1, 1]} : vector<2x128xf32> to vector<2x32xf32>
    %750 = arith.mulf %747, %714 : vector<2x32xf32>
    %751 = arith.mulf %746, %748 : vector<2x32xf32>
    %752 = arith.addf %750, %751 : vector<2x32xf32>
    %753 = math.tanh %752 : vector<2x32xf32>
    %754 = arith.mulf %749, %753 : vector<2x32xf32>
    %755 = tpu.concatenate %739, %754 in 1 : vector<2x32xf32>, vector<2x32xf32> -> vector<2x64xf32>
    %cst_89 = arith.constant dense<0.000000e+00> : vector<2x256xf32>
    %756 = tpu.matmul %755, %635, %cst_89 {dimension_numbers = #tpu.dot_dimension_numbers<[1], [0], [0], [1], [0, 0, 1, 1], [], []>} : vector<2x64xf32>, vector<64x256xf32>, vector<2x256xf32> -> vector<2x256xf32>
    %757 = vector.extract_strided_slice %640 {offsets = [6, 0], sizes = [2, 128], strides = [1, 1]} : vector<16x256xf32> to vector<2x128xf32>
    %758 = vector.extract_strided_slice %756 {offsets = [0, 0], sizes = [2, 128], strides = [1, 1]} : vector<2x256xf32> to vector<2x128xf32>
    %759 = arith.addf %757, %758 : vector<2x128xf32>
    %760 = vector.extract_strided_slice %640 {offsets = [8, 128], sizes = [2, 128], strides = [1, 1]} : vector<16x256xf32> to vector<2x128xf32>
    %761 = vector.extract_strided_slice %756 {offsets = [0, 128], sizes = [2, 128], strides = [1, 1]} : vector<2x256xf32> to vector<2x128xf32>
    %762 = arith.addf %760, %761 : vector<2x128xf32>
    %763 = arith.negf %759 : vector<2x128xf32>
    %764 = math.exp %763 : vector<2x128xf32>
    %cst_90 = arith.constant 1.000000e+00 : f32
    %765 = vector.broadcast %cst_90 : f32 to vector<2x128xf32>
    %766 = arith.addf %765, %764 : vector<2x128xf32>
    %767 = arith.divf %765, %766 : vector<2x128xf32>
    %768 = math.tanh %759 : vector<2x128xf32>
    %769 = vector.extract_strided_slice %767 {offsets = [0, 0], sizes = [2, 32], strides = [1, 1]} : vector<2x128xf32> to vector<2x32xf32>
    %770 = vector.extract_strided_slice %767 {offsets = [0, 32], sizes = [2, 32], strides = [1, 1]} : vector<2x128xf32> to vector<2x32xf32>
    %771 = vector.extract_strided_slice %768 {offsets = [0, 64], sizes = [2, 32], strides = [1, 1]} : vector<2x128xf32> to vector<2x32xf32>
    %772 = vector.extract_strided_slice %767 {offsets = [0, 96], sizes = [2, 32], strides = [1, 1]} : vector<2x128xf32> to vector<2x32xf32>
    %773 = arith.mulf %770, %737 : vector<2x32xf32>
    %774 = arith.mulf %769, %771 : vector<2x32xf32>
    %775 = arith.addf %773, %774 : vector<2x32xf32>
    %776 = math.tanh %775 : vector<2x32xf32>
    %777 = arith.mulf %772, %776 : vector<2x32xf32>
    %778 = arith.negf %762 : vector<2x128xf32>
    %779 = math.exp %778 : vector<2x128xf32>
    %cst_91 = arith.constant 1.000000e+00 : f32
    %780 = vector.broadcast %cst_91 : f32 to vector<2x128xf32>
    %781 = arith.addf %780, %779 : vector<2x128xf32>
    %782 = arith.divf %780, %781 : vector<2x128xf32>
    %783 = math.tanh %762 : vector<2x128xf32>
    %784 = vector.extract_strided_slice %782 {offsets = [0, 0], sizes = [2, 32], strides = [1, 1]} : vector<2x128xf32> to vector<2x32xf32>
    %785 = vector.extract_strided_slice %782 {offsets = [0, 32], sizes = [2, 32], strides = [1, 1]} : vector<2x128xf32> to vector<2x32xf32>
    %786 = vector.extract_strided_slice %783 {offsets = [0, 64], sizes = [2, 32], strides = [1, 1]} : vector<2x128xf32> to vector<2x32xf32>
    %787 = vector.extract_strided_slice %782 {offsets = [0, 96], sizes = [2, 32], strides = [1, 1]} : vector<2x128xf32> to vector<2x32xf32>
    %788 = arith.mulf %785, %752 : vector<2x32xf32>
    %789 = arith.mulf %784, %786 : vector<2x32xf32>
    %790 = arith.addf %788, %789 : vector<2x32xf32>
    %791 = math.tanh %790 : vector<2x32xf32>
    %792 = arith.mulf %787, %791 : vector<2x32xf32>
    %793 = tpu.concatenate %777, %792 in 1 : vector<2x32xf32>, vector<2x32xf32> -> vector<2x64xf32>
    %cst_92 = arith.constant dense<0.000000e+00> : vector<2x256xf32>
    %794 = tpu.matmul %793, %635, %cst_92 {dimension_numbers = #tpu.dot_dimension_numbers<[1], [0], [0], [1], [0, 0, 1, 1], [], []>} : vector<2x64xf32>, vector<64x256xf32>, vector<2x256xf32> -> vector<2x256xf32>
    %795 = vector.extract_strided_slice %640 {offsets = [8, 0], sizes = [2, 128], strides = [1, 1]} : vector<16x256xf32> to vector<2x128xf32>
    %796 = vector.extract_strided_slice %794 {offsets = [0, 0], sizes = [2, 128], strides = [1, 1]} : vector<2x256xf32> to vector<2x128xf32>
    %797 = arith.addf %795, %796 : vector<2x128xf32>
    %798 = vector.extract_strided_slice %640 {offsets = [6, 128], sizes = [2, 128], strides = [1, 1]} : vector<16x256xf32> to vector<2x128xf32>
    %799 = vector.extract_strided_slice %794 {offsets = [0, 128], sizes = [2, 128], strides = [1, 1]} : vector<2x256xf32> to vector<2x128xf32>
    %800 = arith.addf %798, %799 : vector<2x128xf32>
    %801 = arith.negf %797 : vector<2x128xf32>
    %802 = math.exp %801 : vector<2x128xf32>
    %cst_93 = arith.constant 1.000000e+00 : f32
    %803 = vector.broadcast %cst_93 : f32 to vector<2x128xf32>
    %804 = arith.addf %803, %802 : vector<2x128xf32>
    %805 = arith.divf %803, %804 : vector<2x128xf32>
    %806 = math.tanh %797 : vector<2x128xf32>
    %807 = vector.extract_strided_slice %805 {offsets = [0, 0], sizes = [2, 32], strides = [1, 1]} : vector<2x128xf32> to vector<2x32xf32>
    %808 = vector.extract_strided_slice %805 {offsets = [0, 32], sizes = [2, 32], strides = [1, 1]} : vector<2x128xf32> to vector<2x32xf32>
    %809 = vector.extract_strided_slice %806 {offsets = [0, 64], sizes = [2, 32], strides = [1, 1]} : vector<2x128xf32> to vector<2x32xf32>
    %810 = vector.extract_strided_slice %805 {offsets = [0, 96], sizes = [2, 32], strides = [1, 1]} : vector<2x128xf32> to vector<2x32xf32>
    %811 = arith.mulf %808, %775 : vector<2x32xf32>
    %812 = arith.mulf %807, %809 : vector<2x32xf32>
    %813 = arith.addf %811, %812 : vector<2x32xf32>
    %814 = math.tanh %813 : vector<2x32xf32>
    %815 = arith.mulf %810, %814 : vector<2x32xf32>
    %816 = arith.negf %800 : vector<2x128xf32>
    %817 = math.exp %816 : vector<2x128xf32>
    %cst_94 = arith.constant 1.000000e+00 : f32
    %818 = vector.broadcast %cst_94 : f32 to vector<2x128xf32>
    %819 = arith.addf %818, %817 : vector<2x128xf32>
    %820 = arith.divf %818, %819 : vector<2x128xf32>
    %821 = math.tanh %800 : vector<2x128xf32>
    %822 = vector.extract_strided_slice %820 {offsets = [0, 0], sizes = [2, 32], strides = [1, 1]} : vector<2x128xf32> to vector<2x32xf32>
    %823 = vector.extract_strided_slice %820 {offsets = [0, 32], sizes = [2, 32], strides = [1, 1]} : vector<2x128xf32> to vector<2x32xf32>
    %824 = vector.extract_strided_slice %821 {offsets = [0, 64], sizes = [2, 32], strides = [1, 1]} : vector<2x128xf32> to vector<2x32xf32>
    %825 = vector.extract_strided_slice %820 {offsets = [0, 96], sizes = [2, 32], strides = [1, 1]} : vector<2x128xf32> to vector<2x32xf32>
    %826 = arith.mulf %823, %790 : vector<2x32xf32>
    %827 = arith.mulf %822, %824 : vector<2x32xf32>
    %828 = arith.addf %826, %827 : vector<2x32xf32>
    %829 = math.tanh %828 : vector<2x32xf32>
    %830 = arith.mulf %825, %829 : vector<2x32xf32>
    %831 = tpu.concatenate %815, %830 in 1 : vector<2x32xf32>, vector<2x32xf32> -> vector<2x64xf32>
    %cst_95 = arith.constant dense<0.000000e+00> : vector<2x256xf32>
    %832 = tpu.matmul %831, %635, %cst_95 {dimension_numbers = #tpu.dot_dimension_numbers<[1], [0], [0], [1], [0, 0, 1, 1], [], []>} : vector<2x64xf32>, vector<64x256xf32>, vector<2x256xf32> -> vector<2x256xf32>
    %833 = vector.extract_strided_slice %640 {offsets = [10, 0], sizes = [2, 128], strides = [1, 1]} : vector<16x256xf32> to vector<2x128xf32>
    %834 = vector.extract_strided_slice %832 {offsets = [0, 0], sizes = [2, 128], strides = [1, 1]} : vector<2x256xf32> to vector<2x128xf32>
    %835 = arith.addf %833, %834 : vector<2x128xf32>
    %836 = vector.extract_strided_slice %640 {offsets = [4, 128], sizes = [2, 128], strides = [1, 1]} : vector<16x256xf32> to vector<2x128xf32>
    %837 = vector.extract_strided_slice %832 {offsets = [0, 128], sizes = [2, 128], strides = [1, 1]} : vector<2x256xf32> to vector<2x128xf32>
    %838 = arith.addf %836, %837 : vector<2x128xf32>
    %839 = arith.negf %835 : vector<2x128xf32>
    %840 = math.exp %839 : vector<2x128xf32>
    %cst_96 = arith.constant 1.000000e+00 : f32
    %841 = vector.broadcast %cst_96 : f32 to vector<2x128xf32>
    %842 = arith.addf %841, %840 : vector<2x128xf32>
    %843 = arith.divf %841, %842 : vector<2x128xf32>
    %844 = math.tanh %835 : vector<2x128xf32>
    %845 = vector.extract_strided_slice %843 {offsets = [0, 0], sizes = [2, 32], strides = [1, 1]} : vector<2x128xf32> to vector<2x32xf32>
    %846 = vector.extract_strided_slice %843 {offsets = [0, 32], sizes = [2, 32], strides = [1, 1]} : vector<2x128xf32> to vector<2x32xf32>
    %847 = vector.extract_strided_slice %844 {offsets = [0, 64], sizes = [2, 32], strides = [1, 1]} : vector<2x128xf32> to vector<2x32xf32>
    %848 = vector.extract_strided_slice %843 {offsets = [0, 96], sizes = [2, 32], strides = [1, 1]} : vector<2x128xf32> to vector<2x32xf32>
    %849 = arith.mulf %846, %813 : vector<2x32xf32>
    %850 = arith.mulf %845, %847 : vector<2x32xf32>
    %851 = arith.addf %849, %850 : vector<2x32xf32>
    %852 = math.tanh %851 : vector<2x32xf32>
    %853 = arith.mulf %848, %852 : vector<2x32xf32>
    %854 = arith.negf %838 : vector<2x128xf32>
    %855 = math.exp %854 : vector<2x128xf32>
    %cst_97 = arith.constant 1.000000e+00 : f32
    %856 = vector.broadcast %cst_97 : f32 to vector<2x128xf32>
    %857 = arith.addf %856, %855 : vector<2x128xf32>
    %858 = arith.divf %856, %857 : vector<2x128xf32>
    %859 = math.tanh %838 : vector<2x128xf32>
    %860 = vector.extract_strided_slice %858 {offsets = [0, 0], sizes = [2, 32], strides = [1, 1]} : vector<2x128xf32> to vector<2x32xf32>
    %861 = vector.extract_strided_slice %858 {offsets = [0, 32], sizes = [2, 32], strides = [1, 1]} : vector<2x128xf32> to vector<2x32xf32>
    %862 = vector.extract_strided_slice %859 {offsets = [0, 64], sizes = [2, 32], strides = [1, 1]} : vector<2x128xf32> to vector<2x32xf32>
    %863 = vector.extract_strided_slice %858 {offsets = [0, 96], sizes = [2, 32], strides = [1, 1]} : vector<2x128xf32> to vector<2x32xf32>
    %864 = arith.mulf %861, %828 : vector<2x32xf32>
    %865 = arith.mulf %860, %862 : vector<2x32xf32>
    %866 = arith.addf %864, %865 : vector<2x32xf32>
    %867 = math.tanh %866 : vector<2x32xf32>
    %868 = arith.mulf %863, %867 : vector<2x32xf32>
    %869 = tpu.concatenate %853, %868 in 1 : vector<2x32xf32>, vector<2x32xf32> -> vector<2x64xf32>
    %cst_98 = arith.constant dense<0.000000e+00> : vector<2x256xf32>
    %870 = tpu.matmul %869, %635, %cst_98 {dimension_numbers = #tpu.dot_dimension_numbers<[1], [0], [0], [1], [0, 0, 1, 1], [], []>} : vector<2x64xf32>, vector<64x256xf32>, vector<2x256xf32> -> vector<2x256xf32>
    %871 = vector.extract_strided_slice %640 {offsets = [12, 0], sizes = [2, 128], strides = [1, 1]} : vector<16x256xf32> to vector<2x128xf32>
    %872 = vector.extract_strided_slice %870 {offsets = [0, 0], sizes = [2, 128], strides = [1, 1]} : vector<2x256xf32> to vector<2x128xf32>
    %873 = arith.addf %871, %872 : vector<2x128xf32>
    %874 = vector.extract_strided_slice %640 {offsets = [2, 128], sizes = [2, 128], strides = [1, 1]} : vector<16x256xf32> to vector<2x128xf32>
    %875 = vector.extract_strided_slice %870 {offsets = [0, 128], sizes = [2, 128], strides = [1, 1]} : vector<2x256xf32> to vector<2x128xf32>
    %876 = arith.addf %874, %875 : vector<2x128xf32>
    %877 = arith.negf %873 : vector<2x128xf32>
    %878 = math.exp %877 : vector<2x128xf32>
    %cst_99 = arith.constant 1.000000e+00 : f32
    %879 = vector.broadcast %cst_99 : f32 to vector<2x128xf32>
    %880 = arith.addf %879, %878 : vector<2x128xf32>
    %881 = arith.divf %879, %880 : vector<2x128xf32>
    %882 = math.tanh %873 : vector<2x128xf32>
    %883 = vector.extract_strided_slice %881 {offsets = [0, 0], sizes = [2, 32], strides = [1, 1]} : vector<2x128xf32> to vector<2x32xf32>
    %884 = vector.extract_strided_slice %881 {offsets = [0, 32], sizes = [2, 32], strides = [1, 1]} : vector<2x128xf32> to vector<2x32xf32>
    %885 = vector.extract_strided_slice %882 {offsets = [0, 64], sizes = [2, 32], strides = [1, 1]} : vector<2x128xf32> to vector<2x32xf32>
    %886 = vector.extract_strided_slice %881 {offsets = [0, 96], sizes = [2, 32], strides = [1, 1]} : vector<2x128xf32> to vector<2x32xf32>
    %887 = arith.mulf %884, %851 : vector<2x32xf32>
    %888 = arith.mulf %883, %885 : vector<2x32xf32>
    %889 = arith.addf %887, %888 : vector<2x32xf32>
    %890 = math.tanh %889 : vector<2x32xf32>
    %891 = arith.mulf %886, %890 : vector<2x32xf32>
    %892 = arith.negf %876 : vector<2x128xf32>
    %893 = math.exp %892 : vector<2x128xf32>
    %cst_100 = arith.constant 1.000000e+00 : f32
    %894 = vector.broadcast %cst_100 : f32 to vector<2x128xf32>
    %895 = arith.addf %894, %893 : vector<2x128xf32>
    %896 = arith.divf %894, %895 : vector<2x128xf32>
    %897 = math.tanh %876 : vector<2x128xf32>
    %898 = vector.extract_strided_slice %896 {offsets = [0, 0], sizes = [2, 32], strides = [1, 1]} : vector<2x128xf32> to vector<2x32xf32>
    %899 = vector.extract_strided_slice %896 {offsets = [0, 32], sizes = [2, 32], strides = [1, 1]} : vector<2x128xf32> to vector<2x32xf32>
    %900 = vector.extract_strided_slice %897 {offsets = [0, 64], sizes = [2, 32], strides = [1, 1]} : vector<2x128xf32> to vector<2x32xf32>
    %901 = vector.extract_strided_slice %896 {offsets = [0, 96], sizes = [2, 32], strides = [1, 1]} : vector<2x128xf32> to vector<2x32xf32>
    %902 = arith.mulf %899, %866 : vector<2x32xf32>
    %903 = arith.mulf %898, %900 : vector<2x32xf32>
    %904 = arith.addf %902, %903 : vector<2x32xf32>
    %905 = math.tanh %904 : vector<2x32xf32>
    %906 = arith.mulf %901, %905 : vector<2x32xf32>
    %907 = tpu.concatenate %891, %906 in 1 : vector<2x32xf32>, vector<2x32xf32> -> vector<2x64xf32>
    %cst_101 = arith.constant dense<0.000000e+00> : vector<2x256xf32>
    %908 = tpu.matmul %907, %635, %cst_101 {dimension_numbers = #tpu.dot_dimension_numbers<[1], [0], [0], [1], [0, 0, 1, 1], [], []>} : vector<2x64xf32>, vector<64x256xf32>, vector<2x256xf32> -> vector<2x256xf32>
    %909 = vector.extract_strided_slice %640 {offsets = [14, 0], sizes = [2, 128], strides = [1, 1]} : vector<16x256xf32> to vector<2x128xf32>
    %910 = vector.extract_strided_slice %908 {offsets = [0, 0], sizes = [2, 128], strides = [1, 1]} : vector<2x256xf32> to vector<2x128xf32>
    %911 = arith.addf %909, %910 : vector<2x128xf32>
    %912 = vector.extract_strided_slice %640 {offsets = [0, 128], sizes = [2, 128], strides = [1, 1]} : vector<16x256xf32> to vector<2x128xf32>
    %913 = vector.extract_strided_slice %908 {offsets = [0, 128], sizes = [2, 128], strides = [1, 1]} : vector<2x256xf32> to vector<2x128xf32>
    %914 = arith.addf %912, %913 : vector<2x128xf32>
    %915 = arith.negf %911 : vector<2x128xf32>
    %916 = math.exp %915 : vector<2x128xf32>
    %cst_102 = arith.constant 1.000000e+00 : f32
    %917 = vector.broadcast %cst_102 : f32 to vector<2x128xf32>
    %918 = arith.addf %917, %916 : vector<2x128xf32>
    %919 = arith.divf %917, %918 : vector<2x128xf32>
    %920 = math.tanh %911 : vector<2x128xf32>
    %921 = vector.extract_strided_slice %919 {offsets = [0, 0], sizes = [2, 32], strides = [1, 1]} : vector<2x128xf32> to vector<2x32xf32>
    %922 = vector.extract_strided_slice %919 {offsets = [0, 32], sizes = [2, 32], strides = [1, 1]} : vector<2x128xf32> to vector<2x32xf32>
    %923 = vector.extract_strided_slice %920 {offsets = [0, 64], sizes = [2, 32], strides = [1, 1]} : vector<2x128xf32> to vector<2x32xf32>
    %924 = vector.extract_strided_slice %919 {offsets = [0, 96], sizes = [2, 32], strides = [1, 1]} : vector<2x128xf32> to vector<2x32xf32>
    %925 = arith.mulf %922, %889 : vector<2x32xf32>
    %926 = arith.mulf %921, %923 : vector<2x32xf32>
    %927 = arith.addf %925, %926 : vector<2x32xf32>
    %928 = math.tanh %927 : vector<2x32xf32>
    %929 = arith.mulf %924, %928 : vector<2x32xf32>
    %930 = arith.negf %914 : vector<2x128xf32>
    %931 = math.exp %930 : vector<2x128xf32>
    %cst_103 = arith.constant 1.000000e+00 : f32
    %932 = vector.broadcast %cst_103 : f32 to vector<2x128xf32>
    %933 = arith.addf %932, %931 : vector<2x128xf32>
    %934 = arith.divf %932, %933 : vector<2x128xf32>
    %935 = math.tanh %914 : vector<2x128xf32>
    %936 = vector.extract_strided_slice %934 {offsets = [0, 0], sizes = [2, 32], strides = [1, 1]} : vector<2x128xf32> to vector<2x32xf32>
    %937 = vector.extract_strided_slice %934 {offsets = [0, 32], sizes = [2, 32], strides = [1, 1]} : vector<2x128xf32> to vector<2x32xf32>
    %938 = vector.extract_strided_slice %935 {offsets = [0, 64], sizes = [2, 32], strides = [1, 1]} : vector<2x128xf32> to vector<2x32xf32>
    %939 = vector.extract_strided_slice %934 {offsets = [0, 96], sizes = [2, 32], strides = [1, 1]} : vector<2x128xf32> to vector<2x32xf32>
    %940 = arith.mulf %937, %904 : vector<2x32xf32>
    %941 = arith.mulf %936, %938 : vector<2x32xf32>
    %942 = arith.addf %940, %941 : vector<2x32xf32>
    %943 = math.tanh %942 : vector<2x32xf32>
    %944 = arith.mulf %939, %943 : vector<2x32xf32>
    %945 = tpu.concatenate %663, %701, %739, %777, %815, %853, %891, %929 in 0 : vector<2x32xf32>, vector<2x32xf32>, vector<2x32xf32>, vector<2x32xf32>, vector<2x32xf32>, vector<2x32xf32>, vector<2x32xf32>, vector<2x32xf32> -> vector<16x32xf32>
    %946 = tpu.concatenate %944, %906, %868, %830, %792, %754, %716, %678 in 0 : vector<2x32xf32>, vector<2x32xf32>, vector<2x32xf32>, vector<2x32xf32>, vector<2x32xf32>, vector<2x32xf32>, vector<2x32xf32>, vector<2x32xf32> -> vector<16x32xf32>
    %947 = tpu.concatenate %945, %946 in 1 : vector<16x32xf32>, vector<16x32xf32> -> vector<16x64xf32>
    %c1_104 = arith.constant 1 : index
    %c0_105 = arith.constant 0 : index
    %c0_106 = arith.constant 0 : index
    %948 = vector.load %arg5[%c1_104, %c0_105, %c0_106] : memref<2x64x256xf32, #tpu.memory_space<vmem>>, vector<1x64x256xf32>
    %949 = vector.shape_cast %948 : vector<1x64x256xf32> to vector<64x256xf32>
    %c1_107 = arith.constant 1 : index
    %c0_108 = arith.constant 0 : index
    %c0_109 = arith.constant 0 : index
    %950 = vector.load %arg6[%c1_107, %c0_108, %c0_109] : memref<2x64x256xf32, #tpu.memory_space<vmem>>, vector<1x64x256xf32>
    %951 = vector.shape_cast %950 : vector<1x64x256xf32> to vector<64x256xf32>
    %c1_110 = arith.constant 1 : index
    %c0_111 = arith.constant 0 : index
    %c0_112 = arith.constant 0 : index
    %952 = vector.load %arg7[%c1_110, %c0_111, %c0_112] : memref<2x1x256xf32, #tpu.memory_space<vmem>>, vector<1x1x256xf32>
    %953 = vector.shape_cast %952 : vector<1x1x256xf32> to vector<1x256xf32>
    %cst_113 = arith.constant dense<0.000000e+00> : vector<16x256xf32>
    %954 = tpu.matmul %947, %949, %cst_113 {dimension_numbers = #tpu.dot_dimension_numbers<[1], [0], [0], [1], [0, 0, 1, 1], [], []>} : vector<16x64xf32>, vector<64x256xf32>, vector<16x256xf32> -> vector<16x256xf32>
    %955 = vector.broadcast %953 : vector<1x256xf32> to vector<16x256xf32>
    %956 = arith.addf %954, %955 : vector<16x256xf32>
    %957 = tpu.concatenate %615, %630 in 1 : vector<2x32xf32>, vector<2x32xf32> -> vector<2x64xf32>
    %cst_114 = arith.constant dense<0.000000e+00> : vector<2x256xf32>
    %958 = tpu.matmul %957, %951, %cst_114 {dimension_numbers = #tpu.dot_dimension_numbers<[1], [0], [0], [1], [0, 0, 1, 1], [], []>} : vector<2x64xf32>, vector<64x256xf32>, vector<2x256xf32> -> vector<2x256xf32>
    %959 = vector.extract_strided_slice %956 {offsets = [0, 0], sizes = [2, 128], strides = [1, 1]} : vector<16x256xf32> to vector<2x128xf32>
    %960 = vector.extract_strided_slice %958 {offsets = [0, 0], sizes = [2, 128], strides = [1, 1]} : vector<2x256xf32> to vector<2x128xf32>
    %961 = arith.addf %959, %960 : vector<2x128xf32>
    %962 = vector.extract_strided_slice %956 {offsets = [14, 128], sizes = [2, 128], strides = [1, 1]} : vector<16x256xf32> to vector<2x128xf32>
    %963 = vector.extract_strided_slice %958 {offsets = [0, 128], sizes = [2, 128], strides = [1, 1]} : vector<2x256xf32> to vector<2x128xf32>
    %964 = arith.addf %962, %963 : vector<2x128xf32>
    %965 = arith.negf %961 : vector<2x128xf32>
    %966 = math.exp %965 : vector<2x128xf32>
    %cst_115 = arith.constant 1.000000e+00 : f32
    %967 = vector.broadcast %cst_115 : f32 to vector<2x128xf32>
    %968 = arith.addf %967, %966 : vector<2x128xf32>
    %969 = arith.divf %967, %968 : vector<2x128xf32>
    %970 = math.tanh %961 : vector<2x128xf32>
    %971 = vector.extract_strided_slice %969 {offsets = [0, 0], sizes = [2, 32], strides = [1, 1]} : vector<2x128xf32> to vector<2x32xf32>
    %972 = vector.extract_strided_slice %969 {offsets = [0, 32], sizes = [2, 32], strides = [1, 1]} : vector<2x128xf32> to vector<2x32xf32>
    %973 = vector.extract_strided_slice %970 {offsets = [0, 64], sizes = [2, 32], strides = [1, 1]} : vector<2x128xf32> to vector<2x32xf32>
    %974 = vector.extract_strided_slice %969 {offsets = [0, 96], sizes = [2, 32], strides = [1, 1]} : vector<2x128xf32> to vector<2x32xf32>
    %975 = arith.mulf %972, %613 : vector<2x32xf32>
    %976 = arith.mulf %971, %973 : vector<2x32xf32>
    %977 = arith.addf %975, %976 : vector<2x32xf32>
    %978 = math.tanh %977 : vector<2x32xf32>
    %979 = arith.mulf %974, %978 : vector<2x32xf32>
    %980 = arith.negf %964 : vector<2x128xf32>
    %981 = math.exp %980 : vector<2x128xf32>
    %cst_116 = arith.constant 1.000000e+00 : f32
    %982 = vector.broadcast %cst_116 : f32 to vector<2x128xf32>
    %983 = arith.addf %982, %981 : vector<2x128xf32>
    %984 = arith.divf %982, %983 : vector<2x128xf32>
    %985 = math.tanh %964 : vector<2x128xf32>
    %986 = vector.extract_strided_slice %984 {offsets = [0, 0], sizes = [2, 32], strides = [1, 1]} : vector<2x128xf32> to vector<2x32xf32>
    %987 = vector.extract_strided_slice %984 {offsets = [0, 32], sizes = [2, 32], strides = [1, 1]} : vector<2x128xf32> to vector<2x32xf32>
    %988 = vector.extract_strided_slice %985 {offsets = [0, 64], sizes = [2, 32], strides = [1, 1]} : vector<2x128xf32> to vector<2x32xf32>
    %989 = vector.extract_strided_slice %984 {offsets = [0, 96], sizes = [2, 32], strides = [1, 1]} : vector<2x128xf32> to vector<2x32xf32>
    %990 = arith.mulf %987, %628 : vector<2x32xf32>
    %991 = arith.mulf %986, %988 : vector<2x32xf32>
    %992 = arith.addf %990, %991 : vector<2x32xf32>
    %993 = math.tanh %992 : vector<2x32xf32>
    %994 = arith.mulf %989, %993 : vector<2x32xf32>
    %995 = tpu.concatenate %979, %994 in 1 : vector<2x32xf32>, vector<2x32xf32> -> vector<2x64xf32>
    %cst_117 = arith.constant dense<0.000000e+00> : vector<2x256xf32>
    %996 = tpu.matmul %995, %951, %cst_117 {dimension_numbers = #tpu.dot_dimension_numbers<[1], [0], [0], [1], [0, 0, 1, 1], [], []>} : vector<2x64xf32>, vector<64x256xf32>, vector<2x256xf32> -> vector<2x256xf32>
    %997 = vector.extract_strided_slice %956 {offsets = [2, 0], sizes = [2, 128], strides = [1, 1]} : vector<16x256xf32> to vector<2x128xf32>
    %998 = vector.extract_strided_slice %996 {offsets = [0, 0], sizes = [2, 128], strides = [1, 1]} : vector<2x256xf32> to vector<2x128xf32>
    %999 = arith.addf %997, %998 : vector<2x128xf32>
    %1000 = vector.extract_strided_slice %956 {offsets = [12, 128], sizes = [2, 128], strides = [1, 1]} : vector<16x256xf32> to vector<2x128xf32>
    %1001 = vector.extract_strided_slice %996 {offsets = [0, 128], sizes = [2, 128], strides = [1, 1]} : vector<2x256xf32> to vector<2x128xf32>
    %1002 = arith.addf %1000, %1001 : vector<2x128xf32>
    %1003 = arith.negf %999 : vector<2x128xf32>
    %1004 = math.exp %1003 : vector<2x128xf32>
    %cst_118 = arith.constant 1.000000e+00 : f32
    %1005 = vector.broadcast %cst_118 : f32 to vector<2x128xf32>
    %1006 = arith.addf %1005, %1004 : vector<2x128xf32>
    %1007 = arith.divf %1005, %1006 : vector<2x128xf32>
    %1008 = math.tanh %999 : vector<2x128xf32>
    %1009 = vector.extract_strided_slice %1007 {offsets = [0, 0], sizes = [2, 32], strides = [1, 1]} : vector<2x128xf32> to vector<2x32xf32>
    %1010 = vector.extract_strided_slice %1007 {offsets = [0, 32], sizes = [2, 32], strides = [1, 1]} : vector<2x128xf32> to vector<2x32xf32>
    %1011 = vector.extract_strided_slice %1008 {offsets = [0, 64], sizes = [2, 32], strides = [1, 1]} : vector<2x128xf32> to vector<2x32xf32>
    %1012 = vector.extract_strided_slice %1007 {offsets = [0, 96], sizes = [2, 32], strides = [1, 1]} : vector<2x128xf32> to vector<2x32xf32>
    %1013 = arith.mulf %1010, %977 : vector<2x32xf32>
    %1014 = arith.mulf %1009, %1011 : vector<2x32xf32>
    %1015 = arith.addf %1013, %1014 : vector<2x32xf32>
    %1016 = math.tanh %1015 : vector<2x32xf32>
    %1017 = arith.mulf %1012, %1016 : vector<2x32xf32>
    %1018 = arith.negf %1002 : vector<2x128xf32>
    %1019 = math.exp %1018 : vector<2x128xf32>
    %cst_119 = arith.constant 1.000000e+00 : f32
    %1020 = vector.broadcast %cst_119 : f32 to vector<2x128xf32>
    %1021 = arith.addf %1020, %1019 : vector<2x128xf32>
    %1022 = arith.divf %1020, %1021 : vector<2x128xf32>
    %1023 = math.tanh %1002 : vector<2x128xf32>
    %1024 = vector.extract_strided_slice %1022 {offsets = [0, 0], sizes = [2, 32], strides = [1, 1]} : vector<2x128xf32> to vector<2x32xf32>
    %1025 = vector.extract_strided_slice %1022 {offsets = [0, 32], sizes = [2, 32], strides = [1, 1]} : vector<2x128xf32> to vector<2x32xf32>
    %1026 = vector.extract_strided_slice %1023 {offsets = [0, 64], sizes = [2, 32], strides = [1, 1]} : vector<2x128xf32> to vector<2x32xf32>
    %1027 = vector.extract_strided_slice %1022 {offsets = [0, 96], sizes = [2, 32], strides = [1, 1]} : vector<2x128xf32> to vector<2x32xf32>
    %1028 = arith.mulf %1025, %992 : vector<2x32xf32>
    %1029 = arith.mulf %1024, %1026 : vector<2x32xf32>
    %1030 = arith.addf %1028, %1029 : vector<2x32xf32>
    %1031 = math.tanh %1030 : vector<2x32xf32>
    %1032 = arith.mulf %1027, %1031 : vector<2x32xf32>
    %1033 = tpu.concatenate %1017, %1032 in 1 : vector<2x32xf32>, vector<2x32xf32> -> vector<2x64xf32>
    %cst_120 = arith.constant dense<0.000000e+00> : vector<2x256xf32>
    %1034 = tpu.matmul %1033, %951, %cst_120 {dimension_numbers = #tpu.dot_dimension_numbers<[1], [0], [0], [1], [0, 0, 1, 1], [], []>} : vector<2x64xf32>, vector<64x256xf32>, vector<2x256xf32> -> vector<2x256xf32>
    %1035 = vector.extract_strided_slice %956 {offsets = [4, 0], sizes = [2, 128], strides = [1, 1]} : vector<16x256xf32> to vector<2x128xf32>
    %1036 = vector.extract_strided_slice %1034 {offsets = [0, 0], sizes = [2, 128], strides = [1, 1]} : vector<2x256xf32> to vector<2x128xf32>
    %1037 = arith.addf %1035, %1036 : vector<2x128xf32>
    %1038 = vector.extract_strided_slice %956 {offsets = [10, 128], sizes = [2, 128], strides = [1, 1]} : vector<16x256xf32> to vector<2x128xf32>
    %1039 = vector.extract_strided_slice %1034 {offsets = [0, 128], sizes = [2, 128], strides = [1, 1]} : vector<2x256xf32> to vector<2x128xf32>
    %1040 = arith.addf %1038, %1039 : vector<2x128xf32>
    %1041 = arith.negf %1037 : vector<2x128xf32>
    %1042 = math.exp %1041 : vector<2x128xf32>
    %cst_121 = arith.constant 1.000000e+00 : f32
    %1043 = vector.broadcast %cst_121 : f32 to vector<2x128xf32>
    %1044 = arith.addf %1043, %1042 : vector<2x128xf32>
    %1045 = arith.divf %1043, %1044 : vector<2x128xf32>
    %1046 = math.tanh %1037 : vector<2x128xf32>
    %1047 = vector.extract_strided_slice %1045 {offsets = [0, 0], sizes = [2, 32], strides = [1, 1]} : vector<2x128xf32> to vector<2x32xf32>
    %1048 = vector.extract_strided_slice %1045 {offsets = [0, 32], sizes = [2, 32], strides = [1, 1]} : vector<2x128xf32> to vector<2x32xf32>
    %1049 = vector.extract_strided_slice %1046 {offsets = [0, 64], sizes = [2, 32], strides = [1, 1]} : vector<2x128xf32> to vector<2x32xf32>
    %1050 = vector.extract_strided_slice %1045 {offsets = [0, 96], sizes = [2, 32], strides = [1, 1]} : vector<2x128xf32> to vector<2x32xf32>
    %1051 = arith.mulf %1048, %1015 : vector<2x32xf32>
    %1052 = arith.mulf %1047, %1049 : vector<2x32xf32>
    %1053 = arith.addf %1051, %1052 : vector<2x32xf32>
    %1054 = math.tanh %1053 : vector<2x32xf32>
    %1055 = arith.mulf %1050, %1054 : vector<2x32xf32>
    %1056 = arith.negf %1040 : vector<2x128xf32>
    %1057 = math.exp %1056 : vector<2x128xf32>
    %cst_122 = arith.constant 1.000000e+00 : f32
    %1058 = vector.broadcast %cst_122 : f32 to vector<2x128xf32>
    %1059 = arith.addf %1058, %1057 : vector<2x128xf32>
    %1060 = arith.divf %1058, %1059 : vector<2x128xf32>
    %1061 = math.tanh %1040 : vector<2x128xf32>
    %1062 = vector.extract_strided_slice %1060 {offsets = [0, 0], sizes = [2, 32], strides = [1, 1]} : vector<2x128xf32> to vector<2x32xf32>
    %1063 = vector.extract_strided_slice %1060 {offsets = [0, 32], sizes = [2, 32], strides = [1, 1]} : vector<2x128xf32> to vector<2x32xf32>
    %1064 = vector.extract_strided_slice %1061 {offsets = [0, 64], sizes = [2, 32], strides = [1, 1]} : vector<2x128xf32> to vector<2x32xf32>
    %1065 = vector.extract_strided_slice %1060 {offsets = [0, 96], sizes = [2, 32], strides = [1, 1]} : vector<2x128xf32> to vector<2x32xf32>
    %1066 = arith.mulf %1063, %1030 : vector<2x32xf32>
    %1067 = arith.mulf %1062, %1064 : vector<2x32xf32>
    %1068 = arith.addf %1066, %1067 : vector<2x32xf32>
    %1069 = math.tanh %1068 : vector<2x32xf32>
    %1070 = arith.mulf %1065, %1069 : vector<2x32xf32>
    %1071 = tpu.concatenate %1055, %1070 in 1 : vector<2x32xf32>, vector<2x32xf32> -> vector<2x64xf32>
    %cst_123 = arith.constant dense<0.000000e+00> : vector<2x256xf32>
    %1072 = tpu.matmul %1071, %951, %cst_123 {dimension_numbers = #tpu.dot_dimension_numbers<[1], [0], [0], [1], [0, 0, 1, 1], [], []>} : vector<2x64xf32>, vector<64x256xf32>, vector<2x256xf32> -> vector<2x256xf32>
    %1073 = vector.extract_strided_slice %956 {offsets = [6, 0], sizes = [2, 128], strides = [1, 1]} : vector<16x256xf32> to vector<2x128xf32>
    %1074 = vector.extract_strided_slice %1072 {offsets = [0, 0], sizes = [2, 128], strides = [1, 1]} : vector<2x256xf32> to vector<2x128xf32>
    %1075 = arith.addf %1073, %1074 : vector<2x128xf32>
    %1076 = vector.extract_strided_slice %956 {offsets = [8, 128], sizes = [2, 128], strides = [1, 1]} : vector<16x256xf32> to vector<2x128xf32>
    %1077 = vector.extract_strided_slice %1072 {offsets = [0, 128], sizes = [2, 128], strides = [1, 1]} : vector<2x256xf32> to vector<2x128xf32>
    %1078 = arith.addf %1076, %1077 : vector<2x128xf32>
    %1079 = arith.negf %1075 : vector<2x128xf32>
    %1080 = math.exp %1079 : vector<2x128xf32>
    %cst_124 = arith.constant 1.000000e+00 : f32
    %1081 = vector.broadcast %cst_124 : f32 to vector<2x128xf32>
    %1082 = arith.addf %1081, %1080 : vector<2x128xf32>
    %1083 = arith.divf %1081, %1082 : vector<2x128xf32>
    %1084 = math.tanh %1075 : vector<2x128xf32>
    %1085 = vector.extract_strided_slice %1083 {offsets = [0, 0], sizes = [2, 32], strides = [1, 1]} : vector<2x128xf32> to vector<2x32xf32>
    %1086 = vector.extract_strided_slice %1083 {offsets = [0, 32], sizes = [2, 32], strides = [1, 1]} : vector<2x128xf32> to vector<2x32xf32>
    %1087 = vector.extract_strided_slice %1084 {offsets = [0, 64], sizes = [2, 32], strides = [1, 1]} : vector<2x128xf32> to vector<2x32xf32>
    %1088 = vector.extract_strided_slice %1083 {offsets = [0, 96], sizes = [2, 32], strides = [1, 1]} : vector<2x128xf32> to vector<2x32xf32>
    %1089 = arith.mulf %1086, %1053 : vector<2x32xf32>
    %1090 = arith.mulf %1085, %1087 : vector<2x32xf32>
    %1091 = arith.addf %1089, %1090 : vector<2x32xf32>
    %1092 = math.tanh %1091 : vector<2x32xf32>
    %1093 = arith.mulf %1088, %1092 : vector<2x32xf32>
    %1094 = arith.negf %1078 : vector<2x128xf32>
    %1095 = math.exp %1094 : vector<2x128xf32>
    %cst_125 = arith.constant 1.000000e+00 : f32
    %1096 = vector.broadcast %cst_125 : f32 to vector<2x128xf32>
    %1097 = arith.addf %1096, %1095 : vector<2x128xf32>
    %1098 = arith.divf %1096, %1097 : vector<2x128xf32>
    %1099 = math.tanh %1078 : vector<2x128xf32>
    %1100 = vector.extract_strided_slice %1098 {offsets = [0, 0], sizes = [2, 32], strides = [1, 1]} : vector<2x128xf32> to vector<2x32xf32>
    %1101 = vector.extract_strided_slice %1098 {offsets = [0, 32], sizes = [2, 32], strides = [1, 1]} : vector<2x128xf32> to vector<2x32xf32>
    %1102 = vector.extract_strided_slice %1099 {offsets = [0, 64], sizes = [2, 32], strides = [1, 1]} : vector<2x128xf32> to vector<2x32xf32>
    %1103 = vector.extract_strided_slice %1098 {offsets = [0, 96], sizes = [2, 32], strides = [1, 1]} : vector<2x128xf32> to vector<2x32xf32>
    %1104 = arith.mulf %1101, %1068 : vector<2x32xf32>
    %1105 = arith.mulf %1100, %1102 : vector<2x32xf32>
    %1106 = arith.addf %1104, %1105 : vector<2x32xf32>
    %1107 = math.tanh %1106 : vector<2x32xf32>
    %1108 = arith.mulf %1103, %1107 : vector<2x32xf32>
    %1109 = tpu.concatenate %1093, %1108 in 1 : vector<2x32xf32>, vector<2x32xf32> -> vector<2x64xf32>
    %cst_126 = arith.constant dense<0.000000e+00> : vector<2x256xf32>
    %1110 = tpu.matmul %1109, %951, %cst_126 {dimension_numbers = #tpu.dot_dimension_numbers<[1], [0], [0], [1], [0, 0, 1, 1], [], []>} : vector<2x64xf32>, vector<64x256xf32>, vector<2x256xf32> -> vector<2x256xf32>
    %1111 = vector.extract_strided_slice %956 {offsets = [8, 0], sizes = [2, 128], strides = [1, 1]} : vector<16x256xf32> to vector<2x128xf32>
    %1112 = vector.extract_strided_slice %1110 {offsets = [0, 0], sizes = [2, 128], strides = [1, 1]} : vector<2x256xf32> to vector<2x128xf32>
    %1113 = arith.addf %1111, %1112 : vector<2x128xf32>
    %1114 = vector.extract_strided_slice %956 {offsets = [6, 128], sizes = [2, 128], strides = [1, 1]} : vector<16x256xf32> to vector<2x128xf32>
    %1115 = vector.extract_strided_slice %1110 {offsets = [0, 128], sizes = [2, 128], strides = [1, 1]} : vector<2x256xf32> to vector<2x128xf32>
    %1116 = arith.addf %1114, %1115 : vector<2x128xf32>
    %1117 = arith.negf %1113 : vector<2x128xf32>
    %1118 = math.exp %1117 : vector<2x128xf32>
    %cst_127 = arith.constant 1.000000e+00 : f32
    %1119 = vector.broadcast %cst_127 : f32 to vector<2x128xf32>
    %1120 = arith.addf %1119, %1118 : vector<2x128xf32>
    %1121 = arith.divf %1119, %1120 : vector<2x128xf32>
    %1122 = math.tanh %1113 : vector<2x128xf32>
    %1123 = vector.extract_strided_slice %1121 {offsets = [0, 0], sizes = [2, 32], strides = [1, 1]} : vector<2x128xf32> to vector<2x32xf32>
    %1124 = vector.extract_strided_slice %1121 {offsets = [0, 32], sizes = [2, 32], strides = [1, 1]} : vector<2x128xf32> to vector<2x32xf32>
    %1125 = vector.extract_strided_slice %1122 {offsets = [0, 64], sizes = [2, 32], strides = [1, 1]} : vector<2x128xf32> to vector<2x32xf32>
    %1126 = vector.extract_strided_slice %1121 {offsets = [0, 96], sizes = [2, 32], strides = [1, 1]} : vector<2x128xf32> to vector<2x32xf32>
    %1127 = arith.mulf %1124, %1091 : vector<2x32xf32>
    %1128 = arith.mulf %1123, %1125 : vector<2x32xf32>
    %1129 = arith.addf %1127, %1128 : vector<2x32xf32>
    %1130 = math.tanh %1129 : vector<2x32xf32>
    %1131 = arith.mulf %1126, %1130 : vector<2x32xf32>
    %1132 = arith.negf %1116 : vector<2x128xf32>
    %1133 = math.exp %1132 : vector<2x128xf32>
    %cst_128 = arith.constant 1.000000e+00 : f32
    %1134 = vector.broadcast %cst_128 : f32 to vector<2x128xf32>
    %1135 = arith.addf %1134, %1133 : vector<2x128xf32>
    %1136 = arith.divf %1134, %1135 : vector<2x128xf32>
    %1137 = math.tanh %1116 : vector<2x128xf32>
    %1138 = vector.extract_strided_slice %1136 {offsets = [0, 0], sizes = [2, 32], strides = [1, 1]} : vector<2x128xf32> to vector<2x32xf32>
    %1139 = vector.extract_strided_slice %1136 {offsets = [0, 32], sizes = [2, 32], strides = [1, 1]} : vector<2x128xf32> to vector<2x32xf32>
    %1140 = vector.extract_strided_slice %1137 {offsets = [0, 64], sizes = [2, 32], strides = [1, 1]} : vector<2x128xf32> to vector<2x32xf32>
    %1141 = vector.extract_strided_slice %1136 {offsets = [0, 96], sizes = [2, 32], strides = [1, 1]} : vector<2x128xf32> to vector<2x32xf32>
    %1142 = arith.mulf %1139, %1106 : vector<2x32xf32>
    %1143 = arith.mulf %1138, %1140 : vector<2x32xf32>
    %1144 = arith.addf %1142, %1143 : vector<2x32xf32>
    %1145 = math.tanh %1144 : vector<2x32xf32>
    %1146 = arith.mulf %1141, %1145 : vector<2x32xf32>
    %1147 = tpu.concatenate %1131, %1146 in 1 : vector<2x32xf32>, vector<2x32xf32> -> vector<2x64xf32>
    %cst_129 = arith.constant dense<0.000000e+00> : vector<2x256xf32>
    %1148 = tpu.matmul %1147, %951, %cst_129 {dimension_numbers = #tpu.dot_dimension_numbers<[1], [0], [0], [1], [0, 0, 1, 1], [], []>} : vector<2x64xf32>, vector<64x256xf32>, vector<2x256xf32> -> vector<2x256xf32>
    %1149 = vector.extract_strided_slice %956 {offsets = [10, 0], sizes = [2, 128], strides = [1, 1]} : vector<16x256xf32> to vector<2x128xf32>
    %1150 = vector.extract_strided_slice %1148 {offsets = [0, 0], sizes = [2, 128], strides = [1, 1]} : vector<2x256xf32> to vector<2x128xf32>
    %1151 = arith.addf %1149, %1150 : vector<2x128xf32>
    %1152 = vector.extract_strided_slice %956 {offsets = [4, 128], sizes = [2, 128], strides = [1, 1]} : vector<16x256xf32> to vector<2x128xf32>
    %1153 = vector.extract_strided_slice %1148 {offsets = [0, 128], sizes = [2, 128], strides = [1, 1]} : vector<2x256xf32> to vector<2x128xf32>
    %1154 = arith.addf %1152, %1153 : vector<2x128xf32>
    %1155 = arith.negf %1151 : vector<2x128xf32>
    %1156 = math.exp %1155 : vector<2x128xf32>
    %cst_130 = arith.constant 1.000000e+00 : f32
    %1157 = vector.broadcast %cst_130 : f32 to vector<2x128xf32>
    %1158 = arith.addf %1157, %1156 : vector<2x128xf32>
    %1159 = arith.divf %1157, %1158 : vector<2x128xf32>
    %1160 = math.tanh %1151 : vector<2x128xf32>
    %1161 = vector.extract_strided_slice %1159 {offsets = [0, 0], sizes = [2, 32], strides = [1, 1]} : vector<2x128xf32> to vector<2x32xf32>
    %1162 = vector.extract_strided_slice %1159 {offsets = [0, 32], sizes = [2, 32], strides = [1, 1]} : vector<2x128xf32> to vector<2x32xf32>
    %1163 = vector.extract_strided_slice %1160 {offsets = [0, 64], sizes = [2, 32], strides = [1, 1]} : vector<2x128xf32> to vector<2x32xf32>
    %1164 = vector.extract_strided_slice %1159 {offsets = [0, 96], sizes = [2, 32], strides = [1, 1]} : vector<2x128xf32> to vector<2x32xf32>
    %1165 = arith.mulf %1162, %1129 : vector<2x32xf32>
    %1166 = arith.mulf %1161, %1163 : vector<2x32xf32>
    %1167 = arith.addf %1165, %1166 : vector<2x32xf32>
    %1168 = math.tanh %1167 : vector<2x32xf32>
    %1169 = arith.mulf %1164, %1168 : vector<2x32xf32>
    %1170 = arith.negf %1154 : vector<2x128xf32>
    %1171 = math.exp %1170 : vector<2x128xf32>
    %cst_131 = arith.constant 1.000000e+00 : f32
    %1172 = vector.broadcast %cst_131 : f32 to vector<2x128xf32>
    %1173 = arith.addf %1172, %1171 : vector<2x128xf32>
    %1174 = arith.divf %1172, %1173 : vector<2x128xf32>
    %1175 = math.tanh %1154 : vector<2x128xf32>
    %1176 = vector.extract_strided_slice %1174 {offsets = [0, 0], sizes = [2, 32], strides = [1, 1]} : vector<2x128xf32> to vector<2x32xf32>
    %1177 = vector.extract_strided_slice %1174 {offsets = [0, 32], sizes = [2, 32], strides = [1, 1]} : vector<2x128xf32> to vector<2x32xf32>
    %1178 = vector.extract_strided_slice %1175 {offsets = [0, 64], sizes = [2, 32], strides = [1, 1]} : vector<2x128xf32> to vector<2x32xf32>
    %1179 = vector.extract_strided_slice %1174 {offsets = [0, 96], sizes = [2, 32], strides = [1, 1]} : vector<2x128xf32> to vector<2x32xf32>
    %1180 = arith.mulf %1177, %1144 : vector<2x32xf32>
    %1181 = arith.mulf %1176, %1178 : vector<2x32xf32>
    %1182 = arith.addf %1180, %1181 : vector<2x32xf32>
    %1183 = math.tanh %1182 : vector<2x32xf32>
    %1184 = arith.mulf %1179, %1183 : vector<2x32xf32>
    %1185 = tpu.concatenate %1169, %1184 in 1 : vector<2x32xf32>, vector<2x32xf32> -> vector<2x64xf32>
    %cst_132 = arith.constant dense<0.000000e+00> : vector<2x256xf32>
    %1186 = tpu.matmul %1185, %951, %cst_132 {dimension_numbers = #tpu.dot_dimension_numbers<[1], [0], [0], [1], [0, 0, 1, 1], [], []>} : vector<2x64xf32>, vector<64x256xf32>, vector<2x256xf32> -> vector<2x256xf32>
    %1187 = vector.extract_strided_slice %956 {offsets = [12, 0], sizes = [2, 128], strides = [1, 1]} : vector<16x256xf32> to vector<2x128xf32>
    %1188 = vector.extract_strided_slice %1186 {offsets = [0, 0], sizes = [2, 128], strides = [1, 1]} : vector<2x256xf32> to vector<2x128xf32>
    %1189 = arith.addf %1187, %1188 : vector<2x128xf32>
    %1190 = vector.extract_strided_slice %956 {offsets = [2, 128], sizes = [2, 128], strides = [1, 1]} : vector<16x256xf32> to vector<2x128xf32>
    %1191 = vector.extract_strided_slice %1186 {offsets = [0, 128], sizes = [2, 128], strides = [1, 1]} : vector<2x256xf32> to vector<2x128xf32>
    %1192 = arith.addf %1190, %1191 : vector<2x128xf32>
    %1193 = arith.negf %1189 : vector<2x128xf32>
    %1194 = math.exp %1193 : vector<2x128xf32>
    %cst_133 = arith.constant 1.000000e+00 : f32
    %1195 = vector.broadcast %cst_133 : f32 to vector<2x128xf32>
    %1196 = arith.addf %1195, %1194 : vector<2x128xf32>
    %1197 = arith.divf %1195, %1196 : vector<2x128xf32>
    %1198 = math.tanh %1189 : vector<2x128xf32>
    %1199 = vector.extract_strided_slice %1197 {offsets = [0, 0], sizes = [2, 32], strides = [1, 1]} : vector<2x128xf32> to vector<2x32xf32>
    %1200 = vector.extract_strided_slice %1197 {offsets = [0, 32], sizes = [2, 32], strides = [1, 1]} : vector<2x128xf32> to vector<2x32xf32>
    %1201 = vector.extract_strided_slice %1198 {offsets = [0, 64], sizes = [2, 32], strides = [1, 1]} : vector<2x128xf32> to vector<2x32xf32>
    %1202 = vector.extract_strided_slice %1197 {offsets = [0, 96], sizes = [2, 32], strides = [1, 1]} : vector<2x128xf32> to vector<2x32xf32>
    %1203 = arith.mulf %1200, %1167 : vector<2x32xf32>
    %1204 = arith.mulf %1199, %1201 : vector<2x32xf32>
    %1205 = arith.addf %1203, %1204 : vector<2x32xf32>
    %1206 = math.tanh %1205 : vector<2x32xf32>
    %1207 = arith.mulf %1202, %1206 : vector<2x32xf32>
    %1208 = arith.negf %1192 : vector<2x128xf32>
    %1209 = math.exp %1208 : vector<2x128xf32>
    %cst_134 = arith.constant 1.000000e+00 : f32
    %1210 = vector.broadcast %cst_134 : f32 to vector<2x128xf32>
    %1211 = arith.addf %1210, %1209 : vector<2x128xf32>
    %1212 = arith.divf %1210, %1211 : vector<2x128xf32>
    %1213 = math.tanh %1192 : vector<2x128xf32>
    %1214 = vector.extract_strided_slice %1212 {offsets = [0, 0], sizes = [2, 32], strides = [1, 1]} : vector<2x128xf32> to vector<2x32xf32>
    %1215 = vector.extract_strided_slice %1212 {offsets = [0, 32], sizes = [2, 32], strides = [1, 1]} : vector<2x128xf32> to vector<2x32xf32>
    %1216 = vector.extract_strided_slice %1213 {offsets = [0, 64], sizes = [2, 32], strides = [1, 1]} : vector<2x128xf32> to vector<2x32xf32>
    %1217 = vector.extract_strided_slice %1212 {offsets = [0, 96], sizes = [2, 32], strides = [1, 1]} : vector<2x128xf32> to vector<2x32xf32>
    %1218 = arith.mulf %1215, %1182 : vector<2x32xf32>
    %1219 = arith.mulf %1214, %1216 : vector<2x32xf32>
    %1220 = arith.addf %1218, %1219 : vector<2x32xf32>
    %1221 = math.tanh %1220 : vector<2x32xf32>
    %1222 = arith.mulf %1217, %1221 : vector<2x32xf32>
    %1223 = tpu.concatenate %1207, %1222 in 1 : vector<2x32xf32>, vector<2x32xf32> -> vector<2x64xf32>
    %cst_135 = arith.constant dense<0.000000e+00> : vector<2x256xf32>
    %1224 = tpu.matmul %1223, %951, %cst_135 {dimension_numbers = #tpu.dot_dimension_numbers<[1], [0], [0], [1], [0, 0, 1, 1], [], []>} : vector<2x64xf32>, vector<64x256xf32>, vector<2x256xf32> -> vector<2x256xf32>
    %1225 = vector.extract_strided_slice %956 {offsets = [14, 0], sizes = [2, 128], strides = [1, 1]} : vector<16x256xf32> to vector<2x128xf32>
    %1226 = vector.extract_strided_slice %1224 {offsets = [0, 0], sizes = [2, 128], strides = [1, 1]} : vector<2x256xf32> to vector<2x128xf32>
    %1227 = arith.addf %1225, %1226 : vector<2x128xf32>
    %1228 = vector.extract_strided_slice %956 {offsets = [0, 128], sizes = [2, 128], strides = [1, 1]} : vector<16x256xf32> to vector<2x128xf32>
    %1229 = vector.extract_strided_slice %1224 {offsets = [0, 128], sizes = [2, 128], strides = [1, 1]} : vector<2x256xf32> to vector<2x128xf32>
    %1230 = arith.addf %1228, %1229 : vector<2x128xf32>
    %1231 = arith.negf %1227 : vector<2x128xf32>
    %1232 = math.exp %1231 : vector<2x128xf32>
    %cst_136 = arith.constant 1.000000e+00 : f32
    %1233 = vector.broadcast %cst_136 : f32 to vector<2x128xf32>
    %1234 = arith.addf %1233, %1232 : vector<2x128xf32>
    %1235 = arith.divf %1233, %1234 : vector<2x128xf32>
    %1236 = math.tanh %1227 : vector<2x128xf32>
    %1237 = vector.extract_strided_slice %1235 {offsets = [0, 0], sizes = [2, 32], strides = [1, 1]} : vector<2x128xf32> to vector<2x32xf32>
    %1238 = vector.extract_strided_slice %1235 {offsets = [0, 32], sizes = [2, 32], strides = [1, 1]} : vector<2x128xf32> to vector<2x32xf32>
    %1239 = vector.extract_strided_slice %1236 {offsets = [0, 64], sizes = [2, 32], strides = [1, 1]} : vector<2x128xf32> to vector<2x32xf32>
    %1240 = vector.extract_strided_slice %1235 {offsets = [0, 96], sizes = [2, 32], strides = [1, 1]} : vector<2x128xf32> to vector<2x32xf32>
    %1241 = arith.mulf %1238, %1205 : vector<2x32xf32>
    %1242 = arith.mulf %1237, %1239 : vector<2x32xf32>
    %1243 = arith.addf %1241, %1242 : vector<2x32xf32>
    %1244 = math.tanh %1243 : vector<2x32xf32>
    %1245 = arith.mulf %1240, %1244 : vector<2x32xf32>
    %1246 = arith.negf %1230 : vector<2x128xf32>
    %1247 = math.exp %1246 : vector<2x128xf32>
    %cst_137 = arith.constant 1.000000e+00 : f32
    %1248 = vector.broadcast %cst_137 : f32 to vector<2x128xf32>
    %1249 = arith.addf %1248, %1247 : vector<2x128xf32>
    %1250 = arith.divf %1248, %1249 : vector<2x128xf32>
    %1251 = math.tanh %1230 : vector<2x128xf32>
    %1252 = vector.extract_strided_slice %1250 {offsets = [0, 0], sizes = [2, 32], strides = [1, 1]} : vector<2x128xf32> to vector<2x32xf32>
    %1253 = vector.extract_strided_slice %1250 {offsets = [0, 32], sizes = [2, 32], strides = [1, 1]} : vector<2x128xf32> to vector<2x32xf32>
    %1254 = vector.extract_strided_slice %1251 {offsets = [0, 64], sizes = [2, 32], strides = [1, 1]} : vector<2x128xf32> to vector<2x32xf32>
    %1255 = vector.extract_strided_slice %1250 {offsets = [0, 96], sizes = [2, 32], strides = [1, 1]} : vector<2x128xf32> to vector<2x32xf32>
    %1256 = arith.mulf %1253, %1220 : vector<2x32xf32>
    %1257 = arith.mulf %1252, %1254 : vector<2x32xf32>
    %1258 = arith.addf %1256, %1257 : vector<2x32xf32>
    %1259 = math.tanh %1258 : vector<2x32xf32>
    %1260 = arith.mulf %1255, %1259 : vector<2x32xf32>
    %1261 = tpu.concatenate %979, %1017, %1055, %1093, %1131, %1169, %1207, %1245 in 0 : vector<2x32xf32>, vector<2x32xf32>, vector<2x32xf32>, vector<2x32xf32>, vector<2x32xf32>, vector<2x32xf32>, vector<2x32xf32>, vector<2x32xf32> -> vector<16x32xf32>
    %1262 = tpu.concatenate %1260, %1222, %1184, %1146, %1108, %1070, %1032, %994 in 0 : vector<2x32xf32>, vector<2x32xf32>, vector<2x32xf32>, vector<2x32xf32>, vector<2x32xf32>, vector<2x32xf32>, vector<2x32xf32>, vector<2x32xf32> -> vector<16x32xf32>
    %1263 = tpu.concatenate %1261, %1262 in 1 : vector<16x32xf32>, vector<16x32xf32> -> vector<16x64xf32>
    %c0_138 = arith.constant 0 : index
    %c0_139 = arith.constant 0 : index
    %1264 = vector.load %arg8[%c0_138, %c0_139] : memref<1x64xf32, #tpu.memory_space<vmem>>, vector<1x64xf32>
    %1265 = vector.broadcast %1264 : vector<1x64xf32> to vector<16x64xf32>
    %1266 = arith.mulf %1263, %1265 : vector<16x64xf32>
    %cst_140 = arith.constant dense<0.000000e+00> : vector<16xf32>
    %1267 = vector.multi_reduction <add>, %1266, %cst_140 [1] : vector<16x64xf32> to vector<16xf32>
    %1268 = vector.shape_cast %1267 : vector<16xf32> to vector<16x1xf32>
    %c0_141 = arith.constant 0 : index
    %c0_142 = arith.constant 0 : index
    %1269 = vector.load %arg9[%c0_141, %c0_142] : memref<1x1xf32, #tpu.memory_space<vmem>>, vector<1x1xf32>
    %1270 = vector.broadcast %1269 : vector<1x1xf32> to vector<16x1xf32>
    %1271 = arith.addf %1268, %1270 : vector<16x1xf32>
    %c0_143 = arith.constant 0 : index
    %c0_144 = arith.constant 0 : index
    %1272 = vector.load %arg10[%c0_143, %c0_144] : memref<16x1xf32, #tpu.memory_space<vmem>>, vector<16x1xf32>
    tpu.vector_store %arg10[%c0_143, %c0_144], %1271 {strides = array<i32>} : memref<16x1xf32, #tpu.memory_space<vmem>>, vector<16x1xf32>,
    return
  }
}

</mosaic_0001>

<llo_original>
// kernel: forward.1
$region0: #{forward.1}
  #allocation0 [shape = 'u32[]', space=smem, size = 0x4, offset = 0x4, fixed_abs, tag = 'smem constant byte address 0x4 - core index']
  #allocation1 [shape = 'u32[144,128]{1,0:T(1,128)}', space=vmem, size = 0x12000, scoped, tag = 'internal scratch']
  #allocation2 [shape = 'f32[1,1]{1,0:T(1,128)S(1)}', space=vmem, size = 0x200, scoped, tag = 'scoped memory for forward.1']
  %s0 = inlined_call_operand.vmem [shape: f32[16,20], index: 0, kind: input, shape index: {}]
  %s1 = inlined_call_operand.vmem [shape: f32[16,20], index: 1, kind: input, shape index: {}]
  %s2 = inlined_call_operand.vmem [shape: f32[2,64,256], index: 2, kind: input, shape index: {}]
  %s3 = inlined_call_operand.vmem [shape: f32[2,64,256], index: 3, kind: input, shape index: {}]
  %s4 = inlined_call_operand.vmem [shape: f32[2,1,256], index: 4, kind: input, shape index: {}]
  %s5 = inlined_call_operand.hbm [shape: f32[2,64,256], index: 5, kind: input, shape index: {}]
  %s6 = inlined_call_operand.hbm [shape: f32[2,64,256], index: 6, kind: input, shape index: {}]
  %s7 = inlined_call_operand.vmem [shape: f32[2,1,256], index: 7, kind: input, shape index: {}]
  %s8 = inlined_call_operand.vmem [shape: f32[1,64], index: 8, kind: input, shape index: {}]
  %s9 = inlined_call_operand.<no memory space> [shape: f32[1,1], index: 9, kind: input, shape index: {}]
  %s10 = inlined_call_operand.vmem [shape: f32[16,1], index: 10, kind: output, shape index: {}]
  %s11 = sld [smem:[#allocation0]]
  $region58: #{forward.1} parent=0
    _
  %s13 = ssub.s32 1, %s11
  %s14 = scalar_select 0, %s13, %s11
  %v15 = vstv %s9
  %16 = vst [vmem:[#allocation2] sm:$0x1] %v15
  $region1: #{forward.1} parent=0
    #allocation3 [shape = 'u8[131072]{0}', space=vmem, size = 0x20000, scoped, tag = 'input window, operand 5, single buffered']
    #allocation4 [shape = 's32[1]{0}', space=sflag, size = 0x4, scoped, tag = 'scoped memory for forward.1']
    #allocation5 [shape = 'u8[131072]{0}', space=vmem, size = 0x20000, scoped, tag = 'input window, operand 6, single buffered']
    #allocation6 [shape = 's32[1]{0}', space=sflag, size = 0x4, scoped, tag = 'scoped memory for forward.1']
    %17 = vsyncpa [#allocation4], 0
    %18 = vsyncpa [#allocation6], 0
    // Predicated region
    $region2: #{forward.1} parent=1 // pred_check
      _
    $region3: #{forward.1} parent=1 // pred_check_branch
      %20 = sbr.rel (0) target = $region5
    $region4: #{forward.1} parent=1 // pred_region
      _
    $region5: #{forward.1} parent=1 // pred_fallthru
      _
    // Predicated region
    $region6: #{forward.1} parent=1 // pred_check
      _
    $region7: #{forward.1} parent=1 // pred_check_branch
      %22 = sbr.rel (0) target = $region9
    $region8: #{forward.1} parent=1 // pred_region
      _
    $region9: #{forward.1} parent=1 // pred_fallthru
      _
    // Predicated region
    $region10: #{forward.1} parent=1 // pred_check
      _
    $region11: #{forward.1} parent=1 // pred_check_branch
      %24 = sbr.rel (0) target = $region13
    $region12: #{forward.1} parent=1 // pred_region
      _
    $region13: #{forward.1} parent=1 // pred_fallthru
      _
    // Predicated region
    $region14: #{forward.1} parent=1 // pred_check
      _
    $region15: #{forward.1} parent=1 // pred_check_branch
      %26 = sbr.rel (0) target = $region17
    $region16: #{forward.1} parent=1 // pred_region
      _
    $region17: #{forward.1} parent=1 // pred_fallthru
      _
    // Predicated region
    $region18: #{forward.1} parent=1 // pred_check
      _
    $region19: #{forward.1} parent=1 // pred_check_branch
      %28 = sbr.rel (0) target = $region21
    $region20: #{forward.1} parent=1 // pred_region
      _
    $region21: #{forward.1} parent=1 // pred_fallthru
      _
    // Predicated region
    $region22: #{forward.1} parent=1 // pred_check
      _
    $region23: #{forward.1} parent=1 // pred_check_branch
      %30 = sbr.rel (0) target = $region25
    $region24: #{forward.1} parent=1 // pred_region
      %s32 = ssub.s32 4096, 4096
      %33 = vsyncadd [#allocation4], %s32
      %s34 = sshll.u32 [#allocation3], 4
      %s35 = int_to_ptr.vmem [resolvable:$true] %s34
      %40 = dma.hbm_to_vmem [thread:$0]  %s5, 4096, %s35, [#allocation4], 256, 256, 16
    $region25: #{forward.1} parent=1 // pred_fallthru
      _
    // Predicated region
    $region26: #{forward.1} parent=1 // pred_check
      _
    $region27: #{forward.1} parent=1 // pred_check_branch
      %42 = sbr.rel (0) target = $region29
    $region28: #{forward.1} parent=1 // pred_region
      %s44 = ssub.s32 4096, 4096
      %45 = vsyncadd [#allocation6], %s44
      %s46 = sshll.u32 [#allocation5], 4
      %s47 = int_to_ptr.vmem [resolvable:$true] %s46
      %52 = dma.hbm_to_vmem [thread:$0]  %s6, 4096, %s47, [#allocation6], 256, 256, 16
    $region29: #{forward.1} parent=1 // pred_fallthru
      _
    // Predicated region
    $region30: #{forward.1} parent=1 // pred_check
      _
    $region31: #{forward.1} parent=1 // pred_check_branch
      %54 = sbr.rel (0) target = $region33
    $region32: #{forward.1} parent=1 // pred_region
      _
    $region33: #{forward.1} parent=1 // pred_fallthru
      _
    // Predicated region
    $region34: #{forward.1} parent=1 // pred_check
      _
    $region35: #{forward.1} parent=1 // pred_check_branch
      %56 = sbr.rel (0) target = $region37
    $region36: #{forward.1} parent=1 // pred_region
      _
    $region37: #{forward.1} parent=1 // pred_fallthru
      _
    // Predicated region
    $region38: #{forward.1} parent=1 // pred_check
      _
    $region39: #{forward.1} parent=1 // pred_check_branch
      %58 = sbr.rel (0) target = $region41
    $region40: #{forward.1} parent=1 // pred_region
      _
    $region41: #{forward.1} parent=1 // pred_fallthru
      _
    // Predicated region
    $region42: #{forward.1} parent=1 // pred_check
      _
    $region43: #{forward.1} parent=1 // pred_check_branch
      %60 = sbr.rel (0) target = $region45
    $region44: #{forward.1} parent=1 // pred_region
      %61 = dma.done [#allocation4], 4096
    $region45: #{forward.1} parent=1 // pred_fallthru
      _
    // Predicated region
    $region46: #{forward.1} parent=1 // pred_check
      _
    $region47: #{forward.1} parent=1 // pred_check_branch
      %63 = sbr.rel (0) target = $region49
    $region48: #{forward.1} parent=1 // pred_region
      %64 = dma.done [#allocation6], 4096
    $region49: #{forward.1} parent=1 // pred_fallthru
      _
    %v65 = vld [vmem:[%s0] sm:$0xff]
    %v66 = vld [vmem:[%s0 + $0x8] sm:$0xff]
    %v67 = vld [vmem:[%s2] sm:$0xff]
    %v68 = vld [vmem:[%s2 + $0x8] sm:$0xff]
    %v69 = vld [vmem:[%s2 + $0x10] sm:$0xff]
    %v70 = vld [vmem:[%s2 + $0x18] sm:$0xff]
    %v71 = vld [vmem:[%s2 + $0x20] sm:$0xf]
    %v72 = vld [vmem:[%s2 + $0x28] sm:$0xf]
    %v73 = vld [vmem:[%s3] sm:$0xff]
    %v74 = vld [vmem:[%s3 + $0x8] sm:$0xff]
    %v75 = vld [vmem:[%s3 + $0x10] sm:$0xff]
    %v76 = vld [vmem:[%s3 + $0x18] sm:$0xff]
    %v77 = vld [vmem:[%s3 + $0x20] sm:$0xff]
    %v78 = vld [vmem:[%s3 + $0x28] sm:$0xff]
    %v79 = vld [vmem:[%s3 + $0x30] sm:$0xff]
    %v80 = vld [vmem:[%s3 + $0x38] sm:$0xff]
    %v81 = vld [vmem:[%s3 + $0x40] sm:$0xff]
    %v82 = vld [vmem:[%s3 + $0x48] sm:$0xff]
    %v83 = vld [vmem:[%s3 + $0x50] sm:$0xff]
    %v84 = vld [vmem:[%s3 + $0x58] sm:$0xff]
    %v85 = vld [vmem:[%s3 + $0x60] sm:$0xff]
    %v86 = vld [vmem:[%s3 + $0x68] sm:$0xff]
    %v87 = vld [vmem:[%s3 + $0x70] sm:$0xff]
    %v88 = vld [vmem:[%s3 + $0x78] sm:$0xff]
    %v89 = vld [vmem:[%s4] sm:$0x3]
    %v91 = vlaneseq
    %v92 = vshrl.u32 %v91, 7
    %v93 = vsub.s32 0, %v92
    %v94 = vrot.slane %v89, %v93
    %v95 = vlaneseq
    %v96 = vshrl.u32 %v95, 7
    %v97 = vsub.s32 1, %v96
    %v98 = vrot.slane %v89, %v97
    %vm101 = vcmask 162816
    %v103 = vsel %vm101, %v65, 0
    %v106 = vsel %vm101, %v66, 0
    %vm108 = vcmask 1043456
    %v110 = vsel %vm108, %v71, 0
    %v113 = vsel %vm108, %v72, 0
    %115 = vmatprep.subr.mxu0 0.0
    %116 = vmatpush1.msra.mxu0 0.0
    %117 = vmatprep.subr.mxu0 0.0
    %118 = vmatpush1.msra.mxu0 0.0
    %119 = vmatprep.subr.mxu0 0.0
    %120 = vmatpush1.msra.mxu0 0.0
    %121 = vmatprep.subr.mxu0 0.0
    %122 = vmatpush1.msra.mxu0 0.0
    %123 = vmatprep.subr.mxu0 0.0
    %124 = vmatpush1.msra.mxu0 0.0
    %125 = vmatprep.subr.mxu0 0.0
    %126 = vmatpush1.msra.mxu0 0.0
    %127 = vmatprep.subr.mxu0 0.0
    %128 = vmatpush1.msra.mxu0 0.0
    %129 = vmatprep.subr.mxu0 0.0
    %130 = vmatpush1.msra.mxu0 0.0
    %131 = vmatprep.subr.mxu0 0.0
    %132 = vmatpush1.msra.mxu0 0.0
    %133 = vmatprep.subr.mxu0 0.0
    %134 = vmatpush1.msra.mxu0 0.0
    %135 = vmatprep.subr.mxu0 0.0
    %136 = vmatpush1.msra.mxu0 0.0
    %137 = vmatprep.subr.mxu0 0.0
    %138 = vmatpush1.msra.mxu0 0.0
    %139 = vmatprep.subr.mxu0 0.0
    %140 = vmatpush1.msra.mxu0 0.0
    %141 = vmatprep.subr.mxu0 %v113
    %142 = vmatpush1.msra.mxu0 %v110
    %143 = vmatprep.subr.mxu0 %v70
    %144 = vmatpush1.msra.mxu0 %v69
    %145 = vmatprep.subr.mxu0 %v68
    %146 = vmatpush1.msra.mxu0 %v67
    %147 = vmatprep.subr.mxu0 0.0
    %148 = vmatpush2.msra.mxu0 0.0
    %149 = vmatprep.subr.mxu0 0.0
    %150 = vmatpush2.msra.mxu0 0.0
    %151 = vmatprep.subr.mxu0 0.0
    %152 = vmatpush2.msra.mxu0 0.0
    %153 = vmatprep.subr.mxu0 0.0
    %154 = vmatpush2.msra.mxu0 0.0
    %155 = vmatprep.subr.mxu0 0.0
    %156 = vmatpush2.msra.mxu0 0.0
    %157 = vmatprep.subr.mxu0 0.0
    %158 = vmatpush2.msra.mxu0 0.0
    %159 = vmatprep.subr.mxu0 0.0
    %160 = vmatpush2.msra.mxu0 0.0
    %161 = vmatprep.subr.mxu0 0.0
    %162 = vmatpush2.msra.mxu0 0.0
    %163 = vmatprep.subr.mxu0 0.0
    %164 = vmatpush2.msra.mxu0 0.0
    %165 = vmatprep.subr.mxu0 0.0
    %166 = vmatpush2.msra.mxu0 0.0
    %167 = vmatprep.subr.mxu0 0.0
    %168 = vmatpush2.msra.mxu0 0.0
    %169 = vmatprep.subr.mxu0 0.0
    %170 = vmatpush2.msra.mxu0 0.0
    %171 = vmatprep.subr.mxu0 0.0
    %172 = vmatpush2.msra.mxu0 0.0
    %173 = vmatprep.subr.mxu0 0.0
    %174 = vmatpush2.msra.mxu0 0.0
    %175 = vmatprep.subr.mxu0 0.0
    %176 = vmatpush2.msra.mxu0 0.0
    %177 = vmatprep.subr.mxu0 0.0
    %178 = vmatpush2.msra.mxu0 0.0
    %179 = vmatprep.mubr.f32.mxu0 0.0
    %180 = vmatmul.mubr.f32.gmra.mxu0 %v103
    %v181 = vpop.f32.mrf.mxu0
    %v182 = vadd.f32 %v94, %v181
    %v183 = vpop.f32.mrf.mxu0
    %v184 = vadd.f32 %v98, %v183
    %185 = vmatprep.mubr.f32.mxu0 0.0
    %186 = vmatmul.mubr.f32.gmra.mxu0 %v106
    %v187 = vpop.f32.mrf.mxu0
    %v188 = vadd.f32 %v94, %v187
    %v189 = vpop.f32.mrf.mxu0
    %v190 = vadd.f32 %v98, %v189
    %191 = vdwg.mxu0
    %vm192 = vcmask 523264
    %v194 = vsel %vm192, 0.0, 0
    %196 = vmatprep.subr.mxu0 0.0
    %197 = vmatpush1.msra.mxu0 0.0
    %198 = vmatprep.subr.mxu0 0.0
    %199 = vmatpush1.msra.mxu0 0.0
    %200 = vmatprep.subr.mxu0 0.0
    %201 = vmatpush1.msra.mxu0 0.0
    %202 = vmatprep.subr.mxu0 0.0
    %203 = vmatpush1.msra.mxu0 0.0
    %204 = vmatprep.subr.mxu0 0.0
    %205 = vmatpush1.msra.mxu0 0.0
    %206 = vmatprep.subr.mxu0 0.0
    %207 = vmatpush1.msra.mxu0 0.0
    %208 = vmatprep.subr.mxu0 0.0
    %209 = vmatpush1.msra.mxu0 0.0
    %210 = vmatprep.subr.mxu0 0.0
    %211 = vmatpush1.msra.mxu0 0.0
    %212 = vmatprep.subr.mxu0 %v88
    %213 = vmatpush1.msra.mxu0 %v87
    %214 = vmatprep.subr.mxu0 %v86
    %215 = vmatpush1.msra.mxu0 %v85
    %216 = vmatprep.subr.mxu0 %v84
    %217 = vmatpush1.msra.mxu0 %v83
    %218 = vmatprep.subr.mxu0 %v82
    %219 = vmatpush1.msra.mxu0 %v81
    %220 = vmatprep.subr.mxu0 %v80
    %221 = vmatpush1.msra.mxu0 %v79
    %222 = vmatprep.subr.mxu0 %v78
    %223 = vmatpush1.msra.mxu0 %v77
    %224 = vmatprep.subr.mxu0 %v76
    %225 = vmatpush1.msra.mxu0 %v75
    %226 = vmatprep.subr.mxu0 %v74
    %227 = vmatpush1.msra.mxu0 %v73
    %228 = vmatprep.subr.mxu0 0.0
    %229 = vmatpush2.msra.mxu0 0.0
    %230 = vmatprep.subr.mxu0 0.0
    %231 = vmatpush2.msra.mxu0 0.0
    %232 = vmatprep.subr.mxu0 0.0
    %233 = vmatpush2.msra.mxu0 0.0
    %234 = vmatprep.subr.mxu0 0.0
    %235 = vmatpush2.msra.mxu0 0.0
    %236 = vmatprep.subr.mxu0 0.0
    %237 = vmatpush2.msra.mxu0 0.0
    %238 = vmatprep.subr.mxu0 0.0
    %239 = vmatpush2.msra.mxu0 0.0
    %240 = vmatprep.subr.mxu0 0.0
    %241 = vmatpush2.msra.mxu0 0.0
    %242 = vmatprep.subr.mxu0 0.0
    %243 = vmatpush2.msra.mxu0 0.0
    %244 = vmatprep.subr.mxu0 0.0
    %245 = vmatpush2.msra.mxu0 0.0
    %246 = vmatprep.subr.mxu0 0.0
    %247 = vmatpush2.msra.mxu0 0.0
    %248 = vmatprep.subr.mxu0 0.0
    %249 = vmatpush2.msra.mxu0 0.0
    %250 = vmatprep.subr.mxu0 0.0
    %251 = vmatpush2.msra.mxu0 0.0
    %252 = vmatprep.subr.mxu0 0.0
    %253 = vmatpush2.msra.mxu0 0.0
    %254 = vmatprep.subr.mxu0 0.0
    %255 = vmatpush2.msra.mxu0 0.0
    %256 = vmatprep.subr.mxu0 0.0
    %257 = vmatpush2.msra.mxu0 0.0
    %258 = vmatprep.subr.mxu0 0.0
    %259 = vmatpush2.msra.mxu0 0.0
    %260 = vmatprep.mubr.f32.mxu0 0.0
    %261 = vmatmul.mubr.f32.gmra.mxu0 %v194
    %v262 = vpop.f32.mrf.mxu0
    %v263 = vadd.f32 0.0, %v262
    %v264 = vpop.f32.mrf.mxu0
    %v265 = vadd.f32 0.0, %v264
    %266 = vdwg.mxu0
    %v267 = vadd.f32 %v182, %v263
    %v269 = vrot.slane %v265, 2
    %v271 = vadd.f32 %v190, %v269
    %v272 = vxor.u32 %v267, 2147483648
    %v273 = vmul.f32 %v272, 1.442695
    %v274 = vpow.pop %v273
    %v275 = vadd.f32 %v274, 1.0
    %v276 = vrcp.pop %v275
    %v277 = vmul.f32 1.0, %v276
    %v278 = vtanh.pop %v267
    %v279 = vmul.f32 %v277, 0.0
    %281 = vrot.lane.b32.xlu0 %v278, 64
    %v282 = vpop.permute.xlu0 %281
    %v284 = vmul.f32 %v277, %v282
    %286 = vrot.lane.b32.xlu0 %v284, 32
    %v287 = vpop.permute.xlu0 %286
    %v289 = vadd.f32 %v279, %v287
    %v290 = vtanh.pop %v289
    %292 = vrot.lane.b32.xlu0 %v290, 64
    %v293 = vpop.permute.xlu0 %292
    %v295 = vmul.f32 %v277, %v293
    %v296 = vxor.u32 %v271, 2147483648
    %v297 = vmul.f32 %v296, 1.442695
    %v298 = vpow.pop %v297
    %v299 = vadd.f32 %v298, 1.0
    %v300 = vrcp.pop %v299
    %v301 = vmul.f32 1.0, %v300
    %v302 = vtanh.pop %v271
    %v303 = vmul.f32 %v301, 0.0
    %305 = vrot.lane.b32.xlu0 %v302, 64
    %v306 = vpop.permute.xlu0 %305
    %v308 = vmul.f32 %v301, %v306
    %310 = vrot.lane.b32.xlu0 %v308, 32
    %v311 = vpop.permute.xlu0 %310
    %v313 = vadd.f32 %v303, %v311
    %v314 = vtanh.pop %v313
    %316 = vrot.lane.b32.xlu0 %v314, 64
    %v317 = vpop.permute.xlu0 %316
    %v319 = vmul.f32 %v301, %v317
    %321 = vrot.lane.b32.xlu0 %v295, 32
    %v322 = vpop.permute.xlu0 %321
    %v325 = vrot.slane %v319, 6
    %326 = vrot.lane.b32.xlu0 %v325, 64
    %v327 = vpop.permute.xlu0 %326
    %vm329 = vcmask 261120
    %v330 = vsel %vm329, %v322, %v327
    %v332 = vsel %vm192, %v330, 0
    %334 = vmatprep.subr.mxu0 0.0
    %335 = vmatpush1.msra.mxu0 0.0
    %336 = vmatprep.subr.mxu0 0.0
    %337 = vmatpush1.msra.mxu0 0.0
    %338 = vmatprep.subr.mxu0 0.0
    %339 = vmatpush1.msra.mxu0 0.0
    %340 = vmatprep.subr.mxu0 0.0
    %341 = vmatpush1.msra.mxu0 0.0
    %342 = vmatprep.subr.mxu0 0.0
    %343 = vmatpush1.msra.mxu0 0.0
    %344 = vmatprep.subr.mxu0 0.0
    %345 = vmatpush1.msra.mxu0 0.0
    %346 = vmatprep.subr.mxu0 0.0
    %347 = vmatpush1.msra.mxu0 0.0
    %348 = vmatprep.subr.mxu0 0.0
    %349 = vmatpush1.msra.mxu0 0.0
    %350 = vmatprep.subr.mxu0 %v88
    %351 = vmatpush1.msra.mxu0 %v87
    %352 = vmatprep.subr.mxu0 %v86
    %353 = vmatpush1.msra.mxu0 %v85
    %354 = vmatprep.subr.mxu0 %v84
    %355 = vmatpush1.msra.mxu0 %v83
    %356 = vmatprep.subr.mxu0 %v82
    %357 = vmatpush1.msra.mxu0 %v81
    %358 = vmatprep.subr.mxu0 %v80
    %359 = vmatpush1.msra.mxu0 %v79
    %360 = vmatprep.subr.mxu0 %v78
    %361 = vmatpush1.msra.mxu0 %v77
    %362 = vmatprep.subr.mxu0 %v76
    %363 = vmatpush1.msra.mxu0 %v75
    %364 = vmatprep.subr.mxu0 %v74
    %365 = vmatpush1.msra.mxu0 %v73
    %366 = vmatprep.subr.mxu0 0.0
    %367 = vmatpush2.msra.mxu0 0.0
    %368 = vmatprep.subr.mxu0 0.0
    %369 = vmatpush2.msra.mxu0 0.0
    %370 = vmatprep.subr.mxu0 0.0
    %371 = vmatpush2.msra.mxu0 0.0
    %372 = vmatprep.subr.mxu0 0.0
    %373 = vmatpush2.msra.mxu0 0.0
    %374 = vmatprep.subr.mxu0 0.0
    %375 = vmatpush2.msra.mxu0 0.0
    %376 = vmatprep.subr.mxu0 0.0
    %377 = vmatpush2.msra.mxu0 0.0
    %378 = vmatprep.subr.mxu0 0.0
    %379 = vmatpush2.msra.mxu0 0.0
    %380 = vmatprep.subr.mxu0 0.0
    %381 = vmatpush2.msra.mxu0 0.0
    %382 = vmatprep.subr.mxu0 0.0
    %383 = vmatpush2.msra.mxu0 0.0
    %384 = vmatprep.subr.mxu0 0.0
    %385 = vmatpush2.msra.mxu0 0.0
    %386 = vmatprep.subr.mxu0 0.0
    %387 = vmatpush2.msra.mxu0 0.0
    %388 = vmatprep.subr.mxu0 0.0
    %389 = vmatpush2.msra.mxu0 0.0
    %390 = vmatprep.subr.mxu0 0.0
    %391 = vmatpush2.msra.mxu0 0.0
    %392 = vmatprep.subr.mxu0 0.0
    %393 = vmatpush2.msra.mxu0 0.0
    %394 = vmatprep.subr.mxu0 0.0
    %395 = vmatpush2.msra.mxu0 0.0
    %396 = vmatprep.subr.mxu0 0.0
    %397 = vmatpush2.msra.mxu0 0.0
    %398 = vmatprep.mubr.f32.mxu0 0.0
    %399 = vmatmul.mubr.f32.gmra.mxu0 %v332
    %v400 = vpop.f32.mrf.mxu0
    %v401 = vadd.f32 0.0, %v400
    %v402 = vpop.f32.mrf.mxu0
    %v403 = vadd.f32 0.0, %v402
    %404 = vdwg.mxu0
    %v406 = vrot.slane %v401, 6
    %v408 = vadd.f32 %v182, %v406
    %v410 = vrot.slane %v403, 4
    %v412 = vadd.f32 %v190, %v410
    %v413 = vxor.u32 %v408, 2147483648
    %v414 = vmul.f32 %v413, 1.442695
    %v415 = vpow.pop %v414
    %v416 = vadd.f32 %v415, 1.0
    %v417 = vrcp.pop %v416
    %v418 = vmul.f32 1.0, %v417
    %v419 = vtanh.pop %v408
    %v421 = vrot.slane %v289, 6
    %v423 = vmul.f32 %v418, %v421
    %425 = vrot.lane.b32.xlu0 %v419, 64
    %v426 = vpop.permute.xlu0 %425
    %v428 = vmul.f32 %v418, %v426
    %430 = vrot.lane.b32.xlu0 %v428, 32
    %v431 = vpop.permute.xlu0 %430
    %v433 = vadd.f32 %v423, %v431
    %v434 = vtanh.pop %v433
    %436 = vrot.lane.b32.xlu0 %v434, 64
    %v437 = vpop.permute.xlu0 %436
    %v439 = vmul.f32 %v418, %v437
    %v440 = vxor.u32 %v412, 2147483648
    %v441 = vmul.f32 %v440, 1.442695
    %v442 = vpow.pop %v441
    %v443 = vadd.f32 %v442, 1.0
    %v444 = vrcp.pop %v443
    %v445 = vmul.f32 1.0, %v444
    %v446 = vtanh.pop %v412
    %v448 = vrot.slane %v313, 2
    %v450 = vmul.f32 %v445, %v448
    %452 = vrot.lane.b32.xlu0 %v446, 64
    %v453 = vpop.permute.xlu0 %452
    %v455 = vmul.f32 %v445, %v453
    %457 = vrot.lane.b32.xlu0 %v455, 32
    %v458 = vpop.permute.xlu0 %457
    %v460 = vadd.f32 %v450, %v458
    %v461 = vtanh.pop %v460
    %463 = vrot.lane.b32.xlu0 %v461, 64
    %v464 = vpop.permute.xlu0 %463
    %v466 = vmul.f32 %v445, %v464
    %468 = vrot.lane.b32.xlu0 %v439, 32
    %v469 = vpop.permute.xlu0 %468
    %v472 = vrot.slane %v466, 2
    %473 = vrot.lane.b32.xlu0 %v472, 64
    %v474 = vpop.permute.xlu0 %473
    %v476 = vsel %vm329, %v469, %v474
    %v478 = vrot.slane %v476, 2
    %v479 = vsel %vm192, %v478, 0
    %481 = vmatprep.subr.mxu0 0.0
    %482 = vmatpush1.msra.mxu0 0.0
    %483 = vmatprep.subr.mxu0 0.0
    %484 = vmatpush1.msra.mxu0 0.0
    %485 = vmatprep.subr.mxu0 0.0
    %486 = vmatpush1.msra.mxu0 0.0
    %487 = vmatprep.subr.mxu0 0.0
    %488 = vmatpush1.msra.mxu0 0.0
    %489 = vmatprep.subr.mxu0 0.0
    %490 = vmatpush1.msra.mxu0 0.0
    %491 = vmatprep.subr.mxu0 0.0
    %492 = vmatpush1.msra.mxu0 0.0
    %493 = vmatprep.subr.mxu0 0.0
    %494 = vmatpush1.msra.mxu0 0.0
    %495 = vmatprep.subr.mxu0 0.0
    %496 = vmatpush1.msra.mxu0 0.0
    %497 = vmatprep.subr.mxu0 %v88
    %498 = vmatpush1.msra.mxu0 %v87
    %499 = vmatprep.subr.mxu0 %v86
    %500 = vmatpush1.msra.mxu0 %v85
    %501 = vmatprep.subr.mxu0 %v84
    %502 = vmatpush1.msra.mxu0 %v83
    %503 = vmatprep.subr.mxu0 %v82
    %504 = vmatpush1.msra.mxu0 %v81
    %505 = vmatprep.subr.mxu0 %v80
    %506 = vmatpush1.msra.mxu0 %v79
    %507 = vmatprep.subr.mxu0 %v78
    %508 = vmatpush1.msra.mxu0 %v77
    %509 = vmatprep.subr.mxu0 %v76
    %510 = vmatpush1.msra.mxu0 %v75
    %511 = vmatprep.subr.mxu0 %v74
    %512 = vmatpush1.msra.mxu0 %v73
    %513 = vmatprep.subr.mxu0 0.0
    %514 = vmatpush2.msra.mxu0 0.0
    %515 = vmatprep.subr.mxu0 0.0
    %516 = vmatpush2.msra.mxu0 0.0
    %517 = vmatprep.subr.mxu0 0.0
    %518 = vmatpush2.msra.mxu0 0.0
    %519 = vmatprep.subr.mxu0 0.0
    %520 = vmatpush2.msra.mxu0 0.0
    %521 = vmatprep.subr.mxu0 0.0
    %522 = vmatpush2.msra.mxu0 0.0
    %523 = vmatprep.subr.mxu0 0.0
    %524 = vmatpush2.msra.mxu0 0.0
    %525 = vmatprep.subr.mxu0 0.0
    %526 = vmatpush2.msra.mxu0 0.0
    %527 = vmatprep.subr.mxu0 0.0
    %528 = vmatpush2.msra.mxu0 0.0
    %529 = vmatprep.subr.mxu0 0.0
    %530 = vmatpush2.msra.mxu0 0.0
    %531 = vmatprep.subr.mxu0 0.0
    %532 = vmatpush2.msra.mxu0 0.0
    %533 = vmatprep.subr.mxu0 0.0
    %534 = vmatpush2.msra.mxu0 0.0
    %535 = vmatprep.subr.mxu0 0.0
    %536 = vmatpush2.msra.mxu0 0.0
    %537 = vmatprep.subr.mxu0 0.0
    %538 = vmatpush2.msra.mxu0 0.0
    %539 = vmatprep.subr.mxu0 0.0
    %540 = vmatpush2.msra.mxu0 0.0
    %541 = vmatprep.subr.mxu0 0.0
    %542 = vmatpush2.msra.mxu0 0.0
    %543 = vmatprep.subr.mxu0 0.0
    %544 = vmatpush2.msra.mxu0 0.0
    %545 = vmatprep.mubr.f32.mxu0 0.0
    %546 = vmatmul.mubr.f32.gmra.mxu0 %v479
    %v547 = vpop.f32.mrf.mxu0
    %v548 = vadd.f32 0.0, %v547
    %v549 = vpop.f32.mrf.mxu0
    %v550 = vadd.f32 0.0, %v549
    %551 = vdwg.mxu0
    %v553 = vrot.slane %v548, 4
    %v555 = vadd.f32 %v182, %v553
    %v557 = vrot.slane %v550, 6
    %v559 = vadd.f32 %v190, %v557
    %v560 = vxor.u32 %v555, 2147483648
    %v561 = vmul.f32 %v560, 1.442695
    %v562 = vpow.pop %v561
    %v563 = vadd.f32 %v562, 1.0
    %v564 = vrcp.pop %v563
    %v565 = vmul.f32 1.0, %v564
    %v566 = vtanh.pop %v555
    %v568 = vrot.slane %v433, 6
    %v570 = vmul.f32 %v565, %v568
    %572 = vrot.lane.b32.xlu0 %v566, 64
    %v573 = vpop.permute.xlu0 %572
    %v575 = vmul.f32 %v565, %v573
    %577 = vrot.lane.b32.xlu0 %v575, 32
    %v578 = vpop.permute.xlu0 %577
    %v580 = vadd.f32 %v570, %v578
    %v581 = vtanh.pop %v580
    %583 = vrot.lane.b32.xlu0 %v581, 64
    %v584 = vpop.permute.xlu0 %583
    %v586 = vmul.f32 %v565, %v584
    %v587 = vxor.u32 %v559, 2147483648
    %v588 = vmul.f32 %v587, 1.442695
    %v589 = vpow.pop %v588
    %v590 = vadd.f32 %v589, 1.0
    %v591 = vrcp.pop %v590
    %v592 = vmul.f32 1.0, %v591
    %v593 = vtanh.pop %v559
    %v595 = vrot.slane %v460, 2
    %v597 = vmul.f32 %v592, %v595
    %599 = vrot.lane.b32.xlu0 %v593, 64
    %v600 = vpop.permute.xlu0 %599
    %v602 = vmul.f32 %v592, %v600
    %604 = vrot.lane.b32.xlu0 %v602, 32
    %v605 = vpop.permute.xlu0 %604
    %v607 = vadd.f32 %v597, %v605
    %v608 = vtanh.pop %v607
    %610 = vrot.lane.b32.xlu0 %v608, 64
    %v611 = vpop.permute.xlu0 %610
    %v613 = vmul.f32 %v592, %v611
    %615 = vrot.lane.b32.xlu0 %v586, 32
    %v616 = vpop.permute.xlu0 %615
    %v619 = vrot.slane %v613, 6
    %620 = vrot.lane.b32.xlu0 %v619, 64
    %v621 = vpop.permute.xlu0 %620
    %v623 = vsel %vm329, %v616, %v621
    %v625 = vrot.slane %v623, 4
    %v626 = vsel %vm192, %v625, 0
    %628 = vmatprep.subr.mxu0 0.0
    %629 = vmatpush1.msra.mxu0 0.0
    %630 = vmatprep.subr.mxu0 0.0
    %631 = vmatpush1.msra.mxu0 0.0
    %632 = vmatprep.subr.mxu0 0.0
    %633 = vmatpush1.msra.mxu0 0.0
    %634 = vmatprep.subr.mxu0 0.0
    %635 = vmatpush1.msra.mxu0 0.0
    %636 = vmatprep.subr.mxu0 0.0
    %637 = vmatpush1.msra.mxu0 0.0
    %638 = vmatprep.subr.mxu0 0.0
    %639 = vmatpush1.msra.mxu0 0.0
    %640 = vmatprep.subr.mxu0 0.0
    %641 = vmatpush1.msra.mxu0 0.0
    %642 = vmatprep.subr.mxu0 0.0
    %643 = vmatpush1.msra.mxu0 0.0
    %644 = vmatprep.subr.mxu0 %v88
    %645 = vmatpush1.msra.mxu0 %v87
    %646 = vmatprep.subr.mxu0 %v86
    %647 = vmatpush1.msra.mxu0 %v85
    %648 = vmatprep.subr.mxu0 %v84
    %649 = vmatpush1.msra.mxu0 %v83
    %650 = vmatprep.subr.mxu0 %v82
    %651 = vmatpush1.msra.mxu0 %v81
    %652 = vmatprep.subr.mxu0 %v80
    %653 = vmatpush1.msra.mxu0 %v79
    %654 = vmatprep.subr.mxu0 %v78
    %655 = vmatpush1.msra.mxu0 %v77
    %656 = vmatprep.subr.mxu0 %v76
    %657 = vmatpush1.msra.mxu0 %v75
    %658 = vmatprep.subr.mxu0 %v74
    %659 = vmatpush1.msra.mxu0 %v73
    %660 = vmatprep.subr.mxu0 0.0
    %661 = vmatpush2.msra.mxu0 0.0
    %662 = vmatprep.subr.mxu0 0.0
    %663 = vmatpush2.msra.mxu0 0.0
    %664 = vmatprep.subr.mxu0 0.0
    %665 = vmatpush2.msra.mxu0 0.0
    %666 = vmatprep.subr.mxu0 0.0
    %667 = vmatpush2.msra.mxu0 0.0
    %668 = vmatprep.subr.mxu0 0.0
    %669 = vmatpush2.msra.mxu0 0.0
    %670 = vmatprep.subr.mxu0 0.0
    %671 = vmatpush2.msra.mxu0 0.0
    %672 = vmatprep.subr.mxu0 0.0
    %673 = vmatpush2.msra.mxu0 0.0
    %674 = vmatprep.subr.mxu0 0.0
    %675 = vmatpush2.msra.mxu0 0.0
    %676 = vmatprep.subr.mxu0 0.0
    %677 = vmatpush2.msra.mxu0 0.0
    %678 = vmatprep.subr.mxu0 0.0
    %679 = vmatpush2.msra.mxu0 0.0
    %680 = vmatprep.subr.mxu0 0.0
    %681 = vmatpush2.msra.mxu0 0.0
    %682 = vmatprep.subr.mxu0 0.0
    %683 = vmatpush2.msra.mxu0 0.0
    %684 = vmatprep.subr.mxu0 0.0
    %685 = vmatpush2.msra.mxu0 0.0
    %686 = vmatprep.subr.mxu0 0.0
    %687 = vmatpush2.msra.mxu0 0.0
    %688 = vmatprep.subr.mxu0 0.0
    %689 = vmatpush2.msra.mxu0 0.0
    %690 = vmatprep.subr.mxu0 0.0
    %691 = vmatpush2.msra.mxu0 0.0
    %692 = vmatprep.mubr.f32.mxu0 0.0
    %693 = vmatmul.mubr.f32.gmra.mxu0 %v626
    %v694 = vpop.f32.mrf.mxu0
    %v695 = vadd.f32 0.0, %v694
    %v696 = vpop.f32.mrf.mxu0
    %v697 = vadd.f32 0.0, %v696
    %698 = vdwg.mxu0
    %v700 = vrot.slane %v695, 2
    %v702 = vadd.f32 %v182, %v700
    %v703 = vadd.f32 %v190, %v697
    %v704 = vxor.u32 %v702, 2147483648
    %v705 = vmul.f32 %v704, 1.442695
    %v706 = vpow.pop %v705
    %v707 = vadd.f32 %v706, 1.0
    %v708 = vrcp.pop %v707
    %v709 = vmul.f32 1.0, %v708
    %v710 = vtanh.pop %v702
    %v712 = vrot.slane %v580, 6
    %v714 = vmul.f32 %v709, %v712
    %716 = vrot.lane.b32.xlu0 %v710, 64
    %v717 = vpop.permute.xlu0 %716
    %v719 = vmul.f32 %v709, %v717
    %721 = vrot.lane.b32.xlu0 %v719, 32
    %v722 = vpop.permute.xlu0 %721
    %v724 = vadd.f32 %v714, %v722
    %v725 = vtanh.pop %v724
    %727 = vrot.lane.b32.xlu0 %v725, 64
    %v728 = vpop.permute.xlu0 %727
    %v730 = vmul.f32 %v709, %v728
    %v731 = vxor.u32 %v703, 2147483648
    %v732 = vmul.f32 %v731, 1.442695
    %v733 = vpow.pop %v732
    %v734 = vadd.f32 %v733, 1.0
    %v735 = vrcp.pop %v734
    %v736 = vmul.f32 1.0, %v735
    %v737 = vtanh.pop %v703
    %v739 = vrot.slane %v607, 2
    %v741 = vmul.f32 %v736, %v739
    %743 = vrot.lane.b32.xlu0 %v737, 64
    %v744 = vpop.permute.xlu0 %743
    %v746 = vmul.f32 %v736, %v744
    %748 = vrot.lane.b32.xlu0 %v746, 32
    %v749 = vpop.permute.xlu0 %748
    %v751 = vadd.f32 %v741, %v749
    %v752 = vtanh.pop %v751
    %754 = vrot.lane.b32.xlu0 %v752, 64
    %v755 = vpop.permute.xlu0 %754
    %v757 = vmul.f32 %v736, %v755
    %759 = vrot.lane.b32.xlu0 %v730, 32
    %v760 = vpop.permute.xlu0 %759
    %v763 = vrot.slane %v757, 2
    %764 = vrot.lane.b32.xlu0 %v763, 64
    %v765 = vpop.permute.xlu0 %764
    %v767 = vsel %vm329, %v760, %v765
    %v769 = vrot.slane %v767, 6
    %v770 = vsel %vm192, %v769, 0
    %772 = vmatprep.subr.mxu0 0.0
    %773 = vmatpush1.msra.mxu0 0.0
    %774 = vmatprep.subr.mxu0 0.0
    %775 = vmatpush1.msra.mxu0 0.0
    %776 = vmatprep.subr.mxu0 0.0
    %777 = vmatpush1.msra.mxu0 0.0
    %778 = vmatprep.subr.mxu0 0.0
    %779 = vmatpush1.msra.mxu0 0.0
    %780 = vmatprep.subr.mxu0 0.0
    %781 = vmatpush1.msra.mxu0 0.0
    %782 = vmatprep.subr.mxu0 0.0
    %783 = vmatpush1.msra.mxu0 0.0
    %784 = vmatprep.subr.mxu0 0.0
    %785 = vmatpush1.msra.mxu0 0.0
    %786 = vmatprep.subr.mxu0 0.0
    %787 = vmatpush1.msra.mxu0 0.0
    %788 = vmatprep.subr.mxu0 %v88
    %789 = vmatpush1.msra.mxu0 %v87
    %790 = vmatprep.subr.mxu0 %v86
    %791 = vmatpush1.msra.mxu0 %v85
    %792 = vmatprep.subr.mxu0 %v84
    %793 = vmatpush1.msra.mxu0 %v83
    %794 = vmatprep.subr.mxu0 %v82
    %795 = vmatpush1.msra.mxu0 %v81
    %796 = vmatprep.subr.mxu0 %v80
    %797 = vmatpush1.msra.mxu0 %v79
    %798 = vmatprep.subr.mxu0 %v78
    %799 = vmatpush1.msra.mxu0 %v77
    %800 = vmatprep.subr.mxu0 %v76
    %801 = vmatpush1.msra.mxu0 %v75
    %802 = vmatprep.subr.mxu0 %v74
    %803 = vmatpush1.msra.mxu0 %v73
    %804 = vmatprep.subr.mxu0 0.0
    %805 = vmatpush2.msra.mxu0 0.0
    %806 = vmatprep.subr.mxu0 0.0
    %807 = vmatpush2.msra.mxu0 0.0
    %808 = vmatprep.subr.mxu0 0.0
    %809 = vmatpush2.msra.mxu0 0.0
    %810 = vmatprep.subr.mxu0 0.0
    %811 = vmatpush2.msra.mxu0 0.0
    %812 = vmatprep.subr.mxu0 0.0
    %813 = vmatpush2.msra.mxu0 0.0
    %814 = vmatprep.subr.mxu0 0.0
    %815 = vmatpush2.msra.mxu0 0.0
    %816 = vmatprep.subr.mxu0 0.0
    %817 = vmatpush2.msra.mxu0 0.0
    %818 = vmatprep.subr.mxu0 0.0
    %819 = vmatpush2.msra.mxu0 0.0
    %820 = vmatprep.subr.mxu0 0.0
    %821 = vmatpush2.msra.mxu0 0.0
    %822 = vmatprep.subr.mxu0 0.0
    %823 = vmatpush2.msra.mxu0 0.0
    %824 = vmatprep.subr.mxu0 0.0
    %825 = vmatpush2.msra.mxu0 0.0
    %826 = vmatprep.subr.mxu0 0.0
    %827 = vmatpush2.msra.mxu0 0.0
    %828 = vmatprep.subr.mxu0 0.0
    %829 = vmatpush2.msra.mxu0 0.0
    %830 = vmatprep.subr.mxu0 0.0
    %831 = vmatpush2.msra.mxu0 0.0
    %832 = vmatprep.subr.mxu0 0.0
    %833 = vmatpush2.msra.mxu0 0.0
    %834 = vmatprep.subr.mxu0 0.0
    %835 = vmatpush2.msra.mxu0 0.0
    %836 = vmatprep.mubr.f32.mxu0 0.0
    %837 = vmatmul.mubr.f32.gmra.mxu0 %v770
    %v838 = vpop.f32.mrf.mxu0
    %v839 = vadd.f32 0.0, %v838
    %v840 = vpop.f32.mrf.mxu0
    %v841 = vadd.f32 0.0, %v840
    %842 = vdwg.mxu0
    %v843 = vadd.f32 %v188, %v839
    %v845 = vrot.slane %v841, 2
    %v847 = vadd.f32 %v184, %v845
    %v848 = vxor.u32 %v843, 2147483648
    %v849 = vmul.f32 %v848, 1.442695
    %v850 = vpow.pop %v849
    %v851 = vadd.f32 %v850, 1.0
    %v852 = vrcp.pop %v851
    %v853 = vmul.f32 1.0, %v852
    %v854 = vtanh.pop %v843
    %v856 = vrot.slane %v724, 6
    %v858 = vmul.f32 %v853, %v856
    %860 = vrot.lane.b32.xlu0 %v854, 64
    %v861 = vpop.permute.xlu0 %860
    %v863 = vmul.f32 %v853, %v861
    %865 = vrot.lane.b32.xlu0 %v863, 32
    %v866 = vpop.permute.xlu0 %865
    %v868 = vadd.f32 %v858, %v866
    %v869 = vtanh.pop %v868
    %871 = vrot.lane.b32.xlu0 %v869, 64
    %v872 = vpop.permute.xlu0 %871
    %v874 = vmul.f32 %v853, %v872
    %v875 = vxor.u32 %v847, 2147483648
    %v876 = vmul.f32 %v875, 1.442695
    %v877 = vpow.pop %v876
    %v878 = vadd.f32 %v877, 1.0
    %v879 = vrcp.pop %v878
    %v880 = vmul.f32 1.0, %v879
    %v881 = vtanh.pop %v847
    %v883 = vrot.slane %v751, 2
    %v885 = vmul.f32 %v880, %v883
    %887 = vrot.lane.b32.xlu0 %v881, 64
    %v888 = vpop.permute.xlu0 %887
    %v890 = vmul.f32 %v880, %v888
    %892 = vrot.lane.b32.xlu0 %v890, 32
    %v893 = vpop.permute.xlu0 %892
    %v895 = vadd.f32 %v885, %v893
    %v896 = vtanh.pop %v895
    %898 = vrot.lane.b32.xlu0 %v896, 64
    %v899 = vpop.permute.xlu0 %898
    %v901 = vmul.f32 %v880, %v899
    %903 = vrot.lane.b32.xlu0 %v874, 32
    %v904 = vpop.permute.xlu0 %903
    %v907 = vrot.slane %v901, 6
    %908 = vrot.lane.b32.xlu0 %v907, 64
    %v909 = vpop.permute.xlu0 %908
    %v911 = vsel %vm329, %v904, %v909
    %v913 = vsel %vm192, %v911, 0
    %915 = vmatprep.subr.mxu0 0.0
    %916 = vmatpush1.msra.mxu0 0.0
    %917 = vmatprep.subr.mxu0 0.0
    %918 = vmatpush1.msra.mxu0 0.0
    %919 = vmatprep.subr.mxu0 0.0
    %920 = vmatpush1.msra.mxu0 0.0
    %921 = vmatprep.subr.mxu0 0.0
    %922 = vmatpush1.msra.mxu0 0.0
    %923 = vmatprep.subr.mxu0 0.0
    %924 = vmatpush1.msra.mxu0 0.0
    %925 = vmatprep.subr.mxu0 0.0
    %926 = vmatpush1.msra.mxu0 0.0
    %927 = vmatprep.subr.mxu0 0.0
    %928 = vmatpush1.msra.mxu0 0.0
    %929 = vmatprep.subr.mxu0 0.0
    %930 = vmatpush1.msra.mxu0 0.0
    %931 = vmatprep.subr.mxu0 %v88
    %932 = vmatpush1.msra.mxu0 %v87
    %933 = vmatprep.subr.mxu0 %v86
    %934 = vmatpush1.msra.mxu0 %v85
    %935 = vmatprep.subr.mxu0 %v84
    %936 = vmatpush1.msra.mxu0 %v83
    %937 = vmatprep.subr.mxu0 %v82
    %938 = vmatpush1.msra.mxu0 %v81
    %939 = vmatprep.subr.mxu0 %v80
    %940 = vmatpush1.msra.mxu0 %v79
    %941 = vmatprep.subr.mxu0 %v78
    %942 = vmatpush1.msra.mxu0 %v77
    %943 = vmatprep.subr.mxu0 %v76
    %944 = vmatpush1.msra.mxu0 %v75
    %945 = vmatprep.subr.mxu0 %v74
    %946 = vmatpush1.msra.mxu0 %v73
    %947 = vmatprep.subr.mxu0 0.0
    %948 = vmatpush2.msra.mxu0 0.0
    %949 = vmatprep.subr.mxu0 0.0
    %950 = vmatpush2.msra.mxu0 0.0
    %951 = vmatprep.subr.mxu0 0.0
    %952 = vmatpush2.msra.mxu0 0.0
    %953 = vmatprep.subr.mxu0 0.0
    %954 = vmatpush2.msra.mxu0 0.0
    %955 = vmatprep.subr.mxu0 0.0
    %956 = vmatpush2.msra.mxu0 0.0
    %957 = vmatprep.subr.mxu0 0.0
    %958 = vmatpush2.msra.mxu0 0.0
    %959 = vmatprep.subr.mxu0 0.0
    %960 = vmatpush2.msra.mxu0 0.0
    %961 = vmatprep.subr.mxu0 0.0
    %962 = vmatpush2.msra.mxu0 0.0
    %963 = vmatprep.subr.mxu0 0.0
    %964 = vmatpush2.msra.mxu0 0.0
    %965 = vmatprep.subr.mxu0 0.0
    %966 = vmatpush2.msra.mxu0 0.0
    %967 = vmatprep.subr.mxu0 0.0
    %968 = vmatpush2.msra.mxu0 0.0
    %969 = vmatprep.subr.mxu0 0.0
    %970 = vmatpush2.msra.mxu0 0.0
    %971 = vmatprep.subr.mxu0 0.0
    %972 = vmatpush2.msra.mxu0 0.0
    %973 = vmatprep.subr.mxu0 0.0
    %974 = vmatpush2.msra.mxu0 0.0
    %975 = vmatprep.subr.mxu0 0.0
    %976 = vmatpush2.msra.mxu0 0.0
    %977 = vmatprep.subr.mxu0 0.0
    %978 = vmatpush2.msra.mxu0 0.0
    %979 = vmatprep.mubr.f32.mxu0 0.0
    %980 = vmatmul.mubr.f32.gmra.mxu0 %v913
    %v981 = vpop.f32.mrf.mxu0
    %v982 = vadd.f32 0.0, %v981
    %v983 = vpop.f32.mrf.mxu0
    %v984 = vadd.f32 0.0, %v983
    %985 = vdwg.mxu0
    %v987 = vrot.slane %v982, 6
    %v989 = vadd.f32 %v188, %v987
    %v991 = vrot.slane %v984, 4
    %v993 = vadd.f32 %v184, %v991
    %v994 = vxor.u32 %v989, 2147483648
    %v995 = vmul.f32 %v994, 1.442695
    %v996 = vpow.pop %v995
    %v997 = vadd.f32 %v996, 1.0
    %v998 = vrcp.pop %v997
    %v999 = vmul.f32 1.0, %v998
    %v1000 = vtanh.pop %v989
    %v1002 = vrot.slane %v868, 6
    %v1004 = vmul.f32 %v999, %v1002
    %1006 = vrot.lane.b32.xlu0 %v1000, 64
    %v1007 = vpop.permute.xlu0 %1006
    %v1009 = vmul.f32 %v999, %v1007
    %1011 = vrot.lane.b32.xlu0 %v1009, 32
    %v1012 = vpop.permute.xlu0 %1011
    %v1014 = vadd.f32 %v1004, %v1012
    %v1015 = vtanh.pop %v1014
    %1017 = vrot.lane.b32.xlu0 %v1015, 64
    %v1018 = vpop.permute.xlu0 %1017
    %v1020 = vmul.f32 %v999, %v1018
    %v1021 = vxor.u32 %v993, 2147483648
    %v1022 = vmul.f32 %v1021, 1.442695
    %v1023 = vpow.pop %v1022
    %v1024 = vadd.f32 %v1023, 1.0
    %v1025 = vrcp.pop %v1024
    %v1026 = vmul.f32 1.0, %v1025
    %v1027 = vtanh.pop %v993
    %v1029 = vrot.slane %v895, 2
    %v1031 = vmul.f32 %v1026, %v1029
    %1033 = vrot.lane.b32.xlu0 %v1027, 64
    %v1034 = vpop.permute.xlu0 %1033
    %v1036 = vmul.f32 %v1026, %v1034
    %1038 = vrot.lane.b32.xlu0 %v1036, 32
    %v1039 = vpop.permute.xlu0 %1038
    %v1041 = vadd.f32 %v1031, %v1039
    %v1042 = vtanh.pop %v1041
    %1044 = vrot.lane.b32.xlu0 %v1042, 64
    %v1045 = vpop.permute.xlu0 %1044
    %v1047 = vmul.f32 %v1026, %v1045
    %1049 = vrot.lane.b32.xlu0 %v1020, 32
    %v1050 = vpop.permute.xlu0 %1049
    %v1053 = vrot.slane %v1047, 2
    %1054 = vrot.lane.b32.xlu0 %v1053, 64
    %v1055 = vpop.permute.xlu0 %1054
    %v1057 = vsel %vm329, %v1050, %v1055
    %v1059 = vrot.slane %v1057, 2
    %v1060 = vsel %vm192, %v1059, 0
    %1062 = vmatprep.subr.mxu0 0.0
    %1063 = vmatpush1.msra.mxu0 0.0
    %1064 = vmatprep.subr.mxu0 0.0
    %1065 = vmatpush1.msra.mxu0 0.0
    %1066 = vmatprep.subr.mxu0 0.0
    %1067 = vmatpush1.msra.mxu0 0.0
    %1068 = vmatprep.subr.mxu0 0.0
    %1069 = vmatpush1.msra.mxu0 0.0
    %1070 = vmatprep.subr.mxu0 0.0
    %1071 = vmatpush1.msra.mxu0 0.0
    %1072 = vmatprep.subr.mxu0 0.0
    %1073 = vmatpush1.msra.mxu0 0.0
    %1074 = vmatprep.subr.mxu0 0.0
    %1075 = vmatpush1.msra.mxu0 0.0
    %1076 = vmatprep.subr.mxu0 0.0
    %1077 = vmatpush1.msra.mxu0 0.0
    %1078 = vmatprep.subr.mxu0 %v88
    %1079 = vmatpush1.msra.mxu0 %v87
    %1080 = vmatprep.subr.mxu0 %v86
    %1081 = vmatpush1.msra.mxu0 %v85
    %1082 = vmatprep.subr.mxu0 %v84
    %1083 = vmatpush1.msra.mxu0 %v83
    %1084 = vmatprep.subr.mxu0 %v82
    %1085 = vmatpush1.msra.mxu0 %v81
    %1086 = vmatprep.subr.mxu0 %v80
    %1087 = vmatpush1.msra.mxu0 %v79
    %1088 = vmatprep.subr.mxu0 %v78
    %1089 = vmatpush1.msra.mxu0 %v77
    %1090 = vmatprep.subr.mxu0 %v76
    %1091 = vmatpush1.msra.mxu0 %v75
    %1092 = vmatprep.subr.mxu0 %v74
    %1093 = vmatpush1.msra.mxu0 %v73
    %1094 = vmatprep.subr.mxu0 0.0
    %1095 = vmatpush2.msra.mxu0 0.0
    %1096 = vmatprep.subr.mxu0 0.0
    %1097 = vmatpush2.msra.mxu0 0.0
    %1098 = vmatprep.subr.mxu0 0.0
    %1099 = vmatpush2.msra.mxu0 0.0
    %1100 = vmatprep.subr.mxu0 0.0
    %1101 = vmatpush2.msra.mxu0 0.0
    %1102 = vmatprep.subr.mxu0 0.0
    %1103 = vmatpush2.msra.mxu0 0.0
    %1104 = vmatprep.subr.mxu0 0.0
    %1105 = vmatpush2.msra.mxu0 0.0
    %1106 = vmatprep.subr.mxu0 0.0
    %1107 = vmatpush2.msra.mxu0 0.0
    %1108 = vmatprep.subr.mxu0 0.0
    %1109 = vmatpush2.msra.mxu0 0.0
    %1110 = vmatprep.subr.mxu0 0.0
    %1111 = vmatpush2.msra.mxu0 0.0
    %1112 = vmatprep.subr.mxu0 0.0
    %1113 = vmatpush2.msra.mxu0 0.0
    %1114 = vmatprep.subr.mxu0 0.0
    %1115 = vmatpush2.msra.mxu0 0.0
    %1116 = vmatprep.subr.mxu0 0.0
    %1117 = vmatpush2.msra.mxu0 0.0
    %1118 = vmatprep.subr.mxu0 0.0
    %1119 = vmatpush2.msra.mxu0 0.0
    %1120 = vmatprep.subr.mxu0 0.0
    %1121 = vmatpush2.msra.mxu0 0.0
    %1122 = vmatprep.subr.mxu0 0.0
    %1123 = vmatpush2.msra.mxu0 0.0
    %1124 = vmatprep.subr.mxu0 0.0
    %1125 = vmatpush2.msra.mxu0 0.0
    %1126 = vmatprep.mubr.f32.mxu0 0.0
    %1127 = vmatmul.mubr.f32.gmra.mxu0 %v1060
    %v1128 = vpop.f32.mrf.mxu0
    %v1129 = vadd.f32 0.0, %v1128
    %v1130 = vpop.f32.mrf.mxu0
    %v1131 = vadd.f32 0.0, %v1130
    %1132 = vdwg.mxu0
    %v1134 = vrot.slane %v1129, 4
    %v1136 = vadd.f32 %v188, %v1134
    %v1138 = vrot.slane %v1131, 6
    %v1140 = vadd.f32 %v184, %v1138
    %v1141 = vxor.u32 %v1136, 2147483648
    %v1142 = vmul.f32 %v1141, 1.442695
    %v1143 = vpow.pop %v1142
    %v1144 = vadd.f32 %v1143, 1.0
    %v1145 = vrcp.pop %v1144
    %v1146 = vmul.f32 1.0, %v1145
    %v1147 = vtanh.pop %v1136
    %v1149 = vrot.slane %v1014, 6
    %v1151 = vmul.f32 %v1146, %v1149
    %1153 = vrot.lane.b32.xlu0 %v1147, 64
    %v1154 = vpop.permute.xlu0 %1153
    %v1156 = vmul.f32 %v1146, %v1154
    %1158 = vrot.lane.b32.xlu0 %v1156, 32
    %v1159 = vpop.permute.xlu0 %1158
    %v1161 = vadd.f32 %v1151, %v1159
    %v1162 = vtanh.pop %v1161
    %1164 = vrot.lane.b32.xlu0 %v1162, 64
    %v1165 = vpop.permute.xlu0 %1164
    %v1167 = vmul.f32 %v1146, %v1165
    %v1168 = vxor.u32 %v1140, 2147483648
    %v1169 = vmul.f32 %v1168, 1.442695
    %v1170 = vpow.pop %v1169
    %v1171 = vadd.f32 %v1170, 1.0
    %v1172 = vrcp.pop %v1171
    %v1173 = vmul.f32 1.0, %v1172
    %v1174 = vtanh.pop %v1140
    %v1176 = vrot.slane %v1041, 2
    %v1178 = vmul.f32 %v1173, %v1176
    %1180 = vrot.lane.b32.xlu0 %v1174, 64
    %v1181 = vpop.permute.xlu0 %1180
    %v1183 = vmul.f32 %v1173, %v1181
    %1185 = vrot.lane.b32.xlu0 %v1183, 32
    %v1186 = vpop.permute.xlu0 %1185
    %v1188 = vadd.f32 %v1178, %v1186
    %v1189 = vtanh.pop %v1188
    %1191 = vrot.lane.b32.xlu0 %v1189, 64
    %v1192 = vpop.permute.xlu0 %1191
    %v1194 = vmul.f32 %v1173, %v1192
    %1196 = vrot.lane.b32.xlu0 %v1167, 32
    %v1197 = vpop.permute.xlu0 %1196
    %v1200 = vrot.slane %v1194, 6
    %1201 = vrot.lane.b32.xlu0 %v1200, 64
    %v1202 = vpop.permute.xlu0 %1201
    %v1204 = vsel %vm329, %v1197, %v1202
    %v1206 = vrot.slane %v1204, 4
    %v1207 = vsel %vm192, %v1206, 0
    %1209 = vmatprep.subr.mxu0 0.0
    %1210 = vmatpush1.msra.mxu0 0.0
    %1211 = vmatprep.subr.mxu0 0.0
    %1212 = vmatpush1.msra.mxu0 0.0
    %1213 = vmatprep.subr.mxu0 0.0
    %1214 = vmatpush1.msra.mxu0 0.0
    %1215 = vmatprep.subr.mxu0 0.0
    %1216 = vmatpush1.msra.mxu0 0.0
    %1217 = vmatprep.subr.mxu0 0.0
    %1218 = vmatpush1.msra.mxu0 0.0
    %1219 = vmatprep.subr.mxu0 0.0
    %1220 = vmatpush1.msra.mxu0 0.0
    %1221 = vmatprep.subr.mxu0 0.0
    %1222 = vmatpush1.msra.mxu0 0.0
    %1223 = vmatprep.subr.mxu0 0.0
    %1224 = vmatpush1.msra.mxu0 0.0
    %1225 = vmatprep.subr.mxu0 %v88
    %1226 = vmatpush1.msra.mxu0 %v87
    %1227 = vmatprep.subr.mxu0 %v86
    %1228 = vmatpush1.msra.mxu0 %v85
    %1229 = vmatprep.subr.mxu0 %v84
    %1230 = vmatpush1.msra.mxu0 %v83
    %1231 = vmatprep.subr.mxu0 %v82
    %1232 = vmatpush1.msra.mxu0 %v81
    %1233 = vmatprep.subr.mxu0 %v80
    %1234 = vmatpush1.msra.mxu0 %v79
    %1235 = vmatprep.subr.mxu0 %v78
    %1236 = vmatpush1.msra.mxu0 %v77
    %1237 = vmatprep.subr.mxu0 %v76
    %1238 = vmatpush1.msra.mxu0 %v75
    %1239 = vmatprep.subr.mxu0 %v74
    %1240 = vmatpush1.msra.mxu0 %v73
    %1241 = vmatprep.subr.mxu0 0.0
    %1242 = vmatpush2.msra.mxu0 0.0
    %1243 = vmatprep.subr.mxu0 0.0
    %1244 = vmatpush2.msra.mxu0 0.0
    %1245 = vmatprep.subr.mxu0 0.0
    %1246 = vmatpush2.msra.mxu0 0.0
    %1247 = vmatprep.subr.mxu0 0.0
    %1248 = vmatpush2.msra.mxu0 0.0
    %1249 = vmatprep.subr.mxu0 0.0
    %1250 = vmatpush2.msra.mxu0 0.0
    %1251 = vmatprep.subr.mxu0 0.0
    %1252 = vmatpush2.msra.mxu0 0.0
    %1253 = vmatprep.subr.mxu0 0.0
    %1254 = vmatpush2.msra.mxu0 0.0
    %1255 = vmatprep.subr.mxu0 0.0
    %1256 = vmatpush2.msra.mxu0 0.0
    %1257 = vmatprep.subr.mxu0 0.0
    %1258 = vmatpush2.msra.mxu0 0.0
    %1259 = vmatprep.subr.mxu0 0.0
    %1260 = vmatpush2.msra.mxu0 0.0
    %1261 = vmatprep.subr.mxu0 0.0
    %1262 = vmatpush2.msra.mxu0 0.0
    %1263 = vmatprep.subr.mxu0 0.0
    %1264 = vmatpush2.msra.mxu0 0.0
    %1265 = vmatprep.subr.mxu0 0.0
    %1266 = vmatpush2.msra.mxu0 0.0
    %1267 = vmatprep.subr.mxu0 0.0
    %1268 = vmatpush2.msra.mxu0 0.0
    %1269 = vmatprep.subr.mxu0 0.0
    %1270 = vmatpush2.msra.mxu0 0.0
    %1271 = vmatprep.subr.mxu0 0.0
    %1272 = vmatpush2.msra.mxu0 0.0
    %1273 = vmatprep.mubr.f32.mxu0 0.0
    %1274 = vmatmul.mubr.f32.gmra.mxu0 %v1207
    %v1275 = vpop.f32.mrf.mxu0
    %v1276 = vadd.f32 0.0, %v1275
    %v1277 = vpop.f32.mrf.mxu0
    %v1278 = vadd.f32 0.0, %v1277
    %1279 = vdwg.mxu0
    %v1281 = vrot.slane %v1276, 2
    %v1283 = vadd.f32 %v188, %v1281
    %v1284 = vadd.f32 %v184, %v1278
    %v1285 = vxor.u32 %v1283, 2147483648
    %v1286 = vmul.f32 %v1285, 1.442695
    %v1287 = vpow.pop %v1286
    %v1288 = vadd.f32 %v1287, 1.0
    %v1289 = vrcp.pop %v1288
    %v1290 = vmul.f32 1.0, %v1289
    %v1291 = vtanh.pop %v1283
    %v1293 = vrot.slane %v1161, 6
    %v1295 = vmul.f32 %v1290, %v1293
    %1297 = vrot.lane.b32.xlu0 %v1291, 64
    %v1298 = vpop.permute.xlu0 %1297
    %v1300 = vmul.f32 %v1290, %v1298
    %1302 = vrot.lane.b32.xlu0 %v1300, 32
    %v1303 = vpop.permute.xlu0 %1302
    %v1305 = vadd.f32 %v1295, %v1303
    %v1306 = vtanh.pop %v1305
    %1308 = vrot.lane.b32.xlu0 %v1306, 64
    %v1309 = vpop.permute.xlu0 %1308
    %v1311 = vmul.f32 %v1290, %v1309
    %v1312 = vxor.u32 %v1284, 2147483648
    %v1313 = vmul.f32 %v1312, 1.442695
    %v1314 = vpow.pop %v1313
    %v1315 = vadd.f32 %v1314, 1.0
    %v1316 = vrcp.pop %v1315
    %v1317 = vmul.f32 1.0, %v1316
    %v1318 = vtanh.pop %v1284
    %v1320 = vrot.slane %v1188, 2
    %v1322 = vmul.f32 %v1317, %v1320
    %1324 = vrot.lane.b32.xlu0 %v1318, 64
    %v1325 = vpop.permute.xlu0 %1324
    %v1327 = vmul.f32 %v1317, %v1325
    %1329 = vrot.lane.b32.xlu0 %v1327, 32
    %v1330 = vpop.permute.xlu0 %1329
    %v1332 = vadd.f32 %v1322, %v1330
    %v1333 = vtanh.pop %v1332
    %1335 = vrot.lane.b32.xlu0 %v1333, 64
    %v1336 = vpop.permute.xlu0 %1335
    %v1338 = vmul.f32 %v1317, %v1336
    %vm1339 = vcmask 1041408
    %v1340 = vsel %vm1339, %v295, %v439
    %v1341 = vsel %vm108, %v1340, %v586
    %vm1342 = vcmask 1045504
    %v1343 = vsel %vm1342, %v1341, %v730
    %v1344 = vsel %vm1339, %v874, %v1020
    %v1345 = vsel %vm108, %v1344, %v1167
    %v1346 = vsel %vm1342, %v1345, %v1311
    %v1347 = vsel %vm1339, %v1338, %v1194
    %v1348 = vsel %vm108, %v1347, %v1047
    %v1349 = vsel %vm1342, %v1348, %v901
    %v1350 = vsel %vm1339, %v757, %v613
    %v1351 = vsel %vm108, %v1350, %v466
    %v1352 = vsel %vm1342, %v1351, %v319
    %1355 = vrot.lane.b32.xlu0 %v1343, 32
    %v1356 = vpop.permute.xlu0 %1355
    %1357 = vrot.lane.b32.xlu0 %v1346, 32
    %v1358 = vpop.permute.xlu0 %1357
    %1363 = vrot.lane.b32.xlu0 %v1349, 64
    %v1364 = vpop.permute.xlu0 %1363
    %1365 = vrot.lane.b32.xlu0 %v1352, 64
    %v1366 = vpop.permute.xlu0 %1365
    %v1369 = vsel %vm329, %v1356, %v1364
    %v1370 = vsel %vm329, %v1358, %v1366
    %s1371 = scalar_lea.vmem %s2, 128
    %v1372 = vld [vmem:[%s1371] sm:$0xff]
    %v1373 = vld [vmem:[%s1371 + $0x8] sm:$0xff]
    %v1374 = vld [vmem:[%s1371 + $0x10] sm:$0xff]
    %v1375 = vld [vmem:[%s1371 + $0x18] sm:$0xff]
    %v1376 = vld [vmem:[%s1371 + $0x20] sm:$0xff]
    %v1377 = vld [vmem:[%s1371 + $0x28] sm:$0xff]
    %v1378 = vld [vmem:[%s1371 + $0x30] sm:$0xff]
    %v1379 = vld [vmem:[%s1371 + $0x38] sm:$0xff]
    %v1380 = vld [vmem:[%s1371 + $0x40] sm:$0xff]
    %v1381 = vld [vmem:[%s1371 + $0x48] sm:$0xff]
    %v1382 = vld [vmem:[%s1371 + $0x50] sm:$0xff]
    %v1383 = vld [vmem:[%s1371 + $0x58] sm:$0xff]
    %v1384 = vld [vmem:[%s1371 + $0x60] sm:$0xff]
    %v1385 = vld [vmem:[%s1371 + $0x68] sm:$0xff]
    %v1386 = vld [vmem:[%s1371 + $0x70] sm:$0xff]
    %v1387 = vld [vmem:[%s1371 + $0x78] sm:$0xff]
    %s1388 = scalar_lea.vmem %s3, 128
    %v1389 = vld [vmem:[%s1388] sm:$0xff]
    %v1390 = vld [vmem:[%s1388 + $0x8] sm:$0xff]
    %v1391 = vld [vmem:[%s1388 + $0x10] sm:$0xff]
    %v1392 = vld [vmem:[%s1388 + $0x18] sm:$0xff]
    %v1393 = vld [vmem:[%s1388 + $0x20] sm:$0xff]
    %v1394 = vld [vmem:[%s1388 + $0x28] sm:$0xff]
    %v1395 = vld [vmem:[%s1388 + $0x30] sm:$0xff]
    %v1396 = vld [vmem:[%s1388 + $0x38] sm:$0xff]
    %v1397 = vld [vmem:[%s1388 + $0x40] sm:$0xff]
    %v1398 = vld [vmem:[%s1388 + $0x48] sm:$0xff]
    %v1399 = vld [vmem:[%s1388 + $0x50] sm:$0xff]
    %v1400 = vld [vmem:[%s1388 + $0x58] sm:$0xff]
    %v1401 = vld [vmem:[%s1388 + $0x60] sm:$0xff]
    %v1402 = vld [vmem:[%s1388 + $0x68] sm:$0xff]
    %v1403 = vld [vmem:[%s1388 + $0x70] sm:$0xff]
    %v1404 = vld [vmem:[%s1388 + $0x78] sm:$0xff]
    %s1405 = scalar_lea.vmem %s4, 2
    %v1406 = vld [vmem:[%s1405] sm:$0x3]
    %v1408 = vlaneseq
    %v1409 = vshrl.u32 %v1408, 7
    %v1410 = vsub.s32 0, %v1409
    %v1411 = vrot.slane %v1406, %v1410
    %v1412 = vlaneseq
    %v1413 = vshrl.u32 %v1412, 7
    %v1414 = vsub.s32 1, %v1413
    %v1415 = vrot.slane %v1406, %v1414
    %v1419 = vsel %vm192, %v1369, 0
    %v1422 = vsel %vm192, %v1370, 0
    %1424 = vmatprep.subr.mxu0 0.0
    %1425 = vmatpush1.msra.mxu0 0.0
    %1426 = vmatprep.subr.mxu0 0.0
    %1427 = vmatpush1.msra.mxu0 0.0
    %1428 = vmatprep.subr.mxu0 0.0
    %1429 = vmatpush1.msra.mxu0 0.0
    %1430 = vmatprep.subr.mxu0 0.0
    %1431 = vmatpush1.msra.mxu0 0.0
    %1432 = vmatprep.subr.mxu0 0.0
    %1433 = vmatpush1.msra.mxu0 0.0
    %1434 = vmatprep.subr.mxu0 0.0
    %1435 = vmatpush1.msra.mxu0 0.0
    %1436 = vmatprep.subr.mxu0 0.0
    %1437 = vmatpush1.msra.mxu0 0.0
    %1438 = vmatprep.subr.mxu0 0.0
    %1439 = vmatpush1.msra.mxu0 0.0
    %1440 = vmatprep.subr.mxu0 %v1387
    %1441 = vmatpush1.msra.mxu0 %v1386
    %1442 = vmatprep.subr.mxu0 %v1385
    %1443 = vmatpush1.msra.mxu0 %v1384
    %1444 = vmatprep.subr.mxu0 %v1383
    %1445 = vmatpush1.msra.mxu0 %v1382
    %1446 = vmatprep.subr.mxu0 %v1381
    %1447 = vmatpush1.msra.mxu0 %v1380
    %1448 = vmatprep.subr.mxu0 %v1379
    %1449 = vmatpush1.msra.mxu0 %v1378
    %1450 = vmatprep.subr.mxu0 %v1377
    %1451 = vmatpush1.msra.mxu0 %v1376
    %1452 = vmatprep.subr.mxu0 %v1375
    %1453 = vmatpush1.msra.mxu0 %v1374
    %1454 = vmatprep.subr.mxu0 %v1373
    %1455 = vmatpush1.msra.mxu0 %v1372
    %1456 = vmatprep.subr.mxu0 0.0
    %1457 = vmatpush2.msra.mxu0 0.0
    %1458 = vmatprep.subr.mxu0 0.0
    %1459 = vmatpush2.msra.mxu0 0.0
    %1460 = vmatprep.subr.mxu0 0.0
    %1461 = vmatpush2.msra.mxu0 0.0
    %1462 = vmatprep.subr.mxu0 0.0
    %1463 = vmatpush2.msra.mxu0 0.0
    %1464 = vmatprep.subr.mxu0 0.0
    %1465 = vmatpush2.msra.mxu0 0.0
    %1466 = vmatprep.subr.mxu0 0.0
    %1467 = vmatpush2.msra.mxu0 0.0
    %1468 = vmatprep.subr.mxu0 0.0
    %1469 = vmatpush2.msra.mxu0 0.0
    %1470 = vmatprep.subr.mxu0 0.0
    %1471 = vmatpush2.msra.mxu0 0.0
    %1472 = vmatprep.subr.mxu0 0.0
    %1473 = vmatpush2.msra.mxu0 0.0
    %1474 = vmatprep.subr.mxu0 0.0
    %1475 = vmatpush2.msra.mxu0 0.0
    %1476 = vmatprep.subr.mxu0 0.0
    %1477 = vmatpush2.msra.mxu0 0.0
    %1478 = vmatprep.subr.mxu0 0.0
    %1479 = vmatpush2.msra.mxu0 0.0
    %1480 = vmatprep.subr.mxu0 0.0
    %1481 = vmatpush2.msra.mxu0 0.0
    %1482 = vmatprep.subr.mxu0 0.0
    %1483 = vmatpush2.msra.mxu0 0.0
    %1484 = vmatprep.subr.mxu0 0.0
    %1485 = vmatpush2.msra.mxu0 0.0
    %1486 = vmatprep.subr.mxu0 0.0
    %1487 = vmatpush2.msra.mxu0 0.0
    %1488 = vmatprep.mubr.f32.mxu0 0.0
    %1489 = vmatmul.mubr.f32.gmra.mxu0 %v1419
    %v1490 = vpop.f32.mrf.mxu0
    %v1491 = vadd.f32 %v1411, %v1490
    %v1492 = vpop.f32.mrf.mxu0
    %v1493 = vadd.f32 %v1415, %v1492
    %1494 = vmatprep.mubr.f32.mxu0 0.0
    %1495 = vmatmul.mubr.f32.gmra.mxu0 %v1422
    %v1496 = vpop.f32.mrf.mxu0
    %v1497 = vadd.f32 %v1411, %v1496
    %v1498 = vpop.f32.mrf.mxu0
    %v1499 = vadd.f32 %v1415, %v1498
    %1500 = vdwg.mxu0
    %1501 = vmatprep.subr.mxu0 0.0
    %1502 = vmatpush1.msra.mxu0 0.0
    %1503 = vmatprep.subr.mxu0 0.0
    %1504 = vmatpush1.msra.mxu0 0.0
    %1505 = vmatprep.subr.mxu0 0.0
    %1506 = vmatpush1.msra.mxu0 0.0
    %1507 = vmatprep.subr.mxu0 0.0
    %1508 = vmatpush1.msra.mxu0 0.0
    %1509 = vmatprep.subr.mxu0 0.0
    %1510 = vmatpush1.msra.mxu0 0.0
    %1511 = vmatprep.subr.mxu0 0.0
    %1512 = vmatpush1.msra.mxu0 0.0
    %1513 = vmatprep.subr.mxu0 0.0
    %1514 = vmatpush1.msra.mxu0 0.0
    %1515 = vmatprep.subr.mxu0 0.0
    %1516 = vmatpush1.msra.mxu0 0.0
    %1517 = vmatprep.subr.mxu0 %v1404
    %1518 = vmatpush1.msra.mxu0 %v1403
    %1519 = vmatprep.subr.mxu0 %v1402
    %1520 = vmatpush1.msra.mxu0 %v1401
    %1521 = vmatprep.subr.mxu0 %v1400
    %1522 = vmatpush1.msra.mxu0 %v1399
    %1523 = vmatprep.subr.mxu0 %v1398
    %1524 = vmatpush1.msra.mxu0 %v1397
    %1525 = vmatprep.subr.mxu0 %v1396
    %1526 = vmatpush1.msra.mxu0 %v1395
    %1527 = vmatprep.subr.mxu0 %v1394
    %1528 = vmatpush1.msra.mxu0 %v1393
    %1529 = vmatprep.subr.mxu0 %v1392
    %1530 = vmatpush1.msra.mxu0 %v1391
    %1531 = vmatprep.subr.mxu0 %v1390
    %1532 = vmatpush1.msra.mxu0 %v1389
    %1533 = vmatprep.subr.mxu0 0.0
    %1534 = vmatpush2.msra.mxu0 0.0
    %1535 = vmatprep.subr.mxu0 0.0
    %1536 = vmatpush2.msra.mxu0 0.0
    %1537 = vmatprep.subr.mxu0 0.0
    %1538 = vmatpush2.msra.mxu0 0.0
    %1539 = vmatprep.subr.mxu0 0.0
    %1540 = vmatpush2.msra.mxu0 0.0
    %1541 = vmatprep.subr.mxu0 0.0
    %1542 = vmatpush2.msra.mxu0 0.0
    %1543 = vmatprep.subr.mxu0 0.0
    %1544 = vmatpush2.msra.mxu0 0.0
    %1545 = vmatprep.subr.mxu0 0.0
    %1546 = vmatpush2.msra.mxu0 0.0
    %1547 = vmatprep.subr.mxu0 0.0
    %1548 = vmatpush2.msra.mxu0 0.0
    %1549 = vmatprep.subr.mxu0 0.0
    %1550 = vmatpush2.msra.mxu0 0.0
    %1551 = vmatprep.subr.mxu0 0.0
    %1552 = vmatpush2.msra.mxu0 0.0
    %1553 = vmatprep.subr.mxu0 0.0
    %1554 = vmatpush2.msra.mxu0 0.0
    %1555 = vmatprep.subr.mxu0 0.0
    %1556 = vmatpush2.msra.mxu0 0.0
    %1557 = vmatprep.subr.mxu0 0.0
    %1558 = vmatpush2.msra.mxu0 0.0
    %1559 = vmatprep.subr.mxu0 0.0
    %1560 = vmatpush2.msra.mxu0 0.0
    %1561 = vmatprep.subr.mxu0 0.0
    %1562 = vmatpush2.msra.mxu0 0.0
    %1563 = vmatprep.subr.mxu0 0.0
    %1564 = vmatpush2.msra.mxu0 0.0
    %1565 = vmatprep.mubr.f32.mxu0 0.0
    %1566 = vmatmul.mubr.f32.gmra.mxu0 %v194
    %v1567 = vpop.f32.mrf.mxu0
    %v1568 = vadd.f32 0.0, %v1567
    %v1569 = vpop.f32.mrf.mxu0
    %v1570 = vadd.f32 0.0, %v1569
    %1571 = vdwg.mxu0
    %v1572 = vadd.f32 %v1491, %v1568
    %v1574 = vrot.slane %v1570, 2
    %v1576 = vadd.f32 %v1499, %v1574
    %v1577 = vxor.u32 %v1572, 2147483648
    %v1578 = vmul.f32 %v1577, 1.442695
    %v1579 = vpow.pop %v1578
    %v1580 = vadd.f32 %v1579, 1.0
    %v1581 = vrcp.pop %v1580
    %v1582 = vmul.f32 1.0, %v1581
    %v1583 = vtanh.pop %v1572
    %v1584 = vmul.f32 %v1582, 0.0
    %1586 = vrot.lane.b32.xlu0 %v1583, 64
    %v1587 = vpop.permute.xlu0 %1586
    %v1589 = vmul.f32 %v1582, %v1587
    %1591 = vrot.lane.b32.xlu0 %v1589, 32
    %v1592 = vpop.permute.xlu0 %1591
    %v1594 = vadd.f32 %v1584, %v1592
    %v1595 = vtanh.pop %v1594
    %1597 = vrot.lane.b32.xlu0 %v1595, 64
    %v1598 = vpop.permute.xlu0 %1597
    %v1600 = vmul.f32 %v1582, %v1598
    %v1601 = vxor.u32 %v1576, 2147483648
    %v1602 = vmul.f32 %v1601, 1.442695
    %v1603 = vpow.pop %v1602
    %v1604 = vadd.f32 %v1603, 1.0
    %v1605 = vrcp.pop %v1604
    %v1606 = vmul.f32 1.0, %v1605
    %v1607 = vtanh.pop %v1576
    %v1608 = vmul.f32 %v1606, 0.0
    %1610 = vrot.lane.b32.xlu0 %v1607, 64
    %v1611 = vpop.permute.xlu0 %1610
    %v1613 = vmul.f32 %v1606, %v1611
    %1615 = vrot.lane.b32.xlu0 %v1613, 32
    %v1616 = vpop.permute.xlu0 %1615
    %v1618 = vadd.f32 %v1608, %v1616
    %v1619 = vtanh.pop %v1618
    %1621 = vrot.lane.b32.xlu0 %v1619, 64
    %v1622 = vpop.permute.xlu0 %1621
    %v1624 = vmul.f32 %v1606, %v1622
    %1626 = vrot.lane.b32.xlu0 %v1600, 32
    %v1627 = vpop.permute.xlu0 %1626
    %v1630 = vrot.slane %v1624, 6
    %1631 = vrot.lane.b32.xlu0 %v1630, 64
    %v1632 = vpop.permute.xlu0 %1631
    %v1634 = vsel %vm329, %v1627, %v1632
    %v1636 = vsel %vm192, %v1634, 0
    %1638 = vmatprep.subr.mxu0 0.0
    %1639 = vmatpush1.msra.mxu0 0.0
    %1640 = vmatprep.subr.mxu0 0.0
    %1641 = vmatpush1.msra.mxu0 0.0
    %1642 = vmatprep.subr.mxu0 0.0
    %1643 = vmatpush1.msra.mxu0 0.0
    %1644 = vmatprep.subr.mxu0 0.0
    %1645 = vmatpush1.msra.mxu0 0.0
    %1646 = vmatprep.subr.mxu0 0.0
    %1647 = vmatpush1.msra.mxu0 0.0
    %1648 = vmatprep.subr.mxu0 0.0
    %1649 = vmatpush1.msra.mxu0 0.0
    %1650 = vmatprep.subr.mxu0 0.0
    %1651 = vmatpush1.msra.mxu0 0.0
    %1652 = vmatprep.subr.mxu0 0.0
    %1653 = vmatpush1.msra.mxu0 0.0
    %1654 = vmatprep.subr.mxu0 %v1404
    %1655 = vmatpush1.msra.mxu0 %v1403
    %1656 = vmatprep.subr.mxu0 %v1402
    %1657 = vmatpush1.msra.mxu0 %v1401
    %1658 = vmatprep.subr.mxu0 %v1400
    %1659 = vmatpush1.msra.mxu0 %v1399
    %1660 = vmatprep.subr.mxu0 %v1398
    %1661 = vmatpush1.msra.mxu0 %v1397
    %1662 = vmatprep.subr.mxu0 %v1396
    %1663 = vmatpush1.msra.mxu0 %v1395
    %1664 = vmatprep.subr.mxu0 %v1394
    %1665 = vmatpush1.msra.mxu0 %v1393
    %1666 = vmatprep.subr.mxu0 %v1392
    %1667 = vmatpush1.msra.mxu0 %v1391
    %1668 = vmatprep.subr.mxu0 %v1390
    %1669 = vmatpush1.msra.mxu0 %v1389
    %1670 = vmatprep.subr.mxu0 0.0
    %1671 = vmatpush2.msra.mxu0 0.0
    %1672 = vmatprep.subr.mxu0 0.0
    %1673 = vmatpush2.msra.mxu0 0.0
    %1674 = vmatprep.subr.mxu0 0.0
    %1675 = vmatpush2.msra.mxu0 0.0
    %1676 = vmatprep.subr.mxu0 0.0
    %1677 = vmatpush2.msra.mxu0 0.0
    %1678 = vmatprep.subr.mxu0 0.0
    %1679 = vmatpush2.msra.mxu0 0.0
    %1680 = vmatprep.subr.mxu0 0.0
    %1681 = vmatpush2.msra.mxu0 0.0
    %1682 = vmatprep.subr.mxu0 0.0
    %1683 = vmatpush2.msra.mxu0 0.0
    %1684 = vmatprep.subr.mxu0 0.0
    %1685 = vmatpush2.msra.mxu0 0.0
    %1686 = vmatprep.subr.mxu0 0.0
    %1687 = vmatpush2.msra.mxu0 0.0
    %1688 = vmatprep.subr.mxu0 0.0
    %1689 = vmatpush2.msra.mxu0 0.0
    %1690 = vmatprep.subr.mxu0 0.0
    %1691 = vmatpush2.msra.mxu0 0.0
    %1692 = vmatprep.subr.mxu0 0.0
    %1693 = vmatpush2.msra.mxu0 0.0
    %1694 = vmatprep.subr.mxu0 0.0
    %1695 = vmatpush2.msra.mxu0 0.0
    %1696 = vmatprep.subr.mxu0 0.0
    %1697 = vmatpush2.msra.mxu0 0.0
    %1698 = vmatprep.subr.mxu0 0.0
    %1699 = vmatpush2.msra.mxu0 0.0
    %1700 = vmatprep.subr.mxu0 0.0
    %1701 = vmatpush2.msra.mxu0 0.0
    %1702 = vmatprep.mubr.f32.mxu0 0.0
    %1703 = vmatmul.mubr.f32.gmra.mxu0 %v1636
    %v1704 = vpop.f32.mrf.mxu0
    %v1705 = vadd.f32 0.0, %v1704
    %v1706 = vpop.f32.mrf.mxu0
    %v1707 = vadd.f32 0.0, %v1706
    %1708 = vdwg.mxu0
    %v1710 = vrot.slane %v1705, 6
    %v1712 = vadd.f32 %v1491, %v1710
    %v1714 = vrot.slane %v1707, 4
    %v1716 = vadd.f32 %v1499, %v1714
    %v1717 = vxor.u32 %v1712, 2147483648
    %v1718 = vmul.f32 %v1717, 1.442695
    %v1719 = vpow.pop %v1718
    %v1720 = vadd.f32 %v1719, 1.0
    %v1721 = vrcp.pop %v1720
    %v1722 = vmul.f32 1.0, %v1721
    %v1723 = vtanh.pop %v1712
    %v1725 = vrot.slane %v1594, 6
    %v1727 = vmul.f32 %v1722, %v1725
    %1729 = vrot.lane.b32.xlu0 %v1723, 64
    %v1730 = vpop.permute.xlu0 %1729
    %v1732 = vmul.f32 %v1722, %v1730
    %1734 = vrot.lane.b32.xlu0 %v1732, 32
    %v1735 = vpop.permute.xlu0 %1734
    %v1737 = vadd.f32 %v1727, %v1735
    %v1738 = vtanh.pop %v1737
    %1740 = vrot.lane.b32.xlu0 %v1738, 64
    %v1741 = vpop.permute.xlu0 %1740
    %v1743 = vmul.f32 %v1722, %v1741
    %v1744 = vxor.u32 %v1716, 2147483648
    %v1745 = vmul.f32 %v1744, 1.442695
    %v1746 = vpow.pop %v1745
    %v1747 = vadd.f32 %v1746, 1.0
    %v1748 = vrcp.pop %v1747
    %v1749 = vmul.f32 1.0, %v1748
    %v1750 = vtanh.pop %v1716
    %v1752 = vrot.slane %v1618, 2
    %v1754 = vmul.f32 %v1749, %v1752
    %1756 = vrot.lane.b32.xlu0 %v1750, 64
    %v1757 = vpop.permute.xlu0 %1756
    %v1759 = vmul.f32 %v1749, %v1757
    %1761 = vrot.lane.b32.xlu0 %v1759, 32
    %v1762 = vpop.permute.xlu0 %1761
    %v1764 = vadd.f32 %v1754, %v1762
    %v1765 = vtanh.pop %v1764
    %1767 = vrot.lane.b32.xlu0 %v1765, 64
    %v1768 = vpop.permute.xlu0 %1767
    %v1770 = vmul.f32 %v1749, %v1768
    %1772 = vrot.lane.b32.xlu0 %v1743, 32
    %v1773 = vpop.permute.xlu0 %1772
    %v1776 = vrot.slane %v1770, 2
    %1777 = vrot.lane.b32.xlu0 %v1776, 64
    %v1778 = vpop.permute.xlu0 %1777
    %v1780 = vsel %vm329, %v1773, %v1778
    %v1782 = vrot.slane %v1780, 2
    %v1783 = vsel %vm192, %v1782, 0
    %1785 = vmatprep.subr.mxu0 0.0
    %1786 = vmatpush1.msra.mxu0 0.0
    %1787 = vmatprep.subr.mxu0 0.0
    %1788 = vmatpush1.msra.mxu0 0.0
    %1789 = vmatprep.subr.mxu0 0.0
    %1790 = vmatpush1.msra.mxu0 0.0
    %1791 = vmatprep.subr.mxu0 0.0
    %1792 = vmatpush1.msra.mxu0 0.0
    %1793 = vmatprep.subr.mxu0 0.0
    %1794 = vmatpush1.msra.mxu0 0.0
    %1795 = vmatprep.subr.mxu0 0.0
    %1796 = vmatpush1.msra.mxu0 0.0
    %1797 = vmatprep.subr.mxu0 0.0
    %1798 = vmatpush1.msra.mxu0 0.0
    %1799 = vmatprep.subr.mxu0 0.0
    %1800 = vmatpush1.msra.mxu0 0.0
    %1801 = vmatprep.subr.mxu0 %v1404
    %1802 = vmatpush1.msra.mxu0 %v1403
    %1803 = vmatprep.subr.mxu0 %v1402
    %1804 = vmatpush1.msra.mxu0 %v1401
    %1805 = vmatprep.subr.mxu0 %v1400
    %1806 = vmatpush1.msra.mxu0 %v1399
    %1807 = vmatprep.subr.mxu0 %v1398
    %1808 = vmatpush1.msra.mxu0 %v1397
    %1809 = vmatprep.subr.mxu0 %v1396
    %1810 = vmatpush1.msra.mxu0 %v1395
    %1811 = vmatprep.subr.mxu0 %v1394
    %1812 = vmatpush1.msra.mxu0 %v1393
    %1813 = vmatprep.subr.mxu0 %v1392
    %1814 = vmatpush1.msra.mxu0 %v1391
    %1815 = vmatprep.subr.mxu0 %v1390
    %1816 = vmatpush1.msra.mxu0 %v1389
    %1817 = vmatprep.subr.mxu0 0.0
    %1818 = vmatpush2.msra.mxu0 0.0
    %1819 = vmatprep.subr.mxu0 0.0
    %1820 = vmatpush2.msra.mxu0 0.0
    %1821 = vmatprep.subr.mxu0 0.0
    %1822 = vmatpush2.msra.mxu0 0.0
    %1823 = vmatprep.subr.mxu0 0.0
    %1824 = vmatpush2.msra.mxu0 0.0
    %1825 = vmatprep.subr.mxu0 0.0
    %1826 = vmatpush2.msra.mxu0 0.0
    %1827 = vmatprep.subr.mxu0 0.0
    %1828 = vmatpush2.msra.mxu0 0.0
    %1829 = vmatprep.subr.mxu0 0.0
    %1830 = vmatpush2.msra.mxu0 0.0
    %1831 = vmatprep.subr.mxu0 0.0
    %1832 = vmatpush2.msra.mxu0 0.0
    %1833 = vmatprep.subr.mxu0 0.0
    %1834 = vmatpush2.msra.mxu0 0.0
    %1835 = vmatprep.subr.mxu0 0.0
    %1836 = vmatpush2.msra.mxu0 0.0
    %1837 = vmatprep.subr.mxu0 0.0
    %1838 = vmatpush2.msra.mxu0 0.0
    %1839 = vmatprep.subr.mxu0 0.0
    %1840 = vmatpush2.msra.mxu0 0.0
    %1841 = vmatprep.subr.mxu0 0.0
    %1842 = vmatpush2.msra.mxu0 0.0
    %1843 = vmatprep.subr.mxu0 0.0
    %1844 = vmatpush2.msra.mxu0 0.0
    %1845 = vmatprep.subr.mxu0 0.0
    %1846 = vmatpush2.msra.mxu0 0.0
    %1847 = vmatprep.subr.mxu0 0.0
    %1848 = vmatpush2.msra.mxu0 0.0
    %1849 = vmatprep.mubr.f32.mxu0 0.0
    %1850 = vmatmul.mubr.f32.gmra.mxu0 %v1783
    %v1851 = vpop.f32.mrf.mxu0
    %v1852 = vadd.f32 0.0, %v1851
    %v1853 = vpop.f32.mrf.mxu0
    %v1854 = vadd.f32 0.0, %v1853
    %1855 = vdwg.mxu0
    %v1857 = vrot.slane %v1852, 4
    %v1859 = vadd.f32 %v1491, %v1857
    %v1861 = vrot.slane %v1854, 6
    %v1863 = vadd.f32 %v1499, %v1861
    %v1864 = vxor.u32 %v1859, 2147483648
    %v1865 = vmul.f32 %v1864, 1.442695
    %v1866 = vpow.pop %v1865
    %v1867 = vadd.f32 %v1866, 1.0
    %v1868 = vrcp.pop %v1867
    %v1869 = vmul.f32 1.0, %v1868
    %v1870 = vtanh.pop %v1859
    %v1872 = vrot.slane %v1737, 6
    %v1874 = vmul.f32 %v1869, %v1872
    %1876 = vrot.lane.b32.xlu0 %v1870, 64
    %v1877 = vpop.permute.xlu0 %1876
    %v1879 = vmul.f32 %v1869, %v1877
    %1881 = vrot.lane.b32.xlu0 %v1879, 32
    %v1882 = vpop.permute.xlu0 %1881
    %v1884 = vadd.f32 %v1874, %v1882
    %v1885 = vtanh.pop %v1884
    %1887 = vrot.lane.b32.xlu0 %v1885, 64
    %v1888 = vpop.permute.xlu0 %1887
    %v1890 = vmul.f32 %v1869, %v1888
    %v1891 = vxor.u32 %v1863, 2147483648
    %v1892 = vmul.f32 %v1891, 1.442695
    %v1893 = vpow.pop %v1892
    %v1894 = vadd.f32 %v1893, 1.0
    %v1895 = vrcp.pop %v1894
    %v1896 = vmul.f32 1.0, %v1895
    %v1897 = vtanh.pop %v1863
    %v1899 = vrot.slane %v1764, 2
    %v1901 = vmul.f32 %v1896, %v1899
    %1903 = vrot.lane.b32.xlu0 %v1897, 64
    %v1904 = vpop.permute.xlu0 %1903
    %v1906 = vmul.f32 %v1896, %v1904
    %1908 = vrot.lane.b32.xlu0 %v1906, 32
    %v1909 = vpop.permute.xlu0 %1908
    %v1911 = vadd.f32 %v1901, %v1909
    %v1912 = vtanh.pop %v1911
    %1914 = vrot.lane.b32.xlu0 %v1912, 64
    %v1915 = vpop.permute.xlu0 %1914
    %v1917 = vmul.f32 %v1896, %v1915
    %1919 = vrot.lane.b32.xlu0 %v1890, 32
    %v1920 = vpop.permute.xlu0 %1919
    %v1923 = vrot.slane %v1917, 6
    %1924 = vrot.lane.b32.xlu0 %v1923, 64
    %v1925 = vpop.permute.xlu0 %1924
    %v1927 = vsel %vm329, %v1920, %v1925
    %v1929 = vrot.slane %v1927, 4
    %v1930 = vsel %vm192, %v1929, 0
    %1932 = vmatprep.subr.mxu0 0.0
    %1933 = vmatpush1.msra.mxu0 0.0
    %1934 = vmatprep.subr.mxu0 0.0
    %1935 = vmatpush1.msra.mxu0 0.0
    %1936 = vmatprep.subr.mxu0 0.0
    %1937 = vmatpush1.msra.mxu0 0.0
    %1938 = vmatprep.subr.mxu0 0.0
    %1939 = vmatpush1.msra.mxu0 0.0
    %1940 = vmatprep.subr.mxu0 0.0
    %1941 = vmatpush1.msra.mxu0 0.0
    %1942 = vmatprep.subr.mxu0 0.0
    %1943 = vmatpush1.msra.mxu0 0.0
    %1944 = vmatprep.subr.mxu0 0.0
    %1945 = vmatpush1.msra.mxu0 0.0
    %1946 = vmatprep.subr.mxu0 0.0
    %1947 = vmatpush1.msra.mxu0 0.0
    %1948 = vmatprep.subr.mxu0 %v1404
    %1949 = vmatpush1.msra.mxu0 %v1403
    %1950 = vmatprep.subr.mxu0 %v1402
    %1951 = vmatpush1.msra.mxu0 %v1401
    %1952 = vmatprep.subr.mxu0 %v1400
    %1953 = vmatpush1.msra.mxu0 %v1399
    %1954 = vmatprep.subr.mxu0 %v1398
    %1955 = vmatpush1.msra.mxu0 %v1397
    %1956 = vmatprep.subr.mxu0 %v1396
    %1957 = vmatpush1.msra.mxu0 %v1395
    %1958 = vmatprep.subr.mxu0 %v1394
    %1959 = vmatpush1.msra.mxu0 %v1393
    %1960 = vmatprep.subr.mxu0 %v1392
    %1961 = vmatpush1.msra.mxu0 %v1391
    %1962 = vmatprep.subr.mxu0 %v1390
    %1963 = vmatpush1.msra.mxu0 %v1389
    %1964 = vmatprep.subr.mxu0 0.0
    %1965 = vmatpush2.msra.mxu0 0.0
    %1966 = vmatprep.subr.mxu0 0.0
    %1967 = vmatpush2.msra.mxu0 0.0
    %1968 = vmatprep.subr.mxu0 0.0
    %1969 = vmatpush2.msra.mxu0 0.0
    %1970 = vmatprep.subr.mxu0 0.0
    %1971 = vmatpush2.msra.mxu0 0.0
    %1972 = vmatprep.subr.mxu0 0.0
    %1973 = vmatpush2.msra.mxu0 0.0
    %1974 = vmatprep.subr.mxu0 0.0
    %1975 = vmatpush2.msra.mxu0 0.0
    %1976 = vmatprep.subr.mxu0 0.0
    %1977 = vmatpush2.msra.mxu0 0.0
    %1978 = vmatprep.subr.mxu0 0.0
    %1979 = vmatpush2.msra.mxu0 0.0
    %1980 = vmatprep.subr.mxu0 0.0
    %1981 = vmatpush2.msra.mxu0 0.0
    %1982 = vmatprep.subr.mxu0 0.0
    %1983 = vmatpush2.msra.mxu0 0.0
    %1984 = vmatprep.subr.mxu0 0.0
    %1985 = vmatpush2.msra.mxu0 0.0
    %1986 = vmatprep.subr.mxu0 0.0
    %1987 = vmatpush2.msra.mxu0 0.0
    %1988 = vmatprep.subr.mxu0 0.0
    %1989 = vmatpush2.msra.mxu0 0.0
    %1990 = vmatprep.subr.mxu0 0.0
    %1991 = vmatpush2.msra.mxu0 0.0
    %1992 = vmatprep.subr.mxu0 0.0
    %1993 = vmatpush2.msra.mxu0 0.0
    %1994 = vmatprep.subr.mxu0 0.0
    %1995 = vmatpush2.msra.mxu0 0.0
    %1996 = vmatprep.mubr.f32.mxu0 0.0
    %1997 = vmatmul.mubr.f32.gmra.mxu0 %v1930
    %v1998 = vpop.f32.mrf.mxu0
    %v1999 = vadd.f32 0.0, %v1998
    %v2000 = vpop.f32.mrf.mxu0
    %v2001 = vadd.f32 0.0, %v2000
    %2002 = vdwg.mxu0
    %v2004 = vrot.slane %v1999, 2
    %v2006 = vadd.f32 %v1491, %v2004
    %v2007 = vadd.f32 %v1499, %v2001
    %v2008 = vxor.u32 %v2006, 2147483648
    %v2009 = vmul.f32 %v2008, 1.442695
    %v2010 = vpow.pop %v2009
    %v2011 = vadd.f32 %v2010, 1.0
    %v2012 = vrcp.pop %v2011
    %v2013 = vmul.f32 1.0, %v2012
    %v2014 = vtanh.pop %v2006
    %v2016 = vrot.slane %v1884, 6
    %v2018 = vmul.f32 %v2013, %v2016
    %2020 = vrot.lane.b32.xlu0 %v2014, 64
    %v2021 = vpop.permute.xlu0 %2020
    %v2023 = vmul.f32 %v2013, %v2021
    %2025 = vrot.lane.b32.xlu0 %v2023, 32
    %v2026 = vpop.permute.xlu0 %2025
    %v2028 = vadd.f32 %v2018, %v2026
    %v2029 = vtanh.pop %v2028
    %2031 = vrot.lane.b32.xlu0 %v2029, 64
    %v2032 = vpop.permute.xlu0 %2031
    %v2034 = vmul.f32 %v2013, %v2032
    %v2035 = vxor.u32 %v2007, 2147483648
    %v2036 = vmul.f32 %v2035, 1.442695
    %v2037 = vpow.pop %v2036
    %v2038 = vadd.f32 %v2037, 1.0
    %v2039 = vrcp.pop %v2038
    %v2040 = vmul.f32 1.0, %v2039
    %v2041 = vtanh.pop %v2007
    %v2043 = vrot.slane %v1911, 2
    %v2045 = vmul.f32 %v2040, %v2043
    %2047 = vrot.lane.b32.xlu0 %v2041, 64
    %v2048 = vpop.permute.xlu0 %2047
    %v2050 = vmul.f32 %v2040, %v2048
    %2052 = vrot.lane.b32.xlu0 %v2050, 32
    %v2053 = vpop.permute.xlu0 %2052
    %v2055 = vadd.f32 %v2045, %v2053
    %v2056 = vtanh.pop %v2055
    %2058 = vrot.lane.b32.xlu0 %v2056, 64
    %v2059 = vpop.permute.xlu0 %2058
    %v2061 = vmul.f32 %v2040, %v2059
    %2063 = vrot.lane.b32.xlu0 %v2034, 32
    %v2064 = vpop.permute.xlu0 %2063
    %v2067 = vrot.slane %v2061, 2
    %2068 = vrot.lane.b32.xlu0 %v2067, 64
    %v2069 = vpop.permute.xlu0 %2068
    %v2071 = vsel %vm329, %v2064, %v2069
    %v2073 = vrot.slane %v2071, 6
    %v2074 = vsel %vm192, %v2073, 0
    %2076 = vmatprep.subr.mxu0 0.0
    %2077 = vmatpush1.msra.mxu0 0.0
    %2078 = vmatprep.subr.mxu0 0.0
    %2079 = vmatpush1.msra.mxu0 0.0
    %2080 = vmatprep.subr.mxu0 0.0
    %2081 = vmatpush1.msra.mxu0 0.0
    %2082 = vmatprep.subr.mxu0 0.0
    %2083 = vmatpush1.msra.mxu0 0.0
    %2084 = vmatprep.subr.mxu0 0.0
    %2085 = vmatpush1.msra.mxu0 0.0
    %2086 = vmatprep.subr.mxu0 0.0
    %2087 = vmatpush1.msra.mxu0 0.0
    %2088 = vmatprep.subr.mxu0 0.0
    %2089 = vmatpush1.msra.mxu0 0.0
    %2090 = vmatprep.subr.mxu0 0.0
    %2091 = vmatpush1.msra.mxu0 0.0
    %2092 = vmatprep.subr.mxu0 %v1404
    %2093 = vmatpush1.msra.mxu0 %v1403
    %2094 = vmatprep.subr.mxu0 %v1402
    %2095 = vmatpush1.msra.mxu0 %v1401
    %2096 = vmatprep.subr.mxu0 %v1400
    %2097 = vmatpush1.msra.mxu0 %v1399
    %2098 = vmatprep.subr.mxu0 %v1398
    %2099 = vmatpush1.msra.mxu0 %v1397
    %2100 = vmatprep.subr.mxu0 %v1396
    %2101 = vmatpush1.msra.mxu0 %v1395
    %2102 = vmatprep.subr.mxu0 %v1394
    %2103 = vmatpush1.msra.mxu0 %v1393
    %2104 = vmatprep.subr.mxu0 %v1392
    %2105 = vmatpush1.msra.mxu0 %v1391
    %2106 = vmatprep.subr.mxu0 %v1390
    %2107 = vmatpush1.msra.mxu0 %v1389
    %2108 = vmatprep.subr.mxu0 0.0
    %2109 = vmatpush2.msra.mxu0 0.0
    %2110 = vmatprep.subr.mxu0 0.0
    %2111 = vmatpush2.msra.mxu0 0.0
    %2112 = vmatprep.subr.mxu0 0.0
    %2113 = vmatpush2.msra.mxu0 0.0
    %2114 = vmatprep.subr.mxu0 0.0
    %2115 = vmatpush2.msra.mxu0 0.0
    %2116 = vmatprep.subr.mxu0 0.0
    %2117 = vmatpush2.msra.mxu0 0.0
    %2118 = vmatprep.subr.mxu0 0.0
    %2119 = vmatpush2.msra.mxu0 0.0
    %2120 = vmatprep.subr.mxu0 0.0
    %2121 = vmatpush2.msra.mxu0 0.0
    %2122 = vmatprep.subr.mxu0 0.0
    %2123 = vmatpush2.msra.mxu0 0.0
    %2124 = vmatprep.subr.mxu0 0.0
    %2125 = vmatpush2.msra.mxu0 0.0
    %2126 = vmatprep.subr.mxu0 0.0
    %2127 = vmatpush2.msra.mxu0 0.0
    %2128 = vmatprep.subr.mxu0 0.0
    %2129 = vmatpush2.msra.mxu0 0.0
    %2130 = vmatprep.subr.mxu0 0.0
    %2131 = vmatpush2.msra.mxu0 0.0
    %2132 = vmatprep.subr.mxu0 0.0
    %2133 = vmatpush2.msra.mxu0 0.0
    %2134 = vmatprep.subr.mxu0 0.0
    %2135 = vmatpush2.msra.mxu0 0.0
    %2136 = vmatprep.subr.mxu0 0.0
    %2137 = vmatpush2.msra.mxu0 0.0
    %2138 = vmatprep.subr.mxu0 0.0
    %2139 = vmatpush2.msra.mxu0 0.0
    %2140 = vmatprep.mubr.f32.mxu0 0.0
    %2141 = vmatmul.mubr.f32.gmra.mxu0 %v2074
    %v2142 = vpop.f32.mrf.mxu0
    %v2143 = vadd.f32 0.0, %v2142
    %v2144 = vpop.f32.mrf.mxu0
    %v2145 = vadd.f32 0.0, %v2144
    %2146 = vdwg.mxu0
    %v2147 = vadd.f32 %v1497, %v2143
    %v2149 = vrot.slane %v2145, 2
    %v2151 = vadd.f32 %v1493, %v2149
    %v2152 = vxor.u32 %v2147, 2147483648
    %v2153 = vmul.f32 %v2152, 1.442695
    %v2154 = vpow.pop %v2153
    %v2155 = vadd.f32 %v2154, 1.0
    %v2156 = vrcp.pop %v2155
    %v2157 = vmul.f32 1.0, %v2156
    %v2158 = vtanh.pop %v2147
    %v2160 = vrot.slane %v2028, 6
    %v2162 = vmul.f32 %v2157, %v2160
    %2164 = vrot.lane.b32.xlu0 %v2158, 64
    %v2165 = vpop.permute.xlu0 %2164
    %v2167 = vmul.f32 %v2157, %v2165
    %2169 = vrot.lane.b32.xlu0 %v2167, 32
    %v2170 = vpop.permute.xlu0 %2169
    %v2172 = vadd.f32 %v2162, %v2170
    %v2173 = vtanh.pop %v2172
    %2175 = vrot.lane.b32.xlu0 %v2173, 64
    %v2176 = vpop.permute.xlu0 %2175
    %v2178 = vmul.f32 %v2157, %v2176
    %v2179 = vxor.u32 %v2151, 2147483648
    %v2180 = vmul.f32 %v2179, 1.442695
    %v2181 = vpow.pop %v2180
    %v2182 = vadd.f32 %v2181, 1.0
    %v2183 = vrcp.pop %v2182
    %v2184 = vmul.f32 1.0, %v2183
    %v2185 = vtanh.pop %v2151
    %v2187 = vrot.slane %v2055, 2
    %v2189 = vmul.f32 %v2184, %v2187
    %2191 = vrot.lane.b32.xlu0 %v2185, 64
    %v2192 = vpop.permute.xlu0 %2191
    %v2194 = vmul.f32 %v2184, %v2192
    %2196 = vrot.lane.b32.xlu0 %v2194, 32
    %v2197 = vpop.permute.xlu0 %2196
    %v2199 = vadd.f32 %v2189, %v2197
    %v2200 = vtanh.pop %v2199
    %2202 = vrot.lane.b32.xlu0 %v2200, 64
    %v2203 = vpop.permute.xlu0 %2202
    %v2205 = vmul.f32 %v2184, %v2203
    %2207 = vrot.lane.b32.xlu0 %v2178, 32
    %v2208 = vpop.permute.xlu0 %2207
    %v2211 = vrot.slane %v2205, 6
    %2212 = vrot.lane.b32.xlu0 %v2211, 64
    %v2213 = vpop.permute.xlu0 %2212
    %v2215 = vsel %vm329, %v2208, %v2213
    %v2217 = vsel %vm192, %v2215, 0
    %2219 = vmatprep.subr.mxu0 0.0
    %2220 = vmatpush1.msra.mxu0 0.0
    %2221 = vmatprep.subr.mxu0 0.0
    %2222 = vmatpush1.msra.mxu0 0.0
    %2223 = vmatprep.subr.mxu0 0.0
    %2224 = vmatpush1.msra.mxu0 0.0
    %2225 = vmatprep.subr.mxu0 0.0
    %2226 = vmatpush1.msra.mxu0 0.0
    %2227 = vmatprep.subr.mxu0 0.0
    %2228 = vmatpush1.msra.mxu0 0.0
    %2229 = vmatprep.subr.mxu0 0.0
    %2230 = vmatpush1.msra.mxu0 0.0
    %2231 = vmatprep.subr.mxu0 0.0
    %2232 = vmatpush1.msra.mxu0 0.0
    %2233 = vmatprep.subr.mxu0 0.0
    %2234 = vmatpush1.msra.mxu0 0.0
    %2235 = vmatprep.subr.mxu0 %v1404
    %2236 = vmatpush1.msra.mxu0 %v1403
    %2237 = vmatprep.subr.mxu0 %v1402
    %2238 = vmatpush1.msra.mxu0 %v1401
    %2239 = vmatprep.subr.mxu0 %v1400
    %2240 = vmatpush1.msra.mxu0 %v1399
    %2241 = vmatprep.subr.mxu0 %v1398
    %2242 = vmatpush1.msra.mxu0 %v1397
    %2243 = vmatprep.subr.mxu0 %v1396
    %2244 = vmatpush1.msra.mxu0 %v1395
    %2245 = vmatprep.subr.mxu0 %v1394
    %2246 = vmatpush1.msra.mxu0 %v1393
    %2247 = vmatprep.subr.mxu0 %v1392
    %2248 = vmatpush1.msra.mxu0 %v1391
    %2249 = vmatprep.subr.mxu0 %v1390
    %2250 = vmatpush1.msra.mxu0 %v1389
    %2251 = vmatprep.subr.mxu0 0.0
    %2252 = vmatpush2.msra.mxu0 0.0
    %2253 = vmatprep.subr.mxu0 0.0
    %2254 = vmatpush2.msra.mxu0 0.0
    %2255 = vmatprep.subr.mxu0 0.0
    %2256 = vmatpush2.msra.mxu0 0.0
    %2257 = vmatprep.subr.mxu0 0.0
    %2258 = vmatpush2.msra.mxu0 0.0
    %2259 = vmatprep.subr.mxu0 0.0
    %2260 = vmatpush2.msra.mxu0 0.0
    %2261 = vmatprep.subr.mxu0 0.0
    %2262 = vmatpush2.msra.mxu0 0.0
    %2263 = vmatprep.subr.mxu0 0.0
    %2264 = vmatpush2.msra.mxu0 0.0
    %2265 = vmatprep.subr.mxu0 0.0
    %2266 = vmatpush2.msra.mxu0 0.0
    %2267 = vmatprep.subr.mxu0 0.0
    %2268 = vmatpush2.msra.mxu0 0.0
    %2269 = vmatprep.subr.mxu0 0.0
    %2270 = vmatpush2.msra.mxu0 0.0
    %2271 = vmatprep.subr.mxu0 0.0
    %2272 = vmatpush2.msra.mxu0 0.0
    %2273 = vmatprep.subr.mxu0 0.0
    %2274 = vmatpush2.msra.mxu0 0.0
    %2275 = vmatprep.subr.mxu0 0.0
    %2276 = vmatpush2.msra.mxu0 0.0
    %2277 = vmatprep.subr.mxu0 0.0
    %2278 = vmatpush2.msra.mxu0 0.0
    %2279 = vmatprep.subr.mxu0 0.0
    %2280 = vmatpush2.msra.mxu0 0.0
    %2281 = vmatprep.subr.mxu0 0.0
    %2282 = vmatpush2.msra.mxu0 0.0
    %2283 = vmatprep.mubr.f32.mxu0 0.0
    %2284 = vmatmul.mubr.f32.gmra.mxu0 %v2217
    %v2285 = vpop.f32.mrf.mxu0
    %v2286 = vadd.f32 0.0, %v2285
    %v2287 = vpop.f32.mrf.mxu0
    %v2288 = vadd.f32 0.0, %v2287
    %2289 = vdwg.mxu0
    %v2291 = vrot.slane %v2286, 6
    %v2293 = vadd.f32 %v1497, %v2291
    %v2295 = vrot.slane %v2288, 4
    %v2297 = vadd.f32 %v1493, %v2295
    %v2298 = vxor.u32 %v2293, 2147483648
    %v2299 = vmul.f32 %v2298, 1.442695
    %v2300 = vpow.pop %v2299
    %v2301 = vadd.f32 %v2300, 1.0
    %v2302 = vrcp.pop %v2301
    %v2303 = vmul.f32 1.0, %v2302
    %v2304 = vtanh.pop %v2293
    %v2306 = vrot.slane %v2172, 6
    %v2308 = vmul.f32 %v2303, %v2306
    %2310 = vrot.lane.b32.xlu0 %v2304, 64
    %v2311 = vpop.permute.xlu0 %2310
    %v2313 = vmul.f32 %v2303, %v2311
    %2315 = vrot.lane.b32.xlu0 %v2313, 32
    %v2316 = vpop.permute.xlu0 %2315
    %v2318 = vadd.f32 %v2308, %v2316
    %v2319 = vtanh.pop %v2318
    %2321 = vrot.lane.b32.xlu0 %v2319, 64
    %v2322 = vpop.permute.xlu0 %2321
    %v2324 = vmul.f32 %v2303, %v2322
    %v2325 = vxor.u32 %v2297, 2147483648
    %v2326 = vmul.f32 %v2325, 1.442695
    %v2327 = vpow.pop %v2326
    %v2328 = vadd.f32 %v2327, 1.0
    %v2329 = vrcp.pop %v2328
    %v2330 = vmul.f32 1.0, %v2329
    %v2331 = vtanh.pop %v2297
    %v2333 = vrot.slane %v2199, 2
    %v2335 = vmul.f32 %v2330, %v2333
    %2337 = vrot.lane.b32.xlu0 %v2331, 64
    %v2338 = vpop.permute.xlu0 %2337
    %v2340 = vmul.f32 %v2330, %v2338
    %2342 = vrot.lane.b32.xlu0 %v2340, 32
    %v2343 = vpop.permute.xlu0 %2342
    %v2345 = vadd.f32 %v2335, %v2343
    %v2346 = vtanh.pop %v2345
    %2348 = vrot.lane.b32.xlu0 %v2346, 64
    %v2349 = vpop.permute.xlu0 %2348
    %v2351 = vmul.f32 %v2330, %v2349
    %2353 = vrot.lane.b32.xlu0 %v2324, 32
    %v2354 = vpop.permute.xlu0 %2353
    %v2357 = vrot.slane %v2351, 2
    %2358 = vrot.lane.b32.xlu0 %v2357, 64
    %v2359 = vpop.permute.xlu0 %2358
    %v2361 = vsel %vm329, %v2354, %v2359
    %v2363 = vrot.slane %v2361, 2
    %v2364 = vsel %vm192, %v2363, 0
    %2366 = vmatprep.subr.mxu0 0.0
    %2367 = vmatpush1.msra.mxu0 0.0
    %2368 = vmatprep.subr.mxu0 0.0
    %2369 = vmatpush1.msra.mxu0 0.0
    %2370 = vmatprep.subr.mxu0 0.0
    %2371 = vmatpush1.msra.mxu0 0.0
    %2372 = vmatprep.subr.mxu0 0.0
    %2373 = vmatpush1.msra.mxu0 0.0
    %2374 = vmatprep.subr.mxu0 0.0
    %2375 = vmatpush1.msra.mxu0 0.0
    %2376 = vmatprep.subr.mxu0 0.0
    %2377 = vmatpush1.msra.mxu0 0.0
    %2378 = vmatprep.subr.mxu0 0.0
    %2379 = vmatpush1.msra.mxu0 0.0
    %2380 = vmatprep.subr.mxu0 0.0
    %2381 = vmatpush1.msra.mxu0 0.0
    %2382 = vmatprep.subr.mxu0 %v1404
    %2383 = vmatpush1.msra.mxu0 %v1403
    %2384 = vmatprep.subr.mxu0 %v1402
    %2385 = vmatpush1.msra.mxu0 %v1401
    %2386 = vmatprep.subr.mxu0 %v1400
    %2387 = vmatpush1.msra.mxu0 %v1399
    %2388 = vmatprep.subr.mxu0 %v1398
    %2389 = vmatpush1.msra.mxu0 %v1397
    %2390 = vmatprep.subr.mxu0 %v1396
    %2391 = vmatpush1.msra.mxu0 %v1395
    %2392 = vmatprep.subr.mxu0 %v1394
    %2393 = vmatpush1.msra.mxu0 %v1393
    %2394 = vmatprep.subr.mxu0 %v1392
    %2395 = vmatpush1.msra.mxu0 %v1391
    %2396 = vmatprep.subr.mxu0 %v1390
    %2397 = vmatpush1.msra.mxu0 %v1389
    %2398 = vmatprep.subr.mxu0 0.0
    %2399 = vmatpush2.msra.mxu0 0.0
    %2400 = vmatprep.subr.mxu0 0.0
    %2401 = vmatpush2.msra.mxu0 0.0
    %2402 = vmatprep.subr.mxu0 0.0
    %2403 = vmatpush2.msra.mxu0 0.0
    %2404 = vmatprep.subr.mxu0 0.0
    %2405 = vmatpush2.msra.mxu0 0.0
    %2406 = vmatprep.subr.mxu0 0.0
    %2407 = vmatpush2.msra.mxu0 0.0
    %2408 = vmatprep.subr.mxu0 0.0
    %2409 = vmatpush2.msra.mxu0 0.0
    %2410 = vmatprep.subr.mxu0 0.0
    %2411 = vmatpush2.msra.mxu0 0.0
    %2412 = vmatprep.subr.mxu0 0.0
    %2413 = vmatpush2.msra.mxu0 0.0
    %2414 = vmatprep.subr.mxu0 0.0
    %2415 = vmatpush2.msra.mxu0 0.0
    %2416 = vmatprep.subr.mxu0 0.0
    %2417 = vmatpush2.msra.mxu0 0.0
    %2418 = vmatprep.subr.mxu0 0.0
    %2419 = vmatpush2.msra.mxu0 0.0
    %2420 = vmatprep.subr.mxu0 0.0
    %2421 = vmatpush2.msra.mxu0 0.0
    %2422 = vmatprep.subr.mxu0 0.0
    %2423 = vmatpush2.msra.mxu0 0.0
    %2424 = vmatprep.subr.mxu0 0.0
    %2425 = vmatpush2.msra.mxu0 0.0
    %2426 = vmatprep.subr.mxu0 0.0
    %2427 = vmatpush2.msra.mxu0 0.0
    %2428 = vmatprep.subr.mxu0 0.0
    %2429 = vmatpush2.msra.mxu0 0.0
    %2430 = vmatprep.mubr.f32.mxu0 0.0
    %2431 = vmatmul.mubr.f32.gmra.mxu0 %v2364
    %v2432 = vpop.f32.mrf.mxu0
    %v2433 = vadd.f32 0.0, %v2432
    %v2434 = vpop.f32.mrf.mxu0
    %v2435 = vadd.f32 0.0, %v2434
    %2436 = vdwg.mxu0
    %v2438 = vrot.slane %v2433, 4
    %v2440 = vadd.f32 %v1497, %v2438
    %v2442 = vrot.slane %v2435, 6
    %v2444 = vadd.f32 %v1493, %v2442
    %v2445 = vxor.u32 %v2440, 2147483648
    %v2446 = vmul.f32 %v2445, 1.442695
    %v2447 = vpow.pop %v2446
    %v2448 = vadd.f32 %v2447, 1.0
    %v2449 = vrcp.pop %v2448
    %v2450 = vmul.f32 1.0, %v2449
    %v2451 = vtanh.pop %v2440
    %v2453 = vrot.slane %v2318, 6
    %v2455 = vmul.f32 %v2450, %v2453
    %2457 = vrot.lane.b32.xlu0 %v2451, 64
    %v2458 = vpop.permute.xlu0 %2457
    %v2460 = vmul.f32 %v2450, %v2458
    %2462 = vrot.lane.b32.xlu0 %v2460, 32
    %v2463 = vpop.permute.xlu0 %2462
    %v2465 = vadd.f32 %v2455, %v2463
    %v2466 = vtanh.pop %v2465
    %2468 = vrot.lane.b32.xlu0 %v2466, 64
    %v2469 = vpop.permute.xlu0 %2468
    %v2471 = vmul.f32 %v2450, %v2469
    %v2472 = vxor.u32 %v2444, 2147483648
    %v2473 = vmul.f32 %v2472, 1.442695
    %v2474 = vpow.pop %v2473
    %v2475 = vadd.f32 %v2474, 1.0
    %v2476 = vrcp.pop %v2475
    %v2477 = vmul.f32 1.0, %v2476
    %v2478 = vtanh.pop %v2444
    %v2480 = vrot.slane %v2345, 2
    %v2482 = vmul.f32 %v2477, %v2480
    %2484 = vrot.lane.b32.xlu0 %v2478, 64
    %v2485 = vpop.permute.xlu0 %2484
    %v2487 = vmul.f32 %v2477, %v2485
    %2489 = vrot.lane.b32.xlu0 %v2487, 32
    %v2490 = vpop.permute.xlu0 %2489
    %v2492 = vadd.f32 %v2482, %v2490
    %v2493 = vtanh.pop %v2492
    %2495 = vrot.lane.b32.xlu0 %v2493, 64
    %v2496 = vpop.permute.xlu0 %2495
    %v2498 = vmul.f32 %v2477, %v2496
    %2500 = vrot.lane.b32.xlu0 %v2471, 32
    %v2501 = vpop.permute.xlu0 %2500
    %v2504 = vrot.slane %v2498, 6
    %2505 = vrot.lane.b32.xlu0 %v2504, 64
    %v2506 = vpop.permute.xlu0 %2505
    %v2508 = vsel %vm329, %v2501, %v2506
    %v2510 = vrot.slane %v2508, 4
    %v2511 = vsel %vm192, %v2510, 0
    %2513 = vmatprep.subr.mxu0 0.0
    %2514 = vmatpush1.msra.mxu0 0.0
    %2515 = vmatprep.subr.mxu0 0.0
    %2516 = vmatpush1.msra.mxu0 0.0
    %2517 = vmatprep.subr.mxu0 0.0
    %2518 = vmatpush1.msra.mxu0 0.0
    %2519 = vmatprep.subr.mxu0 0.0
    %2520 = vmatpush1.msra.mxu0 0.0
    %2521 = vmatprep.subr.mxu0 0.0
    %2522 = vmatpush1.msra.mxu0 0.0
    %2523 = vmatprep.subr.mxu0 0.0
    %2524 = vmatpush1.msra.mxu0 0.0
    %2525 = vmatprep.subr.mxu0 0.0
    %2526 = vmatpush1.msra.mxu0 0.0
    %2527 = vmatprep.subr.mxu0 0.0
    %2528 = vmatpush1.msra.mxu0 0.0
    %2529 = vmatprep.subr.mxu0 %v1404
    %2530 = vmatpush1.msra.mxu0 %v1403
    %2531 = vmatprep.subr.mxu0 %v1402
    %2532 = vmatpush1.msra.mxu0 %v1401
    %2533 = vmatprep.subr.mxu0 %v1400
    %2534 = vmatpush1.msra.mxu0 %v1399
    %2535 = vmatprep.subr.mxu0 %v1398
    %2536 = vmatpush1.msra.mxu0 %v1397
    %2537 = vmatprep.subr.mxu0 %v1396
    %2538 = vmatpush1.msra.mxu0 %v1395
    %2539 = vmatprep.subr.mxu0 %v1394
    %2540 = vmatpush1.msra.mxu0 %v1393
    %2541 = vmatprep.subr.mxu0 %v1392
    %2542 = vmatpush1.msra.mxu0 %v1391
    %2543 = vmatprep.subr.mxu0 %v1390
    %2544 = vmatpush1.msra.mxu0 %v1389
    %2545 = vmatprep.subr.mxu0 0.0
    %2546 = vmatpush2.msra.mxu0 0.0
    %2547 = vmatprep.subr.mxu0 0.0
    %2548 = vmatpush2.msra.mxu0 0.0
    %2549 = vmatprep.subr.mxu0 0.0
    %2550 = vmatpush2.msra.mxu0 0.0
    %2551 = vmatprep.subr.mxu0 0.0
    %2552 = vmatpush2.msra.mxu0 0.0
    %2553 = vmatprep.subr.mxu0 0.0
    %2554 = vmatpush2.msra.mxu0 0.0
    %2555 = vmatprep.subr.mxu0 0.0
    %2556 = vmatpush2.msra.mxu0 0.0
    %2557 = vmatprep.subr.mxu0 0.0
    %2558 = vmatpush2.msra.mxu0 0.0
    %2559 = vmatprep.subr.mxu0 0.0
    %2560 = vmatpush2.msra.mxu0 0.0
    %2561 = vmatprep.subr.mxu0 0.0
    %2562 = vmatpush2.msra.mxu0 0.0
    %2563 = vmatprep.subr.mxu0 0.0
    %2564 = vmatpush2.msra.mxu0 0.0
    %2565 = vmatprep.subr.mxu0 0.0
    %2566 = vmatpush2.msra.mxu0 0.0
    %2567 = vmatprep.subr.mxu0 0.0
    %2568 = vmatpush2.msra.mxu0 0.0
    %2569 = vmatprep.subr.mxu0 0.0
    %2570 = vmatpush2.msra.mxu0 0.0
    %2571 = vmatprep.subr.mxu0 0.0
    %2572 = vmatpush2.msra.mxu0 0.0
    %2573 = vmatprep.subr.mxu0 0.0
    %2574 = vmatpush2.msra.mxu0 0.0
    %2575 = vmatprep.subr.mxu0 0.0
    %2576 = vmatpush2.msra.mxu0 0.0
    %2577 = vmatprep.mubr.f32.mxu0 0.0
    %2578 = vmatmul.mubr.f32.gmra.mxu0 %v2511
    %v2579 = vpop.f32.mrf.mxu0
    %v2580 = vadd.f32 0.0, %v2579
    %v2581 = vpop.f32.mrf.mxu0
    %v2582 = vadd.f32 0.0, %v2581
    %2583 = vdwg.mxu0
    %v2585 = vrot.slane %v2580, 2
    %v2587 = vadd.f32 %v1497, %v2585
    %v2588 = vadd.f32 %v1493, %v2582
    %v2589 = vxor.u32 %v2587, 2147483648
    %v2590 = vmul.f32 %v2589, 1.442695
    %v2591 = vpow.pop %v2590
    %v2592 = vadd.f32 %v2591, 1.0
    %v2593 = vrcp.pop %v2592
    %v2594 = vmul.f32 1.0, %v2593
    %v2595 = vtanh.pop %v2587
    %v2597 = vrot.slane %v2465, 6
    %v2599 = vmul.f32 %v2594, %v2597
    %2601 = vrot.lane.b32.xlu0 %v2595, 64
    %v2602 = vpop.permute.xlu0 %2601
    %v2604 = vmul.f32 %v2594, %v2602
    %2606 = vrot.lane.b32.xlu0 %v2604, 32
    %v2607 = vpop.permute.xlu0 %2606
    %v2609 = vadd.f32 %v2599, %v2607
    %v2610 = vtanh.pop %v2609
    %2612 = vrot.lane.b32.xlu0 %v2610, 64
    %v2613 = vpop.permute.xlu0 %2612
    %v2615 = vmul.f32 %v2594, %v2613
    %v2616 = vxor.u32 %v2588, 2147483648
    %v2617 = vmul.f32 %v2616, 1.442695
    %v2618 = vpow.pop %v2617
    %v2619 = vadd.f32 %v2618, 1.0
    %v2620 = vrcp.pop %v2619
    %v2621 = vmul.f32 1.0, %v2620
    %v2622 = vtanh.pop %v2588
    %v2624 = vrot.slane %v2492, 2
    %v2626 = vmul.f32 %v2621, %v2624
    %2628 = vrot.lane.b32.xlu0 %v2622, 64
    %v2629 = vpop.permute.xlu0 %2628
    %v2631 = vmul.f32 %v2621, %v2629
    %2633 = vrot.lane.b32.xlu0 %v2631, 32
    %v2634 = vpop.permute.xlu0 %2633
    %v2636 = vadd.f32 %v2626, %v2634
    %v2637 = vtanh.pop %v2636
    %2639 = vrot.lane.b32.xlu0 %v2637, 64
    %v2640 = vpop.permute.xlu0 %2639
    %v2642 = vmul.f32 %v2621, %v2640
    %v2643 = vld [vmem:[%s1] sm:$0xff]
    %v2644 = vld [vmem:[%s1 + $0x8] sm:$0xff]
    %v2645 = vld [vmem:[#allocation3] sm:$0xff]
    %v2646 = vld [vmem:[#allocation3 + $0x8] sm:$0xff]
    %v2647 = vld [vmem:[#allocation3 + $0x10] sm:$0xff]
    %v2648 = vld [vmem:[#allocation3 + $0x18] sm:$0xff]
    %v2649 = vld [vmem:[#allocation3 + $0x20] sm:$0xf]
    %v2650 = vld [vmem:[#allocation3 + $0x28] sm:$0xf]
    %v2651 = vld [vmem:[#allocation5] sm:$0xff]
    %v2652 = vld [vmem:[#allocation5 + $0x8] sm:$0xff]
    %v2653 = vld [vmem:[#allocation5 + $0x10] sm:$0xff]
    %v2654 = vld [vmem:[#allocation5 + $0x18] sm:$0xff]
    %v2655 = vld [vmem:[#allocation5 + $0x20] sm:$0xff]
    %v2656 = vld [vmem:[#allocation5 + $0x28] sm:$0xff]
    %v2657 = vld [vmem:[#allocation5 + $0x30] sm:$0xff]
    %v2658 = vld [vmem:[#allocation5 + $0x38] sm:$0xff]
    %v2659 = vld [vmem:[#allocation5 + $0x40] sm:$0xff]
    %v2660 = vld [vmem:[#allocation5 + $0x48] sm:$0xff]
    %v2661 = vld [vmem:[#allocation5 + $0x50] sm:$0xff]
    %v2662 = vld [vmem:[#allocation5 + $0x58] sm:$0xff]
    %v2663 = vld [vmem:[#allocation5 + $0x60] sm:$0xff]
    %v2664 = vld [vmem:[#allocation5 + $0x68] sm:$0xff]
    %v2665 = vld [vmem:[#allocation5 + $0x70] sm:$0xff]
    %v2666 = vld [vmem:[#allocation5 + $0x78] sm:$0xff]
    %v2667 = vld [vmem:[%s7] sm:$0x3]
    %v2669 = vlaneseq
    %v2670 = vshrl.u32 %v2669, 7
    %v2671 = vsub.s32 0, %v2670
    %v2672 = vrot.slane %v2667, %v2671
    %v2673 = vlaneseq
    %v2674 = vshrl.u32 %v2673, 7
    %v2675 = vsub.s32 1, %v2674
    %v2676 = vrot.slane %v2667, %v2675
    %v2680 = vsel %vm101, %v2643, 0
    %v2683 = vsel %vm101, %v2644, 0
    %v2686 = vsel %vm108, %v2649, 0
    %v2689 = vsel %vm108, %v2650, 0
    %2691 = vmatprep.subr.mxu0 0.0
    %2692 = vmatpush1.msra.mxu0 0.0
    %2693 = vmatprep.subr.mxu0 0.0
    %2694 = vmatpush1.msra.mxu0 0.0
    %2695 = vmatprep.subr.mxu0 0.0
    %2696 = vmatpush1.msra.mxu0 0.0
    %2697 = vmatprep.subr.mxu0 0.0
    %2698 = vmatpush1.msra.mxu0 0.0
    %2699 = vmatprep.subr.mxu0 0.0
    %2700 = vmatpush1.msra.mxu0 0.0
    %2701 = vmatprep.subr.mxu0 0.0
    %2702 = vmatpush1.msra.mxu0 0.0
    %2703 = vmatprep.subr.mxu0 0.0
    %2704 = vmatpush1.msra.mxu0 0.0
    %2705 = vmatprep.subr.mxu0 0.0
    %2706 = vmatpush1.msra.mxu0 0.0
    %2707 = vmatprep.subr.mxu0 0.0
    %2708 = vmatpush1.msra.mxu0 0.0
    %2709 = vmatprep.subr.mxu0 0.0
    %2710 = vmatpush1.msra.mxu0 0.0
    %2711 = vmatprep.subr.mxu0 0.0
    %2712 = vmatpush1.msra.mxu0 0.0
    %2713 = vmatprep.subr.mxu0 0.0
    %2714 = vmatpush1.msra.mxu0 0.0
    %2715 = vmatprep.subr.mxu0 0.0
    %2716 = vmatpush1.msra.mxu0 0.0
    %2717 = vmatprep.subr.mxu0 %v2689
    %2718 = vmatpush1.msra.mxu0 %v2686
    %2719 = vmatprep.subr.mxu0 %v2648
    %2720 = vmatpush1.msra.mxu0 %v2647
    %2721 = vmatprep.subr.mxu0 %v2646
    %2722 = vmatpush1.msra.mxu0 %v2645
    %2723 = vmatprep.subr.mxu0 0.0
    %2724 = vmatpush2.msra.mxu0 0.0
    %2725 = vmatprep.subr.mxu0 0.0
    %2726 = vmatpush2.msra.mxu0 0.0
    %2727 = vmatprep.subr.mxu0 0.0
    %2728 = vmatpush2.msra.mxu0 0.0
    %2729 = vmatprep.subr.mxu0 0.0
    %2730 = vmatpush2.msra.mxu0 0.0
    %2731 = vmatprep.subr.mxu0 0.0
    %2732 = vmatpush2.msra.mxu0 0.0
    %2733 = vmatprep.subr.mxu0 0.0
    %2734 = vmatpush2.msra.mxu0 0.0
    %2735 = vmatprep.subr.mxu0 0.0
    %2736 = vmatpush2.msra.mxu0 0.0
    %2737 = vmatprep.subr.mxu0 0.0
    %2738 = vmatpush2.msra.mxu0 0.0
    %2739 = vmatprep.subr.mxu0 0.0
    %2740 = vmatpush2.msra.mxu0 0.0
    %2741 = vmatprep.subr.mxu0 0.0
    %2742 = vmatpush2.msra.mxu0 0.0
    %2743 = vmatprep.subr.mxu0 0.0
    %2744 = vmatpush2.msra.mxu0 0.0
    %2745 = vmatprep.subr.mxu0 0.0
    %2746 = vmatpush2.msra.mxu0 0.0
    %2747 = vmatprep.subr.mxu0 0.0
    %2748 = vmatpush2.msra.mxu0 0.0
    %2749 = vmatprep.subr.mxu0 0.0
    %2750 = vmatpush2.msra.mxu0 0.0
    %2751 = vmatprep.subr.mxu0 0.0
    %2752 = vmatpush2.msra.mxu0 0.0
    %2753 = vmatprep.subr.mxu0 0.0
    %2754 = vmatpush2.msra.mxu0 0.0
    %2755 = vmatprep.mubr.f32.mxu0 0.0
    %2756 = vmatmul.mubr.f32.gmra.mxu0 %v2680
    %v2757 = vpop.f32.mrf.mxu0
    %v2758 = vadd.f32 %v2672, %v2757
    %v2759 = vpop.f32.mrf.mxu0
    %v2760 = vadd.f32 %v2676, %v2759
    %2761 = vmatprep.mubr.f32.mxu0 0.0
    %2762 = vmatmul.mubr.f32.gmra.mxu0 %v2683
    %v2763 = vpop.f32.mrf.mxu0
    %v2764 = vadd.f32 %v2672, %v2763
    %v2765 = vpop.f32.mrf.mxu0
    %v2766 = vadd.f32 %v2676, %v2765
    %2767 = vdwg.mxu0
    %2769 = vrot.lane.b32.xlu0 %v1311, 32
    %v2770 = vpop.permute.xlu0 %2769
    %v2773 = vrot.slane %v1338, 2
    %2774 = vrot.lane.b32.xlu0 %v2773, 64
    %v2775 = vpop.permute.xlu0 %2774
    %v2777 = vsel %vm329, %v2770, %v2775
    %v2779 = vrot.slane %v2777, 6
    %v2780 = vsel %vm192, %v2779, 0
    %2782 = vmatprep.subr.mxu0 0.0
    %2783 = vmatpush1.msra.mxu0 0.0
    %2784 = vmatprep.subr.mxu0 0.0
    %2785 = vmatpush1.msra.mxu0 0.0
    %2786 = vmatprep.subr.mxu0 0.0
    %2787 = vmatpush1.msra.mxu0 0.0
    %2788 = vmatprep.subr.mxu0 0.0
    %2789 = vmatpush1.msra.mxu0 0.0
    %2790 = vmatprep.subr.mxu0 0.0
    %2791 = vmatpush1.msra.mxu0 0.0
    %2792 = vmatprep.subr.mxu0 0.0
    %2793 = vmatpush1.msra.mxu0 0.0
    %2794 = vmatprep.subr.mxu0 0.0
    %2795 = vmatpush1.msra.mxu0 0.0
    %2796 = vmatprep.subr.mxu0 0.0
    %2797 = vmatpush1.msra.mxu0 0.0
    %2798 = vmatprep.subr.mxu0 %v2666
    %2799 = vmatpush1.msra.mxu0 %v2665
    %2800 = vmatprep.subr.mxu0 %v2664
    %2801 = vmatpush1.msra.mxu0 %v2663
    %2802 = vmatprep.subr.mxu0 %v2662
    %2803 = vmatpush1.msra.mxu0 %v2661
    %2804 = vmatprep.subr.mxu0 %v2660
    %2805 = vmatpush1.msra.mxu0 %v2659
    %2806 = vmatprep.subr.mxu0 %v2658
    %2807 = vmatpush1.msra.mxu0 %v2657
    %2808 = vmatprep.subr.mxu0 %v2656
    %2809 = vmatpush1.msra.mxu0 %v2655
    %2810 = vmatprep.subr.mxu0 %v2654
    %2811 = vmatpush1.msra.mxu0 %v2653
    %2812 = vmatprep.subr.mxu0 %v2652
    %2813 = vmatpush1.msra.mxu0 %v2651
    %2814 = vmatprep.subr.mxu0 0.0
    %2815 = vmatpush2.msra.mxu0 0.0
    %2816 = vmatprep.subr.mxu0 0.0
    %2817 = vmatpush2.msra.mxu0 0.0
    %2818 = vmatprep.subr.mxu0 0.0
    %2819 = vmatpush2.msra.mxu0 0.0
    %2820 = vmatprep.subr.mxu0 0.0
    %2821 = vmatpush2.msra.mxu0 0.0
    %2822 = vmatprep.subr.mxu0 0.0
    %2823 = vmatpush2.msra.mxu0 0.0
    %2824 = vmatprep.subr.mxu0 0.0
    %2825 = vmatpush2.msra.mxu0 0.0
    %2826 = vmatprep.subr.mxu0 0.0
    %2827 = vmatpush2.msra.mxu0 0.0
    %2828 = vmatprep.subr.mxu0 0.0
    %2829 = vmatpush2.msra.mxu0 0.0
    %2830 = vmatprep.subr.mxu0 0.0
    %2831 = vmatpush2.msra.mxu0 0.0
    %2832 = vmatprep.subr.mxu0 0.0
    %2833 = vmatpush2.msra.mxu0 0.0
    %2834 = vmatprep.subr.mxu0 0.0
    %2835 = vmatpush2.msra.mxu0 0.0
    %2836 = vmatprep.subr.mxu0 0.0
    %2837 = vmatpush2.msra.mxu0 0.0
    %2838 = vmatprep.subr.mxu0 0.0
    %2839 = vmatpush2.msra.mxu0 0.0
    %2840 = vmatprep.subr.mxu0 0.0
    %2841 = vmatpush2.msra.mxu0 0.0
    %2842 = vmatprep.subr.mxu0 0.0
    %2843 = vmatpush2.msra.mxu0 0.0
    %2844 = vmatprep.subr.mxu0 0.0
    %2845 = vmatpush2.msra.mxu0 0.0
    %2846 = vmatprep.mubr.f32.mxu0 0.0
    %2847 = vmatmul.mubr.f32.gmra.mxu0 %v2780
    %v2848 = vpop.f32.mrf.mxu0
    %v2849 = vadd.f32 0.0, %v2848
    %v2850 = vpop.f32.mrf.mxu0
    %v2851 = vadd.f32 0.0, %v2850
    %2852 = vdwg.mxu0
    %v2853 = vadd.f32 %v2758, %v2849
    %v2855 = vrot.slane %v2851, 2
    %v2857 = vadd.f32 %v2766, %v2855
    %v2858 = vxor.u32 %v2853, 2147483648
    %v2859 = vmul.f32 %v2858, 1.442695
    %v2860 = vpow.pop %v2859
    %v2861 = vadd.f32 %v2860, 1.0
    %v2862 = vrcp.pop %v2861
    %v2863 = vmul.f32 1.0, %v2862
    %v2864 = vtanh.pop %v2853
    %v2866 = vrot.slane %v1305, 6
    %v2868 = vmul.f32 %v2863, %v2866
    %2870 = vrot.lane.b32.xlu0 %v2864, 64
    %v2871 = vpop.permute.xlu0 %2870
    %v2873 = vmul.f32 %v2863, %v2871
    %2875 = vrot.lane.b32.xlu0 %v2873, 32
    %v2876 = vpop.permute.xlu0 %2875
    %v2878 = vadd.f32 %v2868, %v2876
    %v2879 = vtanh.pop %v2878
    %2881 = vrot.lane.b32.xlu0 %v2879, 64
    %v2882 = vpop.permute.xlu0 %2881
    %v2884 = vmul.f32 %v2863, %v2882
    %v2885 = vxor.u32 %v2857, 2147483648
    %v2886 = vmul.f32 %v2885, 1.442695
    %v2887 = vpow.pop %v2886
    %v2888 = vadd.f32 %v2887, 1.0
    %v2889 = vrcp.pop %v2888
    %v2890 = vmul.f32 1.0, %v2889
    %v2891 = vtanh.pop %v2857
    %v2893 = vrot.slane %v1332, 2
    %v2895 = vmul.f32 %v2890, %v2893
    %2897 = vrot.lane.b32.xlu0 %v2891, 64
    %v2898 = vpop.permute.xlu0 %2897
    %v2900 = vmul.f32 %v2890, %v2898
    %2902 = vrot.lane.b32.xlu0 %v2900, 32
    %v2903 = vpop.permute.xlu0 %2902
    %v2905 = vadd.f32 %v2895, %v2903
    %v2906 = vtanh.pop %v2905
    %2908 = vrot.lane.b32.xlu0 %v2906, 64
    %v2909 = vpop.permute.xlu0 %2908
    %v2911 = vmul.f32 %v2890, %v2909
    %2913 = vrot.lane.b32.xlu0 %v2884, 32
    %v2914 = vpop.permute.xlu0 %2913
    %v2917 = vrot.slane %v2911, 6
    %2918 = vrot.lane.b32.xlu0 %v2917, 64
    %v2919 = vpop.permute.xlu0 %2918
    %v2921 = vsel %vm329, %v2914, %v2919
    %v2923 = vsel %vm192, %v2921, 0
    %2925 = vmatprep.subr.mxu0 0.0
    %2926 = vmatpush1.msra.mxu0 0.0
    %2927 = vmatprep.subr.mxu0 0.0
    %2928 = vmatpush1.msra.mxu0 0.0
    %2929 = vmatprep.subr.mxu0 0.0
    %2930 = vmatpush1.msra.mxu0 0.0
    %2931 = vmatprep.subr.mxu0 0.0
    %2932 = vmatpush1.msra.mxu0 0.0
    %2933 = vmatprep.subr.mxu0 0.0
    %2934 = vmatpush1.msra.mxu0 0.0
    %2935 = vmatprep.subr.mxu0 0.0
    %2936 = vmatpush1.msra.mxu0 0.0
    %2937 = vmatprep.subr.mxu0 0.0
    %2938 = vmatpush1.msra.mxu0 0.0
    %2939 = vmatprep.subr.mxu0 0.0
    %2940 = vmatpush1.msra.mxu0 0.0
    %2941 = vmatprep.subr.mxu0 %v2666
    %2942 = vmatpush1.msra.mxu0 %v2665
    %2943 = vmatprep.subr.mxu0 %v2664
    %2944 = vmatpush1.msra.mxu0 %v2663
    %2945 = vmatprep.subr.mxu0 %v2662
    %2946 = vmatpush1.msra.mxu0 %v2661
    %2947 = vmatprep.subr.mxu0 %v2660
    %2948 = vmatpush1.msra.mxu0 %v2659
    %2949 = vmatprep.subr.mxu0 %v2658
    %2950 = vmatpush1.msra.mxu0 %v2657
    %2951 = vmatprep.subr.mxu0 %v2656
    %2952 = vmatpush1.msra.mxu0 %v2655
    %2953 = vmatprep.subr.mxu0 %v2654
    %2954 = vmatpush1.msra.mxu0 %v2653
    %2955 = vmatprep.subr.mxu0 %v2652
    %2956 = vmatpush1.msra.mxu0 %v2651
    %2957 = vmatprep.subr.mxu0 0.0
    %2958 = vmatpush2.msra.mxu0 0.0
    %2959 = vmatprep.subr.mxu0 0.0
    %2960 = vmatpush2.msra.mxu0 0.0
    %2961 = vmatprep.subr.mxu0 0.0
    %2962 = vmatpush2.msra.mxu0 0.0
    %2963 = vmatprep.subr.mxu0 0.0
    %2964 = vmatpush2.msra.mxu0 0.0
    %2965 = vmatprep.subr.mxu0 0.0
    %2966 = vmatpush2.msra.mxu0 0.0
    %2967 = vmatprep.subr.mxu0 0.0
    %2968 = vmatpush2.msra.mxu0 0.0
    %2969 = vmatprep.subr.mxu0 0.0
    %2970 = vmatpush2.msra.mxu0 0.0
    %2971 = vmatprep.subr.mxu0 0.0
    %2972 = vmatpush2.msra.mxu0 0.0
    %2973 = vmatprep.subr.mxu0 0.0
    %2974 = vmatpush2.msra.mxu0 0.0
    %2975 = vmatprep.subr.mxu0 0.0
    %2976 = vmatpush2.msra.mxu0 0.0
    %2977 = vmatprep.subr.mxu0 0.0
    %2978 = vmatpush2.msra.mxu0 0.0
    %2979 = vmatprep.subr.mxu0 0.0
    %2980 = vmatpush2.msra.mxu0 0.0
    %2981 = vmatprep.subr.mxu0 0.0
    %2982 = vmatpush2.msra.mxu0 0.0
    %2983 = vmatprep.subr.mxu0 0.0
    %2984 = vmatpush2.msra.mxu0 0.0
    %2985 = vmatprep.subr.mxu0 0.0
    %2986 = vmatpush2.msra.mxu0 0.0
    %2987 = vmatprep.subr.mxu0 0.0
    %2988 = vmatpush2.msra.mxu0 0.0
    %2989 = vmatprep.mubr.f32.mxu0 0.0
    %2990 = vmatmul.mubr.f32.gmra.mxu0 %v2923
    %v2991 = vpop.f32.mrf.mxu0
    %v2992 = vadd.f32 0.0, %v2991
    %v2993 = vpop.f32.mrf.mxu0
    %v2994 = vadd.f32 0.0, %v2993
    %2995 = vdwg.mxu0
    %v2997 = vrot.slane %v2992, 6
    %v2999 = vadd.f32 %v2758, %v2997
    %v3001 = vrot.slane %v2994, 4
    %v3003 = vadd.f32 %v2766, %v3001
    %v3004 = vxor.u32 %v2999, 2147483648
    %v3005 = vmul.f32 %v3004, 1.442695
    %v3006 = vpow.pop %v3005
    %v3007 = vadd.f32 %v3006, 1.0
    %v3008 = vrcp.pop %v3007
    %v3009 = vmul.f32 1.0, %v3008
    %v3010 = vtanh.pop %v2999
    %v3012 = vrot.slane %v2878, 6
    %v3014 = vmul.f32 %v3009, %v3012
    %3016 = vrot.lane.b32.xlu0 %v3010, 64
    %v3017 = vpop.permute.xlu0 %3016
    %v3019 = vmul.f32 %v3009, %v3017
    %3021 = vrot.lane.b32.xlu0 %v3019, 32
    %v3022 = vpop.permute.xlu0 %3021
    %v3024 = vadd.f32 %v3014, %v3022
    %v3025 = vtanh.pop %v3024
    %3027 = vrot.lane.b32.xlu0 %v3025, 64
    %v3028 = vpop.permute.xlu0 %3027
    %v3030 = vmul.f32 %v3009, %v3028
    %v3031 = vxor.u32 %v3003, 2147483648
    %v3032 = vmul.f32 %v3031, 1.442695
    %v3033 = vpow.pop %v3032
    %v3034 = vadd.f32 %v3033, 1.0
    %v3035 = vrcp.pop %v3034
    %v3036 = vmul.f32 1.0, %v3035
    %v3037 = vtanh.pop %v3003
    %v3039 = vrot.slane %v2905, 2
    %v3041 = vmul.f32 %v3036, %v3039
    %3043 = vrot.lane.b32.xlu0 %v3037, 64
    %v3044 = vpop.permute.xlu0 %3043
    %v3046 = vmul.f32 %v3036, %v3044
    %3048 = vrot.lane.b32.xlu0 %v3046, 32
    %v3049 = vpop.permute.xlu0 %3048
    %v3051 = vadd.f32 %v3041, %v3049
    %v3052 = vtanh.pop %v3051
    %3054 = vrot.lane.b32.xlu0 %v3052, 64
    %v3055 = vpop.permute.xlu0 %3054
    %v3057 = vmul.f32 %v3036, %v3055
    %3059 = vrot.lane.b32.xlu0 %v3030, 32
    %v3060 = vpop.permute.xlu0 %3059
    %v3063 = vrot.slane %v3057, 2
    %3064 = vrot.lane.b32.xlu0 %v3063, 64
    %v3065 = vpop.permute.xlu0 %3064
    %v3067 = vsel %vm329, %v3060, %v3065
    %v3069 = vrot.slane %v3067, 2
    %v3070 = vsel %vm192, %v3069, 0
    %3072 = vmatprep.subr.mxu0 0.0
    %3073 = vmatpush1.msra.mxu0 0.0
    %3074 = vmatprep.subr.mxu0 0.0
    %3075 = vmatpush1.msra.mxu0 0.0
    %3076 = vmatprep.subr.mxu0 0.0
    %3077 = vmatpush1.msra.mxu0 0.0
    %3078 = vmatprep.subr.mxu0 0.0
    %3079 = vmatpush1.msra.mxu0 0.0
    %3080 = vmatprep.subr.mxu0 0.0
    %3081 = vmatpush1.msra.mxu0 0.0
    %3082 = vmatprep.subr.mxu0 0.0
    %3083 = vmatpush1.msra.mxu0 0.0
    %3084 = vmatprep.subr.mxu0 0.0
    %3085 = vmatpush1.msra.mxu0 0.0
    %3086 = vmatprep.subr.mxu0 0.0
    %3087 = vmatpush1.msra.mxu0 0.0
    %3088 = vmatprep.subr.mxu0 %v2666
    %3089 = vmatpush1.msra.mxu0 %v2665
    %3090 = vmatprep.subr.mxu0 %v2664
    %3091 = vmatpush1.msra.mxu0 %v2663
    %3092 = vmatprep.subr.mxu0 %v2662
    %3093 = vmatpush1.msra.mxu0 %v2661
    %3094 = vmatprep.subr.mxu0 %v2660
    %3095 = vmatpush1.msra.mxu0 %v2659
    %3096 = vmatprep.subr.mxu0 %v2658
    %3097 = vmatpush1.msra.mxu0 %v2657
    %3098 = vmatprep.subr.mxu0 %v2656
    %3099 = vmatpush1.msra.mxu0 %v2655
    %3100 = vmatprep.subr.mxu0 %v2654
    %3101 = vmatpush1.msra.mxu0 %v2653
    %3102 = vmatprep.subr.mxu0 %v2652
    %3103 = vmatpush1.msra.mxu0 %v2651
    %3104 = vmatprep.subr.mxu0 0.0
    %3105 = vmatpush2.msra.mxu0 0.0
    %3106 = vmatprep.subr.mxu0 0.0
    %3107 = vmatpush2.msra.mxu0 0.0
    %3108 = vmatprep.subr.mxu0 0.0
    %3109 = vmatpush2.msra.mxu0 0.0
    %3110 = vmatprep.subr.mxu0 0.0
    %3111 = vmatpush2.msra.mxu0 0.0
    %3112 = vmatprep.subr.mxu0 0.0
    %3113 = vmatpush2.msra.mxu0 0.0
    %3114 = vmatprep.subr.mxu0 0.0
    %3115 = vmatpush2.msra.mxu0 0.0
    %3116 = vmatprep.subr.mxu0 0.0
    %3117 = vmatpush2.msra.mxu0 0.0
    %3118 = vmatprep.subr.mxu0 0.0
    %3119 = vmatpush2.msra.mxu0 0.0
    %3120 = vmatprep.subr.mxu0 0.0
    %3121 = vmatpush2.msra.mxu0 0.0
    %3122 = vmatprep.subr.mxu0 0.0
    %3123 = vmatpush2.msra.mxu0 0.0
    %3124 = vmatprep.subr.mxu0 0.0
    %3125 = vmatpush2.msra.mxu0 0.0
    %3126 = vmatprep.subr.mxu0 0.0
    %3127 = vmatpush2.msra.mxu0 0.0
    %3128 = vmatprep.subr.mxu0 0.0
    %3129 = vmatpush2.msra.mxu0 0.0
    %3130 = vmatprep.subr.mxu0 0.0
    %3131 = vmatpush2.msra.mxu0 0.0
    %3132 = vmatprep.subr.mxu0 0.0
    %3133 = vmatpush2.msra.mxu0 0.0
    %3134 = vmatprep.subr.mxu0 0.0
    %3135 = vmatpush2.msra.mxu0 0.0
    %3136 = vmatprep.mubr.f32.mxu0 0.0
    %3137 = vmatmul.mubr.f32.gmra.mxu0 %v3070
    %v3138 = vpop.f32.mrf.mxu0
    %v3139 = vadd.f32 0.0, %v3138
    %v3140 = vpop.f32.mrf.mxu0
    %v3141 = vadd.f32 0.0, %v3140
    %3142 = vdwg.mxu0
    %v3144 = vrot.slane %v3139, 4
    %v3146 = vadd.f32 %v2758, %v3144
    %v3148 = vrot.slane %v3141, 6
    %v3150 = vadd.f32 %v2766, %v3148
    %v3151 = vxor.u32 %v3146, 2147483648
    %v3152 = vmul.f32 %v3151, 1.442695
    %v3153 = vpow.pop %v3152
    %v3154 = vadd.f32 %v3153, 1.0
    %v3155 = vrcp.pop %v3154
    %v3156 = vmul.f32 1.0, %v3155
    %v3157 = vtanh.pop %v3146
    %v3159 = vrot.slane %v3024, 6
    %v3161 = vmul.f32 %v3156, %v3159
    %3163 = vrot.lane.b32.xlu0 %v3157, 64
    %v3164 = vpop.permute.xlu0 %3163
    %v3166 = vmul.f32 %v3156, %v3164
    %3168 = vrot.lane.b32.xlu0 %v3166, 32
    %v3169 = vpop.permute.xlu0 %3168
    %v3171 = vadd.f32 %v3161, %v3169
    %v3172 = vtanh.pop %v3171
    %3174 = vrot.lane.b32.xlu0 %v3172, 64
    %v3175 = vpop.permute.xlu0 %3174
    %v3177 = vmul.f32 %v3156, %v3175
    %v3178 = vxor.u32 %v3150, 2147483648
    %v3179 = vmul.f32 %v3178, 1.442695
    %v3180 = vpow.pop %v3179
    %v3181 = vadd.f32 %v3180, 1.0
    %v3182 = vrcp.pop %v3181
    %v3183 = vmul.f32 1.0, %v3182
    %v3184 = vtanh.pop %v3150
    %v3186 = vrot.slane %v3051, 2
    %v3188 = vmul.f32 %v3183, %v3186
    %3190 = vrot.lane.b32.xlu0 %v3184, 64
    %v3191 = vpop.permute.xlu0 %3190
    %v3193 = vmul.f32 %v3183, %v3191
    %3195 = vrot.lane.b32.xlu0 %v3193, 32
    %v3196 = vpop.permute.xlu0 %3195
    %v3198 = vadd.f32 %v3188, %v3196
    %v3199 = vtanh.pop %v3198
    %3201 = vrot.lane.b32.xlu0 %v3199, 64
    %v3202 = vpop.permute.xlu0 %3201
    %v3204 = vmul.f32 %v3183, %v3202
    %3206 = vrot.lane.b32.xlu0 %v3177, 32
    %v3207 = vpop.permute.xlu0 %3206
    %v3210 = vrot.slane %v3204, 6
    %3211 = vrot.lane.b32.xlu0 %v3210, 64
    %v3212 = vpop.permute.xlu0 %3211
    %v3214 = vsel %vm329, %v3207, %v3212
    %v3216 = vrot.slane %v3214, 4
    %v3217 = vsel %vm192, %v3216, 0
    %3219 = vmatprep.subr.mxu0 0.0
    %3220 = vmatpush1.msra.mxu0 0.0
    %3221 = vmatprep.subr.mxu0 0.0
    %3222 = vmatpush1.msra.mxu0 0.0
    %3223 = vmatprep.subr.mxu0 0.0
    %3224 = vmatpush1.msra.mxu0 0.0
    %3225 = vmatprep.subr.mxu0 0.0
    %3226 = vmatpush1.msra.mxu0 0.0
    %3227 = vmatprep.subr.mxu0 0.0
    %3228 = vmatpush1.msra.mxu0 0.0
    %3229 = vmatprep.subr.mxu0 0.0
    %3230 = vmatpush1.msra.mxu0 0.0
    %3231 = vmatprep.subr.mxu0 0.0
    %3232 = vmatpush1.msra.mxu0 0.0
    %3233 = vmatprep.subr.mxu0 0.0
    %3234 = vmatpush1.msra.mxu0 0.0
    %3235 = vmatprep.subr.mxu0 %v2666
    %3236 = vmatpush1.msra.mxu0 %v2665
    %3237 = vmatprep.subr.mxu0 %v2664
    %3238 = vmatpush1.msra.mxu0 %v2663
    %3239 = vmatprep.subr.mxu0 %v2662
    %3240 = vmatpush1.msra.mxu0 %v2661
    %3241 = vmatprep.subr.mxu0 %v2660
    %3242 = vmatpush1.msra.mxu0 %v2659
    %3243 = vmatprep.subr.mxu0 %v2658
    %3244 = vmatpush1.msra.mxu0 %v2657
    %3245 = vmatprep.subr.mxu0 %v2656
    %3246 = vmatpush1.msra.mxu0 %v2655
    %3247 = vmatprep.subr.mxu0 %v2654
    %3248 = vmatpush1.msra.mxu0 %v2653
    %3249 = vmatprep.subr.mxu0 %v2652
    %3250 = vmatpush1.msra.mxu0 %v2651
    %3251 = vmatprep.subr.mxu0 0.0
    %3252 = vmatpush2.msra.mxu0 0.0
    %3253 = vmatprep.subr.mxu0 0.0
    %3254 = vmatpush2.msra.mxu0 0.0
    %3255 = vmatprep.subr.mxu0 0.0
    %3256 = vmatpush2.msra.mxu0 0.0
    %3257 = vmatprep.subr.mxu0 0.0
    %3258 = vmatpush2.msra.mxu0 0.0
    %3259 = vmatprep.subr.mxu0 0.0
    %3260 = vmatpush2.msra.mxu0 0.0
    %3261 = vmatprep.subr.mxu0 0.0
    %3262 = vmatpush2.msra.mxu0 0.0
    %3263 = vmatprep.subr.mxu0 0.0
    %3264 = vmatpush2.msra.mxu0 0.0
    %3265 = vmatprep.subr.mxu0 0.0
    %3266 = vmatpush2.msra.mxu0 0.0
    %3267 = vmatprep.subr.mxu0 0.0
    %3268 = vmatpush2.msra.mxu0 0.0
    %3269 = vmatprep.subr.mxu0 0.0
    %3270 = vmatpush2.msra.mxu0 0.0
    %3271 = vmatprep.subr.mxu0 0.0
    %3272 = vmatpush2.msra.mxu0 0.0
    %3273 = vmatprep.subr.mxu0 0.0
    %3274 = vmatpush2.msra.mxu0 0.0
    %3275 = vmatprep.subr.mxu0 0.0
    %3276 = vmatpush2.msra.mxu0 0.0
    %3277 = vmatprep.subr.mxu0 0.0
    %3278 = vmatpush2.msra.mxu0 0.0
    %3279 = vmatprep.subr.mxu0 0.0
    %3280 = vmatpush2.msra.mxu0 0.0
    %3281 = vmatprep.subr.mxu0 0.0
    %3282 = vmatpush2.msra.mxu0 0.0
    %3283 = vmatprep.mubr.f32.mxu0 0.0
    %3284 = vmatmul.mubr.f32.gmra.mxu0 %v3217
    %v3285 = vpop.f32.mrf.mxu0
    %v3286 = vadd.f32 0.0, %v3285
    %v3287 = vpop.f32.mrf.mxu0
    %v3288 = vadd.f32 0.0, %v3287
    %3289 = vdwg.mxu0
    %v3291 = vrot.slane %v3286, 2
    %v3293 = vadd.f32 %v2758, %v3291
    %v3294 = vadd.f32 %v2766, %v3288
    %v3295 = vxor.u32 %v3293, 2147483648
    %v3296 = vmul.f32 %v3295, 1.442695
    %v3297 = vpow.pop %v3296
    %v3298 = vadd.f32 %v3297, 1.0
    %v3299 = vrcp.pop %v3298
    %v3300 = vmul.f32 1.0, %v3299
    %v3301 = vtanh.pop %v3293
    %v3303 = vrot.slane %v3171, 6
    %v3305 = vmul.f32 %v3300, %v3303
    %3307 = vrot.lane.b32.xlu0 %v3301, 64
    %v3308 = vpop.permute.xlu0 %3307
    %v3310 = vmul.f32 %v3300, %v3308
    %3312 = vrot.lane.b32.xlu0 %v3310, 32
    %v3313 = vpop.permute.xlu0 %3312
    %v3315 = vadd.f32 %v3305, %v3313
    %v3316 = vtanh.pop %v3315
    %3318 = vrot.lane.b32.xlu0 %v3316, 64
    %v3319 = vpop.permute.xlu0 %3318
    %v3321 = vmul.f32 %v3300, %v3319
    %v3322 = vxor.u32 %v3294, 2147483648
    %v3323 = vmul.f32 %v3322, 1.442695
    %v3324 = vpow.pop %v3323
    %v3325 = vadd.f32 %v3324, 1.0
    %v3326 = vrcp.pop %v3325
    %v3327 = vmul.f32 1.0, %v3326
    %v3328 = vtanh.pop %v3294
    %v3330 = vrot.slane %v3198, 2
    %v3332 = vmul.f32 %v3327, %v3330
    %3334 = vrot.lane.b32.xlu0 %v3328, 64
    %v3335 = vpop.permute.xlu0 %3334
    %v3337 = vmul.f32 %v3327, %v3335
    %3339 = vrot.lane.b32.xlu0 %v3337, 32
    %v3340 = vpop.permute.xlu0 %3339
    %v3342 = vadd.f32 %v3332, %v3340
    %v3343 = vtanh.pop %v3342
    %3345 = vrot.lane.b32.xlu0 %v3343, 64
    %v3346 = vpop.permute.xlu0 %3345
    %v3348 = vmul.f32 %v3327, %v3346
    %3350 = vrot.lane.b32.xlu0 %v3321, 32
    %v3351 = vpop.permute.xlu0 %3350
    %v3354 = vrot.slane %v3348, 2
    %3355 = vrot.lane.b32.xlu0 %v3354, 64
    %v3356 = vpop.permute.xlu0 %3355
    %v3358 = vsel %vm329, %v3351, %v3356
    %v3360 = vrot.slane %v3358, 6
    %v3361 = vsel %vm192, %v3360, 0
    %3363 = vmatprep.subr.mxu0 0.0
    %3364 = vmatpush1.msra.mxu0 0.0
    %3365 = vmatprep.subr.mxu0 0.0
    %3366 = vmatpush1.msra.mxu0 0.0
    %3367 = vmatprep.subr.mxu0 0.0
    %3368 = vmatpush1.msra.mxu0 0.0
    %3369 = vmatprep.subr.mxu0 0.0
    %3370 = vmatpush1.msra.mxu0 0.0
    %3371 = vmatprep.subr.mxu0 0.0
    %3372 = vmatpush1.msra.mxu0 0.0
    %3373 = vmatprep.subr.mxu0 0.0
    %3374 = vmatpush1.msra.mxu0 0.0
    %3375 = vmatprep.subr.mxu0 0.0
    %3376 = vmatpush1.msra.mxu0 0.0
    %3377 = vmatprep.subr.mxu0 0.0
    %3378 = vmatpush1.msra.mxu0 0.0
    %3379 = vmatprep.subr.mxu0 %v2666
    %3380 = vmatpush1.msra.mxu0 %v2665
    %3381 = vmatprep.subr.mxu0 %v2664
    %3382 = vmatpush1.msra.mxu0 %v2663
    %3383 = vmatprep.subr.mxu0 %v2662
    %3384 = vmatpush1.msra.mxu0 %v2661
    %3385 = vmatprep.subr.mxu0 %v2660
    %3386 = vmatpush1.msra.mxu0 %v2659
    %3387 = vmatprep.subr.mxu0 %v2658
    %3388 = vmatpush1.msra.mxu0 %v2657
    %3389 = vmatprep.subr.mxu0 %v2656
    %3390 = vmatpush1.msra.mxu0 %v2655
    %3391 = vmatprep.subr.mxu0 %v2654
    %3392 = vmatpush1.msra.mxu0 %v2653
    %3393 = vmatprep.subr.mxu0 %v2652
    %3394 = vmatpush1.msra.mxu0 %v2651
    %3395 = vmatprep.subr.mxu0 0.0
    %3396 = vmatpush2.msra.mxu0 0.0
    %3397 = vmatprep.subr.mxu0 0.0
    %3398 = vmatpush2.msra.mxu0 0.0
    %3399 = vmatprep.subr.mxu0 0.0
    %3400 = vmatpush2.msra.mxu0 0.0
    %3401 = vmatprep.subr.mxu0 0.0
    %3402 = vmatpush2.msra.mxu0 0.0
    %3403 = vmatprep.subr.mxu0 0.0
    %3404 = vmatpush2.msra.mxu0 0.0
    %3405 = vmatprep.subr.mxu0 0.0
    %3406 = vmatpush2.msra.mxu0 0.0
    %3407 = vmatprep.subr.mxu0 0.0
    %3408 = vmatpush2.msra.mxu0 0.0
    %3409 = vmatprep.subr.mxu0 0.0
    %3410 = vmatpush2.msra.mxu0 0.0
    %3411 = vmatprep.subr.mxu0 0.0
    %3412 = vmatpush2.msra.mxu0 0.0
    %3413 = vmatprep.subr.mxu0 0.0
    %3414 = vmatpush2.msra.mxu0 0.0
    %3415 = vmatprep.subr.mxu0 0.0
    %3416 = vmatpush2.msra.mxu0 0.0
    %3417 = vmatprep.subr.mxu0 0.0
    %3418 = vmatpush2.msra.mxu0 0.0
    %3419 = vmatprep.subr.mxu0 0.0
    %3420 = vmatpush2.msra.mxu0 0.0
    %3421 = vmatprep.subr.mxu0 0.0
    %3422 = vmatpush2.msra.mxu0 0.0
    %3423 = vmatprep.subr.mxu0 0.0
    %3424 = vmatpush2.msra.mxu0 0.0
    %3425 = vmatprep.subr.mxu0 0.0
    %3426 = vmatpush2.msra.mxu0 0.0
    %3427 = vmatprep.mubr.f32.mxu0 0.0
    %3428 = vmatmul.mubr.f32.gmra.mxu0 %v3361
    %v3429 = vpop.f32.mrf.mxu0
    %v3430 = vadd.f32 0.0, %v3429
    %v3431 = vpop.f32.mrf.mxu0
    %v3432 = vadd.f32 0.0, %v3431
    %3433 = vdwg.mxu0
    %v3434 = vadd.f32 %v2764, %v3430
    %v3436 = vrot.slane %v3432, 2
    %v3438 = vadd.f32 %v2760, %v3436
    %v3439 = vxor.u32 %v3434, 2147483648
    %v3440 = vmul.f32 %v3439, 1.442695
    %v3441 = vpow.pop %v3440
    %v3442 = vadd.f32 %v3441, 1.0
    %v3443 = vrcp.pop %v3442
    %v3444 = vmul.f32 1.0, %v3443
    %v3445 = vtanh.pop %v3434
    %v3447 = vrot.slane %v3315, 6
    %v3449 = vmul.f32 %v3444, %v3447
    %3451 = vrot.lane.b32.xlu0 %v3445, 64
    %v3452 = vpop.permute.xlu0 %3451
    %v3454 = vmul.f32 %v3444, %v3452
    %3456 = vrot.lane.b32.xlu0 %v3454, 32
    %v3457 = vpop.permute.xlu0 %3456
    %v3459 = vadd.f32 %v3449, %v3457
    %v3460 = vtanh.pop %v3459
    %3462 = vrot.lane.b32.xlu0 %v3460, 64
    %v3463 = vpop.permute.xlu0 %3462
    %v3465 = vmul.f32 %v3444, %v3463
    %v3466 = vxor.u32 %v3438, 2147483648
    %v3467 = vmul.f32 %v3466, 1.442695
    %v3468 = vpow.pop %v3467
    %v3469 = vadd.f32 %v3468, 1.0
    %v3470 = vrcp.pop %v3469
    %v3471 = vmul.f32 1.0, %v3470
    %v3472 = vtanh.pop %v3438
    %v3474 = vrot.slane %v3342, 2
    %v3476 = vmul.f32 %v3471, %v3474
    %3478 = vrot.lane.b32.xlu0 %v3472, 64
    %v3479 = vpop.permute.xlu0 %3478
    %v3481 = vmul.f32 %v3471, %v3479
    %3483 = vrot.lane.b32.xlu0 %v3481, 32
    %v3484 = vpop.permute.xlu0 %3483
    %v3486 = vadd.f32 %v3476, %v3484
    %v3487 = vtanh.pop %v3486
    %3489 = vrot.lane.b32.xlu0 %v3487, 64
    %v3490 = vpop.permute.xlu0 %3489
    %v3492 = vmul.f32 %v3471, %v3490
    %3494 = vrot.lane.b32.xlu0 %v3465, 32
    %v3495 = vpop.permute.xlu0 %3494
    %v3498 = vrot.slane %v3492, 6
    %3499 = vrot.lane.b32.xlu0 %v3498, 64
    %v3500 = vpop.permute.xlu0 %3499
    %v3502 = vsel %vm329, %v3495, %v3500
    %v3504 = vsel %vm192, %v3502, 0
    %3506 = vmatprep.subr.mxu0 0.0
    %3507 = vmatpush1.msra.mxu0 0.0
    %3508 = vmatprep.subr.mxu0 0.0
    %3509 = vmatpush1.msra.mxu0 0.0
    %3510 = vmatprep.subr.mxu0 0.0
    %3511 = vmatpush1.msra.mxu0 0.0
    %3512 = vmatprep.subr.mxu0 0.0
    %3513 = vmatpush1.msra.mxu0 0.0
    %3514 = vmatprep.subr.mxu0 0.0
    %3515 = vmatpush1.msra.mxu0 0.0
    %3516 = vmatprep.subr.mxu0 0.0
    %3517 = vmatpush1.msra.mxu0 0.0
    %3518 = vmatprep.subr.mxu0 0.0
    %3519 = vmatpush1.msra.mxu0 0.0
    %3520 = vmatprep.subr.mxu0 0.0
    %3521 = vmatpush1.msra.mxu0 0.0
    %3522 = vmatprep.subr.mxu0 %v2666
    %3523 = vmatpush1.msra.mxu0 %v2665
    %3524 = vmatprep.subr.mxu0 %v2664
    %3525 = vmatpush1.msra.mxu0 %v2663
    %3526 = vmatprep.subr.mxu0 %v2662
    %3527 = vmatpush1.msra.mxu0 %v2661
    %3528 = vmatprep.subr.mxu0 %v2660
    %3529 = vmatpush1.msra.mxu0 %v2659
    %3530 = vmatprep.subr.mxu0 %v2658
    %3531 = vmatpush1.msra.mxu0 %v2657
    %3532 = vmatprep.subr.mxu0 %v2656
    %3533 = vmatpush1.msra.mxu0 %v2655
    %3534 = vmatprep.subr.mxu0 %v2654
    %3535 = vmatpush1.msra.mxu0 %v2653
    %3536 = vmatprep.subr.mxu0 %v2652
    %3537 = vmatpush1.msra.mxu0 %v2651
    %3538 = vmatprep.subr.mxu0 0.0
    %3539 = vmatpush2.msra.mxu0 0.0
    %3540 = vmatprep.subr.mxu0 0.0
    %3541 = vmatpush2.msra.mxu0 0.0
    %3542 = vmatprep.subr.mxu0 0.0
    %3543 = vmatpush2.msra.mxu0 0.0
    %3544 = vmatprep.subr.mxu0 0.0
    %3545 = vmatpush2.msra.mxu0 0.0
    %3546 = vmatprep.subr.mxu0 0.0
    %3547 = vmatpush2.msra.mxu0 0.0
    %3548 = vmatprep.subr.mxu0 0.0
    %3549 = vmatpush2.msra.mxu0 0.0
    %3550 = vmatprep.subr.mxu0 0.0
    %3551 = vmatpush2.msra.mxu0 0.0
    %3552 = vmatprep.subr.mxu0 0.0
    %3553 = vmatpush2.msra.mxu0 0.0
    %3554 = vmatprep.subr.mxu0 0.0
    %3555 = vmatpush2.msra.mxu0 0.0
    %3556 = vmatprep.subr.mxu0 0.0
    %3557 = vmatpush2.msra.mxu0 0.0
    %3558 = vmatprep.subr.mxu0 0.0
    %3559 = vmatpush2.msra.mxu0 0.0
    %3560 = vmatprep.subr.mxu0 0.0
    %3561 = vmatpush2.msra.mxu0 0.0
    %3562 = vmatprep.subr.mxu0 0.0
    %3563 = vmatpush2.msra.mxu0 0.0
    %3564 = vmatprep.subr.mxu0 0.0
    %3565 = vmatpush2.msra.mxu0 0.0
    %3566 = vmatprep.subr.mxu0 0.0
    %3567 = vmatpush2.msra.mxu0 0.0
    %3568 = vmatprep.subr.mxu0 0.0
    %3569 = vmatpush2.msra.mxu0 0.0
    %3570 = vmatprep.mubr.f32.mxu0 0.0
    %3571 = vmatmul.mubr.f32.gmra.mxu0 %v3504
    %v3572 = vpop.f32.mrf.mxu0
    %v3573 = vadd.f32 0.0, %v3572
    %v3574 = vpop.f32.mrf.mxu0
    %v3575 = vadd.f32 0.0, %v3574
    %3576 = vdwg.mxu0
    %v3578 = vrot.slane %v3573, 6
    %v3580 = vadd.f32 %v2764, %v3578
    %v3582 = vrot.slane %v3575, 4
    %v3584 = vadd.f32 %v2760, %v3582
    %v3585 = vxor.u32 %v3580, 2147483648
    %v3586 = vmul.f32 %v3585, 1.442695
    %v3587 = vpow.pop %v3586
    %v3588 = vadd.f32 %v3587, 1.0
    %v3589 = vrcp.pop %v3588
    %v3590 = vmul.f32 1.0, %v3589
    %v3591 = vtanh.pop %v3580
    %v3593 = vrot.slane %v3459, 6
    %v3595 = vmul.f32 %v3590, %v3593
    %3597 = vrot.lane.b32.xlu0 %v3591, 64
    %v3598 = vpop.permute.xlu0 %3597
    %v3600 = vmul.f32 %v3590, %v3598
    %3602 = vrot.lane.b32.xlu0 %v3600, 32
    %v3603 = vpop.permute.xlu0 %3602
    %v3605 = vadd.f32 %v3595, %v3603
    %v3606 = vtanh.pop %v3605
    %3608 = vrot.lane.b32.xlu0 %v3606, 64
    %v3609 = vpop.permute.xlu0 %3608
    %v3611 = vmul.f32 %v3590, %v3609
    %v3612 = vxor.u32 %v3584, 2147483648
    %v3613 = vmul.f32 %v3612, 1.442695
    %v3614 = vpow.pop %v3613
    %v3615 = vadd.f32 %v3614, 1.0
    %v3616 = vrcp.pop %v3615
    %v3617 = vmul.f32 1.0, %v3616
    %v3618 = vtanh.pop %v3584
    %v3620 = vrot.slane %v3486, 2
    %v3622 = vmul.f32 %v3617, %v3620
    %3624 = vrot.lane.b32.xlu0 %v3618, 64
    %v3625 = vpop.permute.xlu0 %3624
    %v3627 = vmul.f32 %v3617, %v3625
    %3629 = vrot.lane.b32.xlu0 %v3627, 32
    %v3630 = vpop.permute.xlu0 %3629
    %v3632 = vadd.f32 %v3622, %v3630
    %v3633 = vtanh.pop %v3632
    %3635 = vrot.lane.b32.xlu0 %v3633, 64
    %v3636 = vpop.permute.xlu0 %3635
    %v3638 = vmul.f32 %v3617, %v3636
    %3640 = vrot.lane.b32.xlu0 %v3611, 32
    %v3641 = vpop.permute.xlu0 %3640
    %v3644 = vrot.slane %v3638, 2
    %3645 = vrot.lane.b32.xlu0 %v3644, 64
    %v3646 = vpop.permute.xlu0 %3645
    %v3648 = vsel %vm329, %v3641, %v3646
    %v3650 = vrot.slane %v3648, 2
    %v3651 = vsel %vm192, %v3650, 0
    %3653 = vmatprep.subr.mxu0 0.0
    %3654 = vmatpush1.msra.mxu0 0.0
    %3655 = vmatprep.subr.mxu0 0.0
    %3656 = vmatpush1.msra.mxu0 0.0
    %3657 = vmatprep.subr.mxu0 0.0
    %3658 = vmatpush1.msra.mxu0 0.0
    %3659 = vmatprep.subr.mxu0 0.0
    %3660 = vmatpush1.msra.mxu0 0.0
    %3661 = vmatprep.subr.mxu0 0.0
    %3662 = vmatpush1.msra.mxu0 0.0
    %3663 = vmatprep.subr.mxu0 0.0
    %3664 = vmatpush1.msra.mxu0 0.0
    %3665 = vmatprep.subr.mxu0 0.0
    %3666 = vmatpush1.msra.mxu0 0.0
    %3667 = vmatprep.subr.mxu0 0.0
    %3668 = vmatpush1.msra.mxu0 0.0
    %3669 = vmatprep.subr.mxu0 %v2666
    %3670 = vmatpush1.msra.mxu0 %v2665
    %3671 = vmatprep.subr.mxu0 %v2664
    %3672 = vmatpush1.msra.mxu0 %v2663
    %3673 = vmatprep.subr.mxu0 %v2662
    %3674 = vmatpush1.msra.mxu0 %v2661
    %3675 = vmatprep.subr.mxu0 %v2660
    %3676 = vmatpush1.msra.mxu0 %v2659
    %3677 = vmatprep.subr.mxu0 %v2658
    %3678 = vmatpush1.msra.mxu0 %v2657
    %3679 = vmatprep.subr.mxu0 %v2656
    %3680 = vmatpush1.msra.mxu0 %v2655
    %3681 = vmatprep.subr.mxu0 %v2654
    %3682 = vmatpush1.msra.mxu0 %v2653
    %3683 = vmatprep.subr.mxu0 %v2652
    %3684 = vmatpush1.msra.mxu0 %v2651
    %3685 = vmatprep.subr.mxu0 0.0
    %3686 = vmatpush2.msra.mxu0 0.0
    %3687 = vmatprep.subr.mxu0 0.0
    %3688 = vmatpush2.msra.mxu0 0.0
    %3689 = vmatprep.subr.mxu0 0.0
    %3690 = vmatpush2.msra.mxu0 0.0
    %3691 = vmatprep.subr.mxu0 0.0
    %3692 = vmatpush2.msra.mxu0 0.0
    %3693 = vmatprep.subr.mxu0 0.0
    %3694 = vmatpush2.msra.mxu0 0.0
    %3695 = vmatprep.subr.mxu0 0.0
    %3696 = vmatpush2.msra.mxu0 0.0
    %3697 = vmatprep.subr.mxu0 0.0
    %3698 = vmatpush2.msra.mxu0 0.0
    %3699 = vmatprep.subr.mxu0 0.0
    %3700 = vmatpush2.msra.mxu0 0.0
    %3701 = vmatprep.subr.mxu0 0.0
    %3702 = vmatpush2.msra.mxu0 0.0
    %3703 = vmatprep.subr.mxu0 0.0
    %3704 = vmatpush2.msra.mxu0 0.0
    %3705 = vmatprep.subr.mxu0 0.0
    %3706 = vmatpush2.msra.mxu0 0.0
    %3707 = vmatprep.subr.mxu0 0.0
    %3708 = vmatpush2.msra.mxu0 0.0
    %3709 = vmatprep.subr.mxu0 0.0
    %3710 = vmatpush2.msra.mxu0 0.0
    %3711 = vmatprep.subr.mxu0 0.0
    %3712 = vmatpush2.msra.mxu0 0.0
    %3713 = vmatprep.subr.mxu0 0.0
    %3714 = vmatpush2.msra.mxu0 0.0
    %3715 = vmatprep.subr.mxu0 0.0
    %3716 = vmatpush2.msra.mxu0 0.0
    %3717 = vmatprep.mubr.f32.mxu0 0.0
    %3718 = vmatmul.mubr.f32.gmra.mxu0 %v3651
    %v3719 = vpop.f32.mrf.mxu0
    %v3720 = vadd.f32 0.0, %v3719
    %v3721 = vpop.f32.mrf.mxu0
    %v3722 = vadd.f32 0.0, %v3721
    %3723 = vdwg.mxu0
    %v3725 = vrot.slane %v3720, 4
    %v3727 = vadd.f32 %v2764, %v3725
    %v3729 = vrot.slane %v3722, 6
    %v3731 = vadd.f32 %v2760, %v3729
    %v3732 = vxor.u32 %v3727, 2147483648
    %v3733 = vmul.f32 %v3732, 1.442695
    %v3734 = vpow.pop %v3733
    %v3735 = vadd.f32 %v3734, 1.0
    %v3736 = vrcp.pop %v3735
    %v3737 = vmul.f32 1.0, %v3736
    %v3738 = vtanh.pop %v3727
    %v3740 = vrot.slane %v3605, 6
    %v3742 = vmul.f32 %v3737, %v3740
    %3744 = vrot.lane.b32.xlu0 %v3738, 64
    %v3745 = vpop.permute.xlu0 %3744
    %v3747 = vmul.f32 %v3737, %v3745
    %3749 = vrot.lane.b32.xlu0 %v3747, 32
    %v3750 = vpop.permute.xlu0 %3749
    %v3752 = vadd.f32 %v3742, %v3750
    %v3753 = vtanh.pop %v3752
    %3755 = vrot.lane.b32.xlu0 %v3753, 64
    %v3756 = vpop.permute.xlu0 %3755
    %v3758 = vmul.f32 %v3737, %v3756
    %v3759 = vxor.u32 %v3731, 2147483648
    %v3760 = vmul.f32 %v3759, 1.442695
    %v3761 = vpow.pop %v3760
    %v3762 = vadd.f32 %v3761, 1.0
    %v3763 = vrcp.pop %v3762
    %v3764 = vmul.f32 1.0, %v3763
    %v3765 = vtanh.pop %v3731
    %v3767 = vrot.slane %v3632, 2
    %v3769 = vmul.f32 %v3764, %v3767
    %3771 = vrot.lane.b32.xlu0 %v3765, 64
    %v3772 = vpop.permute.xlu0 %3771
    %v3774 = vmul.f32 %v3764, %v3772
    %3776 = vrot.lane.b32.xlu0 %v3774, 32
    %v3777 = vpop.permute.xlu0 %3776
    %v3779 = vadd.f32 %v3769, %v3777
    %v3780 = vtanh.pop %v3779
    %3782 = vrot.lane.b32.xlu0 %v3780, 64
    %v3783 = vpop.permute.xlu0 %3782
    %v3785 = vmul.f32 %v3764, %v3783
    %3787 = vrot.lane.b32.xlu0 %v3758, 32
    %v3788 = vpop.permute.xlu0 %3787
    %v3791 = vrot.slane %v3785, 6
    %3792 = vrot.lane.b32.xlu0 %v3791, 64
    %v3793 = vpop.permute.xlu0 %3792
    %v3795 = vsel %vm329, %v3788, %v3793
    %v3797 = vrot.slane %v3795, 4
    %v3798 = vsel %vm192, %v3797, 0
    %3800 = vmatprep.subr.mxu0 0.0
    %3801 = vmatpush1.msra.mxu0 0.0
    %3802 = vmatprep.subr.mxu0 0.0
    %3803 = vmatpush1.msra.mxu0 0.0
    %3804 = vmatprep.subr.mxu0 0.0
    %3805 = vmatpush1.msra.mxu0 0.0
    %3806 = vmatprep.subr.mxu0 0.0
    %3807 = vmatpush1.msra.mxu0 0.0
    %3808 = vmatprep.subr.mxu0 0.0
    %3809 = vmatpush1.msra.mxu0 0.0
    %3810 = vmatprep.subr.mxu0 0.0
    %3811 = vmatpush1.msra.mxu0 0.0
    %3812 = vmatprep.subr.mxu0 0.0
    %3813 = vmatpush1.msra.mxu0 0.0
    %3814 = vmatprep.subr.mxu0 0.0
    %3815 = vmatpush1.msra.mxu0 0.0
    %3816 = vmatprep.subr.mxu0 %v2666
    %3817 = vmatpush1.msra.mxu0 %v2665
    %3818 = vmatprep.subr.mxu0 %v2664
    %3819 = vmatpush1.msra.mxu0 %v2663
    %3820 = vmatprep.subr.mxu0 %v2662
    %3821 = vmatpush1.msra.mxu0 %v2661
    %3822 = vmatprep.subr.mxu0 %v2660
    %3823 = vmatpush1.msra.mxu0 %v2659
    %3824 = vmatprep.subr.mxu0 %v2658
    %3825 = vmatpush1.msra.mxu0 %v2657
    %3826 = vmatprep.subr.mxu0 %v2656
    %3827 = vmatpush1.msra.mxu0 %v2655
    %3828 = vmatprep.subr.mxu0 %v2654
    %3829 = vmatpush1.msra.mxu0 %v2653
    %3830 = vmatprep.subr.mxu0 %v2652
    %3831 = vmatpush1.msra.mxu0 %v2651
    %3832 = vmatprep.subr.mxu0 0.0
    %3833 = vmatpush2.msra.mxu0 0.0
    %3834 = vmatprep.subr.mxu0 0.0
    %3835 = vmatpush2.msra.mxu0 0.0
    %3836 = vmatprep.subr.mxu0 0.0
    %3837 = vmatpush2.msra.mxu0 0.0
    %3838 = vmatprep.subr.mxu0 0.0
    %3839 = vmatpush2.msra.mxu0 0.0
    %3840 = vmatprep.subr.mxu0 0.0
    %3841 = vmatpush2.msra.mxu0 0.0
    %3842 = vmatprep.subr.mxu0 0.0
    %3843 = vmatpush2.msra.mxu0 0.0
    %3844 = vmatprep.subr.mxu0 0.0
    %3845 = vmatpush2.msra.mxu0 0.0
    %3846 = vmatprep.subr.mxu0 0.0
    %3847 = vmatpush2.msra.mxu0 0.0
    %3848 = vmatprep.subr.mxu0 0.0
    %3849 = vmatpush2.msra.mxu0 0.0
    %3850 = vmatprep.subr.mxu0 0.0
    %3851 = vmatpush2.msra.mxu0 0.0
    %3852 = vmatprep.subr.mxu0 0.0
    %3853 = vmatpush2.msra.mxu0 0.0
    %3854 = vmatprep.subr.mxu0 0.0
    %3855 = vmatpush2.msra.mxu0 0.0
    %3856 = vmatprep.subr.mxu0 0.0
    %3857 = vmatpush2.msra.mxu0 0.0
    %3858 = vmatprep.subr.mxu0 0.0
    %3859 = vmatpush2.msra.mxu0 0.0
    %3860 = vmatprep.subr.mxu0 0.0
    %3861 = vmatpush2.msra.mxu0 0.0
    %3862 = vmatprep.subr.mxu0 0.0
    %3863 = vmatpush2.msra.mxu0 0.0
    %3864 = vmatprep.mubr.f32.mxu0 0.0
    %3865 = vmatmul.mubr.f32.gmra.mxu0 %v3798
    %v3866 = vpop.f32.mrf.mxu0
    %v3867 = vadd.f32 0.0, %v3866
    %v3868 = vpop.f32.mrf.mxu0
    %v3869 = vadd.f32 0.0, %v3868
    %3870 = vdwg.mxu0
    %v3872 = vrot.slane %v3867, 2
    %v3874 = vadd.f32 %v2764, %v3872
    %v3875 = vadd.f32 %v2760, %v3869
    %v3876 = vxor.u32 %v3874, 2147483648
    %v3877 = vmul.f32 %v3876, 1.442695
    %v3878 = vpow.pop %v3877
    %v3879 = vadd.f32 %v3878, 1.0
    %v3880 = vrcp.pop %v3879
    %v3881 = vmul.f32 1.0, %v3880
    %v3882 = vtanh.pop %v3874
    %v3884 = vrot.slane %v3752, 6
    %v3886 = vmul.f32 %v3881, %v3884
    %3888 = vrot.lane.b32.xlu0 %v3882, 64
    %v3889 = vpop.permute.xlu0 %3888
    %v3891 = vmul.f32 %v3881, %v3889
    %3893 = vrot.lane.b32.xlu0 %v3891, 32
    %v3894 = vpop.permute.xlu0 %3893
    %v3896 = vadd.f32 %v3886, %v3894
    %v3897 = vtanh.pop %v3896
    %3899 = vrot.lane.b32.xlu0 %v3897, 64
    %v3900 = vpop.permute.xlu0 %3899
    %v3902 = vmul.f32 %v3881, %v3900
    %v3903 = vxor.u32 %v3875, 2147483648
    %v3904 = vmul.f32 %v3903, 1.442695
    %v3905 = vpow.pop %v3904
    %v3906 = vadd.f32 %v3905, 1.0
    %v3907 = vrcp.pop %v3906
    %v3908 = vmul.f32 1.0, %v3907
    %v3909 = vtanh.pop %v3875
    %v3911 = vrot.slane %v3779, 2
    %v3913 = vmul.f32 %v3908, %v3911
    %3915 = vrot.lane.b32.xlu0 %v3909, 64
    %v3916 = vpop.permute.xlu0 %3915
    %v3918 = vmul.f32 %v3908, %v3916
    %3920 = vrot.lane.b32.xlu0 %v3918, 32
    %v3921 = vpop.permute.xlu0 %3920
    %v3923 = vadd.f32 %v3913, %v3921
    %v3924 = vtanh.pop %v3923
    %3926 = vrot.lane.b32.xlu0 %v3924, 64
    %v3927 = vpop.permute.xlu0 %3926
    %v3929 = vmul.f32 %v3908, %v3927
    %v3930 = vsel %vm1339, %v2884, %v3030
    %v3931 = vsel %vm108, %v3930, %v3177
    %v3932 = vsel %vm1342, %v3931, %v3321
    %v3933 = vsel %vm1339, %v3465, %v3611
    %v3934 = vsel %vm108, %v3933, %v3758
    %v3935 = vsel %vm1342, %v3934, %v3902
    %v3936 = vsel %vm1339, %v3929, %v3785
    %v3937 = vsel %vm108, %v3936, %v3638
    %v3938 = vsel %vm1342, %v3937, %v3492
    %v3939 = vsel %vm1339, %v3348, %v3204
    %v3940 = vsel %vm108, %v3939, %v3057
    %v3941 = vsel %vm1342, %v3940, %v2911
    %3944 = vrot.lane.b32.xlu0 %v3932, 32
    %v3945 = vpop.permute.xlu0 %3944
    %3946 = vrot.lane.b32.xlu0 %v3935, 32
    %v3947 = vpop.permute.xlu0 %3946
    %3952 = vrot.lane.b32.xlu0 %v3938, 64
    %v3953 = vpop.permute.xlu0 %3952
    %3954 = vrot.lane.b32.xlu0 %v3941, 64
    %v3955 = vpop.permute.xlu0 %3954
    %v3958 = vsel %vm329, %v3945, %v3953
    %v3959 = vsel %vm329, %v3947, %v3955
    %s3960 = scalar_lea.vmem [#allocation3], 128
    %v3961 = vld [vmem:[%s3960] sm:$0xff]
    %v3962 = vld [vmem:[%s3960 + $0x8] sm:$0xff]
    %v3963 = vld [vmem:[%s3960 + $0x10] sm:$0xff]
    %v3964 = vld [vmem:[%s3960 + $0x18] sm:$0xff]
    %v3965 = vld [vmem:[%s3960 + $0x20] sm:$0xff]
    %v3966 = vld [vmem:[%s3960 + $0x28] sm:$0xff]
    %v3967 = vld [vmem:[%s3960 + $0x30] sm:$0xff]
    %v3968 = vld [vmem:[%s3960 + $0x38] sm:$0xff]
    %v3969 = vld [vmem:[%s3960 + $0x40] sm:$0xff]
    %v3970 = vld [vmem:[%s3960 + $0x48] sm:$0xff]
    %v3971 = vld [vmem:[%s3960 + $0x50] sm:$0xff]
    %v3972 = vld [vmem:[%s3960 + $0x58] sm:$0xff]
    %v3973 = vld [vmem:[%s3960 + $0x60] sm:$0xff]
    %v3974 = vld [vmem:[%s3960 + $0x68] sm:$0xff]
    %v3975 = vld [vmem:[%s3960 + $0x70] sm:$0xff]
    %v3976 = vld [vmem:[%s3960 + $0x78] sm:$0xff]
    %s3977 = scalar_lea.vmem [#allocation5], 128
    %v3978 = vld [vmem:[%s3977] sm:$0xff]
    %v3979 = vld [vmem:[%s3977 + $0x8] sm:$0xff]
    %v3980 = vld [vmem:[%s3977 + $0x10] sm:$0xff]
    %v3981 = vld [vmem:[%s3977 + $0x18] sm:$0xff]
    %v3982 = vld [vmem:[%s3977 + $0x20] sm:$0xff]
    %v3983 = vld [vmem:[%s3977 + $0x28] sm:$0xff]
    %v3984 = vld [vmem:[%s3977 + $0x30] sm:$0xff]
    %v3985 = vld [vmem:[%s3977 + $0x38] sm:$0xff]
    %v3986 = vld [vmem:[%s3977 + $0x40] sm:$0xff]
    %v3987 = vld [vmem:[%s3977 + $0x48] sm:$0xff]
    %v3988 = vld [vmem:[%s3977 + $0x50] sm:$0xff]
    %v3989 = vld [vmem:[%s3977 + $0x58] sm:$0xff]
    %v3990 = vld [vmem:[%s3977 + $0x60] sm:$0xff]
    %v3991 = vld [vmem:[%s3977 + $0x68] sm:$0xff]
    %v3992 = vld [vmem:[%s3977 + $0x70] sm:$0xff]
    %v3993 = vld [vmem:[%s3977 + $0x78] sm:$0xff]
    %s3994 = scalar_lea.vmem %s7, 2
    %v3995 = vld [vmem:[%s3994] sm:$0x3]
    %v3997 = vlaneseq
    %v3998 = vshrl.u32 %v3997, 7
    %v3999 = vsub.s32 0, %v3998
    %v4000 = vrot.slane %v3995, %v3999
    %v4001 = vlaneseq
    %v4002 = vshrl.u32 %v4001, 7
    %v4003 = vsub.s32 1, %v4002
    %v4004 = vrot.slane %v3995, %v4003
    %v4008 = vsel %vm192, %v3958, 0
    %v4011 = vsel %vm192, %v3959, 0
    %4013 = vmatprep.subr.mxu0 0.0
    %4014 = vmatpush1.msra.mxu0 0.0
    %4015 = vmatprep.subr.mxu0 0.0
    %4016 = vmatpush1.msra.mxu0 0.0
    %4017 = vmatprep.subr.mxu0 0.0
    %4018 = vmatpush1.msra.mxu0 0.0
    %4019 = vmatprep.subr.mxu0 0.0
    %4020 = vmatpush1.msra.mxu0 0.0
    %4021 = vmatprep.subr.mxu0 0.0
    %4022 = vmatpush1.msra.mxu0 0.0
    %4023 = vmatprep.subr.mxu0 0.0
    %4024 = vmatpush1.msra.mxu0 0.0
    %4025 = vmatprep.subr.mxu0 0.0
    %4026 = vmatpush1.msra.mxu0 0.0
    %4027 = vmatprep.subr.mxu0 0.0
    %4028 = vmatpush1.msra.mxu0 0.0
    %4029 = vmatprep.subr.mxu0 %v3976
    %4030 = vmatpush1.msra.mxu0 %v3975
    %4031 = vmatprep.subr.mxu0 %v3974
    %4032 = vmatpush1.msra.mxu0 %v3973
    %4033 = vmatprep.subr.mxu0 %v3972
    %4034 = vmatpush1.msra.mxu0 %v3971
    %4035 = vmatprep.subr.mxu0 %v3970
    %4036 = vmatpush1.msra.mxu0 %v3969
    %4037 = vmatprep.subr.mxu0 %v3968
    %4038 = vmatpush1.msra.mxu0 %v3967
    %4039 = vmatprep.subr.mxu0 %v3966
    %4040 = vmatpush1.msra.mxu0 %v3965
    %4041 = vmatprep.subr.mxu0 %v3964
    %4042 = vmatpush1.msra.mxu0 %v3963
    %4043 = vmatprep.subr.mxu0 %v3962
    %4044 = vmatpush1.msra.mxu0 %v3961
    %4045 = vmatprep.subr.mxu0 0.0
    %4046 = vmatpush2.msra.mxu0 0.0
    %4047 = vmatprep.subr.mxu0 0.0
    %4048 = vmatpush2.msra.mxu0 0.0
    %4049 = vmatprep.subr.mxu0 0.0
    %4050 = vmatpush2.msra.mxu0 0.0
    %4051 = vmatprep.subr.mxu0 0.0
    %4052 = vmatpush2.msra.mxu0 0.0
    %4053 = vmatprep.subr.mxu0 0.0
    %4054 = vmatpush2.msra.mxu0 0.0
    %4055 = vmatprep.subr.mxu0 0.0
    %4056 = vmatpush2.msra.mxu0 0.0
    %4057 = vmatprep.subr.mxu0 0.0
    %4058 = vmatpush2.msra.mxu0 0.0
    %4059 = vmatprep.subr.mxu0 0.0
    %4060 = vmatpush2.msra.mxu0 0.0
    %4061 = vmatprep.subr.mxu0 0.0
    %4062 = vmatpush2.msra.mxu0 0.0
    %4063 = vmatprep.subr.mxu0 0.0
    %4064 = vmatpush2.msra.mxu0 0.0
    %4065 = vmatprep.subr.mxu0 0.0
    %4066 = vmatpush2.msra.mxu0 0.0
    %4067 = vmatprep.subr.mxu0 0.0
    %4068 = vmatpush2.msra.mxu0 0.0
    %4069 = vmatprep.subr.mxu0 0.0
    %4070 = vmatpush2.msra.mxu0 0.0
    %4071 = vmatprep.subr.mxu0 0.0
    %4072 = vmatpush2.msra.mxu0 0.0
    %4073 = vmatprep.subr.mxu0 0.0
    %4074 = vmatpush2.msra.mxu0 0.0
    %4075 = vmatprep.subr.mxu0 0.0
    %4076 = vmatpush2.msra.mxu0 0.0
    %4077 = vmatprep.mubr.f32.mxu0 0.0
    %4078 = vmatmul.mubr.f32.gmra.mxu0 %v4008
    %v4079 = vpop.f32.mrf.mxu0
    %v4080 = vadd.f32 %v4000, %v4079
    %v4081 = vpop.f32.mrf.mxu0
    %v4082 = vadd.f32 %v4004, %v4081
    %4083 = vmatprep.mubr.f32.mxu0 0.0
    %4084 = vmatmul.mubr.f32.gmra.mxu0 %v4011
    %v4085 = vpop.f32.mrf.mxu0
    %v4086 = vadd.f32 %v4000, %v4085
    %v4087 = vpop.f32.mrf.mxu0
    %v4088 = vadd.f32 %v4004, %v4087
    %4089 = vdwg.mxu0
    %4091 = vrot.lane.b32.xlu0 %v2615, 32
    %v4092 = vpop.permute.xlu0 %4091
    %v4095 = vrot.slane %v2642, 2
    %4096 = vrot.lane.b32.xlu0 %v4095, 64
    %v4097 = vpop.permute.xlu0 %4096
    %v4099 = vsel %vm329, %v4092, %v4097
    %v4101 = vrot.slane %v4099, 6
    %v4102 = vsel %vm192, %v4101, 0
    %4104 = vmatprep.subr.mxu0 0.0
    %4105 = vmatpush1.msra.mxu0 0.0
    %4106 = vmatprep.subr.mxu0 0.0
    %4107 = vmatpush1.msra.mxu0 0.0
    %4108 = vmatprep.subr.mxu0 0.0
    %4109 = vmatpush1.msra.mxu0 0.0
    %4110 = vmatprep.subr.mxu0 0.0
    %4111 = vmatpush1.msra.mxu0 0.0
    %4112 = vmatprep.subr.mxu0 0.0
    %4113 = vmatpush1.msra.mxu0 0.0
    %4114 = vmatprep.subr.mxu0 0.0
    %4115 = vmatpush1.msra.mxu0 0.0
    %4116 = vmatprep.subr.mxu0 0.0
    %4117 = vmatpush1.msra.mxu0 0.0
    %4118 = vmatprep.subr.mxu0 0.0
    %4119 = vmatpush1.msra.mxu0 0.0
    %4120 = vmatprep.subr.mxu0 %v3993
    %4121 = vmatpush1.msra.mxu0 %v3992
    %4122 = vmatprep.subr.mxu0 %v3991
    %4123 = vmatpush1.msra.mxu0 %v3990
    %4124 = vmatprep.subr.mxu0 %v3989
    %4125 = vmatpush1.msra.mxu0 %v3988
    %4126 = vmatprep.subr.mxu0 %v3987
    %4127 = vmatpush1.msra.mxu0 %v3986
    %4128 = vmatprep.subr.mxu0 %v3985
    %4129 = vmatpush1.msra.mxu0 %v3984
    %4130 = vmatprep.subr.mxu0 %v3983
    %4131 = vmatpush1.msra.mxu0 %v3982
    %4132 = vmatprep.subr.mxu0 %v3981
    %4133 = vmatpush1.msra.mxu0 %v3980
    %4134 = vmatprep.subr.mxu0 %v3979
    %4135 = vmatpush1.msra.mxu0 %v3978
    %4136 = vmatprep.subr.mxu0 0.0
    %4137 = vmatpush2.msra.mxu0 0.0
    %4138 = vmatprep.subr.mxu0 0.0
    %4139 = vmatpush2.msra.mxu0 0.0
    %4140 = vmatprep.subr.mxu0 0.0
    %4141 = vmatpush2.msra.mxu0 0.0
    %4142 = vmatprep.subr.mxu0 0.0
    %4143 = vmatpush2.msra.mxu0 0.0
    %4144 = vmatprep.subr.mxu0 0.0
    %4145 = vmatpush2.msra.mxu0 0.0
    %4146 = vmatprep.subr.mxu0 0.0
    %4147 = vmatpush2.msra.mxu0 0.0
    %4148 = vmatprep.subr.mxu0 0.0
    %4149 = vmatpush2.msra.mxu0 0.0
    %4150 = vmatprep.subr.mxu0 0.0
    %4151 = vmatpush2.msra.mxu0 0.0
    %4152 = vmatprep.subr.mxu0 0.0
    %4153 = vmatpush2.msra.mxu0 0.0
    %4154 = vmatprep.subr.mxu0 0.0
    %4155 = vmatpush2.msra.mxu0 0.0
    %4156 = vmatprep.subr.mxu0 0.0
    %4157 = vmatpush2.msra.mxu0 0.0
    %4158 = vmatprep.subr.mxu0 0.0
    %4159 = vmatpush2.msra.mxu0 0.0
    %4160 = vmatprep.subr.mxu0 0.0
    %4161 = vmatpush2.msra.mxu0 0.0
    %4162 = vmatprep.subr.mxu0 0.0
    %4163 = vmatpush2.msra.mxu0 0.0
    %4164 = vmatprep.subr.mxu0 0.0
    %4165 = vmatpush2.msra.mxu0 0.0
    %4166 = vmatprep.subr.mxu0 0.0
    %4167 = vmatpush2.msra.mxu0 0.0
    %4168 = vmatprep.mubr.f32.mxu0 0.0
    %4169 = vmatmul.mubr.f32.gmra.mxu0 %v4102
    %v4170 = vpop.f32.mrf.mxu0
    %v4171 = vadd.f32 0.0, %v4170
    %v4172 = vpop.f32.mrf.mxu0
    %v4173 = vadd.f32 0.0, %v4172
    %4174 = vdwg.mxu0
    %v4175 = vadd.f32 %v4080, %v4171
    %v4177 = vrot.slane %v4173, 2
    %v4179 = vadd.f32 %v4088, %v4177
    %v4180 = vxor.u32 %v4175, 2147483648
    %v4181 = vmul.f32 %v4180, 1.442695
    %v4182 = vpow.pop %v4181
    %v4183 = vadd.f32 %v4182, 1.0
    %v4184 = vrcp.pop %v4183
    %v4185 = vmul.f32 1.0, %v4184
    %v4186 = vtanh.pop %v4175
    %v4188 = vrot.slane %v2609, 6
    %v4190 = vmul.f32 %v4185, %v4188
    %4192 = vrot.lane.b32.xlu0 %v4186, 64
    %v4193 = vpop.permute.xlu0 %4192
    %v4195 = vmul.f32 %v4185, %v4193
    %4197 = vrot.lane.b32.xlu0 %v4195, 32
    %v4198 = vpop.permute.xlu0 %4197
    %v4200 = vadd.f32 %v4190, %v4198
    %v4201 = vtanh.pop %v4200
    %4203 = vrot.lane.b32.xlu0 %v4201, 64
    %v4204 = vpop.permute.xlu0 %4203
    %v4206 = vmul.f32 %v4185, %v4204
    %v4207 = vxor.u32 %v4179, 2147483648
    %v4208 = vmul.f32 %v4207, 1.442695
    %v4209 = vpow.pop %v4208
    %v4210 = vadd.f32 %v4209, 1.0
    %v4211 = vrcp.pop %v4210
    %v4212 = vmul.f32 1.0, %v4211
    %v4213 = vtanh.pop %v4179
    %v4215 = vrot.slane %v2636, 2
    %v4217 = vmul.f32 %v4212, %v4215
    %4219 = vrot.lane.b32.xlu0 %v4213, 64
    %v4220 = vpop.permute.xlu0 %4219
    %v4222 = vmul.f32 %v4212, %v4220
    %4224 = vrot.lane.b32.xlu0 %v4222, 32
    %v4225 = vpop.permute.xlu0 %4224
    %v4227 = vadd.f32 %v4217, %v4225
    %v4228 = vtanh.pop %v4227
    %4230 = vrot.lane.b32.xlu0 %v4228, 64
    %v4231 = vpop.permute.xlu0 %4230
    %v4233 = vmul.f32 %v4212, %v4231
    %4235 = vrot.lane.b32.xlu0 %v4206, 32
    %v4236 = vpop.permute.xlu0 %4235
    %v4239 = vrot.slane %v4233, 6
    %4240 = vrot.lane.b32.xlu0 %v4239, 64
    %v4241 = vpop.permute.xlu0 %4240
    %v4243 = vsel %vm329, %v4236, %v4241
    %v4245 = vsel %vm192, %v4243, 0
    %4247 = vmatprep.subr.mxu0 0.0
    %4248 = vmatpush1.msra.mxu0 0.0
    %4249 = vmatprep.subr.mxu0 0.0
    %4250 = vmatpush1.msra.mxu0 0.0
    %4251 = vmatprep.subr.mxu0 0.0
    %4252 = vmatpush1.msra.mxu0 0.0
    %4253 = vmatprep.subr.mxu0 0.0
    %4254 = vmatpush1.msra.mxu0 0.0
    %4255 = vmatprep.subr.mxu0 0.0
    %4256 = vmatpush1.msra.mxu0 0.0
    %4257 = vmatprep.subr.mxu0 0.0
    %4258 = vmatpush1.msra.mxu0 0.0
    %4259 = vmatprep.subr.mxu0 0.0
    %4260 = vmatpush1.msra.mxu0 0.0
    %4261 = vmatprep.subr.mxu0 0.0
    %4262 = vmatpush1.msra.mxu0 0.0
    %4263 = vmatprep.subr.mxu0 %v3993
    %4264 = vmatpush1.msra.mxu0 %v3992
    %4265 = vmatprep.subr.mxu0 %v3991
    %4266 = vmatpush1.msra.mxu0 %v3990
    %4267 = vmatprep.subr.mxu0 %v3989
    %4268 = vmatpush1.msra.mxu0 %v3988
    %4269 = vmatprep.subr.mxu0 %v3987
    %4270 = vmatpush1.msra.mxu0 %v3986
    %4271 = vmatprep.subr.mxu0 %v3985
    %4272 = vmatpush1.msra.mxu0 %v3984
    %4273 = vmatprep.subr.mxu0 %v3983
    %4274 = vmatpush1.msra.mxu0 %v3982
    %4275 = vmatprep.subr.mxu0 %v3981
    %4276 = vmatpush1.msra.mxu0 %v3980
    %4277 = vmatprep.subr.mxu0 %v3979
    %4278 = vmatpush1.msra.mxu0 %v3978
    %4279 = vmatprep.subr.mxu0 0.0
    %4280 = vmatpush2.msra.mxu0 0.0
    %4281 = vmatprep.subr.mxu0 0.0
    %4282 = vmatpush2.msra.mxu0 0.0
    %4283 = vmatprep.subr.mxu0 0.0
    %4284 = vmatpush2.msra.mxu0 0.0
    %4285 = vmatprep.subr.mxu0 0.0
    %4286 = vmatpush2.msra.mxu0 0.0
    %4287 = vmatprep.subr.mxu0 0.0
    %4288 = vmatpush2.msra.mxu0 0.0
    %4289 = vmatprep.subr.mxu0 0.0
    %4290 = vmatpush2.msra.mxu0 0.0
    %4291 = vmatprep.subr.mxu0 0.0
    %4292 = vmatpush2.msra.mxu0 0.0
    %4293 = vmatprep.subr.mxu0 0.0
    %4294 = vmatpush2.msra.mxu0 0.0
    %4295 = vmatprep.subr.mxu0 0.0
    %4296 = vmatpush2.msra.mxu0 0.0
    %4297 = vmatprep.subr.mxu0 0.0
    %4298 = vmatpush2.msra.mxu0 0.0
    %4299 = vmatprep.subr.mxu0 0.0
    %4300 = vmatpush2.msra.mxu0 0.0
    %4301 = vmatprep.subr.mxu0 0.0
    %4302 = vmatpush2.msra.mxu0 0.0
    %4303 = vmatprep.subr.mxu0 0.0
    %4304 = vmatpush2.msra.mxu0 0.0
    %4305 = vmatprep.subr.mxu0 0.0
    %4306 = vmatpush2.msra.mxu0 0.0
    %4307 = vmatprep.subr.mxu0 0.0
    %4308 = vmatpush2.msra.mxu0 0.0
    %4309 = vmatprep.subr.mxu0 0.0
    %4310 = vmatpush2.msra.mxu0 0.0
    %4311 = vmatprep.mubr.f32.mxu0 0.0
    %4312 = vmatmul.mubr.f32.gmra.mxu0 %v4245
    %v4313 = vpop.f32.mrf.mxu0
    %v4314 = vadd.f32 0.0, %v4313
    %v4315 = vpop.f32.mrf.mxu0
    %v4316 = vadd.f32 0.0, %v4315
    %4317 = vdwg.mxu0
    %v4319 = vrot.slane %v4314, 6
    %v4321 = vadd.f32 %v4080, %v4319
    %v4323 = vrot.slane %v4316, 4
    %v4325 = vadd.f32 %v4088, %v4323
    %v4326 = vxor.u32 %v4321, 2147483648
    %v4327 = vmul.f32 %v4326, 1.442695
    %v4328 = vpow.pop %v4327
    %v4329 = vadd.f32 %v4328, 1.0
    %v4330 = vrcp.pop %v4329
    %v4331 = vmul.f32 1.0, %v4330
    %v4332 = vtanh.pop %v4321
    %v4334 = vrot.slane %v4200, 6
    %v4336 = vmul.f32 %v4331, %v4334
    %4338 = vrot.lane.b32.xlu0 %v4332, 64
    %v4339 = vpop.permute.xlu0 %4338
    %v4341 = vmul.f32 %v4331, %v4339
    %4343 = vrot.lane.b32.xlu0 %v4341, 32
    %v4344 = vpop.permute.xlu0 %4343
    %v4346 = vadd.f32 %v4336, %v4344
    %v4347 = vtanh.pop %v4346
    %4349 = vrot.lane.b32.xlu0 %v4347, 64
    %v4350 = vpop.permute.xlu0 %4349
    %v4352 = vmul.f32 %v4331, %v4350
    %v4353 = vxor.u32 %v4325, 2147483648
    %v4354 = vmul.f32 %v4353, 1.442695
    %v4355 = vpow.pop %v4354
    %v4356 = vadd.f32 %v4355, 1.0
    %v4357 = vrcp.pop %v4356
    %v4358 = vmul.f32 1.0, %v4357
    %v4359 = vtanh.pop %v4325
    %v4361 = vrot.slane %v4227, 2
    %v4363 = vmul.f32 %v4358, %v4361
    %4365 = vrot.lane.b32.xlu0 %v4359, 64
    %v4366 = vpop.permute.xlu0 %4365
    %v4368 = vmul.f32 %v4358, %v4366
    %4370 = vrot.lane.b32.xlu0 %v4368, 32
    %v4371 = vpop.permute.xlu0 %4370
    %v4373 = vadd.f32 %v4363, %v4371
    %v4374 = vtanh.pop %v4373
    %4376 = vrot.lane.b32.xlu0 %v4374, 64
    %v4377 = vpop.permute.xlu0 %4376
    %v4379 = vmul.f32 %v4358, %v4377
    %4381 = vrot.lane.b32.xlu0 %v4352, 32
    %v4382 = vpop.permute.xlu0 %4381
    %v4385 = vrot.slane %v4379, 2
    %4386 = vrot.lane.b32.xlu0 %v4385, 64
    %v4387 = vpop.permute.xlu0 %4386
    %v4389 = vsel %vm329, %v4382, %v4387
    %v4391 = vrot.slane %v4389, 2
    %v4392 = vsel %vm192, %v4391, 0
    %4394 = vmatprep.subr.mxu0 0.0
    %4395 = vmatpush1.msra.mxu0 0.0
    %4396 = vmatprep.subr.mxu0 0.0
    %4397 = vmatpush1.msra.mxu0 0.0
    %4398 = vmatprep.subr.mxu0 0.0
    %4399 = vmatpush1.msra.mxu0 0.0
    %4400 = vmatprep.subr.mxu0 0.0
    %4401 = vmatpush1.msra.mxu0 0.0
    %4402 = vmatprep.subr.mxu0 0.0
    %4403 = vmatpush1.msra.mxu0 0.0
    %4404 = vmatprep.subr.mxu0 0.0
    %4405 = vmatpush1.msra.mxu0 0.0
    %4406 = vmatprep.subr.mxu0 0.0
    %4407 = vmatpush1.msra.mxu0 0.0
    %4408 = vmatprep.subr.mxu0 0.0
    %4409 = vmatpush1.msra.mxu0 0.0
    %4410 = vmatprep.subr.mxu0 %v3993
    %4411 = vmatpush1.msra.mxu0 %v3992
    %4412 = vmatprep.subr.mxu0 %v3991
    %4413 = vmatpush1.msra.mxu0 %v3990
    %4414 = vmatprep.subr.mxu0 %v3989
    %4415 = vmatpush1.msra.mxu0 %v3988
    %4416 = vmatprep.subr.mxu0 %v3987
    %4417 = vmatpush1.msra.mxu0 %v3986
    %4418 = vmatprep.subr.mxu0 %v3985
    %4419 = vmatpush1.msra.mxu0 %v3984
    %4420 = vmatprep.subr.mxu0 %v3983
    %4421 = vmatpush1.msra.mxu0 %v3982
    %4422 = vmatprep.subr.mxu0 %v3981
    %4423 = vmatpush1.msra.mxu0 %v3980
    %4424 = vmatprep.subr.mxu0 %v3979
    %4425 = vmatpush1.msra.mxu0 %v3978
    %4426 = vmatprep.subr.mxu0 0.0
    %4427 = vmatpush2.msra.mxu0 0.0
    %4428 = vmatprep.subr.mxu0 0.0
    %4429 = vmatpush2.msra.mxu0 0.0
    %4430 = vmatprep.subr.mxu0 0.0
    %4431 = vmatpush2.msra.mxu0 0.0
    %4432 = vmatprep.subr.mxu0 0.0
    %4433 = vmatpush2.msra.mxu0 0.0
    %4434 = vmatprep.subr.mxu0 0.0
    %4435 = vmatpush2.msra.mxu0 0.0
    %4436 = vmatprep.subr.mxu0 0.0
    %4437 = vmatpush2.msra.mxu0 0.0
    %4438 = vmatprep.subr.mxu0 0.0
    %4439 = vmatpush2.msra.mxu0 0.0
    %4440 = vmatprep.subr.mxu0 0.0
    %4441 = vmatpush2.msra.mxu0 0.0
    %4442 = vmatprep.subr.mxu0 0.0
    %4443 = vmatpush2.msra.mxu0 0.0
    %4444 = vmatprep.subr.mxu0 0.0
    %4445 = vmatpush2.msra.mxu0 0.0
    %4446 = vmatprep.subr.mxu0 0.0
    %4447 = vmatpush2.msra.mxu0 0.0
    %4448 = vmatprep.subr.mxu0 0.0
    %4449 = vmatpush2.msra.mxu0 0.0
    %4450 = vmatprep.subr.mxu0 0.0
    %4451 = vmatpush2.msra.mxu0 0.0
    %4452 = vmatprep.subr.mxu0 0.0
    %4453 = vmatpush2.msra.mxu0 0.0
    %4454 = vmatprep.subr.mxu0 0.0
    %4455 = vmatpush2.msra.mxu0 0.0
    %4456 = vmatprep.subr.mxu0 0.0
    %4457 = vmatpush2.msra.mxu0 0.0
    %4458 = vmatprep.mubr.f32.mxu0 0.0
    %4459 = vmatmul.mubr.f32.gmra.mxu0 %v4392
    %v4460 = vpop.f32.mrf.mxu0
    %v4461 = vadd.f32 0.0, %v4460
    %v4462 = vpop.f32.mrf.mxu0
    %v4463 = vadd.f32 0.0, %v4462
    %4464 = vdwg.mxu0
    %v4466 = vrot.slane %v4461, 4
    %v4468 = vadd.f32 %v4080, %v4466
    %v4470 = vrot.slane %v4463, 6
    %v4472 = vadd.f32 %v4088, %v4470
    %v4473 = vxor.u32 %v4468, 2147483648
    %v4474 = vmul.f32 %v4473, 1.442695
    %v4475 = vpow.pop %v4474
    %v4476 = vadd.f32 %v4475, 1.0
    %v4477 = vrcp.pop %v4476
    %v4478 = vmul.f32 1.0, %v4477
    %v4479 = vtanh.pop %v4468
    %v4481 = vrot.slane %v4346, 6
    %v4483 = vmul.f32 %v4478, %v4481
    %4485 = vrot.lane.b32.xlu0 %v4479, 64
    %v4486 = vpop.permute.xlu0 %4485
    %v4488 = vmul.f32 %v4478, %v4486
    %4490 = vrot.lane.b32.xlu0 %v4488, 32
    %v4491 = vpop.permute.xlu0 %4490
    %v4493 = vadd.f32 %v4483, %v4491
    %v4494 = vtanh.pop %v4493
    %4496 = vrot.lane.b32.xlu0 %v4494, 64
    %v4497 = vpop.permute.xlu0 %4496
    %v4499 = vmul.f32 %v4478, %v4497
    %v4500 = vxor.u32 %v4472, 2147483648
    %v4501 = vmul.f32 %v4500, 1.442695
    %v4502 = vpow.pop %v4501
    %v4503 = vadd.f32 %v4502, 1.0
    %v4504 = vrcp.pop %v4503
    %v4505 = vmul.f32 1.0, %v4504
    %v4506 = vtanh.pop %v4472
    %v4508 = vrot.slane %v4373, 2
    %v4510 = vmul.f32 %v4505, %v4508
    %4512 = vrot.lane.b32.xlu0 %v4506, 64
    %v4513 = vpop.permute.xlu0 %4512
    %v4515 = vmul.f32 %v4505, %v4513
    %4517 = vrot.lane.b32.xlu0 %v4515, 32
    %v4518 = vpop.permute.xlu0 %4517
    %v4520 = vadd.f32 %v4510, %v4518
    %v4521 = vtanh.pop %v4520
    %4523 = vrot.lane.b32.xlu0 %v4521, 64
    %v4524 = vpop.permute.xlu0 %4523
    %v4526 = vmul.f32 %v4505, %v4524
    %4528 = vrot.lane.b32.xlu0 %v4499, 32
    %v4529 = vpop.permute.xlu0 %4528
    %v4532 = vrot.slane %v4526, 6
    %4533 = vrot.lane.b32.xlu0 %v4532, 64
    %v4534 = vpop.permute.xlu0 %4533
    %v4536 = vsel %vm329, %v4529, %v4534
    %v4538 = vrot.slane %v4536, 4
    %v4539 = vsel %vm192, %v4538, 0
    %4541 = vmatprep.subr.mxu0 0.0
    %4542 = vmatpush1.msra.mxu0 0.0
    %4543 = vmatprep.subr.mxu0 0.0
    %4544 = vmatpush1.msra.mxu0 0.0
    %4545 = vmatprep.subr.mxu0 0.0
    %4546 = vmatpush1.msra.mxu0 0.0
    %4547 = vmatprep.subr.mxu0 0.0
    %4548 = vmatpush1.msra.mxu0 0.0
    %4549 = vmatprep.subr.mxu0 0.0
    %4550 = vmatpush1.msra.mxu0 0.0
    %4551 = vmatprep.subr.mxu0 0.0
    %4552 = vmatpush1.msra.mxu0 0.0
    %4553 = vmatprep.subr.mxu0 0.0
    %4554 = vmatpush1.msra.mxu0 0.0
    %4555 = vmatprep.subr.mxu0 0.0
    %4556 = vmatpush1.msra.mxu0 0.0
    %4557 = vmatprep.subr.mxu0 %v3993
    %4558 = vmatpush1.msra.mxu0 %v3992
    %4559 = vmatprep.subr.mxu0 %v3991
    %4560 = vmatpush1.msra.mxu0 %v3990
    %4561 = vmatprep.subr.mxu0 %v3989
    %4562 = vmatpush1.msra.mxu0 %v3988
    %4563 = vmatprep.subr.mxu0 %v3987
    %4564 = vmatpush1.msra.mxu0 %v3986
    %4565 = vmatprep.subr.mxu0 %v3985
    %4566 = vmatpush1.msra.mxu0 %v3984
    %4567 = vmatprep.subr.mxu0 %v3983
    %4568 = vmatpush1.msra.mxu0 %v3982
    %4569 = vmatprep.subr.mxu0 %v3981
    %4570 = vmatpush1.msra.mxu0 %v3980
    %4571 = vmatprep.subr.mxu0 %v3979
    %4572 = vmatpush1.msra.mxu0 %v3978
    %4573 = vmatprep.subr.mxu0 0.0
    %4574 = vmatpush2.msra.mxu0 0.0
    %4575 = vmatprep.subr.mxu0 0.0
    %4576 = vmatpush2.msra.mxu0 0.0
    %4577 = vmatprep.subr.mxu0 0.0
    %4578 = vmatpush2.msra.mxu0 0.0
    %4579 = vmatprep.subr.mxu0 0.0
    %4580 = vmatpush2.msra.mxu0 0.0
    %4581 = vmatprep.subr.mxu0 0.0
    %4582 = vmatpush2.msra.mxu0 0.0
    %4583 = vmatprep.subr.mxu0 0.0
    %4584 = vmatpush2.msra.mxu0 0.0
    %4585 = vmatprep.subr.mxu0 0.0
    %4586 = vmatpush2.msra.mxu0 0.0
    %4587 = vmatprep.subr.mxu0 0.0
    %4588 = vmatpush2.msra.mxu0 0.0
    %4589 = vmatprep.subr.mxu0 0.0
    %4590 = vmatpush2.msra.mxu0 0.0
    %4591 = vmatprep.subr.mxu0 0.0
    %4592 = vmatpush2.msra.mxu0 0.0
    %4593 = vmatprep.subr.mxu0 0.0
    %4594 = vmatpush2.msra.mxu0 0.0
    %4595 = vmatprep.subr.mxu0 0.0
    %4596 = vmatpush2.msra.mxu0 0.0
    %4597 = vmatprep.subr.mxu0 0.0
    %4598 = vmatpush2.msra.mxu0 0.0
    %4599 = vmatprep.subr.mxu0 0.0
    %4600 = vmatpush2.msra.mxu0 0.0
    %4601 = vmatprep.subr.mxu0 0.0
    %4602 = vmatpush2.msra.mxu0 0.0
    %4603 = vmatprep.subr.mxu0 0.0
    %4604 = vmatpush2.msra.mxu0 0.0
    %4605 = vmatprep.mubr.f32.mxu0 0.0
    %4606 = vmatmul.mubr.f32.gmra.mxu0 %v4539
    %v4607 = vpop.f32.mrf.mxu0
    %v4608 = vadd.f32 0.0, %v4607
    %v4609 = vpop.f32.mrf.mxu0
    %v4610 = vadd.f32 0.0, %v4609
    %4611 = vdwg.mxu0
    %v4613 = vrot.slane %v4608, 2
    %v4615 = vadd.f32 %v4080, %v4613
    %v4616 = vadd.f32 %v4088, %v4610
    %v4617 = vxor.u32 %v4615, 2147483648
    %v4618 = vmul.f32 %v4617, 1.442695
    %v4619 = vpow.pop %v4618
    %v4620 = vadd.f32 %v4619, 1.0
    %v4621 = vrcp.pop %v4620
    %v4622 = vmul.f32 1.0, %v4621
    %v4623 = vtanh.pop %v4615
    %v4625 = vrot.slane %v4493, 6
    %v4627 = vmul.f32 %v4622, %v4625
    %4629 = vrot.lane.b32.xlu0 %v4623, 64
    %v4630 = vpop.permute.xlu0 %4629
    %v4632 = vmul.f32 %v4622, %v4630
    %4634 = vrot.lane.b32.xlu0 %v4632, 32
    %v4635 = vpop.permute.xlu0 %4634
    %v4637 = vadd.f32 %v4627, %v4635
    %v4638 = vtanh.pop %v4637
    %4640 = vrot.lane.b32.xlu0 %v4638, 64
    %v4641 = vpop.permute.xlu0 %4640
    %v4643 = vmul.f32 %v4622, %v4641
    %v4644 = vxor.u32 %v4616, 2147483648
    %v4645 = vmul.f32 %v4644, 1.442695
    %v4646 = vpow.pop %v4645
    %v4647 = vadd.f32 %v4646, 1.0
    %v4648 = vrcp.pop %v4647
    %v4649 = vmul.f32 1.0, %v4648
    %v4650 = vtanh.pop %v4616
    %v4652 = vrot.slane %v4520, 2
    %v4654 = vmul.f32 %v4649, %v4652
    %4656 = vrot.lane.b32.xlu0 %v4650, 64
    %v4657 = vpop.permute.xlu0 %4656
    %v4659 = vmul.f32 %v4649, %v4657
    %4661 = vrot.lane.b32.xlu0 %v4659, 32
    %v4662 = vpop.permute.xlu0 %4661
    %v4664 = vadd.f32 %v4654, %v4662
    %v4665 = vtanh.pop %v4664
    %4667 = vrot.lane.b32.xlu0 %v4665, 64
    %v4668 = vpop.permute.xlu0 %4667
    %v4670 = vmul.f32 %v4649, %v4668
    %4672 = vrot.lane.b32.xlu0 %v4643, 32
    %v4673 = vpop.permute.xlu0 %4672
    %v4676 = vrot.slane %v4670, 2
    %4677 = vrot.lane.b32.xlu0 %v4676, 64
    %v4678 = vpop.permute.xlu0 %4677
    %v4680 = vsel %vm329, %v4673, %v4678
    %v4682 = vrot.slane %v4680, 6
    %v4683 = vsel %vm192, %v4682, 0
    %4685 = vmatprep.subr.mxu0 0.0
    %4686 = vmatpush1.msra.mxu0 0.0
    %4687 = vmatprep.subr.mxu0 0.0
    %4688 = vmatpush1.msra.mxu0 0.0
    %4689 = vmatprep.subr.mxu0 0.0
    %4690 = vmatpush1.msra.mxu0 0.0
    %4691 = vmatprep.subr.mxu0 0.0
    %4692 = vmatpush1.msra.mxu0 0.0
    %4693 = vmatprep.subr.mxu0 0.0
    %4694 = vmatpush1.msra.mxu0 0.0
    %4695 = vmatprep.subr.mxu0 0.0
    %4696 = vmatpush1.msra.mxu0 0.0
    %4697 = vmatprep.subr.mxu0 0.0
    %4698 = vmatpush1.msra.mxu0 0.0
    %4699 = vmatprep.subr.mxu0 0.0
    %4700 = vmatpush1.msra.mxu0 0.0
    %4701 = vmatprep.subr.mxu0 %v3993
    %4702 = vmatpush1.msra.mxu0 %v3992
    %4703 = vmatprep.subr.mxu0 %v3991
    %4704 = vmatpush1.msra.mxu0 %v3990
    %4705 = vmatprep.subr.mxu0 %v3989
    %4706 = vmatpush1.msra.mxu0 %v3988
    %4707 = vmatprep.subr.mxu0 %v3987
    %4708 = vmatpush1.msra.mxu0 %v3986
    %4709 = vmatprep.subr.mxu0 %v3985
    %4710 = vmatpush1.msra.mxu0 %v3984
    %4711 = vmatprep.subr.mxu0 %v3983
    %4712 = vmatpush1.msra.mxu0 %v3982
    %4713 = vmatprep.subr.mxu0 %v3981
    %4714 = vmatpush1.msra.mxu0 %v3980
    %4715 = vmatprep.subr.mxu0 %v3979
    %4716 = vmatpush1.msra.mxu0 %v3978
    %4717 = vmatprep.subr.mxu0 0.0
    %4718 = vmatpush2.msra.mxu0 0.0
    %4719 = vmatprep.subr.mxu0 0.0
    %4720 = vmatpush2.msra.mxu0 0.0
    %4721 = vmatprep.subr.mxu0 0.0
    %4722 = vmatpush2.msra.mxu0 0.0
    %4723 = vmatprep.subr.mxu0 0.0
    %4724 = vmatpush2.msra.mxu0 0.0
    %4725 = vmatprep.subr.mxu0 0.0
    %4726 = vmatpush2.msra.mxu0 0.0
    %4727 = vmatprep.subr.mxu0 0.0
    %4728 = vmatpush2.msra.mxu0 0.0
    %4729 = vmatprep.subr.mxu0 0.0
    %4730 = vmatpush2.msra.mxu0 0.0
    %4731 = vmatprep.subr.mxu0 0.0
    %4732 = vmatpush2.msra.mxu0 0.0
    %4733 = vmatprep.subr.mxu0 0.0
    %4734 = vmatpush2.msra.mxu0 0.0
    %4735 = vmatprep.subr.mxu0 0.0
    %4736 = vmatpush2.msra.mxu0 0.0
    %4737 = vmatprep.subr.mxu0 0.0
    %4738 = vmatpush2.msra.mxu0 0.0
    %4739 = vmatprep.subr.mxu0 0.0
    %4740 = vmatpush2.msra.mxu0 0.0
    %4741 = vmatprep.subr.mxu0 0.0
    %4742 = vmatpush2.msra.mxu0 0.0
    %4743 = vmatprep.subr.mxu0 0.0
    %4744 = vmatpush2.msra.mxu0 0.0
    %4745 = vmatprep.subr.mxu0 0.0
    %4746 = vmatpush2.msra.mxu0 0.0
    %4747 = vmatprep.subr.mxu0 0.0
    %4748 = vmatpush2.msra.mxu0 0.0
    %4749 = vmatprep.mubr.f32.mxu0 0.0
    %4750 = vmatmul.mubr.f32.gmra.mxu0 %v4683
    %v4751 = vpop.f32.mrf.mxu0
    %v4752 = vadd.f32 0.0, %v4751
    %v4753 = vpop.f32.mrf.mxu0
    %v4754 = vadd.f32 0.0, %v4753
    %4755 = vdwg.mxu0
    %v4756 = vadd.f32 %v4086, %v4752
    %v4758 = vrot.slane %v4754, 2
    %v4760 = vadd.f32 %v4082, %v4758
    %v4761 = vxor.u32 %v4756, 2147483648
    %v4762 = vmul.f32 %v4761, 1.442695
    %v4763 = vpow.pop %v4762
    %v4764 = vadd.f32 %v4763, 1.0
    %v4765 = vrcp.pop %v4764
    %v4766 = vmul.f32 1.0, %v4765
    %v4767 = vtanh.pop %v4756
    %v4769 = vrot.slane %v4637, 6
    %v4771 = vmul.f32 %v4766, %v4769
    %4773 = vrot.lane.b32.xlu0 %v4767, 64
    %v4774 = vpop.permute.xlu0 %4773
    %v4776 = vmul.f32 %v4766, %v4774
    %4778 = vrot.lane.b32.xlu0 %v4776, 32
    %v4779 = vpop.permute.xlu0 %4778
    %v4781 = vadd.f32 %v4771, %v4779
    %v4782 = vtanh.pop %v4781
    %4784 = vrot.lane.b32.xlu0 %v4782, 64
    %v4785 = vpop.permute.xlu0 %4784
    %v4787 = vmul.f32 %v4766, %v4785
    %v4788 = vxor.u32 %v4760, 2147483648
    %v4789 = vmul.f32 %v4788, 1.442695
    %v4790 = vpow.pop %v4789
    %v4791 = vadd.f32 %v4790, 1.0
    %v4792 = vrcp.pop %v4791
    %v4793 = vmul.f32 1.0, %v4792
    %v4794 = vtanh.pop %v4760
    %v4796 = vrot.slane %v4664, 2
    %v4798 = vmul.f32 %v4793, %v4796
    %4800 = vrot.lane.b32.xlu0 %v4794, 64
    %v4801 = vpop.permute.xlu0 %4800
    %v4803 = vmul.f32 %v4793, %v4801
    %4805 = vrot.lane.b32.xlu0 %v4803, 32
    %v4806 = vpop.permute.xlu0 %4805
    %v4808 = vadd.f32 %v4798, %v4806
    %v4809 = vtanh.pop %v4808
    %4811 = vrot.lane.b32.xlu0 %v4809, 64
    %v4812 = vpop.permute.xlu0 %4811
    %v4814 = vmul.f32 %v4793, %v4812
    %4816 = vrot.lane.b32.xlu0 %v4787, 32
    %v4817 = vpop.permute.xlu0 %4816
    %v4820 = vrot.slane %v4814, 6
    %4821 = vrot.lane.b32.xlu0 %v4820, 64
    %v4822 = vpop.permute.xlu0 %4821
    %v4824 = vsel %vm329, %v4817, %v4822
    %v4826 = vsel %vm192, %v4824, 0
    %4828 = vmatprep.subr.mxu0 0.0
    %4829 = vmatpush1.msra.mxu0 0.0
    %4830 = vmatprep.subr.mxu0 0.0
    %4831 = vmatpush1.msra.mxu0 0.0
    %4832 = vmatprep.subr.mxu0 0.0
    %4833 = vmatpush1.msra.mxu0 0.0
    %4834 = vmatprep.subr.mxu0 0.0
    %4835 = vmatpush1.msra.mxu0 0.0
    %4836 = vmatprep.subr.mxu0 0.0
    %4837 = vmatpush1.msra.mxu0 0.0
    %4838 = vmatprep.subr.mxu0 0.0
    %4839 = vmatpush1.msra.mxu0 0.0
    %4840 = vmatprep.subr.mxu0 0.0
    %4841 = vmatpush1.msra.mxu0 0.0
    %4842 = vmatprep.subr.mxu0 0.0
    %4843 = vmatpush1.msra.mxu0 0.0
    %4844 = vmatprep.subr.mxu0 %v3993
    %4845 = vmatpush1.msra.mxu0 %v3992
    %4846 = vmatprep.subr.mxu0 %v3991
    %4847 = vmatpush1.msra.mxu0 %v3990
    %4848 = vmatprep.subr.mxu0 %v3989
    %4849 = vmatpush1.msra.mxu0 %v3988
    %4850 = vmatprep.subr.mxu0 %v3987
    %4851 = vmatpush1.msra.mxu0 %v3986
    %4852 = vmatprep.subr.mxu0 %v3985
    %4853 = vmatpush1.msra.mxu0 %v3984
    %4854 = vmatprep.subr.mxu0 %v3983
    %4855 = vmatpush1.msra.mxu0 %v3982
    %4856 = vmatprep.subr.mxu0 %v3981
    %4857 = vmatpush1.msra.mxu0 %v3980
    %4858 = vmatprep.subr.mxu0 %v3979
    %4859 = vmatpush1.msra.mxu0 %v3978
    %4860 = vmatprep.subr.mxu0 0.0
    %4861 = vmatpush2.msra.mxu0 0.0
    %4862 = vmatprep.subr.mxu0 0.0
    %4863 = vmatpush2.msra.mxu0 0.0
    %4864 = vmatprep.subr.mxu0 0.0
    %4865 = vmatpush2.msra.mxu0 0.0
    %4866 = vmatprep.subr.mxu0 0.0
    %4867 = vmatpush2.msra.mxu0 0.0
    %4868 = vmatprep.subr.mxu0 0.0
    %4869 = vmatpush2.msra.mxu0 0.0
    %4870 = vmatprep.subr.mxu0 0.0
    %4871 = vmatpush2.msra.mxu0 0.0
    %4872 = vmatprep.subr.mxu0 0.0
    %4873 = vmatpush2.msra.mxu0 0.0
    %4874 = vmatprep.subr.mxu0 0.0
    %4875 = vmatpush2.msra.mxu0 0.0
    %4876 = vmatprep.subr.mxu0 0.0
    %4877 = vmatpush2.msra.mxu0 0.0
    %4878 = vmatprep.subr.mxu0 0.0
    %4879 = vmatpush2.msra.mxu0 0.0
    %4880 = vmatprep.subr.mxu0 0.0
    %4881 = vmatpush2.msra.mxu0 0.0
    %4882 = vmatprep.subr.mxu0 0.0
    %4883 = vmatpush2.msra.mxu0 0.0
    %4884 = vmatprep.subr.mxu0 0.0
    %4885 = vmatpush2.msra.mxu0 0.0
    %4886 = vmatprep.subr.mxu0 0.0
    %4887 = vmatpush2.msra.mxu0 0.0
    %4888 = vmatprep.subr.mxu0 0.0
    %4889 = vmatpush2.msra.mxu0 0.0
    %4890 = vmatprep.subr.mxu0 0.0
    %4891 = vmatpush2.msra.mxu0 0.0
    %4892 = vmatprep.mubr.f32.mxu0 0.0
    %4893 = vmatmul.mubr.f32.gmra.mxu0 %v4826
    %v4894 = vpop.f32.mrf.mxu0
    %v4895 = vadd.f32 0.0, %v4894
    %v4896 = vpop.f32.mrf.mxu0
    %v4897 = vadd.f32 0.0, %v4896
    %4898 = vdwg.mxu0
    %v4900 = vrot.slane %v4895, 6
    %v4902 = vadd.f32 %v4086, %v4900
    %v4904 = vrot.slane %v4897, 4
    %v4906 = vadd.f32 %v4082, %v4904
    %v4907 = vxor.u32 %v4902, 2147483648
    %v4908 = vmul.f32 %v4907, 1.442695
    %v4909 = vpow.pop %v4908
    %v4910 = vadd.f32 %v4909, 1.0
    %v4911 = vrcp.pop %v4910
    %v4912 = vmul.f32 1.0, %v4911
    %v4913 = vtanh.pop %v4902
    %v4915 = vrot.slane %v4781, 6
    %v4917 = vmul.f32 %v4912, %v4915
    %4919 = vrot.lane.b32.xlu0 %v4913, 64
    %v4920 = vpop.permute.xlu0 %4919
    %v4922 = vmul.f32 %v4912, %v4920
    %4924 = vrot.lane.b32.xlu0 %v4922, 32
    %v4925 = vpop.permute.xlu0 %4924
    %v4927 = vadd.f32 %v4917, %v4925
    %v4928 = vtanh.pop %v4927
    %4930 = vrot.lane.b32.xlu0 %v4928, 64
    %v4931 = vpop.permute.xlu0 %4930
    %v4933 = vmul.f32 %v4912, %v4931
    %v4934 = vxor.u32 %v4906, 2147483648
    %v4935 = vmul.f32 %v4934, 1.442695
    %v4936 = vpow.pop %v4935
    %v4937 = vadd.f32 %v4936, 1.0
    %v4938 = vrcp.pop %v4937
    %v4939 = vmul.f32 1.0, %v4938
    %v4940 = vtanh.pop %v4906
    %v4942 = vrot.slane %v4808, 2
    %v4944 = vmul.f32 %v4939, %v4942
    %4946 = vrot.lane.b32.xlu0 %v4940, 64
    %v4947 = vpop.permute.xlu0 %4946
    %v4949 = vmul.f32 %v4939, %v4947
    %4951 = vrot.lane.b32.xlu0 %v4949, 32
    %v4952 = vpop.permute.xlu0 %4951
    %v4954 = vadd.f32 %v4944, %v4952
    %v4955 = vtanh.pop %v4954
    %4957 = vrot.lane.b32.xlu0 %v4955, 64
    %v4958 = vpop.permute.xlu0 %4957
    %v4960 = vmul.f32 %v4939, %v4958
    %4962 = vrot.lane.b32.xlu0 %v4933, 32
    %v4963 = vpop.permute.xlu0 %4962
    %v4966 = vrot.slane %v4960, 2
    %4967 = vrot.lane.b32.xlu0 %v4966, 64
    %v4968 = vpop.permute.xlu0 %4967
    %v4970 = vsel %vm329, %v4963, %v4968
    %v4972 = vrot.slane %v4970, 2
    %v4973 = vsel %vm192, %v4972, 0
    %4975 = vmatprep.subr.mxu0 0.0
    %4976 = vmatpush1.msra.mxu0 0.0
    %4977 = vmatprep.subr.mxu0 0.0
    %4978 = vmatpush1.msra.mxu0 0.0
    %4979 = vmatprep.subr.mxu0 0.0
    %4980 = vmatpush1.msra.mxu0 0.0
    %4981 = vmatprep.subr.mxu0 0.0
    %4982 = vmatpush1.msra.mxu0 0.0
    %4983 = vmatprep.subr.mxu0 0.0
    %4984 = vmatpush1.msra.mxu0 0.0
    %4985 = vmatprep.subr.mxu0 0.0
    %4986 = vmatpush1.msra.mxu0 0.0
    %4987 = vmatprep.subr.mxu0 0.0
    %4988 = vmatpush1.msra.mxu0 0.0
    %4989 = vmatprep.subr.mxu0 0.0
    %4990 = vmatpush1.msra.mxu0 0.0
    %4991 = vmatprep.subr.mxu0 %v3993
    %4992 = vmatpush1.msra.mxu0 %v3992
    %4993 = vmatprep.subr.mxu0 %v3991
    %4994 = vmatpush1.msra.mxu0 %v3990
    %4995 = vmatprep.subr.mxu0 %v3989
    %4996 = vmatpush1.msra.mxu0 %v3988
    %4997 = vmatprep.subr.mxu0 %v3987
    %4998 = vmatpush1.msra.mxu0 %v3986
    %4999 = vmatprep.subr.mxu0 %v3985
    %5000 = vmatpush1.msra.mxu0 %v3984
    %5001 = vmatprep.subr.mxu0 %v3983
    %5002 = vmatpush1.msra.mxu0 %v3982
    %5003 = vmatprep.subr.mxu0 %v3981
    %5004 = vmatpush1.msra.mxu0 %v3980
    %5005 = vmatprep.subr.mxu0 %v3979
    %5006 = vmatpush1.msra.mxu0 %v3978
    %5007 = vmatprep.subr.mxu0 0.0
    %5008 = vmatpush2.msra.mxu0 0.0
    %5009 = vmatprep.subr.mxu0 0.0
    %5010 = vmatpush2.msra.mxu0 0.0
    %5011 = vmatprep.subr.mxu0 0.0
    %5012 = vmatpush2.msra.mxu0 0.0
    %5013 = vmatprep.subr.mxu0 0.0
    %5014 = vmatpush2.msra.mxu0 0.0
    %5015 = vmatprep.subr.mxu0 0.0
    %5016 = vmatpush2.msra.mxu0 0.0
    %5017 = vmatprep.subr.mxu0 0.0
    %5018 = vmatpush2.msra.mxu0 0.0
    %5019 = vmatprep.subr.mxu0 0.0
    %5020 = vmatpush2.msra.mxu0 0.0
    %5021 = vmatprep.subr.mxu0 0.0
    %5022 = vmatpush2.msra.mxu0 0.0
    %5023 = vmatprep.subr.mxu0 0.0
    %5024 = vmatpush2.msra.mxu0 0.0
    %5025 = vmatprep.subr.mxu0 0.0
    %5026 = vmatpush2.msra.mxu0 0.0
    %5027 = vmatprep.subr.mxu0 0.0
    %5028 = vmatpush2.msra.mxu0 0.0
    %5029 = vmatprep.subr.mxu0 0.0
    %5030 = vmatpush2.msra.mxu0 0.0
    %5031 = vmatprep.subr.mxu0 0.0
    %5032 = vmatpush2.msra.mxu0 0.0
    %5033 = vmatprep.subr.mxu0 0.0
    %5034 = vmatpush2.msra.mxu0 0.0
    %5035 = vmatprep.subr.mxu0 0.0
    %5036 = vmatpush2.msra.mxu0 0.0
    %5037 = vmatprep.subr.mxu0 0.0
    %5038 = vmatpush2.msra.mxu0 0.0
    %5039 = vmatprep.mubr.f32.mxu0 0.0
    %5040 = vmatmul.mubr.f32.gmra.mxu0 %v4973
    %v5041 = vpop.f32.mrf.mxu0
    %v5042 = vadd.f32 0.0, %v5041
    %v5043 = vpop.f32.mrf.mxu0
    %v5044 = vadd.f32 0.0, %v5043
    %5045 = vdwg.mxu0
    %v5047 = vrot.slane %v5042, 4
    %v5049 = vadd.f32 %v4086, %v5047
    %v5051 = vrot.slane %v5044, 6
    %v5053 = vadd.f32 %v4082, %v5051
    %v5054 = vxor.u32 %v5049, 2147483648
    %v5055 = vmul.f32 %v5054, 1.442695
    %v5056 = vpow.pop %v5055
    %v5057 = vadd.f32 %v5056, 1.0
    %v5058 = vrcp.pop %v5057
    %v5059 = vmul.f32 1.0, %v5058
    %v5060 = vtanh.pop %v5049
    %v5062 = vrot.slane %v4927, 6
    %v5064 = vmul.f32 %v5059, %v5062
    %5066 = vrot.lane.b32.xlu0 %v5060, 64
    %v5067 = vpop.permute.xlu0 %5066
    %v5069 = vmul.f32 %v5059, %v5067
    %5071 = vrot.lane.b32.xlu0 %v5069, 32
    %v5072 = vpop.permute.xlu0 %5071
    %v5074 = vadd.f32 %v5064, %v5072
    %v5075 = vtanh.pop %v5074
    %5077 = vrot.lane.b32.xlu0 %v5075, 64
    %v5078 = vpop.permute.xlu0 %5077
    %v5080 = vmul.f32 %v5059, %v5078
    %v5081 = vxor.u32 %v5053, 2147483648
    %v5082 = vmul.f32 %v5081, 1.442695
    %v5083 = vpow.pop %v5082
    %v5084 = vadd.f32 %v5083, 1.0
    %v5085 = vrcp.pop %v5084
    %v5086 = vmul.f32 1.0, %v5085
    %v5087 = vtanh.pop %v5053
    %v5089 = vrot.slane %v4954, 2
    %v5091 = vmul.f32 %v5086, %v5089
    %5093 = vrot.lane.b32.xlu0 %v5087, 64
    %v5094 = vpop.permute.xlu0 %5093
    %v5096 = vmul.f32 %v5086, %v5094
    %5098 = vrot.lane.b32.xlu0 %v5096, 32
    %v5099 = vpop.permute.xlu0 %5098
    %v5101 = vadd.f32 %v5091, %v5099
    %v5102 = vtanh.pop %v5101
    %5104 = vrot.lane.b32.xlu0 %v5102, 64
    %v5105 = vpop.permute.xlu0 %5104
    %v5107 = vmul.f32 %v5086, %v5105
    %5109 = vrot.lane.b32.xlu0 %v5080, 32
    %v5110 = vpop.permute.xlu0 %5109
    %v5113 = vrot.slane %v5107, 6
    %5114 = vrot.lane.b32.xlu0 %v5113, 64
    %v5115 = vpop.permute.xlu0 %5114
    %v5117 = vsel %vm329, %v5110, %v5115
    %v5119 = vrot.slane %v5117, 4
    %v5120 = vsel %vm192, %v5119, 0
    %5122 = vmatprep.subr.mxu0 0.0
    %5123 = vmatpush1.msra.mxu0 0.0
    %5124 = vmatprep.subr.mxu0 0.0
    %5125 = vmatpush1.msra.mxu0 0.0
    %5126 = vmatprep.subr.mxu0 0.0
    %5127 = vmatpush1.msra.mxu0 0.0
    %5128 = vmatprep.subr.mxu0 0.0
    %5129 = vmatpush1.msra.mxu0 0.0
    %5130 = vmatprep.subr.mxu0 0.0
    %5131 = vmatpush1.msra.mxu0 0.0
    %5132 = vmatprep.subr.mxu0 0.0
    %5133 = vmatpush1.msra.mxu0 0.0
    %5134 = vmatprep.subr.mxu0 0.0
    %5135 = vmatpush1.msra.mxu0 0.0
    %5136 = vmatprep.subr.mxu0 0.0
    %5137 = vmatpush1.msra.mxu0 0.0
    %5138 = vmatprep.subr.mxu0 %v3993
    %5139 = vmatpush1.msra.mxu0 %v3992
    %5140 = vmatprep.subr.mxu0 %v3991
    %5141 = vmatpush1.msra.mxu0 %v3990
    %5142 = vmatprep.subr.mxu0 %v3989
    %5143 = vmatpush1.msra.mxu0 %v3988
    %5144 = vmatprep.subr.mxu0 %v3987
    %5145 = vmatpush1.msra.mxu0 %v3986
    %5146 = vmatprep.subr.mxu0 %v3985
    %5147 = vmatpush1.msra.mxu0 %v3984
    %5148 = vmatprep.subr.mxu0 %v3983
    %5149 = vmatpush1.msra.mxu0 %v3982
    %5150 = vmatprep.subr.mxu0 %v3981
    %5151 = vmatpush1.msra.mxu0 %v3980
    %5152 = vmatprep.subr.mxu0 %v3979
    %5153 = vmatpush1.msra.mxu0 %v3978
    %5154 = vmatprep.subr.mxu0 0.0
    %5155 = vmatpush2.msra.mxu0 0.0
    %5156 = vmatprep.subr.mxu0 0.0
    %5157 = vmatpush2.msra.mxu0 0.0
    %5158 = vmatprep.subr.mxu0 0.0
    %5159 = vmatpush2.msra.mxu0 0.0
    %5160 = vmatprep.subr.mxu0 0.0
    %5161 = vmatpush2.msra.mxu0 0.0
    %5162 = vmatprep.subr.mxu0 0.0
    %5163 = vmatpush2.msra.mxu0 0.0
    %5164 = vmatprep.subr.mxu0 0.0
    %5165 = vmatpush2.msra.mxu0 0.0
    %5166 = vmatprep.subr.mxu0 0.0
    %5167 = vmatpush2.msra.mxu0 0.0
    %5168 = vmatprep.subr.mxu0 0.0
    %5169 = vmatpush2.msra.mxu0 0.0
    %5170 = vmatprep.subr.mxu0 0.0
    %5171 = vmatpush2.msra.mxu0 0.0
    %5172 = vmatprep.subr.mxu0 0.0
    %5173 = vmatpush2.msra.mxu0 0.0
    %5174 = vmatprep.subr.mxu0 0.0
    %5175 = vmatpush2.msra.mxu0 0.0
    %5176 = vmatprep.subr.mxu0 0.0
    %5177 = vmatpush2.msra.mxu0 0.0
    %5178 = vmatprep.subr.mxu0 0.0
    %5179 = vmatpush2.msra.mxu0 0.0
    %5180 = vmatprep.subr.mxu0 0.0
    %5181 = vmatpush2.msra.mxu0 0.0
    %5182 = vmatprep.subr.mxu0 0.0
    %5183 = vmatpush2.msra.mxu0 0.0
    %5184 = vmatprep.subr.mxu0 0.0
    %5185 = vmatpush2.msra.mxu0 0.0
    %5186 = vmatprep.mubr.f32.mxu0 0.0
    %5187 = vmatmul.mubr.f32.gmra.mxu0 %v5120
    %v5188 = vpop.f32.mrf.mxu0
    %v5189 = vadd.f32 0.0, %v5188
    %v5190 = vpop.f32.mrf.mxu0
    %v5191 = vadd.f32 0.0, %v5190
    %5192 = vdwg.mxu0
    %v5194 = vrot.slane %v5189, 2
    %v5196 = vadd.f32 %v4086, %v5194
    %v5197 = vadd.f32 %v4082, %v5191
    %v5198 = vxor.u32 %v5196, 2147483648
    %v5199 = vmul.f32 %v5198, 1.442695
    %v5200 = vpow.pop %v5199
    %v5201 = vadd.f32 %v5200, 1.0
    %v5202 = vrcp.pop %v5201
    %v5203 = vmul.f32 1.0, %v5202
    %v5204 = vtanh.pop %v5196
    %v5206 = vrot.slane %v5074, 6
    %v5208 = vmul.f32 %v5203, %v5206
    %5210 = vrot.lane.b32.xlu0 %v5204, 64
    %v5211 = vpop.permute.xlu0 %5210
    %v5213 = vmul.f32 %v5203, %v5211
    %5215 = vrot.lane.b32.xlu0 %v5213, 32
    %v5216 = vpop.permute.xlu0 %5215
    %v5218 = vadd.f32 %v5208, %v5216
    %v5219 = vtanh.pop %v5218
    %5221 = vrot.lane.b32.xlu0 %v5219, 64
    %v5222 = vpop.permute.xlu0 %5221
    %v5224 = vmul.f32 %v5203, %v5222
    %v5225 = vxor.u32 %v5197, 2147483648
    %v5226 = vmul.f32 %v5225, 1.442695
    %v5227 = vpow.pop %v5226
    %v5228 = vadd.f32 %v5227, 1.0
    %v5229 = vrcp.pop %v5228
    %v5230 = vmul.f32 1.0, %v5229
    %v5231 = vtanh.pop %v5197
    %v5233 = vrot.slane %v5101, 2
    %v5235 = vmul.f32 %v5230, %v5233
    %5237 = vrot.lane.b32.xlu0 %v5231, 64
    %v5238 = vpop.permute.xlu0 %5237
    %v5240 = vmul.f32 %v5230, %v5238
    %5242 = vrot.lane.b32.xlu0 %v5240, 32
    %v5243 = vpop.permute.xlu0 %5242
    %v5245 = vadd.f32 %v5235, %v5243
    %v5246 = vtanh.pop %v5245
    %5248 = vrot.lane.b32.xlu0 %v5246, 64
    %v5249 = vpop.permute.xlu0 %5248
    %v5251 = vmul.f32 %v5230, %v5249
    %v5252 = vsel %vm1339, %v4206, %v4352
    %v5253 = vsel %vm108, %v5252, %v4499
    %v5254 = vsel %vm1342, %v5253, %v4643
    %v5255 = vsel %vm1339, %v4787, %v4933
    %v5256 = vsel %vm108, %v5255, %v5080
    %v5257 = vsel %vm1342, %v5256, %v5224
    %v5258 = vsel %vm1339, %v5251, %v5107
    %v5259 = vsel %vm108, %v5258, %v4960
    %v5260 = vsel %vm1342, %v5259, %v4814
    %v5261 = vsel %vm1339, %v4670, %v4526
    %v5262 = vsel %vm108, %v5261, %v4379
    %v5263 = vsel %vm1342, %v5262, %v4233
    %5266 = vrot.lane.b32.xlu0 %v5254, 32
    %v5267 = vpop.permute.xlu0 %5266
    %5268 = vrot.lane.b32.xlu0 %v5257, 32
    %v5269 = vpop.permute.xlu0 %5268
    %5274 = vrot.lane.b32.xlu0 %v5260, 64
    %v5275 = vpop.permute.xlu0 %5274
    %5276 = vrot.lane.b32.xlu0 %v5263, 64
    %v5277 = vpop.permute.xlu0 %5276
    %v5280 = vsel %vm329, %v5267, %v5275
    %v5281 = vsel %vm329, %v5269, %v5277
    %v5282 = vld [vmem:[%s8] sm:$0x1]
    %v5284 = vlaneseq
    %v5285 = vshrl.u32 %v5284, 7
    %v5286 = vsub.s32 0, %v5285
    %v5287 = vrot.slane %v5282, %v5286
    %v5289 = vmul.f32 %v5280, %v5287
    %v5290 = vmul.f32 %v5281, %v5287
    %v5291 = vsel %vm192, %v5289, 0.0
    %5292 = vadd.xlane.f32.xlu0 %v5291
    %v5293 = vpop.xlane.xlu0 %5292
    %v5294 = vsel %vm192, %v5290, 0.0
    %5295 = vadd.xlane.f32.xlu0 %v5294
    %v5296 = vpop.xlane.xlu0 %5295
    %v5297 = vld [vmem:[#allocation2] sm:$0x1]
    %v5299 = vlaneseq
    %v5300 = vshrl.u32 %v5299, 7
    %v5301 = vsub.s32 0, %v5300
    %v5302 = vrot.slane %v5297, %v5301
    %v5304 = vadd.f32 %v5293, %v5302
    %v5305 = vadd.f32 %v5296, %v5302
    %vm5306 = vcmask 7168
    %5307 = vst.msk [vmem:[%s10] sm:$0xff] %vm5306, %v5304
    %5308 = vst.msk [vmem:[%s10 + $0x8] sm:$0xff] %vm5306, %v5305
    // Predicated region
    $region50: #{forward.1} parent=1 // pred_check
      _
    $region51: #{forward.1} parent=1 // pred_check_branch
      %5310 = sbr.rel (0) target = $region53
    $region52: #{forward.1} parent=1 // pred_region
      _
    $region53: #{forward.1} parent=1 // pred_fallthru
      _
    // Predicated region
    $region54: #{forward.1} parent=1 // pred_check
      _
    $region55: #{forward.1} parent=1 // pred_check_branch
      %5312 = sbr.rel (0) target = $region57
    $region56: #{forward.1} parent=1 // pred_region
      _
    $region57: #{forward.1} parent=1 // pred_fallthru
      _
    %5313 = vsyncpa [#allocation4], 1
    %5314 = vsyncpa [#allocation6], 1

</llo_original>
